<compile_context>
chip_gen: v6e
topology: v6e:2x2x1
jax: 0.10.0
libtpu: 0.0.40
codegen_flags: <defaults>
</compile_context>

<pallas_src>
import functools

import jax
import jax.numpy as jnp
from jax import lax
from jax.experimental import pallas as pl
from jax.experimental.pallas import tpu as pltpu

EPS = 1e-8      # gvp._norm_no_nan eps
LN_EPS = 1e-5   # torch.nn.LayerNorm default eps

# model dims (from the PyTorch module)
IN_S, IN_V = 32, 3
NODE_S, NODE_V = 256, 3
EDGE_S, EDGE_V = 32, 1
LATENT = 250
N_TOKENS = 20

_ROW_TILE = 512                      # row tile (nodes / edges) for realistic graphs
_CPARAMS = pltpu.CompilerParams(
    dimension_semantics=("parallel",),          # row tiles are independent -> 2 TCs on v7x
    vmem_limit_bytes=48 * 1024 * 1024)          # explicit, safe on v7x's 64 MiB VMEM


def _round_up(x, m):
    return (x + m - 1) // m * m


# --------------------------- in-kernel helpers -------------------------------

def _dot_bf16(a, b):
    """bf16 MXU matmul with f32 accumulation. Weights are pre-cast to bf16 in
    the wrapper, so only the activation operand is cast here."""
    return jnp.dot(a.astype(jnp.bfloat16), b, preferred_element_type=jnp.float32)


def _gvp_tail(s_lin, vh, t, wsn_ref, bs_ref, wv_ref, scalar_act, vector_act):
    """GVP epilogue (vector_gate=False) given s_lin = s @ Wss and vh = v @ Wh.

    xyz components are stacked along the sublane (row) axis so the tiny-K
    vector matmuls issue once instead of three times.
    """
    vhx, vhy, vhz = vh[:t], vh[t:2 * t], vh[2 * t:]
    # ||vh|| over xyz, clamped as in gvp._norm_no_nan
    vn = jnp.sqrt(jnp.maximum(vhx * vhx + vhy * vhy + vhz * vhz, EPS))
    s_out = s_lin + _dot_bf16(vn, wsn_ref[...]) + bs_ref[...]
    vo = _dot_bf16(vh, wv_ref[...])                                   # (3T, vo)
    ox, oy, oz = vo[:t], vo[t:2 * t], vo[2 * t:]
    if vector_act:  # v = v * sigmoid(||v||)  (reciprocal on the EUP)
        vnorm = jnp.sqrt(jnp.maximum(ox * ox + oy * oy + oz * oz, EPS))
        gate = pl.reciprocal(1.0 + jnp.exp(-vnorm), approx=True)
        ox, oy, oz = ox * gate, oy * gate, oz * gate
    if scalar_act:  # relu
        s_out = jnp.maximum(s_out, 0.0)
    return s_out, ox, oy, oz


def _gvp_compute(s, vx, vy, vz, wh_ref, wss_ref, wsn_ref, bs_ref, wv_ref,
                 scalar_act, vector_act):
    """One full Geometric Vector Perceptron on in-register values."""
    t = s.shape[0]
    v_stack = jnp.concatenate([vx, vy, vz], axis=0)                   # (3T, vi)
    vh = _dot_bf16(v_stack, wh_ref[...])                              # (3T, h)
    s_lin = _dot_bf16(s, wss_ref[...])
    return _gvp_tail(s_lin, vh, t, wsn_ref, bs_ref, wv_ref, scalar_act, vector_act)


def _ln_compute(s, vx, vy, vz, gamma, beta):
    """gvp.LayerNorm: torch LayerNorm on scalars + RMS-normalized vectors."""
    mean = jnp.mean(s, axis=-1, keepdims=True)
    cent = s - mean
    var = jnp.mean(cent * cent, axis=-1, keepdims=True)
    s_out = cent * lax.rsqrt(var + LN_EPS) * gamma + beta
    sq = jnp.maximum(vx * vx + vy * vy + vz * vz, EPS)
    inv = lax.rsqrt(jnp.mean(sq, axis=-1, keepdims=True))
    return s_out, vx * inv, vy * inv, vz * inv


def _split_slab(x, s_dim, v_dim):
    return (x[:, :s_dim],
            x[:, s_dim:s_dim + v_dim],
            x[:, s_dim + v_dim:s_dim + 2 * v_dim],
            x[:, s_dim + 2 * v_dim:s_dim + 3 * v_dim])


# ------------------------------ Pallas kernels --------------------------------

def _message_kernel(src_ref, dst_ref, edge_ref,
                    whj0, whe0, whi0, wssj0, wsse0, wssi0, wsn0, bs0, wv0,
                    wh1, wss1, wsn1, bs1, wv1,
                    wh2, wss2, wsn2, bs2, wv2,
                    out_ref, *, si, vi, se, ve):
    """Fused GVPConv message function: 3 chained GVPs per edge tile.

    The first GVP's weights are column-split over the [src | edge | dst]
    concatenation in the wrapper, so the kernel issues three lane-aligned dots
    instead of building a 544-lane unaligned concat.
    """
    t = src_ref.shape[0]
    sj, vjx, vjy, vjz = _split_slab(src_ref[...], si, vi)     # source node (j)
    s_i, vix, viy, viz = _split_slab(dst_ref[...], si, vi)    # target node (i)
    es, evx, evy, evz = _split_slab(edge_ref[...], se, ve)

    # ---- GVP 0 (split dots, no wide concat) ----
    vj_st = jnp.concatenate([vjx, vjy, vjz], axis=0)          # (3T, vi)
    ev_st = jnp.concatenate([evx, evy, evz], axis=0)          # (3T, ve)
    vi_st = jnp.concatenate([vix, viy, viz], axis=0)          # (3T, vi)
    vh = _dot_bf16(vj_st, whj0[...]) + _dot_bf16(vi_st, whi0[...])
    if ve == 1:   # K=1: broadcast-FMA on the VPU instead of a degenerate MXU dot
        vh = vh + ev_st * whe0[...].astype(jnp.float32)
    else:
        vh = vh + _dot_bf16(ev_st, whe0[...])
    s_lin = (_dot_bf16(sj, wssj0[...]) + _dot_bf16(es, wsse0[...])
             + _dot_bf16(s_i, wssi0[...]))
    s, vx, vy, vz = _gvp_tail(s_lin, vh, t, wsn0, bs0, wv0, True, True)

    # ---- GVP 1, 2 ----
    s, vx, vy, vz = _gvp_compute(s, vx, vy, vz, wh1, wss1, wsn1, bs1, wv1, True, True)
    s, vx, vy, vz = _gvp_compute(s, vx, vy, vz, wh2, wss2, wsn2, bs2, wv2, False, False)

    out_ref[...] = jnp.concatenate([s, vx, vy, vz], axis=1)   # slab store


def _ln_kernel(*refs, sd, vd, residual):
    """(optional residual add) + gvp.LayerNorm, slab in / slab out."""
    if residual:
        x_ref, dh_ref, g_ref, b_ref, out_ref = refs
        x = x_ref[...] + dh_ref[...]
    else:
        x_ref, g_ref, b_ref, out_ref = refs
        x = x_ref[...]
    s, vx, vy, vz = _split_slab(x, sd, vd)
    s, vx, vy, vz = _ln_compute(s, vx, vy, vz, g_ref[...], b_ref[...])
    out_ref[...] = jnp.concatenate([s, vx, vy, vz], axis=1)


def _ff_kernel(x_ref,
               wh0, wss0, wsn0, bs0, wv0,
               wh1, wss1, wsn1, bs1, wv1,
               g1, b1, g2, b2, out_ref, *, sd, vd):
    """GVPConvLayer feed-forward (2 GVPs) + residual + norm1 + fused shared LayerNorm."""
    x = x_ref[...]
    s, vx, vy, vz = _split_slab(x, sd, vd)
    fs, fx, fy, fz = _gvp_compute(s, vx, vy, vz, wh0, wss0, wsn0, bs0, wv0, True, True)
    fs, fx, fy, fz = _gvp_compute(fs, fx, fy, fz, wh1, wss1, wsn1, bs1, wv1, False, False)
    s2, x2, y2, z2 = _ln_compute(s + fs, vx + fx, vy + fy, vz + fz, g1[...], b1[...])
    s2, x2, y2, z2 = _ln_compute(s2, x2, y2, z2, g2[...], b2[...])   # shared outer LayerNorm
    out_ref[...] = jnp.concatenate([s2, x2, y2, z2], axis=1)


# ------------------------------ kernel wrappers --------------------------------

def _pick_tile(rows):
    """Largest row tile <= _ROW_TILE, with >=2 grid steps when possible so the
    'parallel' grid axis can shard across both TensorCores on v7x."""
    tile = min(_ROW_TILE, _round_up(max(1, -(-rows // 2)), 8))
    if tile >= rows:
        tile = rows
    return tile


def _row_call(kernel, row_inputs, const_inputs, rows, out_width):
    """Row-tiled pallas_call: grid over the row axis, weights VMEM-resident."""
    tile = _pick_tile(rows)
    grid = (pl.cdiv(rows, tile),)
    in_specs = ([pl.BlockSpec((tile, a.shape[1]), lambda i: (i, 0)) for a in row_inputs]
                + [pl.BlockSpec(w.shape, lambda i: (0, 0)) for w in const_inputs])
    return pl.pallas_call(
        kernel,
        grid=grid,
        in_specs=in_specs,
        out_specs=pl.BlockSpec((tile, out_width), lambda i: (i, 0)),
        out_shape=jax.ShapeDtypeStruct((rows, out_width), jnp.float32),
        compiler_params=_CPARAMS,
    )(*row_inputs, *const_inputs)


_GVP_KEYS = ("wh", "wss", "wsn", "bs", "wv")


def message_forward(src_slab, dst_slab, edge_slab, msg_params, si, vi, se, ve):
    p0, p1, p2 = msg_params
    so = p2["wss"].shape[1]
    vo = p2["wv"].shape[1]
    # split GVP0 weights over the [src | edge | dst] concat (wrapper-side, free)
    wh0, wss0 = p0["wh"], p0["wss"]
    weights = [
        wh0[:vi], wh0[vi:vi + ve], wh0[vi + ve:],
        wss0[:si], wss0[si:si + se], wss0[si + se:],
        p0["wsn"], p0["bs"], p0["wv"],
        p1["wh"], p1["wss"], p1["wsn"], p1["bs"], p1["wv"],
        p2["wh"], p2["wss"], p2["wsn"], p2["bs"], p2["wv"],
    ]
    kern = functools.partial(_message_kernel, si=si, vi=vi, se=se, ve=ve)
    return _row_call(kern, [src_slab, dst_slab, edge_slab], weights,
                     src_slab.shape[0], so + 3 * vo)


def layer_norm(h, ln, sd, vd, dh=None):
    kern = functools.partial(_ln_kernel, sd=sd, vd=vd, residual=dh is not None)
    row_inputs = [h] if dh is None else [h, dh]
    return _row_call(kern, row_inputs, [ln["gamma"], ln["beta"]], h.shape[0], h.shape[1])


def ff_norm(h, ff_params, norm1, shared_ln, sd, vd):
    weights = [p[k] for p in ff_params for k in _GVP_KEYS]
    weights += [norm1["gamma"], norm1["beta"], shared_ln["gamma"], shared_ln["beta"]]
    kern = functools.partial(_ff_kernel, sd=sd, vd=vd)
    return _row_call(kern, [h], weights, h.shape[0], h.shape[1])


def latent_linear(hid, w, b):
    # (num_graphs, 256) x (256, 250): too small for a Pallas launch -> plain XLA dot.
    return jnp.dot(hid, w, preferred_element_type=jnp.float32) + b


# ------------------------------ JAX glue --------------------------------------

def pack_slab(s, v):
    """(R, sd) scalars + (R, vd, 3) vectors -> (R, sd + 3*vd) lane-dense slab."""
    return jnp.concatenate([s, v[..., 0], v[..., 1], v[..., 2]], axis=-1)


def segment_mean(values, seg, num_segments):
    """Index-based scatter mean (PyG 'mean' aggregation semantics)."""
    w = values.shape[1]
    sums = jnp.zeros((num_segments, w), values.dtype).at[seg].add(values)
    cnt = jnp.zeros((num_segments, 1), values.dtype).at[seg].add(1.0)
    return sums / jnp.maximum(cnt, 1.0)


def gvp_conv_forward(h, edge_slab, src, dst, msg_params, si, vi, se, ve):
    """GVPConv with aggr='mean' (messages fused in one kernel, mean in glue)."""
    # TODO(synk): fuse the h[src]/h[dst] gathers and the dst segment-mean into
    #             the message kernel (scalar-prefetched indices + VMEM accumulator).
    msg = message_forward(h[src], h[dst], edge_slab, msg_params, si, vi, se, ve)
    return segment_mean(msg, dst, h.shape[0])


def gvp_conv_layer_forward(h, edge_slab, src, dst, p, shared_ln, sd, vd, se, ve):
    """GVPConvLayer (n_message=3, n_feedforward=2, eval dropout) + shared LayerNorm."""
    dh = gvp_conv_forward(h, edge_slab, src, dst, p["msg"], sd, vd, se, ve)
    h = layer_norm(h, p["norm0"], sd, vd, dh=dh)              # residual + norm0 fused
    h = ff_norm(h, p["ff"], p["norm1"], shared_ln, sd, vd)    # FF + residual + norm1 + shared LN
    return h


def pocket_encoder_forward(params, tokens, node_v, edge_index, edge_s, edge_v,
                           batch_idx, num_graphs):
    src, dst = edge_index[0], edge_index[1]
    node_s = params["token_emb"][tokens]                      # (N, 32)
    h = pack_slab(node_s, node_v)                             # (N, 32 + 9)
    e_slab = pack_slab(edge_s, edge_v)                        # (E, 32 + 3)

    h = gvp_conv_forward(h, e_slab, src, dst, params["conv0_msg"],
                         IN_S, IN_V, EDGE_S, EDGE_V)
    h = layer_norm(h, params["shared_ln"], NODE_S, NODE_V)

    h = gvp_conv_layer_forward(h, e_slab, src, dst, params["conv1"],
                               params["shared_ln"], NODE_S, NODE_V, EDGE_S, EDGE_V)
    h = gvp_conv_layer_forward(h, e_slab, src, dst, params["conv2"],
                               params["shared_ln"], NODE_S, NODE_V, EDGE_S, EDGE_V)

    hid = segment_mean(h[:, :NODE_S], batch_idx, num_graphs)  # graph-mean pooling
    return latent_linear(hid, params["latent_w"], params["latent_b"])


# ------------------------------ parameter setup --------------------------------

def _init(key, shape):
    fan_in = shape[0]
    return jax.random.normal(key, shape, jnp.float32) / jnp.sqrt(float(fan_in))


def make_gvp_params(key, si, vi, so, vo):
    h = max(vi, vo)
    k = jax.random.split(key, 5)
    bf = jnp.bfloat16
    return dict(
        wh=_init(k[0], (vi, h)).astype(bf),        # Linear(vi -> h), no bias
        wss=_init(k[1], (si, so)).astype(bf),      # ws[:, :si]
        wsn=_init(k[2], (h, so)).astype(bf),       # ws[:, si:]
        bs=_init(k[3], (1, so)) * 0.1,             # ws bias (f32, post-accumulation add)
        wv=_init(k[4], (h, vo)).astype(bf),        # Linear(h -> vo), no bias
    )


def make_layernorm_params(s_dim):
    return dict(gamma=jnp.ones((1, s_dim), jnp.float32),
                beta=jnp.zeros((1, s_dim), jnp.float32))


def make_message_params(key, node_si, node_vi, so, vo, se, ve):
    si_in, vi_in = 2 * node_si + se, 2 * node_vi + ve
    k = jax.random.split(key, 3)
    return [make_gvp_params(k[0], si_in, vi_in, so, vo),
            make_gvp_params(k[1], so, vo, so, vo),
            make_gvp_params(k[2], so, vo, so, vo)]


def make_conv_layer_params(key, s_dim, v_dim, se, ve):
    k = jax.random.split(key, 3)
    return dict(
        msg=make_message_params(k[0], s_dim, v_dim, s_dim, v_dim, se, ve),
        ff=[make_gvp_params(k[1], s_dim, v_dim, 4 * s_dim, 2 * v_dim),
            make_gvp_params(k[2], 4 * s_dim, 2 * v_dim, s_dim, v_dim)],
        norm0=make_layernorm_params(s_dim),
        norm1=make_layernorm_params(s_dim),
    )


# ------------------------------------ main -------------------------------------

if __name__ == "__main__":
    N, E, B = 16, 32, 2                   # nodes, edges, graphs

    key = jax.random.PRNGKey(0)
    keys = jax.random.split(key, 12)

    params = dict(
        token_emb=jax.random.normal(keys[0], (N_TOKENS, IN_S), jnp.float32) * 0.1,
        conv0_msg=make_message_params(keys[1], IN_S, IN_V, NODE_S, NODE_V,
                                      EDGE_S, EDGE_V),
        shared_ln=make_layernorm_params(NODE_S),
        conv1=make_conv_layer_params(keys[2], NODE_S, NODE_V, EDGE_S, EDGE_V),
        conv2=make_conv_layer_params(keys[3], NODE_S, NODE_V, EDGE_S, EDGE_V),
        latent_w=_init(keys[4], (NODE_S, LATENT)),
        latent_b=jnp.zeros((LATENT,), jnp.float32),
    )

    tokens = jax.random.randint(keys[5], (N,), 0, N_TOKENS)
    node_v = jax.random.normal(keys[6], (N, IN_V, 3), jnp.float32)
    edge_index = jax.random.randint(keys[7], (2, E), 0, N)
    edge_s = jax.random.normal(keys[8], (E, EDGE_S), jnp.float32)
    edge_v = jax.random.normal(keys[9], (E, EDGE_V, 3), jnp.float32)
    batch_idx = jnp.concatenate([jnp.zeros((N // 2,), jnp.int32),
                                 jnp.ones((N - N // 2,), jnp.int32)])

    fwd = jax.jit(functools.partial(pocket_encoder_forward, num_graphs=B))
    out = fwd(params, tokens, node_v, edge_index, edge_s, edge_v, batch_idx)
    out = jax.block_until_ready(out)

    assert out.shape == (B, LATENT), out.shape
    assert bool(jnp.all(jnp.isfinite(out)))
    print("KERNEL_OK")
</pallas_src>

<mosaic_0001>
module attributes {stable_mosaic.version = 11 : i64} {
  func.func private @main(%arg0: i32) attributes {dimension_semantics = [#tpu.dimension_semantics<core_parallel>], iteration_bounds = array<i64: 2>, tpu.core_type = #tpu.core_type<sc_scalar_subcore>, window_params = []} {
    return
  }
}

module attributes {stable_mosaic.version = 11 : i64} {
  func.func private @main(%arg0: i32) attributes {dimension_semantics = [#tpu.dimension_semantics<core_parallel>], iteration_bounds = array<i64: 2>, tpu.core_type = #tpu.core_type<sc_scalar_subcore>, window_params = []} {
    return
  }
}

module attributes {stable_mosaic.version = 11 : i64} {
  func.func @_message_kernel(%arg0: i32, %arg1: memref<16x41xf32, #tpu.memory_space<vmem>>, %arg2: memref<16x41xf32, #tpu.memory_space<vmem>>, %arg3: memref<16x35xf32, #tpu.memory_space<vmem>>, %arg4: memref<3x7xbf16, #tpu.memory_space<vmem>>, %arg5: memref<1x7xbf16, #tpu.memory_space<vmem>>, %arg6: memref<3x7xbf16, #tpu.memory_space<vmem>>, %arg7: memref<32x256xbf16, #tpu.memory_space<vmem>>, %arg8: memref<32x256xbf16, #tpu.memory_space<vmem>>, %arg9: memref<32x256xbf16, #tpu.memory_space<vmem>>, %arg10: memref<7x256xbf16, #tpu.memory_space<vmem>>, %arg11: memref<1x256xf32, #tpu.memory_space<vmem>>, %arg12: memref<7x3xbf16, #tpu.memory_space<vmem>>, %arg13: memref<3x3xbf16, #tpu.memory_space<vmem>>, %arg14: memref<256x256xbf16, #tpu.memory_space<vmem>>, %arg15: memref<3x256xbf16, #tpu.memory_space<vmem>>, %arg16: memref<1x256xf32, #tpu.memory_space<vmem>>, %arg17: memref<3x3xbf16, #tpu.memory_space<vmem>>, %arg18: memref<3x3xbf16, #tpu.memory_space<vmem>>, %arg19: memref<256x256xbf16, #tpu.memory_space<vmem>>, %arg20: memref<3x256xbf16, #tpu.memory_space<vmem>>, %arg21: memref<1x256xf32, #tpu.memory_space<vmem>>, %arg22: memref<3x3xbf16, #tpu.memory_space<vmem>>, %arg23: memref<16x265xf32, #tpu.memory_space<vmem>>) attributes {dimension_semantics = [#tpu.dimension_semantics<parallel>], iteration_bounds = array<i64: 2>, scalar_prefetch = 0 : i64, scratch_operands = 0 : i64, tpu.core_type = #tpu.core_type<tc>, window_params = [{transform_indices = @transform_0, window_bounds = array<i64: 16, 41>}, {transform_indices = @transform_1, window_bounds = array<i64: 16, 41>}, {transform_indices = @transform_2, window_bounds = array<i64: 16, 35>}, {pipeline_mode = #tpu.pipeline_mode<synchronous>, transform_indices = @transform_3, window_bounds = array<i64: 3, 7>}, {pipeline_mode = #tpu.pipeline_mode<synchronous>, transform_indices = @transform_4, window_bounds = array<i64: 1, 7>}, {pipeline_mode = #tpu.pipeline_mode<synchronous>, transform_indices = @transform_5, window_bounds = array<i64: 3, 7>}, {pipeline_mode = #tpu.pipeline_mode<synchronous>, transform_indices = @transform_6, window_bounds = array<i64: 32, 256>}, {pipeline_mode = #tpu.pipeline_mode<synchronous>, transform_indices = @transform_7, window_bounds = array<i64: 32, 256>}, {pipeline_mode = #tpu.pipeline_mode<synchronous>, transform_indices = @transform_8, window_bounds = array<i64: 32, 256>}, {pipeline_mode = #tpu.pipeline_mode<synchronous>, transform_indices = @transform_9, window_bounds = array<i64: 7, 256>}, {pipeline_mode = #tpu.pipeline_mode<synchronous>, transform_indices = @transform_10, window_bounds = array<i64: 1, 256>}, {pipeline_mode = #tpu.pipeline_mode<synchronous>, transform_indices = @transform_11, window_bounds = array<i64: 7, 3>}, {pipeline_mode = #tpu.pipeline_mode<synchronous>, transform_indices = @transform_12, window_bounds = array<i64: 3, 3>}, {pipeline_mode = #tpu.pipeline_mode<synchronous>, transform_indices = @transform_13, window_bounds = array<i64: 256, 256>}, {pipeline_mode = #tpu.pipeline_mode<synchronous>, transform_indices = @transform_14, window_bounds = array<i64: 3, 256>}, {pipeline_mode = #tpu.pipeline_mode<synchronous>, transform_indices = @transform_15, window_bounds = array<i64: 1, 256>}, {pipeline_mode = #tpu.pipeline_mode<synchronous>, transform_indices = @transform_16, window_bounds = array<i64: 3, 3>}, {pipeline_mode = #tpu.pipeline_mode<synchronous>, transform_indices = @transform_17, window_bounds = array<i64: 3, 3>}, {pipeline_mode = #tpu.pipeline_mode<synchronous>, transform_indices = @transform_18, window_bounds = array<i64: 256, 256>}, {pipeline_mode = #tpu.pipeline_mode<synchronous>, transform_indices = @transform_19, window_bounds = array<i64: 3, 256>}, {pipeline_mode = #tpu.pipeline_mode<synchronous>, transform_indices = @transform_20, window_bounds = array<i64: 1, 256>}, {pipeline_mode = #tpu.pipeline_mode<synchronous>, transform_indices = @transform_21, window_bounds = array<i64: 3, 3>}, {transform_indices = @transform_22, window_bounds = array<i64: 16, 265>}]} {
    %c0 = arith.constant 0 : index
    %c0_0 = arith.constant 0 : index
    %0 = vector.load %arg1[%c0, %c0_0] : memref<16x41xf32, #tpu.memory_space<vmem>>, vector<16x41xf32>
    %1 = vector.extract_strided_slice %0 {offsets = [0, 0], sizes = [16, 32], strides = [1, 1]} : vector<16x41xf32> to vector<16x32xf32>
    %2 = vector.extract_strided_slice %0 {offsets = [0, 32], sizes = [16, 3], strides = [1, 1]} : vector<16x41xf32> to vector<16x3xf32>
    %3 = vector.extract_strided_slice %0 {offsets = [0, 35], sizes = [16, 3], strides = [1, 1]} : vector<16x41xf32> to vector<16x3xf32>
    %4 = vector.extract_strided_slice %0 {offsets = [0, 38], sizes = [16, 3], strides = [1, 1]} : vector<16x41xf32> to vector<16x3xf32>
    %c0_1 = arith.constant 0 : index
    %c0_2 = arith.constant 0 : index
    %5 = vector.load %arg2[%c0_1, %c0_2] : memref<16x41xf32, #tpu.memory_space<vmem>>, vector<16x41xf32>
    %6 = vector.extract_strided_slice %5 {offsets = [0, 0], sizes = [16, 32], strides = [1, 1]} : vector<16x41xf32> to vector<16x32xf32>
    %7 = vector.extract_strided_slice %5 {offsets = [0, 32], sizes = [16, 3], strides = [1, 1]} : vector<16x41xf32> to vector<16x3xf32>
    %8 = vector.extract_strided_slice %5 {offsets = [0, 35], sizes = [16, 3], strides = [1, 1]} : vector<16x41xf32> to vector<16x3xf32>
    %9 = vector.extract_strided_slice %5 {offsets = [0, 38], sizes = [16, 3], strides = [1, 1]} : vector<16x41xf32> to vector<16x3xf32>
    %c0_3 = arith.constant 0 : index
    %c0_4 = arith.constant 0 : index
    %10 = vector.load %arg3[%c0_3, %c0_4] : memref<16x35xf32, #tpu.memory_space<vmem>>, vector<16x35xf32>
    %11 = vector.extract_strided_slice %10 {offsets = [0, 0], sizes = [16, 32], strides = [1, 1]} : vector<16x35xf32> to vector<16x32xf32>
    %12 = vector.extract_strided_slice %10 {offsets = [0, 32], sizes = [16, 1], strides = [1, 1]} : vector<16x35xf32> to vector<16x1xf32>
    %13 = vector.extract_strided_slice %10 {offsets = [0, 33], sizes = [16, 1], strides = [1, 1]} : vector<16x35xf32> to vector<16x1xf32>
    %14 = vector.extract_strided_slice %10 {offsets = [0, 34], sizes = [16, 1], strides = [1, 1]} : vector<16x35xf32> to vector<16x1xf32>
    %15 = tpu.concatenate %2, %3, %4 in 0 : vector<16x3xf32>, vector<16x3xf32>, vector<16x3xf32> -> vector<48x3xf32>
    %16 = tpu.concatenate %12, %13, %14 in 0 : vector<16x1xf32>, vector<16x1xf32>, vector<16x1xf32> -> vector<48x1xf32>
    %17 = tpu.concatenate %7, %8, %9 in 0 : vector<16x3xf32>, vector<16x3xf32>, vector<16x3xf32> -> vector<48x3xf32>
    %c0_5 = arith.constant 0 : index
    %c0_6 = arith.constant 0 : index
    %18 = vector.load %arg4[%c0_5, %c0_6] : memref<3x7xbf16, #tpu.memory_space<vmem>>, vector<3x7xbf16>
    %19 = arith.truncf %15 : vector<48x3xf32> to vector<48x3xbf16>
    %cst = arith.constant dense<0.000000e+00> : vector<48x7xf32>
    %20 = tpu.matmul %19, %18, %cst {dimension_numbers = #tpu.dot_dimension_numbers<[1], [0], [0], [1], [0, 0, 1, 1], [], []>} : vector<48x3xbf16>, vector<3x7xbf16>, vector<48x7xf32> -> vector<48x7xf32>
    %c0_7 = arith.constant 0 : index
    %c0_8 = arith.constant 0 : index
    %21 = vector.load %arg6[%c0_7, %c0_8] : memref<3x7xbf16, #tpu.memory_space<vmem>>, vector<3x7xbf16>
    %22 = arith.truncf %17 : vector<48x3xf32> to vector<48x3xbf16>
    %cst_9 = arith.constant dense<0.000000e+00> : vector<48x7xf32>
    %23 = tpu.matmul %22, %21, %cst_9 {dimension_numbers = #tpu.dot_dimension_numbers<[1], [0], [0], [1], [0, 0, 1, 1], [], []>} : vector<48x3xbf16>, vector<3x7xbf16>, vector<48x7xf32> -> vector<48x7xf32>
    %24 = arith.addf %20, %23 : vector<48x7xf32>
    %c0_10 = arith.constant 0 : index
    %c0_11 = arith.constant 0 : index
    %25 = vector.load %arg5[%c0_10, %c0_11] : memref<1x7xbf16, #tpu.memory_space<vmem>>, vector<1x7xbf16>
    %26 = arith.extf %25 : vector<1x7xbf16> to vector<1x7xf32>
    %27 = vector.broadcast %16 : vector<48x1xf32> to vector<48x7xf32>
    %28 = vector.broadcast %26 : vector<1x7xf32> to vector<48x7xf32>
    %29 = arith.mulf %27, %28 : vector<48x7xf32>
    %30 = arith.addf %24, %29 : vector<48x7xf32>
    %c0_12 = arith.constant 0 : index
    %c0_13 = arith.constant 0 : index
    %31 = vector.load %arg7[%c0_12, %c0_13] : memref<32x256xbf16, #tpu.memory_space<vmem>>, vector<32x256xbf16>
    %32 = arith.truncf %1 : vector<16x32xf32> to vector<16x32xbf16>
    %cst_14 = arith.constant dense<0.000000e+00> : vector<16x256xf32>
    %33 = tpu.matmul %32, %31, %cst_14 {dimension_numbers = #tpu.dot_dimension_numbers<[1], [0], [0], [1], [0, 0, 1, 1], [], []>} : vector<16x32xbf16>, vector<32x256xbf16>, vector<16x256xf32> -> vector<16x256xf32>
    %c0_15 = arith.constant 0 : index
    %c0_16 = arith.constant 0 : index
    %34 = vector.load %arg8[%c0_15, %c0_16] : memref<32x256xbf16, #tpu.memory_space<vmem>>, vector<32x256xbf16>
    %35 = arith.truncf %11 : vector<16x32xf32> to vector<16x32xbf16>
    %cst_17 = arith.constant dense<0.000000e+00> : vector<16x256xf32>
    %36 = tpu.matmul %35, %34, %cst_17 {dimension_numbers = #tpu.dot_dimension_numbers<[1], [0], [0], [1], [0, 0, 1, 1], [], []>} : vector<16x32xbf16>, vector<32x256xbf16>, vector<16x256xf32> -> vector<16x256xf32>
    %37 = arith.addf %33, %36 : vector<16x256xf32>
    %c0_18 = arith.constant 0 : index
    %c0_19 = arith.constant 0 : index
    %38 = vector.load %arg9[%c0_18, %c0_19] : memref<32x256xbf16, #tpu.memory_space<vmem>>, vector<32x256xbf16>
    %39 = arith.truncf %6 : vector<16x32xf32> to vector<16x32xbf16>
    %cst_20 = arith.constant dense<0.000000e+00> : vector<16x256xf32>
    %40 = tpu.matmul %39, %38, %cst_20 {dimension_numbers = #tpu.dot_dimension_numbers<[1], [0], [0], [1], [0, 0, 1, 1], [], []>} : vector<16x32xbf16>, vector<32x256xbf16>, vector<16x256xf32> -> vector<16x256xf32>
    %41 = arith.addf %37, %40 : vector<16x256xf32>
    %42 = vector.extract_strided_slice %30 {offsets = [0, 0], sizes = [16, 7], strides = [1, 1]} : vector<48x7xf32> to vector<16x7xf32>
    %43 = vector.extract_strided_slice %30 {offsets = [16, 0], sizes = [16, 7], strides = [1, 1]} : vector<48x7xf32> to vector<16x7xf32>
    %44 = vector.extract_strided_slice %30 {offsets = [32, 0], sizes = [16, 7], strides = [1, 1]} : vector<48x7xf32> to vector<16x7xf32>
    %45 = arith.mulf %42, %42 : vector<16x7xf32>
    %46 = arith.mulf %43, %43 : vector<16x7xf32>
    %47 = arith.addf %45, %46 : vector<16x7xf32>
    %48 = arith.mulf %44, %44 : vector<16x7xf32>
    %49 = arith.addf %47, %48 : vector<16x7xf32>
    %cst_21 = arith.constant 9.99999993E-9 : f32
    %50 = vector.broadcast %cst_21 : f32 to vector<16x7xf32>
    %51 = arith.maximumf %49, %50 : vector<16x7xf32>
    %52 = math.sqrt %51 : vector<16x7xf32>
    %c0_22 = arith.constant 0 : index
    %c0_23 = arith.constant 0 : index
    %53 = vector.load %arg10[%c0_22, %c0_23] : memref<7x256xbf16, #tpu.memory_space<vmem>>, vector<7x256xbf16>
    %54 = arith.truncf %52 : vector<16x7xf32> to vector<16x7xbf16>
    %cst_24 = arith.constant dense<0.000000e+00> : vector<16x256xf32>
    %55 = tpu.matmul %54, %53, %cst_24 {dimension_numbers = #tpu.dot_dimension_numbers<[1], [0], [0], [1], [0, 0, 1, 1], [], []>} : vector<16x7xbf16>, vector<7x256xbf16>, vector<16x256xf32> -> vector<16x256xf32>
    %56 = arith.addf %41, %55 : vector<16x256xf32>
    %c0_25 = arith.constant 0 : index
    %c0_26 = arith.constant 0 : index
    %57 = vector.load %arg11[%c0_25, %c0_26] : memref<1x256xf32, #tpu.memory_space<vmem>>, vector<1x256xf32>
    %58 = vector.broadcast %57 : vector<1x256xf32> to vector<16x256xf32>
    %59 = arith.addf %56, %58 : vector<16x256xf32>
    %c0_27 = arith.constant 0 : index
    %c0_28 = arith.constant 0 : index
    %60 = vector.load %arg12[%c0_27, %c0_28] : memref<7x3xbf16, #tpu.memory_space<vmem>>, vector<7x3xbf16>
    %61 = arith.truncf %30 : vector<48x7xf32> to vector<48x7xbf16>
    %cst_29 = arith.constant dense<0.000000e+00> : vector<48x3xf32>
    %62 = tpu.matmul %61, %60, %cst_29 {dimension_numbers = #tpu.dot_dimension_numbers<[1], [0], [0], [1], [0, 0, 1, 1], [], []>} : vector<48x7xbf16>, vector<7x3xbf16>, vector<48x3xf32> -> vector<48x3xf32>
    %63 = vector.extract_strided_slice %62 {offsets = [0, 0], sizes = [16, 3], strides = [1, 1]} : vector<48x3xf32> to vector<16x3xf32>
    %64 = vector.extract_strided_slice %62 {offsets = [16, 0], sizes = [16, 3], strides = [1, 1]} : vector<48x3xf32> to vector<16x3xf32>
    %65 = vector.extract_strided_slice %62 {offsets = [32, 0], sizes = [16, 3], strides = [1, 1]} : vector<48x3xf32> to vector<16x3xf32>
    %66 = arith.mulf %63, %63 : vector<16x3xf32>
    %67 = arith.mulf %64, %64 : vector<16x3xf32>
    %68 = arith.addf %66, %67 : vector<16x3xf32>
    %69 = arith.mulf %65, %65 : vector<16x3xf32>
    %70 = arith.addf %68, %69 : vector<16x3xf32>
    %cst_30 = arith.constant 9.99999993E-9 : f32
    %71 = vector.broadcast %cst_30 : f32 to vector<16x3xf32>
    %72 = arith.maximumf %70, %71 : vector<16x3xf32>
    %73 = math.sqrt %72 : vector<16x3xf32>
    %cst_31 = arith.constant 0.000000e+00 : f32
    %74 = vector.broadcast %cst_31 : f32 to vector<16x3xf32>
    %75 = arith.subf %74, %73 : vector<16x3xf32>
    %76 = math.exp %75 : vector<16x3xf32>
    %cst_32 = arith.constant 1.000000e+00 : f32
    %77 = vector.broadcast %cst_32 : f32 to vector<16x3xf32>
    %78 = arith.addf %77, %76 : vector<16x3xf32>
    %79 = tpu.reciprocal %78 {approx = true} : vector<16x3xf32> -> vector<16x3xf32>
    %80 = arith.mulf %63, %79 : vector<16x3xf32>
    %81 = arith.mulf %64, %79 : vector<16x3xf32>
    %82 = arith.mulf %65, %79 : vector<16x3xf32>
    %cst_33 = arith.constant 0.000000e+00 : f32
    %83 = vector.broadcast %cst_33 : f32 to vector<16x256xf32>
    %84 = arith.maximumf %59, %83 : vector<16x256xf32>
    %85 = tpu.concatenate %80, %81, %82 in 0 : vector<16x3xf32>, vector<16x3xf32>, vector<16x3xf32> -> vector<48x3xf32>
    %c0_34 = arith.constant 0 : index
    %c0_35 = arith.constant 0 : index
    %86 = vector.load %arg13[%c0_34, %c0_35] : memref<3x3xbf16, #tpu.memory_space<vmem>>, vector<3x3xbf16>
    %87 = arith.truncf %85 : vector<48x3xf32> to vector<48x3xbf16>
    %cst_36 = arith.constant dense<0.000000e+00> : vector<48x3xf32>
    %88 = tpu.matmul %87, %86, %cst_36 {dimension_numbers = #tpu.dot_dimension_numbers<[1], [0], [0], [1], [0, 0, 1, 1], [], []>} : vector<48x3xbf16>, vector<3x3xbf16>, vector<48x3xf32> -> vector<48x3xf32>
    %c0_37 = arith.constant 0 : index
    %c0_38 = arith.constant 0 : index
    %89 = vector.load %arg14[%c0_37, %c0_38] : memref<256x256xbf16, #tpu.memory_space<vmem>>, vector<256x256xbf16>
    %90 = arith.truncf %84 : vector<16x256xf32> to vector<16x256xbf16>
    %cst_39 = arith.constant dense<0.000000e+00> : vector<16x256xf32>
    %91 = tpu.matmul %90, %89, %cst_39 {dimension_numbers = #tpu.dot_dimension_numbers<[1], [0], [0], [1], [0, 0, 1, 1], [], []>} : vector<16x256xbf16>, vector<256x256xbf16>, vector<16x256xf32> -> vector<16x256xf32>
    %92 = vector.extract_strided_slice %88 {offsets = [0, 0], sizes = [16, 3], strides = [1, 1]} : vector<48x3xf32> to vector<16x3xf32>
    %93 = vector.extract_strided_slice %88 {offsets = [16, 0], sizes = [16, 3], strides = [1, 1]} : vector<48x3xf32> to vector<16x3xf32>
    %94 = vector.extract_strided_slice %88 {offsets = [32, 0], sizes = [16, 3], strides = [1, 1]} : vector<48x3xf32> to vector<16x3xf32>
    %95 = arith.mulf %92, %92 : vector<16x3xf32>
    %96 = arith.mulf %93, %93 : vector<16x3xf32>
    %97 = arith.addf %95, %96 : vector<16x3xf32>
    %98 = arith.mulf %94, %94 : vector<16x3xf32>
    %99 = arith.addf %97, %98 : vector<16x3xf32>
    %cst_40 = arith.constant 9.99999993E-9 : f32
    %100 = vector.broadcast %cst_40 : f32 to vector<16x3xf32>
    %101 = arith.maximumf %99, %100 : vector<16x3xf32>
    %102 = math.sqrt %101 : vector<16x3xf32>
    %c0_41 = arith.constant 0 : index
    %c0_42 = arith.constant 0 : index
    %103 = vector.load %arg15[%c0_41, %c0_42] : memref<3x256xbf16, #tpu.memory_space<vmem>>, vector<3x256xbf16>
    %104 = arith.truncf %102 : vector<16x3xf32> to vector<16x3xbf16>
    %cst_43 = arith.constant dense<0.000000e+00> : vector<16x256xf32>
    %105 = tpu.matmul %104, %103, %cst_43 {dimension_numbers = #tpu.dot_dimension_numbers<[1], [0], [0], [1], [0, 0, 1, 1], [], []>} : vector<16x3xbf16>, vector<3x256xbf16>, vector<16x256xf32> -> vector<16x256xf32>
    %106 = arith.addf %91, %105 : vector<16x256xf32>
    %c0_44 = arith.constant 0 : index
    %c0_45 = arith.constant 0 : index
    %107 = vector.load %arg16[%c0_44, %c0_45] : memref<1x256xf32, #tpu.memory_space<vmem>>, vector<1x256xf32>
    %108 = vector.broadcast %107 : vector<1x256xf32> to vector<16x256xf32>
    %109 = arith.addf %106, %108 : vector<16x256xf32>
    %c0_46 = arith.constant 0 : index
    %c0_47 = arith.constant 0 : index
    %110 = vector.load %arg17[%c0_46, %c0_47] : memref<3x3xbf16, #tpu.memory_space<vmem>>, vector<3x3xbf16>
    %111 = arith.truncf %88 : vector<48x3xf32> to vector<48x3xbf16>
    %cst_48 = arith.constant dense<0.000000e+00> : vector<48x3xf32>
    %112 = tpu.matmul %111, %110, %cst_48 {dimension_numbers = #tpu.dot_dimension_numbers<[1], [0], [0], [1], [0, 0, 1, 1], [], []>} : vector<48x3xbf16>, vector<3x3xbf16>, vector<48x3xf32> -> vector<48x3xf32>
    %113 = vector.extract_strided_slice %112 {offsets = [0, 0], sizes = [16, 3], strides = [1, 1]} : vector<48x3xf32> to vector<16x3xf32>
    %114 = vector.extract_strided_slice %112 {offsets = [16, 0], sizes = [16, 3], strides = [1, 1]} : vector<48x3xf32> to vector<16x3xf32>
    %115 = vector.extract_strided_slice %112 {offsets = [32, 0], sizes = [16, 3], strides = [1, 1]} : vector<48x3xf32> to vector<16x3xf32>
    %116 = arith.mulf %113, %113 : vector<16x3xf32>
    %117 = arith.mulf %114, %114 : vector<16x3xf32>
    %118 = arith.addf %116, %117 : vector<16x3xf32>
    %119 = arith.mulf %115, %115 : vector<16x3xf32>
    %120 = arith.addf %118, %119 : vector<16x3xf32>
    %cst_49 = arith.constant 9.99999993E-9 : f32
    %121 = vector.broadcast %cst_49 : f32 to vector<16x3xf32>
    %122 = arith.maximumf %120, %121 : vector<16x3xf32>
    %123 = math.sqrt %122 : vector<16x3xf32>
    %cst_50 = arith.constant 0.000000e+00 : f32
    %124 = vector.broadcast %cst_50 : f32 to vector<16x3xf32>
    %125 = arith.subf %124, %123 : vector<16x3xf32>
    %126 = math.exp %125 : vector<16x3xf32>
    %cst_51 = arith.constant 1.000000e+00 : f32
    %127 = vector.broadcast %cst_51 : f32 to vector<16x3xf32>
    %128 = arith.addf %127, %126 : vector<16x3xf32>
    %129 = tpu.reciprocal %128 {approx = true} : vector<16x3xf32> -> vector<16x3xf32>
    %130 = arith.mulf %113, %129 : vector<16x3xf32>
    %131 = arith.mulf %114, %129 : vector<16x3xf32>
    %132 = arith.mulf %115, %129 : vector<16x3xf32>
    %cst_52 = arith.constant 0.000000e+00 : f32
    %133 = vector.broadcast %cst_52 : f32 to vector<16x256xf32>
    %134 = arith.maximumf %109, %133 : vector<16x256xf32>
    %135 = tpu.concatenate %130, %131, %132 in 0 : vector<16x3xf32>, vector<16x3xf32>, vector<16x3xf32> -> vector<48x3xf32>
    %c0_53 = arith.constant 0 : index
    %c0_54 = arith.constant 0 : index
    %136 = vector.load %arg18[%c0_53, %c0_54] : memref<3x3xbf16, #tpu.memory_space<vmem>>, vector<3x3xbf16>
    %137 = arith.truncf %135 : vector<48x3xf32> to vector<48x3xbf16>
    %cst_55 = arith.constant dense<0.000000e+00> : vector<48x3xf32>
    %138 = tpu.matmul %137, %136, %cst_55 {dimension_numbers = #tpu.dot_dimension_numbers<[1], [0], [0], [1], [0, 0, 1, 1], [], []>} : vector<48x3xbf16>, vector<3x3xbf16>, vector<48x3xf32> -> vector<48x3xf32>
    %c0_56 = arith.constant 0 : index
    %c0_57 = arith.constant 0 : index
    %139 = vector.load %arg19[%c0_56, %c0_57] : memref<256x256xbf16, #tpu.memory_space<vmem>>, vector<256x256xbf16>
    %140 = arith.truncf %134 : vector<16x256xf32> to vector<16x256xbf16>
    %cst_58 = arith.constant dense<0.000000e+00> : vector<16x256xf32>
    %141 = tpu.matmul %140, %139, %cst_58 {dimension_numbers = #tpu.dot_dimension_numbers<[1], [0], [0], [1], [0, 0, 1, 1], [], []>} : vector<16x256xbf16>, vector<256x256xbf16>, vector<16x256xf32> -> vector<16x256xf32>
    %142 = vector.extract_strided_slice %138 {offsets = [0, 0], sizes = [16, 3], strides = [1, 1]} : vector<48x3xf32> to vector<16x3xf32>
    %143 = vector.extract_strided_slice %138 {offsets = [16, 0], sizes = [16, 3], strides = [1, 1]} : vector<48x3xf32> to vector<16x3xf32>
    %144 = vector.extract_strided_slice %138 {offsets = [32, 0], sizes = [16, 3], strides = [1, 1]} : vector<48x3xf32> to vector<16x3xf32>
    %145 = arith.mulf %142, %142 : vector<16x3xf32>
    %146 = arith.mulf %143, %143 : vector<16x3xf32>
    %147 = arith.addf %145, %146 : vector<16x3xf32>
    %148 = arith.mulf %144, %144 : vector<16x3xf32>
    %149 = arith.addf %147, %148 : vector<16x3xf32>
    %cst_59 = arith.constant 9.99999993E-9 : f32
    %150 = vector.broadcast %cst_59 : f32 to vector<16x3xf32>
    %151 = arith.maximumf %149, %150 : vector<16x3xf32>
    %152 = math.sqrt %151 : vector<16x3xf32>
    %c0_60 = arith.constant 0 : index
    %c0_61 = arith.constant 0 : index
    %153 = vector.load %arg20[%c0_60, %c0_61] : memref<3x256xbf16, #tpu.memory_space<vmem>>, vector<3x256xbf16>
    %154 = arith.truncf %152 : vector<16x3xf32> to vector<16x3xbf16>
    %cst_62 = arith.constant dense<0.000000e+00> : vector<16x256xf32>
    %155 = tpu.matmul %154, %153, %cst_62 {dimension_numbers = #tpu.dot_dimension_numbers<[1], [0], [0], [1], [0, 0, 1, 1], [], []>} : vector<16x3xbf16>, vector<3x256xbf16>, vector<16x256xf32> -> vector<16x256xf32>
    %156 = arith.addf %141, %155 : vector<16x256xf32>
    %c0_63 = arith.constant 0 : index
    %c0_64 = arith.constant 0 : index
    %157 = vector.load %arg21[%c0_63, %c0_64] : memref<1x256xf32, #tpu.memory_space<vmem>>, vector<1x256xf32>
    %158 = vector.broadcast %157 : vector<1x256xf32> to vector<16x256xf32>
    %159 = arith.addf %156, %158 : vector<16x256xf32>
    %c0_65 = arith.constant 0 : index
    %c0_66 = arith.constant 0 : index
    %160 = vector.load %arg22[%c0_65, %c0_66] : memref<3x3xbf16, #tpu.memory_space<vmem>>, vector<3x3xbf16>
    %161 = arith.truncf %138 : vector<48x3xf32> to vector<48x3xbf16>
    %cst_67 = arith.constant dense<0.000000e+00> : vector<48x3xf32>
    %162 = tpu.matmul %161, %160, %cst_67 {dimension_numbers = #tpu.dot_dimension_numbers<[1], [0], [0], [1], [0, 0, 1, 1], [], []>} : vector<48x3xbf16>, vector<3x3xbf16>, vector<48x3xf32> -> vector<48x3xf32>
    %163 = vector.extract_strided_slice %162 {offsets = [0, 0], sizes = [16, 3], strides = [1, 1]} : vector<48x3xf32> to vector<16x3xf32>
    %164 = vector.extract_strided_slice %162 {offsets = [16, 0], sizes = [16, 3], strides = [1, 1]} : vector<48x3xf32> to vector<16x3xf32>
    %165 = vector.extract_strided_slice %162 {offsets = [32, 0], sizes = [16, 3], strides = [1, 1]} : vector<48x3xf32> to vector<16x3xf32>
    %166 = tpu.concatenate %159, %163, %164, %165 in 1 : vector<16x256xf32>, vector<16x3xf32>, vector<16x3xf32>, vector<16x3xf32> -> vector<16x265xf32>
    %c0_68 = arith.constant 0 : index
    %c0_69 = arith.constant 0 : index
    %167 = vector.load %arg23[%c0_68, %c0_69] : memref<16x265xf32, #tpu.memory_space<vmem>>, vector<16x265xf32>
    tpu.vector_store %arg23[%c0_68, %c0_69], %166 {strides = array<i32>} : memref<16x265xf32, #tpu.memory_space<vmem>>, vector<16x265xf32>,
    return
  }
  func.func @transform_0(%arg0: i32) -> (i32, i32) {
    %c0_i32 = arith.constant 0 : i32
    %c0_i32_0 = arith.constant 0 : i32
    return %arg0, %c0_i32 : i32, i32
  }
  func.func @transform_1(%arg0: i32) -> (i32, i32) {
    %c0_i32 = arith.constant 0 : i32
    %c0_i32_0 = arith.constant 0 : i32
    return %arg0, %c0_i32 : i32, i32
  }
  func.func @transform_2(%arg0: i32) -> (i32, i32) {
    %c0_i32 = arith.constant 0 : i32
    %c0_i32_0 = arith.constant 0 : i32
    return %arg0, %c0_i32 : i32, i32
  }
  func.func @transform_3(%arg0: i32) -> (i32, i32) {
    %c0_i32 = arith.constant 0 : i32
    %c0_i32_0 = arith.constant 0 : i32
    %c0_i32_1 = arith.constant 0 : i32
    return %c0_i32, %c0_i32_0 : i32, i32
  }
  func.func @transform_4(%arg0: i32) -> (i32, i32) {
    %c0_i32 = arith.constant 0 : i32
    %c0_i32_0 = arith.constant 0 : i32
    %c0_i32_1 = arith.constant 0 : i32
    return %c0_i32, %c0_i32_0 : i32, i32
  }
  func.func @transform_5(%arg0: i32) -> (i32, i32) {
    %c0_i32 = arith.constant 0 : i32
    %c0_i32_0 = arith.constant 0 : i32
    %c0_i32_1 = arith.constant 0 : i32
    return %c0_i32, %c0_i32_0 : i32, i32
  }
  func.func @transform_6(%arg0: i32) -> (i32, i32) {
    %c0_i32 = arith.constant 0 : i32
    %c0_i32_0 = arith.constant 0 : i32
    %c0_i32_1 = arith.constant 0 : i32
    return %c0_i32, %c0_i32_0 : i32, i32
  }
  func.func @transform_7(%arg0: i32) -> (i32, i32) {
    %c0_i32 = arith.constant 0 : i32
    %c0_i32_0 = arith.constant 0 : i32
    %c0_i32_1 = arith.constant 0 : i32
    return %c0_i32, %c0_i32_0 : i32, i32
  }
  func.func @transform_8(%arg0: i32) -> (i32, i32) {
    %c0_i32 = arith.constant 0 : i32
    %c0_i32_0 = arith.constant 0 : i32
    %c0_i32_1 = arith.constant 0 : i32
    return %c0_i32, %c0_i32_0 : i32, i32
  }
  func.func @transform_9(%arg0: i32) -> (i32, i32) {
    %c0_i32 = arith.constant 0 : i32
    %c0_i32_0 = arith.constant 0 : i32
    %c0_i32_1 = arith.constant 0 : i32
    return %c0_i32, %c0_i32_0 : i32, i32
  }
  func.func @transform_10(%arg0: i32) -> (i32, i32) {
    %c0_i32 = arith.constant 0 : i32
    %c0_i32_0 = arith.constant 0 : i32
    %c0_i32_1 = arith.constant 0 : i32
    return %c0_i32, %c0_i32_0 : i32, i32
  }
  func.func @transform_11(%arg0: i32) -> (i32, i32) {
    %c0_i32 = arith.constant 0 : i32
    %c0_i32_0 = arith.constant 0 : i32
    %c0_i32_1 = arith.constant 0 : i32
    return %c0_i32, %c0_i32_0 : i32, i32
  }
  func.func @transform_12(%arg0: i32) -> (i32, i32) {
    %c0_i32 = arith.constant 0 : i32
    %c0_i32_0 = arith.constant 0 : i32
    %c0_i32_1 = arith.constant 0 : i32
    return %c0_i32, %c0_i32_0 : i32, i32
  }
  func.func @transform_13(%arg0: i32) -> (i32, i32) {
    %c0_i32 = arith.constant 0 : i32
    %c0_i32_0 = arith.constant 0 : i32
    %c0_i32_1 = arith.constant 0 : i32
    return %c0_i32, %c0_i32_0 : i32, i32
  }
  func.func @transform_14(%arg0: i32) -> (i32, i32) {
    %c0_i32 = arith.constant 0 : i32
    %c0_i32_0 = arith.constant 0 : i32
    %c0_i32_1 = arith.constant 0 : i32
    return %c0_i32, %c0_i32_0 : i32, i32
  }
  func.func @transform_15(%arg0: i32) -> (i32, i32) {
    %c0_i32 = arith.constant 0 : i32
    %c0_i32_0 = arith.constant 0 : i32
    %c0_i32_1 = arith.constant 0 : i32
    return %c0_i32, %c0_i32_0 : i32, i32
  }
  func.func @transform_16(%arg0: i32) -> (i32, i32) {
    %c0_i32 = arith.constant 0 : i32
    %c0_i32_0 = arith.constant 0 : i32
    %c0_i32_1 = arith.constant 0 : i32
    return %c0_i32, %c0_i32_0 : i32, i32
  }
  func.func @transform_17(%arg0: i32) -> (i32, i32) {
    %c0_i32 = arith.constant 0 : i32
    %c0_i32_0 = arith.constant 0 : i32
    %c0_i32_1 = arith.constant 0 : i32
    return %c0_i32, %c0_i32_0 : i32, i32
  }
  func.func @transform_18(%arg0: i32) -> (i32, i32) {
    %c0_i32 = arith.constant 0 : i32
    %c0_i32_0 = arith.constant 0 : i32
    %c0_i32_1 = arith.constant 0 : i32
    return %c0_i32, %c0_i32_0 : i32, i32
  }
  func.func @transform_19(%arg0: i32) -> (i32, i32) {
    %c0_i32 = arith.constant 0 : i32
    %c0_i32_0 = arith.constant 0 : i32
    %c0_i32_1 = arith.constant 0 : i32
    return %c0_i32, %c0_i32_0 : i32, i32
  }
  func.func @transform_20(%arg0: i32) -> (i32, i32) {
    %c0_i32 = arith.constant 0 : i32
    %c0_i32_0 = arith.constant 0 : i32
    %c0_i32_1 = arith.constant 0 : i32
    return %c0_i32, %c0_i32_0 : i32, i32
  }
  func.func @transform_21(%arg0: i32) -> (i32, i32) {
    %c0_i32 = arith.constant 0 : i32
    %c0_i32_0 = arith.constant 0 : i32
    %c0_i32_1 = arith.constant 0 : i32
    return %c0_i32, %c0_i32_0 : i32, i32
  }
  func.func @transform_22(%arg0: i32) -> (i32, i32) {
    %c0_i32 = arith.constant 0 : i32
    %c0_i32_0 = arith.constant 0 : i32
    return %arg0, %c0_i32 : i32, i32
  }
}

module attributes {stable_mosaic.version = 11 : i64} {
  func.func @_ln_kernel(%arg0: i32, %arg1: memref<8x265xf32, #tpu.memory_space<vmem>>, %arg2: memref<1x256xf32, #tpu.memory_space<vmem>>, %arg3: memref<1x256xf32, #tpu.memory_space<vmem>>, %arg4: memref<8x265xf32, #tpu.memory_space<vmem>>) attributes {dimension_semantics = [#tpu.dimension_semantics<parallel>], iteration_bounds = array<i64: 2>, scalar_prefetch = 0 : i64, scratch_operands = 0 : i64, tpu.core_type = #tpu.core_type<tc>, window_params = [{transform_indices = @transform_0, window_bounds = array<i64: 8, 265>}, {pipeline_mode = #tpu.pipeline_mode<synchronous>, transform_indices = @transform_1, window_bounds = array<i64: 1, 256>}, {pipeline_mode = #tpu.pipeline_mode<synchronous>, transform_indices = @transform_2, window_bounds = array<i64: 1, 256>}, {transform_indices = @transform_3, window_bounds = array<i64: 8, 265>}]} {
    %c0 = arith.constant 0 : index
    %c0_0 = arith.constant 0 : index
    %0 = vector.load %arg1[%c0, %c0_0] : memref<8x265xf32, #tpu.memory_space<vmem>>, vector<8x265xf32>
    %1 = vector.extract_strided_slice %0 {offsets = [0, 0], sizes = [8, 256], strides = [1, 1]} : vector<8x265xf32> to vector<8x256xf32>
    %2 = vector.extract_strided_slice %0 {offsets = [0, 256], sizes = [8, 3], strides = [1, 1]} : vector<8x265xf32> to vector<8x3xf32>
    %3 = vector.extract_strided_slice %0 {offsets = [0, 259], sizes = [8, 3], strides = [1, 1]} : vector<8x265xf32> to vector<8x3xf32>
    %4 = vector.extract_strided_slice %0 {offsets = [0, 262], sizes = [8, 3], strides = [1, 1]} : vector<8x265xf32> to vector<8x3xf32>
    %c0_1 = arith.constant 0 : index
    %c0_2 = arith.constant 0 : index
    %5 = vector.load %arg2[%c0_1, %c0_2] : memref<1x256xf32, #tpu.memory_space<vmem>>, vector<1x256xf32>
    %c0_3 = arith.constant 0 : index
    %c0_4 = arith.constant 0 : index
    %6 = vector.load %arg3[%c0_3, %c0_4] : memref<1x256xf32, #tpu.memory_space<vmem>>, vector<1x256xf32>
    %cst = arith.constant dense<0.000000e+00> : vector<8xf32>
    %7 = vector.multi_reduction <add>, %1, %cst [1] : vector<8x256xf32> to vector<8xf32>
    %8 = vector.shape_cast %7 : vector<8xf32> to vector<8x1xf32>
    %cst_5 = arith.constant 2.560000e+02 : f32
    %9 = vector.broadcast %cst_5 : f32 to vector<8x1xf32>
    %10 = arith.divf %8, %9 : vector<8x1xf32>
    %11 = vector.broadcast %10 : vector<8x1xf32> to vector<8x256xf32>
    %12 = arith.subf %1, %11 : vector<8x256xf32>
    %13 = arith.mulf %12, %12 : vector<8x256xf32>
    %cst_6 = arith.constant dense<0.000000e+00> : vector<8xf32>
    %14 = vector.multi_reduction <add>, %13, %cst_6 [1] : vector<8x256xf32> to vector<8xf32>
    %15 = vector.shape_cast %14 : vector<8xf32> to vector<8x1xf32>
    %cst_7 = arith.constant 2.560000e+02 : f32
    %16 = vector.broadcast %cst_7 : f32 to vector<8x1xf32>
    %17 = arith.divf %15, %16 : vector<8x1xf32>
    %cst_8 = arith.constant 9.99999974E-6 : f32
    %18 = vector.broadcast %cst_8 : f32 to vector<8x1xf32>
    %19 = arith.addf %17, %18 : vector<8x1xf32>
    %20 = math.rsqrt %19 : vector<8x1xf32>
    %21 = vector.broadcast %20 : vector<8x1xf32> to vector<8x256xf32>
    %22 = arith.mulf %12, %21 : vector<8x256xf32>
    %23 = vector.broadcast %5 : vector<1x256xf32> to vector<8x256xf32>
    %24 = arith.mulf %22, %23 : vector<8x256xf32>
    %25 = vector.broadcast %6 : vector<1x256xf32> to vector<8x256xf32>
    %26 = arith.addf %24, %25 : vector<8x256xf32>
    %27 = arith.mulf %2, %2 : vector<8x3xf32>
    %28 = arith.mulf %3, %3 : vector<8x3xf32>
    %29 = arith.addf %27, %28 : vector<8x3xf32>
    %30 = arith.mulf %4, %4 : vector<8x3xf32>
    %31 = arith.addf %29, %30 : vector<8x3xf32>
    %cst_9 = arith.constant 9.99999993E-9 : f32
    %32 = vector.broadcast %cst_9 : f32 to vector<8x3xf32>
    %33 = arith.maximumf %31, %32 : vector<8x3xf32>
    %cst_10 = arith.constant dense<0.000000e+00> : vector<8xf32>
    %34 = vector.multi_reduction <add>, %33, %cst_10 [1] : vector<8x3xf32> to vector<8xf32>
    %35 = vector.shape_cast %34 : vector<8xf32> to vector<8x1xf32>
    %cst_11 = arith.constant 3.000000e+00 : f32
    %36 = vector.broadcast %cst_11 : f32 to vector<8x1xf32>
    %37 = arith.divf %35, %36 : vector<8x1xf32>
    %38 = math.rsqrt %37 : vector<8x1xf32>
    %39 = vector.broadcast %38 : vector<8x1xf32> to vector<8x3xf32>
    %40 = arith.mulf %2, %39 : vector<8x3xf32>
    %41 = vector.broadcast %38 : vector<8x1xf32> to vector<8x3xf32>
    %42 = arith.mulf %3, %41 : vector<8x3xf32>
    %43 = vector.broadcast %38 : vector<8x1xf32> to vector<8x3xf32>
    %44 = arith.mulf %4, %43 : vector<8x3xf32>
    %45 = tpu.concatenate %26, %40, %42, %44 in 1 : vector<8x256xf32>, vector<8x3xf32>, vector<8x3xf32>, vector<8x3xf32> -> vector<8x265xf32>
    %c0_12 = arith.constant 0 : index
    %c0_13 = arith.constant 0 : index
    %46 = vector.load %arg4[%c0_12, %c0_13] : memref<8x265xf32, #tpu.memory_space<vmem>>, vector<8x265xf32>
    tpu.vector_store %arg4[%c0_12, %c0_13], %45 {strides = array<i32>} : memref<8x265xf32, #tpu.memory_space<vmem>>, vector<8x265xf32>,
    return
  }
  func.func @transform_0(%arg0: i32) -> (i32, i32) {
    %c0_i32 = arith.constant 0 : i32
    %c0_i32_0 = arith.constant 0 : i32
    return %arg0, %c0_i32 : i32, i32
  }
  func.func @transform_1(%arg0: i32) -> (i32, i32) {
    %c0_i32 = arith.constant 0 : i32
    %c0_i32_0 = arith.constant 0 : i32
    %c0_i32_1 = arith.constant 0 : i32
    return %c0_i32, %c0_i32_0 : i32, i32
  }
  func.func @transform_2(%arg0: i32) -> (i32, i32) {
    %c0_i32 = arith.constant 0 : i32
    %c0_i32_0 = arith.constant 0 : i32
    %c0_i32_1 = arith.constant 0 : i32
    return %c0_i32, %c0_i32_0 : i32, i32
  }
  func.func @transform_3(%arg0: i32) -> (i32, i32) {
    %c0_i32 = arith.constant 0 : i32
    %c0_i32_0 = arith.constant 0 : i32
    return %arg0, %c0_i32 : i32, i32
  }
}

module attributes {stable_mosaic.version = 11 : i64} {
  func.func @_ln_kernel(%arg0: i32, %arg1: memref<8x265xf32, #tpu.memory_space<vmem>>, %arg2: memref<8x265xf32, #tpu.memory_space<vmem>>, %arg3: memref<1x256xf32, #tpu.memory_space<vmem>>, %arg4: memref<1x256xf32, #tpu.memory_space<vmem>>, %arg5: memref<8x265xf32, #tpu.memory_space<vmem>>) attributes {dimension_semantics = [#tpu.dimension_semantics<parallel>], iteration_bounds = array<i64: 2>, scalar_prefetch = 0 : i64, scratch_operands = 0 : i64, tpu.core_type = #tpu.core_type<tc>, window_params = [{transform_indices = @transform_0, window_bounds = array<i64: 8, 265>}, {transform_indices = @transform_1, window_bounds = array<i64: 8, 265>}, {pipeline_mode = #tpu.pipeline_mode<synchronous>, transform_indices = @transform_2, window_bounds = array<i64: 1, 256>}, {pipeline_mode = #tpu.pipeline_mode<synchronous>, transform_indices = @transform_3, window_bounds = array<i64: 1, 256>}, {transform_indices = @transform_4, window_bounds = array<i64: 8, 265>}]} {
    %c0 = arith.constant 0 : index
    %c0_0 = arith.constant 0 : index
    %0 = vector.load %arg1[%c0, %c0_0] : memref<8x265xf32, #tpu.memory_space<vmem>>, vector<8x265xf32>
    %c0_1 = arith.constant 0 : index
    %c0_2 = arith.constant 0 : index
    %1 = vector.load %arg2[%c0_1, %c0_2] : memref<8x265xf32, #tpu.memory_space<vmem>>, vector<8x265xf32>
    %2 = arith.addf %0, %1 : vector<8x265xf32>
    %3 = vector.extract_strided_slice %2 {offsets = [0, 0], sizes = [8, 256], strides = [1, 1]} : vector<8x265xf32> to vector<8x256xf32>
    %4 = vector.extract_strided_slice %2 {offsets = [0, 256], sizes = [8, 3], strides = [1, 1]} : vector<8x265xf32> to vector<8x3xf32>
    %5 = vector.extract_strided_slice %2 {offsets = [0, 259], sizes = [8, 3], strides = [1, 1]} : vector<8x265xf32> to vector<8x3xf32>
    %6 = vector.extract_strided_slice %2 {offsets = [0, 262], sizes = [8, 3], strides = [1, 1]} : vector<8x265xf32> to vector<8x3xf32>
    %c0_3 = arith.constant 0 : index
    %c0_4 = arith.constant 0 : index
    %7 = vector.load %arg3[%c0_3, %c0_4] : memref<1x256xf32, #tpu.memory_space<vmem>>, vector<1x256xf32>
    %c0_5 = arith.constant 0 : index
    %c0_6 = arith.constant 0 : index
    %8 = vector.load %arg4[%c0_5, %c0_6] : memref<1x256xf32, #tpu.memory_space<vmem>>, vector<1x256xf32>
    %cst = arith.constant dense<0.000000e+00> : vector<8xf32>
    %9 = vector.multi_reduction <add>, %3, %cst [1] : vector<8x256xf32> to vector<8xf32>
    %10 = vector.shape_cast %9 : vector<8xf32> to vector<8x1xf32>
    %cst_7 = arith.constant 2.560000e+02 : f32
    %11 = vector.broadcast %cst_7 : f32 to vector<8x1xf32>
    %12 = arith.divf %10, %11 : vector<8x1xf32>
    %13 = vector.broadcast %12 : vector<8x1xf32> to vector<8x256xf32>
    %14 = arith.subf %3, %13 : vector<8x256xf32>
    %15 = arith.mulf %14, %14 : vector<8x256xf32>
    %cst_8 = arith.constant dense<0.000000e+00> : vector<8xf32>
    %16 = vector.multi_reduction <add>, %15, %cst_8 [1] : vector<8x256xf32> to vector<8xf32>
    %17 = vector.shape_cast %16 : vector<8xf32> to vector<8x1xf32>
    %cst_9 = arith.constant 2.560000e+02 : f32
    %18 = vector.broadcast %cst_9 : f32 to vector<8x1xf32>
    %19 = arith.divf %17, %18 : vector<8x1xf32>
    %cst_10 = arith.constant 9.99999974E-6 : f32
    %20 = vector.broadcast %cst_10 : f32 to vector<8x1xf32>
    %21 = arith.addf %19, %20 : vector<8x1xf32>
    %22 = math.rsqrt %21 : vector<8x1xf32>
    %23 = vector.broadcast %22 : vector<8x1xf32> to vector<8x256xf32>
    %24 = arith.mulf %14, %23 : vector<8x256xf32>
    %25 = vector.broadcast %7 : vector<1x256xf32> to vector<8x256xf32>
    %26 = arith.mulf %24, %25 : vector<8x256xf32>
    %27 = vector.broadcast %8 : vector<1x256xf32> to vector<8x256xf32>
    %28 = arith.addf %26, %27 : vector<8x256xf32>
    %29 = arith.mulf %4, %4 : vector<8x3xf32>
    %30 = arith.mulf %5, %5 : vector<8x3xf32>
    %31 = arith.addf %29, %30 : vector<8x3xf32>
    %32 = arith.mulf %6, %6 : vector<8x3xf32>
    %33 = arith.addf %31, %32 : vector<8x3xf32>
    %cst_11 = arith.constant 9.99999993E-9 : f32
    %34 = vector.broadcast %cst_11 : f32 to vector<8x3xf32>
    %35 = arith.maximumf %33, %34 : vector<8x3xf32>
    %cst_12 = arith.constant dense<0.000000e+00> : vector<8xf32>
    %36 = vector.multi_reduction <add>, %35, %cst_12 [1] : vector<8x3xf32> to vector<8xf32>
    %37 = vector.shape_cast %36 : vector<8xf32> to vector<8x1xf32>
    %cst_13 = arith.constant 3.000000e+00 : f32
    %38 = vector.broadcast %cst_13 : f32 to vector<8x1xf32>
    %39 = arith.divf %37, %38 : vector<8x1xf32>
    %40 = math.rsqrt %39 : vector<8x1xf32>
    %41 = vector.broadcast %40 : vector<8x1xf32> to vector<8x3xf32>
    %42 = arith.mulf %4, %41 : vector<8x3xf32>
    %43 = vector.broadcast %40 : vector<8x1xf32> to vector<8x3xf32>
    %44 = arith.mulf %5, %43 : vector<8x3xf32>
    %45 = vector.broadcast %40 : vector<8x1xf32> to vector<8x3xf32>
    %46 = arith.mulf %6, %45 : vector<8x3xf32>
    %47 = tpu.concatenate %28, %42, %44, %46 in 1 : vector<8x256xf32>, vector<8x3xf32>, vector<8x3xf32>, vector<8x3xf32> -> vector<8x265xf32>
    %c0_14 = arith.constant 0 : index
    %c0_15 = arith.constant 0 : index
    %48 = vector.load %arg5[%c0_14, %c0_15] : memref<8x265xf32, #tpu.memory_space<vmem>>, vector<8x265xf32>
    tpu.vector_store %arg5[%c0_14, %c0_15], %47 {strides = array<i32>} : memref<8x265xf32, #tpu.memory_space<vmem>>, vector<8x265xf32>,
    return
  }
  func.func @transform_0(%arg0: i32) -> (i32, i32) {
    %c0_i32 = arith.constant 0 : i32
    %c0_i32_0 = arith.constant 0 : i32
    return %arg0, %c0_i32 : i32, i32
  }
  func.func @transform_1(%arg0: i32) -> (i32, i32) {
    %c0_i32 = arith.constant 0 : i32
    %c0_i32_0 = arith.constant 0 : i32
    return %arg0, %c0_i32 : i32, i32
  }
  func.func @transform_2(%arg0: i32) -> (i32, i32) {
    %c0_i32 = arith.constant 0 : i32
    %c0_i32_0 = arith.constant 0 : i32
    %c0_i32_1 = arith.constant 0 : i32
    return %c0_i32, %c0_i32_0 : i32, i32
  }
  func.func @transform_3(%arg0: i32) -> (i32, i32) {
    %c0_i32 = arith.constant 0 : i32
    %c0_i32_0 = arith.constant 0 : i32
    %c0_i32_1 = arith.constant 0 : i32
    return %c0_i32, %c0_i32_0 : i32, i32
  }
  func.func @transform_4(%arg0: i32) -> (i32, i32) {
    %c0_i32 = arith.constant 0 : i32
    %c0_i32_0 = arith.constant 0 : i32
    return %arg0, %c0_i32 : i32, i32
  }
}

module attributes {stable_mosaic.version = 11 : i64} {
  func.func @_message_kernel(%arg0: i32, %arg1: memref<16x265xf32, #tpu.memory_space<vmem>>, %arg2: memref<16x265xf32, #tpu.memory_space<vmem>>, %arg3: memref<16x35xf32, #tpu.memory_space<vmem>>, %arg4: memref<3x7xbf16, #tpu.memory_space<vmem>>, %arg5: memref<1x7xbf16, #tpu.memory_space<vmem>>, %arg6: memref<3x7xbf16, #tpu.memory_space<vmem>>, %arg7: memref<256x256xbf16, #tpu.memory_space<vmem>>, %arg8: memref<32x256xbf16, #tpu.memory_space<vmem>>, %arg9: memref<256x256xbf16, #tpu.memory_space<vmem>>, %arg10: memref<7x256xbf16, #tpu.memory_space<vmem>>, %arg11: memref<1x256xf32, #tpu.memory_space<vmem>>, %arg12: memref<7x3xbf16, #tpu.memory_space<vmem>>, %arg13: memref<3x3xbf16, #tpu.memory_space<vmem>>, %arg14: memref<256x256xbf16, #tpu.memory_space<vmem>>, %arg15: memref<3x256xbf16, #tpu.memory_space<vmem>>, %arg16: memref<1x256xf32, #tpu.memory_space<vmem>>, %arg17: memref<3x3xbf16, #tpu.memory_space<vmem>>, %arg18: memref<3x3xbf16, #tpu.memory_space<vmem>>, %arg19: memref<256x256xbf16, #tpu.memory_space<vmem>>, %arg20: memref<3x256xbf16, #tpu.memory_space<vmem>>, %arg21: memref<1x256xf32, #tpu.memory_space<vmem>>, %arg22: memref<3x3xbf16, #tpu.memory_space<vmem>>, %arg23: memref<16x265xf32, #tpu.memory_space<vmem>>) attributes {dimension_semantics = [#tpu.dimension_semantics<parallel>], iteration_bounds = array<i64: 2>, scalar_prefetch = 0 : i64, scratch_operands = 0 : i64, tpu.core_type = #tpu.core_type<tc>, window_params = [{transform_indices = @transform_0, window_bounds = array<i64: 16, 265>}, {transform_indices = @transform_1, window_bounds = array<i64: 16, 265>}, {transform_indices = @transform_2, window_bounds = array<i64: 16, 35>}, {pipeline_mode = #tpu.pipeline_mode<synchronous>, transform_indices = @transform_3, window_bounds = array<i64: 3, 7>}, {pipeline_mode = #tpu.pipeline_mode<synchronous>, transform_indices = @transform_4, window_bounds = array<i64: 1, 7>}, {pipeline_mode = #tpu.pipeline_mode<synchronous>, transform_indices = @transform_5, window_bounds = array<i64: 3, 7>}, {pipeline_mode = #tpu.pipeline_mode<synchronous>, transform_indices = @transform_6, window_bounds = array<i64: 256, 256>}, {pipeline_mode = #tpu.pipeline_mode<synchronous>, transform_indices = @transform_7, window_bounds = array<i64: 32, 256>}, {pipeline_mode = #tpu.pipeline_mode<synchronous>, transform_indices = @transform_8, window_bounds = array<i64: 256, 256>}, {pipeline_mode = #tpu.pipeline_mode<synchronous>, transform_indices = @transform_9, window_bounds = array<i64: 7, 256>}, {pipeline_mode = #tpu.pipeline_mode<synchronous>, transform_indices = @transform_10, window_bounds = array<i64: 1, 256>}, {pipeline_mode = #tpu.pipeline_mode<synchronous>, transform_indices = @transform_11, window_bounds = array<i64: 7, 3>}, {pipeline_mode = #tpu.pipeline_mode<synchronous>, transform_indices = @transform_12, window_bounds = array<i64: 3, 3>}, {pipeline_mode = #tpu.pipeline_mode<synchronous>, transform_indices = @transform_13, window_bounds = array<i64: 256, 256>}, {pipeline_mode = #tpu.pipeline_mode<synchronous>, transform_indices = @transform_14, window_bounds = array<i64: 3, 256>}, {pipeline_mode = #tpu.pipeline_mode<synchronous>, transform_indices = @transform_15, window_bounds = array<i64: 1, 256>}, {pipeline_mode = #tpu.pipeline_mode<synchronous>, transform_indices = @transform_16, window_bounds = array<i64: 3, 3>}, {pipeline_mode = #tpu.pipeline_mode<synchronous>, transform_indices = @transform_17, window_bounds = array<i64: 3, 3>}, {pipeline_mode = #tpu.pipeline_mode<synchronous>, transform_indices = @transform_18, window_bounds = array<i64: 256, 256>}, {pipeline_mode = #tpu.pipeline_mode<synchronous>, transform_indices = @transform_19, window_bounds = array<i64: 3, 256>}, {pipeline_mode = #tpu.pipeline_mode<synchronous>, transform_indices = @transform_20, window_bounds = array<i64: 1, 256>}, {pipeline_mode = #tpu.pipeline_mode<synchronous>, transform_indices = @transform_21, window_bounds = array<i64: 3, 3>}, {transform_indices = @transform_22, window_bounds = array<i64: 16, 265>}]} {
    %c0 = arith.constant 0 : index
    %c0_0 = arith.constant 0 : index
    %0 = vector.load %arg1[%c0, %c0_0] : memref<16x265xf32, #tpu.memory_space<vmem>>, vector<16x265xf32>
    %1 = vector.extract_strided_slice %0 {offsets = [0, 0], sizes = [16, 256], strides = [1, 1]} : vector<16x265xf32> to vector<16x256xf32>
    %2 = vector.extract_strided_slice %0 {offsets = [0, 256], sizes = [16, 3], strides = [1, 1]} : vector<16x265xf32> to vector<16x3xf32>
    %3 = vector.extract_strided_slice %0 {offsets = [0, 259], sizes = [16, 3], strides = [1, 1]} : vector<16x265xf32> to vector<16x3xf32>
    %4 = vector.extract_strided_slice %0 {offsets = [0, 262], sizes = [16, 3], strides = [1, 1]} : vector<16x265xf32> to vector<16x3xf32>
    %c0_1 = arith.constant 0 : index
    %c0_2 = arith.constant 0 : index
    %5 = vector.load %arg2[%c0_1, %c0_2] : memref<16x265xf32, #tpu.memory_space<vmem>>, vector<16x265xf32>
    %6 = vector.extract_strided_slice %5 {offsets = [0, 0], sizes = [16, 256], strides = [1, 1]} : vector<16x265xf32> to vector<16x256xf32>
    %7 = vector.extract_strided_slice %5 {offsets = [0, 256], sizes = [16, 3], strides = [1, 1]} : vector<16x265xf32> to vector<16x3xf32>
    %8 = vector.extract_strided_slice %5 {offsets = [0, 259], sizes = [16, 3], strides = [1, 1]} : vector<16x265xf32> to vector<16x3xf32>
    %9 = vector.extract_strided_slice %5 {offsets = [0, 262], sizes = [16, 3], strides = [1, 1]} : vector<16x265xf32> to vector<16x3xf32>
    %c0_3 = arith.constant 0 : index
    %c0_4 = arith.constant 0 : index
    %10 = vector.load %arg3[%c0_3, %c0_4] : memref<16x35xf32, #tpu.memory_space<vmem>>, vector<16x35xf32>
    %11 = vector.extract_strided_slice %10 {offsets = [0, 0], sizes = [16, 32], strides = [1, 1]} : vector<16x35xf32> to vector<16x32xf32>
    %12 = vector.extract_strided_slice %10 {offsets = [0, 32], sizes = [16, 1], strides = [1, 1]} : vector<16x35xf32> to vector<16x1xf32>
    %13 = vector.extract_strided_slice %10 {offsets = [0, 33], sizes = [16, 1], strides = [1, 1]} : vector<16x35xf32> to vector<16x1xf32>
    %14 = vector.extract_strided_slice %10 {offsets = [0, 34], sizes = [16, 1], strides = [1, 1]} : vector<16x35xf32> to vector<16x1xf32>
    %15 = tpu.concatenate %2, %3, %4 in 0 : vector<16x3xf32>, vector<16x3xf32>, vector<16x3xf32> -> vector<48x3xf32>
    %16 = tpu.concatenate %12, %13, %14 in 0 : vector<16x1xf32>, vector<16x1xf32>, vector<16x1xf32> -> vector<48x1xf32>
    %17 = tpu.concatenate %7, %8, %9 in 0 : vector<16x3xf32>, vector<16x3xf32>, vector<16x3xf32> -> vector<48x3xf32>
    %c0_5 = arith.constant 0 : index
    %c0_6 = arith.constant 0 : index
    %18 = vector.load %arg4[%c0_5, %c0_6] : memref<3x7xbf16, #tpu.memory_space<vmem>>, vector<3x7xbf16>
    %19 = arith.truncf %15 : vector<48x3xf32> to vector<48x3xbf16>
    %cst = arith.constant dense<0.000000e+00> : vector<48x7xf32>
    %20 = tpu.matmul %19, %18, %cst {dimension_numbers = #tpu.dot_dimension_numbers<[1], [0], [0], [1], [0, 0, 1, 1], [], []>} : vector<48x3xbf16>, vector<3x7xbf16>, vector<48x7xf32> -> vector<48x7xf32>
    %c0_7 = arith.constant 0 : index
    %c0_8 = arith.constant 0 : index
    %21 = vector.load %arg6[%c0_7, %c0_8] : memref<3x7xbf16, #tpu.memory_space<vmem>>, vector<3x7xbf16>
    %22 = arith.truncf %17 : vector<48x3xf32> to vector<48x3xbf16>
    %cst_9 = arith.constant dense<0.000000e+00> : vector<48x7xf32>
    %23 = tpu.matmul %22, %21, %cst_9 {dimension_numbers = #tpu.dot_dimension_numbers<[1], [0], [0], [1], [0, 0, 1, 1], [], []>} : vector<48x3xbf16>, vector<3x7xbf16>, vector<48x7xf32> -> vector<48x7xf32>
    %24 = arith.addf %20, %23 : vector<48x7xf32>
    %c0_10 = arith.constant 0 : index
    %c0_11 = arith.constant 0 : index
    %25 = vector.load %arg5[%c0_10, %c0_11] : memref<1x7xbf16, #tpu.memory_space<vmem>>, vector<1x7xbf16>
    %26 = arith.extf %25 : vector<1x7xbf16> to vector<1x7xf32>
    %27 = vector.broadcast %16 : vector<48x1xf32> to vector<48x7xf32>
    %28 = vector.broadcast %26 : vector<1x7xf32> to vector<48x7xf32>
    %29 = arith.mulf %27, %28 : vector<48x7xf32>
    %30 = arith.addf %24, %29 : vector<48x7xf32>
    %c0_12 = arith.constant 0 : index
    %c0_13 = arith.constant 0 : index
    %31 = vector.load %arg7[%c0_12, %c0_13] : memref<256x256xbf16, #tpu.memory_space<vmem>>, vector<256x256xbf16>
    %32 = arith.truncf %1 : vector<16x256xf32> to vector<16x256xbf16>
    %cst_14 = arith.constant dense<0.000000e+00> : vector<16x256xf32>
    %33 = tpu.matmul %32, %31, %cst_14 {dimension_numbers = #tpu.dot_dimension_numbers<[1], [0], [0], [1], [0, 0, 1, 1], [], []>} : vector<16x256xbf16>, vector<256x256xbf16>, vector<16x256xf32> -> vector<16x256xf32>
    %c0_15 = arith.constant 0 : index
    %c0_16 = arith.constant 0 : index
    %34 = vector.load %arg8[%c0_15, %c0_16] : memref<32x256xbf16, #tpu.memory_space<vmem>>, vector<32x256xbf16>
    %35 = arith.truncf %11 : vector<16x32xf32> to vector<16x32xbf16>
    %cst_17 = arith.constant dense<0.000000e+00> : vector<16x256xf32>
    %36 = tpu.matmul %35, %34, %cst_17 {dimension_numbers = #tpu.dot_dimension_numbers<[1], [0], [0], [1], [0, 0, 1, 1], [], []>} : vector<16x32xbf16>, vector<32x256xbf16>, vector<16x256xf32> -> vector<16x256xf32>
    %37 = arith.addf %33, %36 : vector<16x256xf32>
    %c0_18 = arith.constant 0 : index
    %c0_19 = arith.constant 0 : index
    %38 = vector.load %arg9[%c0_18, %c0_19] : memref<256x256xbf16, #tpu.memory_space<vmem>>, vector<256x256xbf16>
    %39 = arith.truncf %6 : vector<16x256xf32> to vector<16x256xbf16>
    %cst_20 = arith.constant dense<0.000000e+00> : vector<16x256xf32>
    %40 = tpu.matmul %39, %38, %cst_20 {dimension_numbers = #tpu.dot_dimension_numbers<[1], [0], [0], [1], [0, 0, 1, 1], [], []>} : vector<16x256xbf16>, vector<256x256xbf16>, vector<16x256xf32> -> vector<16x256xf32>
    %41 = arith.addf %37, %40 : vector<16x256xf32>
    %42 = vector.extract_strided_slice %30 {offsets = [0, 0], sizes = [16, 7], strides = [1, 1]} : vector<48x7xf32> to vector<16x7xf32>
    %43 = vector.extract_strided_slice %30 {offsets = [16, 0], sizes = [16, 7], strides = [1, 1]} : vector<48x7xf32> to vector<16x7xf32>
    %44 = vector.extract_strided_slice %30 {offsets = [32, 0], sizes = [16, 7], strides = [1, 1]} : vector<48x7xf32> to vector<16x7xf32>
    %45 = arith.mulf %42, %42 : vector<16x7xf32>
    %46 = arith.mulf %43, %43 : vector<16x7xf32>
    %47 = arith.addf %45, %46 : vector<16x7xf32>
    %48 = arith.mulf %44, %44 : vector<16x7xf32>
    %49 = arith.addf %47, %48 : vector<16x7xf32>
    %cst_21 = arith.constant 9.99999993E-9 : f32
    %50 = vector.broadcast %cst_21 : f32 to vector<16x7xf32>
    %51 = arith.maximumf %49, %50 : vector<16x7xf32>
    %52 = math.sqrt %51 : vector<16x7xf32>
    %c0_22 = arith.constant 0 : index
    %c0_23 = arith.constant 0 : index
    %53 = vector.load %arg10[%c0_22, %c0_23] : memref<7x256xbf16, #tpu.memory_space<vmem>>, vector<7x256xbf16>
    %54 = arith.truncf %52 : vector<16x7xf32> to vector<16x7xbf16>
    %cst_24 = arith.constant dense<0.000000e+00> : vector<16x256xf32>
    %55 = tpu.matmul %54, %53, %cst_24 {dimension_numbers = #tpu.dot_dimension_numbers<[1], [0], [0], [1], [0, 0, 1, 1], [], []>} : vector<16x7xbf16>, vector<7x256xbf16>, vector<16x256xf32> -> vector<16x256xf32>
    %56 = arith.addf %41, %55 : vector<16x256xf32>
    %c0_25 = arith.constant 0 : index
    %c0_26 = arith.constant 0 : index
    %57 = vector.load %arg11[%c0_25, %c0_26] : memref<1x256xf32, #tpu.memory_space<vmem>>, vector<1x256xf32>
    %58 = vector.broadcast %57 : vector<1x256xf32> to vector<16x256xf32>
    %59 = arith.addf %56, %58 : vector<16x256xf32>
    %c0_27 = arith.constant 0 : index
    %c0_28 = arith.constant 0 : index
    %60 = vector.load %arg12[%c0_27, %c0_28] : memref<7x3xbf16, #tpu.memory_space<vmem>>, vector<7x3xbf16>
    %61 = arith.truncf %30 : vector<48x7xf32> to vector<48x7xbf16>
    %cst_29 = arith.constant dense<0.000000e+00> : vector<48x3xf32>
    %62 = tpu.matmul %61, %60, %cst_29 {dimension_numbers = #tpu.dot_dimension_numbers<[1], [0], [0], [1], [0, 0, 1, 1], [], []>} : vector<48x7xbf16>, vector<7x3xbf16>, vector<48x3xf32> -> vector<48x3xf32>
    %63 = vector.extract_strided_slice %62 {offsets = [0, 0], sizes = [16, 3], strides = [1, 1]} : vector<48x3xf32> to vector<16x3xf32>
    %64 = vector.extract_strided_slice %62 {offsets = [16, 0], sizes = [16, 3], strides = [1, 1]} : vector<48x3xf32> to vector<16x3xf32>
    %65 = vector.extract_strided_slice %62 {offsets = [32, 0], sizes = [16, 3], strides = [1, 1]} : vector<48x3xf32> to vector<16x3xf32>
    %66 = arith.mulf %63, %63 : vector<16x3xf32>
    %67 = arith.mulf %64, %64 : vector<16x3xf32>
    %68 = arith.addf %66, %67 : vector<16x3xf32>
    %69 = arith.mulf %65, %65 : vector<16x3xf32>
    %70 = arith.addf %68, %69 : vector<16x3xf32>
    %cst_30 = arith.constant 9.99999993E-9 : f32
    %71 = vector.broadcast %cst_30 : f32 to vector<16x3xf32>
    %72 = arith.maximumf %70, %71 : vector<16x3xf32>
    %73 = math.sqrt %72 : vector<16x3xf32>
    %cst_31 = arith.constant 0.000000e+00 : f32
    %74 = vector.broadcast %cst_31 : f32 to vector<16x3xf32>
    %75 = arith.subf %74, %73 : vector<16x3xf32>
    %76 = math.exp %75 : vector<16x3xf32>
    %cst_32 = arith.constant 1.000000e+00 : f32
    %77 = vector.broadcast %cst_32 : f32 to vector<16x3xf32>
    %78 = arith.addf %77, %76 : vector<16x3xf32>
    %79 = tpu.reciprocal %78 {approx = true} : vector<16x3xf32> -> vector<16x3xf32>
    %80 = arith.mulf %63, %79 : vector<16x3xf32>
    %81 = arith.mulf %64, %79 : vector<16x3xf32>
    %82 = arith.mulf %65, %79 : vector<16x3xf32>
    %cst_33 = arith.constant 0.000000e+00 : f32
    %83 = vector.broadcast %cst_33 : f32 to vector<16x256xf32>
    %84 = arith.maximumf %59, %83 : vector<16x256xf32>
    %85 = tpu.concatenate %80, %81, %82 in 0 : vector<16x3xf32>, vector<16x3xf32>, vector<16x3xf32> -> vector<48x3xf32>
    %c0_34 = arith.constant 0 : index
    %c0_35 = arith.constant 0 : index
    %86 = vector.load %arg13[%c0_34, %c0_35] : memref<3x3xbf16, #tpu.memory_space<vmem>>, vector<3x3xbf16>
    %87 = arith.truncf %85 : vector<48x3xf32> to vector<48x3xbf16>
    %cst_36 = arith.constant dense<0.000000e+00> : vector<48x3xf32>
    %88 = tpu.matmul %87, %86, %cst_36 {dimension_numbers = #tpu.dot_dimension_numbers<[1], [0], [0], [1], [0, 0, 1, 1], [], []>} : vector<48x3xbf16>, vector<3x3xbf16>, vector<48x3xf32> -> vector<48x3xf32>
    %c0_37 = arith.constant 0 : index
    %c0_38 = arith.constant 0 : index
    %89 = vector.load %arg14[%c0_37, %c0_38] : memref<256x256xbf16, #tpu.memory_space<vmem>>, vector<256x256xbf16>
    %90 = arith.truncf %84 : vector<16x256xf32> to vector<16x256xbf16>
    %cst_39 = arith.constant dense<0.000000e+00> : vector<16x256xf32>
    %91 = tpu.matmul %90, %89, %cst_39 {dimension_numbers = #tpu.dot_dimension_numbers<[1], [0], [0], [1], [0, 0, 1, 1], [], []>} : vector<16x256xbf16>, vector<256x256xbf16>, vector<16x256xf32> -> vector<16x256xf32>
    %92 = vector.extract_strided_slice %88 {offsets = [0, 0], sizes = [16, 3], strides = [1, 1]} : vector<48x3xf32> to vector<16x3xf32>
    %93 = vector.extract_strided_slice %88 {offsets = [16, 0], sizes = [16, 3], strides = [1, 1]} : vector<48x3xf32> to vector<16x3xf32>
    %94 = vector.extract_strided_slice %88 {offsets = [32, 0], sizes = [16, 3], strides = [1, 1]} : vector<48x3xf32> to vector<16x3xf32>
    %95 = arith.mulf %92, %92 : vector<16x3xf32>
    %96 = arith.mulf %93, %93 : vector<16x3xf32>
    %97 = arith.addf %95, %96 : vector<16x3xf32>
    %98 = arith.mulf %94, %94 : vector<16x3xf32>
    %99 = arith.addf %97, %98 : vector<16x3xf32>
    %cst_40 = arith.constant 9.99999993E-9 : f32
    %100 = vector.broadcast %cst_40 : f32 to vector<16x3xf32>
    %101 = arith.maximumf %99, %100 : vector<16x3xf32>
    %102 = math.sqrt %101 : vector<16x3xf32>
    %c0_41 = arith.constant 0 : index
    %c0_42 = arith.constant 0 : index
    %103 = vector.load %arg15[%c0_41, %c0_42] : memref<3x256xbf16, #tpu.memory_space<vmem>>, vector<3x256xbf16>
    %104 = arith.truncf %102 : vector<16x3xf32> to vector<16x3xbf16>
    %cst_43 = arith.constant dense<0.000000e+00> : vector<16x256xf32>
    %105 = tpu.matmul %104, %103, %cst_43 {dimension_numbers = #tpu.dot_dimension_numbers<[1], [0], [0], [1], [0, 0, 1, 1], [], []>} : vector<16x3xbf16>, vector<3x256xbf16>, vector<16x256xf32> -> vector<16x256xf32>
    %106 = arith.addf %91, %105 : vector<16x256xf32>
    %c0_44 = arith.constant 0 : index
    %c0_45 = arith.constant 0 : index
    %107 = vector.load %arg16[%c0_44, %c0_45] : memref<1x256xf32, #tpu.memory_space<vmem>>, vector<1x256xf32>
    %108 = vector.broadcast %107 : vector<1x256xf32> to vector<16x256xf32>
    %109 = arith.addf %106, %108 : vector<16x256xf32>
    %c0_46 = arith.constant 0 : index
    %c0_47 = arith.constant 0 : index
    %110 = vector.load %arg17[%c0_46, %c0_47] : memref<3x3xbf16, #tpu.memory_space<vmem>>, vector<3x3xbf16>
    %111 = arith.truncf %88 : vector<48x3xf32> to vector<48x3xbf16>
    %cst_48 = arith.constant dense<0.000000e+00> : vector<48x3xf32>
    %112 = tpu.matmul %111, %110, %cst_48 {dimension_numbers = #tpu.dot_dimension_numbers<[1], [0], [0], [1], [0, 0, 1, 1], [], []>} : vector<48x3xbf16>, vector<3x3xbf16>, vector<48x3xf32> -> vector<48x3xf32>
    %113 = vector.extract_strided_slice %112 {offsets = [0, 0], sizes = [16, 3], strides = [1, 1]} : vector<48x3xf32> to vector<16x3xf32>
    %114 = vector.extract_strided_slice %112 {offsets = [16, 0], sizes = [16, 3], strides = [1, 1]} : vector<48x3xf32> to vector<16x3xf32>
    %115 = vector.extract_strided_slice %112 {offsets = [32, 0], sizes = [16, 3], strides = [1, 1]} : vector<48x3xf32> to vector<16x3xf32>
    %116 = arith.mulf %113, %113 : vector<16x3xf32>
    %117 = arith.mulf %114, %114 : vector<16x3xf32>
    %118 = arith.addf %116, %117 : vector<16x3xf32>
    %119 = arith.mulf %115, %115 : vector<16x3xf32>
    %120 = arith.addf %118, %119 : vector<16x3xf32>
    %cst_49 = arith.constant 9.99999993E-9 : f32
    %121 = vector.broadcast %cst_49 : f32 to vector<16x3xf32>
    %122 = arith.maximumf %120, %121 : vector<16x3xf32>
    %123 = math.sqrt %122 : vector<16x3xf32>
    %cst_50 = arith.constant 0.000000e+00 : f32
    %124 = vector.broadcast %cst_50 : f32 to vector<16x3xf32>
    %125 = arith.subf %124, %123 : vector<16x3xf32>
    %126 = math.exp %125 : vector<16x3xf32>
    %cst_51 = arith.constant 1.000000e+00 : f32
    %127 = vector.broadcast %cst_51 : f32 to vector<16x3xf32>
    %128 = arith.addf %127, %126 : vector<16x3xf32>
    %129 = tpu.reciprocal %128 {approx = true} : vector<16x3xf32> -> vector<16x3xf32>
    %130 = arith.mulf %113, %129 : vector<16x3xf32>
    %131 = arith.mulf %114, %129 : vector<16x3xf32>
    %132 = arith.mulf %115, %129 : vector<16x3xf32>
    %cst_52 = arith.constant 0.000000e+00 : f32
    %133 = vector.broadcast %cst_52 : f32 to vector<16x256xf32>
    %134 = arith.maximumf %109, %133 : vector<16x256xf32>
    %135 = tpu.concatenate %130, %131, %132 in 0 : vector<16x3xf32>, vector<16x3xf32>, vector<16x3xf32> -> vector<48x3xf32>
    %c0_53 = arith.constant 0 : index
    %c0_54 = arith.constant 0 : index
    %136 = vector.load %arg18[%c0_53, %c0_54] : memref<3x3xbf16, #tpu.memory_space<vmem>>, vector<3x3xbf16>
    %137 = arith.truncf %135 : vector<48x3xf32> to vector<48x3xbf16>
    %cst_55 = arith.constant dense<0.000000e+00> : vector<48x3xf32>
    %138 = tpu.matmul %137, %136, %cst_55 {dimension_numbers = #tpu.dot_dimension_numbers<[1], [0], [0], [1], [0, 0, 1, 1], [], []>} : vector<48x3xbf16>, vector<3x3xbf16>, vector<48x3xf32> -> vector<48x3xf32>
    %c0_56 = arith.constant 0 : index
    %c0_57 = arith.constant 0 : index
    %139 = vector.load %arg19[%c0_56, %c0_57] : memref<256x256xbf16, #tpu.memory_space<vmem>>, vector<256x256xbf16>
    %140 = arith.truncf %134 : vector<16x256xf32> to vector<16x256xbf16>
    %cst_58 = arith.constant dense<0.000000e+00> : vector<16x256xf32>
    %141 = tpu.matmul %140, %139, %cst_58 {dimension_numbers = #tpu.dot_dimension_numbers<[1], [0], [0], [1], [0, 0, 1, 1], [], []>} : vector<16x256xbf16>, vector<256x256xbf16>, vector<16x256xf32> -> vector<16x256xf32>
    %142 = vector.extract_strided_slice %138 {offsets = [0, 0], sizes = [16, 3], strides = [1, 1]} : vector<48x3xf32> to vector<16x3xf32>
    %143 = vector.extract_strided_slice %138 {offsets = [16, 0], sizes = [16, 3], strides = [1, 1]} : vector<48x3xf32> to vector<16x3xf32>
    %144 = vector.extract_strided_slice %138 {offsets = [32, 0], sizes = [16, 3], strides = [1, 1]} : vector<48x3xf32> to vector<16x3xf32>
    %145 = arith.mulf %142, %142 : vector<16x3xf32>
    %146 = arith.mulf %143, %143 : vector<16x3xf32>
    %147 = arith.addf %145, %146 : vector<16x3xf32>
    %148 = arith.mulf %144, %144 : vector<16x3xf32>
    %149 = arith.addf %147, %148 : vector<16x3xf32>
    %cst_59 = arith.constant 9.99999993E-9 : f32
    %150 = vector.broadcast %cst_59 : f32 to vector<16x3xf32>
    %151 = arith.maximumf %149, %150 : vector<16x3xf32>
    %152 = math.sqrt %151 : vector<16x3xf32>
    %c0_60 = arith.constant 0 : index
    %c0_61 = arith.constant 0 : index
    %153 = vector.load %arg20[%c0_60, %c0_61] : memref<3x256xbf16, #tpu.memory_space<vmem>>, vector<3x256xbf16>
    %154 = arith.truncf %152 : vector<16x3xf32> to vector<16x3xbf16>
    %cst_62 = arith.constant dense<0.000000e+00> : vector<16x256xf32>
    %155 = tpu.matmul %154, %153, %cst_62 {dimension_numbers = #tpu.dot_dimension_numbers<[1], [0], [0], [1], [0, 0, 1, 1], [], []>} : vector<16x3xbf16>, vector<3x256xbf16>, vector<16x256xf32> -> vector<16x256xf32>
    %156 = arith.addf %141, %155 : vector<16x256xf32>
    %c0_63 = arith.constant 0 : index
    %c0_64 = arith.constant 0 : index
    %157 = vector.load %arg21[%c0_63, %c0_64] : memref<1x256xf32, #tpu.memory_space<vmem>>, vector<1x256xf32>
    %158 = vector.broadcast %157 : vector<1x256xf32> to vector<16x256xf32>
    %159 = arith.addf %156, %158 : vector<16x256xf32>
    %c0_65 = arith.constant 0 : index
    %c0_66 = arith.constant 0 : index
    %160 = vector.load %arg22[%c0_65, %c0_66] : memref<3x3xbf16, #tpu.memory_space<vmem>>, vector<3x3xbf16>
    %161 = arith.truncf %138 : vector<48x3xf32> to vector<48x3xbf16>
    %cst_67 = arith.constant dense<0.000000e+00> : vector<48x3xf32>
    %162 = tpu.matmul %161, %160, %cst_67 {dimension_numbers = #tpu.dot_dimension_numbers<[1], [0], [0], [1], [0, 0, 1, 1], [], []>} : vector<48x3xbf16>, vector<3x3xbf16>, vector<48x3xf32> -> vector<48x3xf32>
    %163 = vector.extract_strided_slice %162 {offsets = [0, 0], sizes = [16, 3], strides = [1, 1]} : vector<48x3xf32> to vector<16x3xf32>
    %164 = vector.extract_strided_slice %162 {offsets = [16, 0], sizes = [16, 3], strides = [1, 1]} : vector<48x3xf32> to vector<16x3xf32>
    %165 = vector.extract_strided_slice %162 {offsets = [32, 0], sizes = [16, 3], strides = [1, 1]} : vector<48x3xf32> to vector<16x3xf32>
    %166 = tpu.concatenate %159, %163, %164, %165 in 1 : vector<16x256xf32>, vector<16x3xf32>, vector<16x3xf32>, vector<16x3xf32> -> vector<16x265xf32>
    %c0_68 = arith.constant 0 : index
    %c0_69 = arith.constant 0 : index
    %167 = vector.load %arg23[%c0_68, %c0_69] : memref<16x265xf32, #tpu.memory_space<vmem>>, vector<16x265xf32>
    tpu.vector_store %arg23[%c0_68, %c0_69], %166 {strides = array<i32>} : memref<16x265xf32, #tpu.memory_space<vmem>>, vector<16x265xf32>,
    return
  }
  func.func @transform_0(%arg0: i32) -> (i32, i32) {
    %c0_i32 = arith.constant 0 : i32
    %c0_i32_0 = arith.constant 0 : i32
    return %arg0, %c0_i32 : i32, i32
  }
  func.func @transform_1(%arg0: i32) -> (i32, i32) {
    %c0_i32 = arith.constant 0 : i32
    %c0_i32_0 = arith.constant 0 : i32
    return %arg0, %c0_i32 : i32, i32
  }
  func.func @transform_2(%arg0: i32) -> (i32, i32) {
    %c0_i32 = arith.constant 0 : i32
    %c0_i32_0 = arith.constant 0 : i32
    return %arg0, %c0_i32 : i32, i32
  }
  func.func @transform_3(%arg0: i32) -> (i32, i32) {
    %c0_i32 = arith.constant 0 : i32
    %c0_i32_0 = arith.constant 0 : i32
    %c0_i32_1 = arith.constant 0 : i32
    return %c0_i32, %c0_i32_0 : i32, i32
  }
  func.func @transform_4(%arg0: i32) -> (i32, i32) {
    %c0_i32 = arith.constant 0 : i32
    %c0_i32_0 = arith.constant 0 : i32
    %c0_i32_1 = arith.constant 0 : i32
    return %c0_i32, %c0_i32_0 : i32, i32
  }
  func.func @transform_5(%arg0: i32) -> (i32, i32) {
    %c0_i32 = arith.constant 0 : i32
    %c0_i32_0 = arith.constant 0 : i32
    %c0_i32_1 = arith.constant 0 : i32
    return %c0_i32, %c0_i32_0 : i32, i32
  }
  func.func @transform_6(%arg0: i32) -> (i32, i32) {
    %c0_i32 = arith.constant 0 : i32
    %c0_i32_0 = arith.constant 0 : i32
    %c0_i32_1 = arith.constant 0 : i32
    return %c0_i32, %c0_i32_0 : i32, i32
  }
  func.func @transform_7(%arg0: i32) -> (i32, i32) {
    %c0_i32 = arith.constant 0 : i32
    %c0_i32_0 = arith.constant 0 : i32
    %c0_i32_1 = arith.constant 0 : i32
    return %c0_i32, %c0_i32_0 : i32, i32
  }
  func.func @transform_8(%arg0: i32) -> (i32, i32) {
    %c0_i32 = arith.constant 0 : i32
    %c0_i32_0 = arith.constant 0 : i32
    %c0_i32_1 = arith.constant 0 : i32
    return %c0_i32, %c0_i32_0 : i32, i32
  }
  func.func @transform_9(%arg0: i32) -> (i32, i32) {
    %c0_i32 = arith.constant 0 : i32
    %c0_i32_0 = arith.constant 0 : i32
    %c0_i32_1 = arith.constant 0 : i32
    return %c0_i32, %c0_i32_0 : i32, i32
  }
  func.func @transform_10(%arg0: i32) -> (i32, i32) {
    %c0_i32 = arith.constant 0 : i32
    %c0_i32_0 = arith.constant 0 : i32
    %c0_i32_1 = arith.constant 0 : i32
    return %c0_i32, %c0_i32_0 : i32, i32
  }
  func.func @transform_11(%arg0: i32) -> (i32, i32) {
    %c0_i32 = arith.constant 0 : i32
    %c0_i32_0 = arith.constant 0 : i32
    %c0_i32_1 = arith.constant 0 : i32
    return %c0_i32, %c0_i32_0 : i32, i32
  }
  func.func @transform_12(%arg0: i32) -> (i32, i32) {
    %c0_i32 = arith.constant 0 : i32
    %c0_i32_0 = arith.constant 0 : i32
    %c0_i32_1 = arith.constant 0 : i32
    return %c0_i32, %c0_i32_0 : i32, i32
  }
  func.func @transform_13(%arg0: i32) -> (i32, i32) {
    %c0_i32 = arith.constant 0 : i32
    %c0_i32_0 = arith.constant 0 : i32
    %c0_i32_1 = arith.constant 0 : i32
    return %c0_i32, %c0_i32_0 : i32, i32
  }
  func.func @transform_14(%arg0: i32) -> (i32, i32) {
    %c0_i32 = arith.constant 0 : i32
    %c0_i32_0 = arith.constant 0 : i32
    %c0_i32_1 = arith.constant 0 : i32
    return %c0_i32, %c0_i32_0 : i32, i32
  }
  func.func @transform_15(%arg0: i32) -> (i32, i32) {
    %c0_i32 = arith.constant 0 : i32
    %c0_i32_0 = arith.constant 0 : i32
    %c0_i32_1 = arith.constant 0 : i32
    return %c0_i32, %c0_i32_0 : i32, i32
  }
  func.func @transform_16(%arg0: i32) -> (i32, i32) {
    %c0_i32 = arith.constant 0 : i32
    %c0_i32_0 = arith.constant 0 : i32
    %c0_i32_1 = arith.constant 0 : i32
    return %c0_i32, %c0_i32_0 : i32, i32
  }
  func.func @transform_17(%arg0: i32) -> (i32, i32) {
    %c0_i32 = arith.constant 0 : i32
    %c0_i32_0 = arith.constant 0 : i32
    %c0_i32_1 = arith.constant 0 : i32
    return %c0_i32, %c0_i32_0 : i32, i32
  }
  func.func @transform_18(%arg0: i32) -> (i32, i32) {
    %c0_i32 = arith.constant 0 : i32
    %c0_i32_0 = arith.constant 0 : i32
    %c0_i32_1 = arith.constant 0 : i32
    return %c0_i32, %c0_i32_0 : i32, i32
  }
  func.func @transform_19(%arg0: i32) -> (i32, i32) {
    %c0_i32 = arith.constant 0 : i32
    %c0_i32_0 = arith.constant 0 : i32
    %c0_i32_1 = arith.constant 0 : i32
    return %c0_i32, %c0_i32_0 : i32, i32
  }
  func.func @transform_20(%arg0: i32) -> (i32, i32) {
    %c0_i32 = arith.constant 0 : i32
    %c0_i32_0 = arith.constant 0 : i32
    %c0_i32_1 = arith.constant 0 : i32
    return %c0_i32, %c0_i32_0 : i32, i32
  }
  func.func @transform_21(%arg0: i32) -> (i32, i32) {
    %c0_i32 = arith.constant 0 : i32
    %c0_i32_0 = arith.constant 0 : i32
    %c0_i32_1 = arith.constant 0 : i32
    return %c0_i32, %c0_i32_0 : i32, i32
  }
  func.func @transform_22(%arg0: i32) -> (i32, i32) {
    %c0_i32 = arith.constant 0 : i32
    %c0_i32_0 = arith.constant 0 : i32
    return %arg0, %c0_i32 : i32, i32
  }
}

module attributes {stable_mosaic.version = 11 : i64} {
  func.func @_ff_kernel(%arg0: i32, %arg1: memref<8x265xf32, #tpu.memory_space<vmem>>, %arg2: memref<3x6xbf16, #tpu.memory_space<vmem>>, %arg3: memref<256x1024xbf16, #tpu.memory_space<vmem>>, %arg4: memref<6x1024xbf16, #tpu.memory_space<vmem>>, %arg5: memref<1x1024xf32, #tpu.memory_space<vmem>>, %arg6: memref<6x6xbf16, #tpu.memory_space<vmem>>, %arg7: memref<6x6xbf16, #tpu.memory_space<vmem>>, %arg8: memref<1024x256xbf16, #tpu.memory_space<vmem>>, %arg9: memref<6x256xbf16, #tpu.memory_space<vmem>>, %arg10: memref<1x256xf32, #tpu.memory_space<vmem>>, %arg11: memref<6x3xbf16, #tpu.memory_space<vmem>>, %arg12: memref<1x256xf32, #tpu.memory_space<vmem>>, %arg13: memref<1x256xf32, #tpu.memory_space<vmem>>, %arg14: memref<1x256xf32, #tpu.memory_space<vmem>>, %arg15: memref<1x256xf32, #tpu.memory_space<vmem>>, %arg16: memref<8x265xf32, #tpu.memory_space<vmem>>) attributes {dimension_semantics = [#tpu.dimension_semantics<parallel>], iteration_bounds = array<i64: 2>, scalar_prefetch = 0 : i64, scratch_operands = 0 : i64, tpu.core_type = #tpu.core_type<tc>, window_params = [{transform_indices = @transform_0, window_bounds = array<i64: 8, 265>}, {pipeline_mode = #tpu.pipeline_mode<synchronous>, transform_indices = @transform_1, window_bounds = array<i64: 3, 6>}, {pipeline_mode = #tpu.pipeline_mode<synchronous>, transform_indices = @transform_2, window_bounds = array<i64: 256, 1024>}, {pipeline_mode = #tpu.pipeline_mode<synchronous>, transform_indices = @transform_3, window_bounds = array<i64: 6, 1024>}, {pipeline_mode = #tpu.pipeline_mode<synchronous>, transform_indices = @transform_4, window_bounds = array<i64: 1, 1024>}, {pipeline_mode = #tpu.pipeline_mode<synchronous>, transform_indices = @transform_5, window_bounds = array<i64: 6, 6>}, {pipeline_mode = #tpu.pipeline_mode<synchronous>, transform_indices = @transform_6, window_bounds = array<i64: 6, 6>}, {pipeline_mode = #tpu.pipeline_mode<synchronous>, transform_indices = @transform_7, window_bounds = array<i64: 1024, 256>}, {pipeline_mode = #tpu.pipeline_mode<synchronous>, transform_indices = @transform_8, window_bounds = array<i64: 6, 256>}, {pipeline_mode = #tpu.pipeline_mode<synchronous>, transform_indices = @transform_9, window_bounds = array<i64: 1, 256>}, {pipeline_mode = #tpu.pipeline_mode<synchronous>, transform_indices = @transform_10, window_bounds = array<i64: 6, 3>}, {pipeline_mode = #tpu.pipeline_mode<synchronous>, transform_indices = @transform_11, window_bounds = array<i64: 1, 256>}, {pipeline_mode = #tpu.pipeline_mode<synchronous>, transform_indices = @transform_12, window_bounds = array<i64: 1, 256>}, {pipeline_mode = #tpu.pipeline_mode<synchronous>, transform_indices = @transform_13, window_bounds = array<i64: 1, 256>}, {pipeline_mode = #tpu.pipeline_mode<synchronous>, transform_indices = @transform_14, window_bounds = array<i64: 1, 256>}, {transform_indices = @transform_15, window_bounds = array<i64: 8, 265>}]} {
    %c0 = arith.constant 0 : index
    %c0_0 = arith.constant 0 : index
    %0 = vector.load %arg1[%c0, %c0_0] : memref<8x265xf32, #tpu.memory_space<vmem>>, vector<8x265xf32>
    %1 = vector.extract_strided_slice %0 {offsets = [0, 0], sizes = [8, 256], strides = [1, 1]} : vector<8x265xf32> to vector<8x256xf32>
    %2 = vector.extract_strided_slice %0 {offsets = [0, 256], sizes = [8, 3], strides = [1, 1]} : vector<8x265xf32> to vector<8x3xf32>
    %3 = vector.extract_strided_slice %0 {offsets = [0, 259], sizes = [8, 3], strides = [1, 1]} : vector<8x265xf32> to vector<8x3xf32>
    %4 = vector.extract_strided_slice %0 {offsets = [0, 262], sizes = [8, 3], strides = [1, 1]} : vector<8x265xf32> to vector<8x3xf32>
    %5 = tpu.concatenate %2, %3, %4 in 0 : vector<8x3xf32>, vector<8x3xf32>, vector<8x3xf32> -> vector<24x3xf32>
    %c0_1 = arith.constant 0 : index
    %c0_2 = arith.constant 0 : index
    %6 = vector.load %arg2[%c0_1, %c0_2] : memref<3x6xbf16, #tpu.memory_space<vmem>>, vector<3x6xbf16>
    %7 = arith.truncf %5 : vector<24x3xf32> to vector<24x3xbf16>
    %cst = arith.constant dense<0.000000e+00> : vector<24x6xf32>
    %8 = tpu.matmul %7, %6, %cst {dimension_numbers = #tpu.dot_dimension_numbers<[1], [0], [0], [1], [0, 0, 1, 1], [], []>} : vector<24x3xbf16>, vector<3x6xbf16>, vector<24x6xf32> -> vector<24x6xf32>
    %c0_3 = arith.constant 0 : index
    %c0_4 = arith.constant 0 : index
    %9 = vector.load %arg3[%c0_3, %c0_4] : memref<256x1024xbf16, #tpu.memory_space<vmem>>, vector<256x1024xbf16>
    %10 = arith.truncf %1 : vector<8x256xf32> to vector<8x256xbf16>
    %cst_5 = arith.constant dense<0.000000e+00> : vector<8x1024xf32>
    %11 = tpu.matmul %10, %9, %cst_5 {dimension_numbers = #tpu.dot_dimension_numbers<[1], [0], [0], [1], [0, 0, 1, 1], [], []>} : vector<8x256xbf16>, vector<256x1024xbf16>, vector<8x1024xf32> -> vector<8x1024xf32>
    %12 = vector.extract_strided_slice %8 {offsets = [0, 0], sizes = [8, 6], strides = [1, 1]} : vector<24x6xf32> to vector<8x6xf32>
    %13 = vector.extract_strided_slice %8 {offsets = [8, 0], sizes = [8, 6], strides = [1, 1]} : vector<24x6xf32> to vector<8x6xf32>
    %14 = vector.extract_strided_slice %8 {offsets = [16, 0], sizes = [8, 6], strides = [1, 1]} : vector<24x6xf32> to vector<8x6xf32>
    %15 = arith.mulf %12, %12 : vector<8x6xf32>
    %16 = arith.mulf %13, %13 : vector<8x6xf32>
    %17 = arith.addf %15, %16 : vector<8x6xf32>
    %18 = arith.mulf %14, %14 : vector<8x6xf32>
    %19 = arith.addf %17, %18 : vector<8x6xf32>
    %cst_6 = arith.constant 9.99999993E-9 : f32
    %20 = vector.broadcast %cst_6 : f32 to vector<8x6xf32>
    %21 = arith.maximumf %19, %20 : vector<8x6xf32>
    %22 = math.sqrt %21 : vector<8x6xf32>
    %c0_7 = arith.constant 0 : index
    %c0_8 = arith.constant 0 : index
    %23 = vector.load %arg4[%c0_7, %c0_8] : memref<6x1024xbf16, #tpu.memory_space<vmem>>, vector<6x1024xbf16>
    %24 = arith.truncf %22 : vector<8x6xf32> to vector<8x6xbf16>
    %cst_9 = arith.constant dense<0.000000e+00> : vector<8x1024xf32>
    %25 = tpu.matmul %24, %23, %cst_9 {dimension_numbers = #tpu.dot_dimension_numbers<[1], [0], [0], [1], [0, 0, 1, 1], [], []>} : vector<8x6xbf16>, vector<6x1024xbf16>, vector<8x1024xf32> -> vector<8x1024xf32>
    %26 = arith.addf %11, %25 : vector<8x1024xf32>
    %c0_10 = arith.constant 0 : index
    %c0_11 = arith.constant 0 : index
    %27 = vector.load %arg5[%c0_10, %c0_11] : memref<1x1024xf32, #tpu.memory_space<vmem>>, vector<1x1024xf32>
    %28 = vector.broadcast %27 : vector<1x1024xf32> to vector<8x1024xf32>
    %29 = arith.addf %26, %28 : vector<8x1024xf32>
    %c0_12 = arith.constant 0 : index
    %c0_13 = arith.constant 0 : index
    %30 = vector.load %arg6[%c0_12, %c0_13] : memref<6x6xbf16, #tpu.memory_space<vmem>>, vector<6x6xbf16>
    %31 = arith.truncf %8 : vector<24x6xf32> to vector<24x6xbf16>
    %cst_14 = arith.constant dense<0.000000e+00> : vector<24x6xf32>
    %32 = tpu.matmul %31, %30, %cst_14 {dimension_numbers = #tpu.dot_dimension_numbers<[1], [0], [0], [1], [0, 0, 1, 1], [], []>} : vector<24x6xbf16>, vector<6x6xbf16>, vector<24x6xf32> -> vector<24x6xf32>
    %33 = vector.extract_strided_slice %32 {offsets = [0, 0], sizes = [8, 6], strides = [1, 1]} : vector<24x6xf32> to vector<8x6xf32>
    %34 = vector.extract_strided_slice %32 {offsets = [8, 0], sizes = [8, 6], strides = [1, 1]} : vector<24x6xf32> to vector<8x6xf32>
    %35 = vector.extract_strided_slice %32 {offsets = [16, 0], sizes = [8, 6], strides = [1, 1]} : vector<24x6xf32> to vector<8x6xf32>
    %36 = arith.mulf %33, %33 : vector<8x6xf32>
    %37 = arith.mulf %34, %34 : vector<8x6xf32>
    %38 = arith.addf %36, %37 : vector<8x6xf32>
    %39 = arith.mulf %35, %35 : vector<8x6xf32>
    %40 = arith.addf %38, %39 : vector<8x6xf32>
    %cst_15 = arith.constant 9.99999993E-9 : f32
    %41 = vector.broadcast %cst_15 : f32 to vector<8x6xf32>
    %42 = arith.maximumf %40, %41 : vector<8x6xf32>
    %43 = math.sqrt %42 : vector<8x6xf32>
    %cst_16 = arith.constant 0.000000e+00 : f32
    %44 = vector.broadcast %cst_16 : f32 to vector<8x6xf32>
    %45 = arith.subf %44, %43 : vector<8x6xf32>
    %46 = math.exp %45 : vector<8x6xf32>
    %cst_17 = arith.constant 1.000000e+00 : f32
    %47 = vector.broadcast %cst_17 : f32 to vector<8x6xf32>
    %48 = arith.addf %47, %46 : vector<8x6xf32>
    %49 = tpu.reciprocal %48 {approx = true} : vector<8x6xf32> -> vector<8x6xf32>
    %50 = arith.mulf %33, %49 : vector<8x6xf32>
    %51 = arith.mulf %34, %49 : vector<8x6xf32>
    %52 = arith.mulf %35, %49 : vector<8x6xf32>
    %cst_18 = arith.constant 0.000000e+00 : f32
    %53 = vector.broadcast %cst_18 : f32 to vector<8x1024xf32>
    %54 = arith.maximumf %29, %53 : vector<8x1024xf32>
    %55 = tpu.concatenate %50, %51, %52 in 0 : vector<8x6xf32>, vector<8x6xf32>, vector<8x6xf32> -> vector<24x6xf32>
    %c0_19 = arith.constant 0 : index
    %c0_20 = arith.constant 0 : index
    %56 = vector.load %arg7[%c0_19, %c0_20] : memref<6x6xbf16, #tpu.memory_space<vmem>>, vector<6x6xbf16>
    %57 = arith.truncf %55 : vector<24x6xf32> to vector<24x6xbf16>
    %cst_21 = arith.constant dense<0.000000e+00> : vector<24x6xf32>
    %58 = tpu.matmul %57, %56, %cst_21 {dimension_numbers = #tpu.dot_dimension_numbers<[1], [0], [0], [1], [0, 0, 1, 1], [], []>} : vector<24x6xbf16>, vector<6x6xbf16>, vector<24x6xf32> -> vector<24x6xf32>
    %c0_22 = arith.constant 0 : index
    %c0_23 = arith.constant 0 : index
    %59 = vector.load %arg8[%c0_22, %c0_23] : memref<1024x256xbf16, #tpu.memory_space<vmem>>, vector<1024x256xbf16>
    %60 = arith.truncf %54 : vector<8x1024xf32> to vector<8x1024xbf16>
    %cst_24 = arith.constant dense<0.000000e+00> : vector<8x256xf32>
    %61 = tpu.matmul %60, %59, %cst_24 {dimension_numbers = #tpu.dot_dimension_numbers<[1], [0], [0], [1], [0, 0, 1, 1], [], []>} : vector<8x1024xbf16>, vector<1024x256xbf16>, vector<8x256xf32> -> vector<8x256xf32>
    %62 = vector.extract_strided_slice %58 {offsets = [0, 0], sizes = [8, 6], strides = [1, 1]} : vector<24x6xf32> to vector<8x6xf32>
    %63 = vector.extract_strided_slice %58 {offsets = [8, 0], sizes = [8, 6], strides = [1, 1]} : vector<24x6xf32> to vector<8x6xf32>
    %64 = vector.extract_strided_slice %58 {offsets = [16, 0], sizes = [8, 6], strides = [1, 1]} : vector<24x6xf32> to vector<8x6xf32>
    %65 = arith.mulf %62, %62 : vector<8x6xf32>
    %66 = arith.mulf %63, %63 : vector<8x6xf32>
    %67 = arith.addf %65, %66 : vector<8x6xf32>
    %68 = arith.mulf %64, %64 : vector<8x6xf32>
    %69 = arith.addf %67, %68 : vector<8x6xf32>
    %cst_25 = arith.constant 9.99999993E-9 : f32
    %70 = vector.broadcast %cst_25 : f32 to vector<8x6xf32>
    %71 = arith.maximumf %69, %70 : vector<8x6xf32>
    %72 = math.sqrt %71 : vector<8x6xf32>
    %c0_26 = arith.constant 0 : index
    %c0_27 = arith.constant 0 : index
    %73 = vector.load %arg9[%c0_26, %c0_27] : memref<6x256xbf16, #tpu.memory_space<vmem>>, vector<6x256xbf16>
    %74 = arith.truncf %72 : vector<8x6xf32> to vector<8x6xbf16>
    %cst_28 = arith.constant dense<0.000000e+00> : vector<8x256xf32>
    %75 = tpu.matmul %74, %73, %cst_28 {dimension_numbers = #tpu.dot_dimension_numbers<[1], [0], [0], [1], [0, 0, 1, 1], [], []>} : vector<8x6xbf16>, vector<6x256xbf16>, vector<8x256xf32> -> vector<8x256xf32>
    %76 = arith.addf %61, %75 : vector<8x256xf32>
    %c0_29 = arith.constant 0 : index
    %c0_30 = arith.constant 0 : index
    %77 = vector.load %arg10[%c0_29, %c0_30] : memref<1x256xf32, #tpu.memory_space<vmem>>, vector<1x256xf32>
    %78 = vector.broadcast %77 : vector<1x256xf32> to vector<8x256xf32>
    %79 = arith.addf %76, %78 : vector<8x256xf32>
    %c0_31 = arith.constant 0 : index
    %c0_32 = arith.constant 0 : index
    %80 = vector.load %arg11[%c0_31, %c0_32] : memref<6x3xbf16, #tpu.memory_space<vmem>>, vector<6x3xbf16>
    %81 = arith.truncf %58 : vector<24x6xf32> to vector<24x6xbf16>
    %cst_33 = arith.constant dense<0.000000e+00> : vector<24x3xf32>
    %82 = tpu.matmul %81, %80, %cst_33 {dimension_numbers = #tpu.dot_dimension_numbers<[1], [0], [0], [1], [0, 0, 1, 1], [], []>} : vector<24x6xbf16>, vector<6x3xbf16>, vector<24x3xf32> -> vector<24x3xf32>
    %83 = vector.extract_strided_slice %82 {offsets = [0, 0], sizes = [8, 3], strides = [1, 1]} : vector<24x3xf32> to vector<8x3xf32>
    %84 = vector.extract_strided_slice %82 {offsets = [8, 0], sizes = [8, 3], strides = [1, 1]} : vector<24x3xf32> to vector<8x3xf32>
    %85 = vector.extract_strided_slice %82 {offsets = [16, 0], sizes = [8, 3], strides = [1, 1]} : vector<24x3xf32> to vector<8x3xf32>
    %86 = arith.addf %1, %79 : vector<8x256xf32>
    %87 = arith.addf %2, %83 : vector<8x3xf32>
    %88 = arith.addf %3, %84 : vector<8x3xf32>
    %89 = arith.addf %4, %85 : vector<8x3xf32>
    %c0_34 = arith.constant 0 : index
    %c0_35 = arith.constant 0 : index
    %90 = vector.load %arg12[%c0_34, %c0_35] : memref<1x256xf32, #tpu.memory_space<vmem>>, vector<1x256xf32>
    %c0_36 = arith.constant 0 : index
    %c0_37 = arith.constant 0 : index
    %91 = vector.load %arg13[%c0_36, %c0_37] : memref<1x256xf32, #tpu.memory_space<vmem>>, vector<1x256xf32>
    %cst_38 = arith.constant dense<0.000000e+00> : vector<8xf32>
    %92 = vector.multi_reduction <add>, %86, %cst_38 [1] : vector<8x256xf32> to vector<8xf32>
    %93 = vector.shape_cast %92 : vector<8xf32> to vector<8x1xf32>
    %cst_39 = arith.constant 2.560000e+02 : f32
    %94 = vector.broadcast %cst_39 : f32 to vector<8x1xf32>
    %95 = arith.divf %93, %94 : vector<8x1xf32>
    %96 = vector.broadcast %95 : vector<8x1xf32> to vector<8x256xf32>
    %97 = arith.subf %86, %96 : vector<8x256xf32>
    %98 = arith.mulf %97, %97 : vector<8x256xf32>
    %cst_40 = arith.constant dense<0.000000e+00> : vector<8xf32>
    %99 = vector.multi_reduction <add>, %98, %cst_40 [1] : vector<8x256xf32> to vector<8xf32>
    %100 = vector.shape_cast %99 : vector<8xf32> to vector<8x1xf32>
    %cst_41 = arith.constant 2.560000e+02 : f32
    %101 = vector.broadcast %cst_41 : f32 to vector<8x1xf32>
    %102 = arith.divf %100, %101 : vector<8x1xf32>
    %cst_42 = arith.constant 9.99999974E-6 : f32
    %103 = vector.broadcast %cst_42 : f32 to vector<8x1xf32>
    %104 = arith.addf %102, %103 : vector<8x1xf32>
    %105 = math.rsqrt %104 : vector<8x1xf32>
    %106 = vector.broadcast %105 : vector<8x1xf32> to vector<8x256xf32>
    %107 = arith.mulf %97, %106 : vector<8x256xf32>
    %108 = vector.broadcast %90 : vector<1x256xf32> to vector<8x256xf32>
    %109 = arith.mulf %107, %108 : vector<8x256xf32>
    %110 = vector.broadcast %91 : vector<1x256xf32> to vector<8x256xf32>
    %111 = arith.addf %109, %110 : vector<8x256xf32>
    %112 = arith.mulf %87, %87 : vector<8x3xf32>
    %113 = arith.mulf %88, %88 : vector<8x3xf32>
    %114 = arith.addf %112, %113 : vector<8x3xf32>
    %115 = arith.mulf %89, %89 : vector<8x3xf32>
    %116 = arith.addf %114, %115 : vector<8x3xf32>
    %cst_43 = arith.constant 9.99999993E-9 : f32
    %117 = vector.broadcast %cst_43 : f32 to vector<8x3xf32>
    %118 = arith.maximumf %116, %117 : vector<8x3xf32>
    %cst_44 = arith.constant dense<0.000000e+00> : vector<8xf32>
    %119 = vector.multi_reduction <add>, %118, %cst_44 [1] : vector<8x3xf32> to vector<8xf32>
    %120 = vector.shape_cast %119 : vector<8xf32> to vector<8x1xf32>
    %cst_45 = arith.constant 3.000000e+00 : f32
    %121 = vector.broadcast %cst_45 : f32 to vector<8x1xf32>
    %122 = arith.divf %120, %121 : vector<8x1xf32>
    %123 = math.rsqrt %122 : vector<8x1xf32>
    %124 = vector.broadcast %123 : vector<8x1xf32> to vector<8x3xf32>
    %125 = arith.mulf %87, %124 : vector<8x3xf32>
    %126 = vector.broadcast %123 : vector<8x1xf32> to vector<8x3xf32>
    %127 = arith.mulf %88, %126 : vector<8x3xf32>
    %128 = vector.broadcast %123 : vector<8x1xf32> to vector<8x3xf32>
    %129 = arith.mulf %89, %128 : vector<8x3xf32>
    %c0_46 = arith.constant 0 : index
    %c0_47 = arith.constant 0 : index
    %130 = vector.load %arg14[%c0_46, %c0_47] : memref<1x256xf32, #tpu.memory_space<vmem>>, vector<1x256xf32>
    %c0_48 = arith.constant 0 : index
    %c0_49 = arith.constant 0 : index
    %131 = vector.load %arg15[%c0_48, %c0_49] : memref<1x256xf32, #tpu.memory_space<vmem>>, vector<1x256xf32>
    %cst_50 = arith.constant dense<0.000000e+00> : vector<8xf32>
    %132 = vector.multi_reduction <add>, %111, %cst_50 [1] : vector<8x256xf32> to vector<8xf32>
    %133 = vector.shape_cast %132 : vector<8xf32> to vector<8x1xf32>
    %cst_51 = arith.constant 2.560000e+02 : f32
    %134 = vector.broadcast %cst_51 : f32 to vector<8x1xf32>
    %135 = arith.divf %133, %134 : vector<8x1xf32>
    %136 = vector.broadcast %135 : vector<8x1xf32> to vector<8x256xf32>
    %137 = arith.subf %111, %136 : vector<8x256xf32>
    %138 = arith.mulf %137, %137 : vector<8x256xf32>
    %cst_52 = arith.constant dense<0.000000e+00> : vector<8xf32>
    %139 = vector.multi_reduction <add>, %138, %cst_52 [1] : vector<8x256xf32> to vector<8xf32>
    %140 = vector.shape_cast %139 : vector<8xf32> to vector<8x1xf32>
    %cst_53 = arith.constant 2.560000e+02 : f32
    %141 = vector.broadcast %cst_53 : f32 to vector<8x1xf32>
    %142 = arith.divf %140, %141 : vector<8x1xf32>
    %cst_54 = arith.constant 9.99999974E-6 : f32
    %143 = vector.broadcast %cst_54 : f32 to vector<8x1xf32>
    %144 = arith.addf %142, %143 : vector<8x1xf32>
    %145 = math.rsqrt %144 : vector<8x1xf32>
    %146 = vector.broadcast %145 : vector<8x1xf32> to vector<8x256xf32>
    %147 = arith.mulf %137, %146 : vector<8x256xf32>
    %148 = vector.broadcast %130 : vector<1x256xf32> to vector<8x256xf32>
    %149 = arith.mulf %147, %148 : vector<8x256xf32>
    %150 = vector.broadcast %131 : vector<1x256xf32> to vector<8x256xf32>
    %151 = arith.addf %149, %150 : vector<8x256xf32>
    %152 = arith.mulf %125, %125 : vector<8x3xf32>
    %153 = arith.mulf %127, %127 : vector<8x3xf32>
    %154 = arith.addf %152, %153 : vector<8x3xf32>
    %155 = arith.mulf %129, %129 : vector<8x3xf32>
    %156 = arith.addf %154, %155 : vector<8x3xf32>
    %cst_55 = arith.constant 9.99999993E-9 : f32
    %157 = vector.broadcast %cst_55 : f32 to vector<8x3xf32>
    %158 = arith.maximumf %156, %157 : vector<8x3xf32>
    %cst_56 = arith.constant dense<0.000000e+00> : vector<8xf32>
    %159 = vector.multi_reduction <add>, %158, %cst_56 [1] : vector<8x3xf32> to vector<8xf32>
    %160 = vector.shape_cast %159 : vector<8xf32> to vector<8x1xf32>
    %cst_57 = arith.constant 3.000000e+00 : f32
    %161 = vector.broadcast %cst_57 : f32 to vector<8x1xf32>
    %162 = arith.divf %160, %161 : vector<8x1xf32>
    %163 = math.rsqrt %162 : vector<8x1xf32>
    %164 = vector.broadcast %163 : vector<8x1xf32> to vector<8x3xf32>
    %165 = arith.mulf %125, %164 : vector<8x3xf32>
    %166 = vector.broadcast %163 : vector<8x1xf32> to vector<8x3xf32>
    %167 = arith.mulf %127, %166 : vector<8x3xf32>
    %168 = vector.broadcast %163 : vector<8x1xf32> to vector<8x3xf32>
    %169 = arith.mulf %129, %168 : vector<8x3xf32>
    %170 = tpu.concatenate %151, %165, %167, %169 in 1 : vector<8x256xf32>, vector<8x3xf32>, vector<8x3xf32>, vector<8x3xf32> -> vector<8x265xf32>
    %c0_58 = arith.constant 0 : index
    %c0_59 = arith.constant 0 : index
    %171 = vector.load %arg16[%c0_58, %c0_59] : memref<8x265xf32, #tpu.memory_space<vmem>>, vector<8x265xf32>
    tpu.vector_store %arg16[%c0_58, %c0_59], %170 {strides = array<i32>} : memref<8x265xf32, #tpu.memory_space<vmem>>, vector<8x265xf32>,
    return
  }
  func.func @transform_0(%arg0: i32) -> (i32, i32) {
    %c0_i32 = arith.constant 0 : i32
    %c0_i32_0 = arith.constant 0 : i32
    return %arg0, %c0_i32 : i32, i32
  }
  func.func @transform_1(%arg0: i32) -> (i32, i32) {
    %c0_i32 = arith.constant 0 : i32
    %c0_i32_0 = arith.constant 0 : i32
    %c0_i32_1 = arith.constant 0 : i32
    return %c0_i32, %c0_i32_0 : i32, i32
  }
  func.func @transform_2(%arg0: i32) -> (i32, i32) {
    %c0_i32 = arith.constant 0 : i32
    %c0_i32_0 = arith.constant 0 : i32
    %c0_i32_1 = arith.constant 0 : i32
    return %c0_i32, %c0_i32_0 : i32, i32
  }
  func.func @transform_3(%arg0: i32) -> (i32, i32) {
    %c0_i32 = arith.constant 0 : i32
    %c0_i32_0 = arith.constant 0 : i32
    %c0_i32_1 = arith.constant 0 : i32
    return %c0_i32, %c0_i32_0 : i32, i32
  }
  func.func @transform_4(%arg0: i32) -> (i32, i32) {
    %c0_i32 = arith.constant 0 : i32
    %c0_i32_0 = arith.constant 0 : i32
    %c0_i32_1 = arith.constant 0 : i32
    return %c0_i32, %c0_i32_0 : i32, i32
  }
  func.func @transform_5(%arg0: i32) -> (i32, i32) {
    %c0_i32 = arith.constant 0 : i32
    %c0_i32_0 = arith.constant 0 : i32
    %c0_i32_1 = arith.constant 0 : i32
    return %c0_i32, %c0_i32_0 : i32, i32
  }
  func.func @transform_6(%arg0: i32) -> (i32, i32) {
    %c0_i32 = arith.constant 0 : i32
    %c0_i32_0 = arith.constant 0 : i32
    %c0_i32_1 = arith.constant 0 : i32
    return %c0_i32, %c0_i32_0 : i32, i32
  }
  func.func @transform_7(%arg0: i32) -> (i32, i32) {
    %c0_i32 = arith.constant 0 : i32
    %c0_i32_0 = arith.constant 0 : i32
    %c0_i32_1 = arith.constant 0 : i32
    return %c0_i32, %c0_i32_0 : i32, i32
  }
  func.func @transform_8(%arg0: i32) -> (i32, i32) {
    %c0_i32 = arith.constant 0 : i32
    %c0_i32_0 = arith.constant 0 : i32
    %c0_i32_1 = arith.constant 0 : i32
    return %c0_i32, %c0_i32_0 : i32, i32
  }
  func.func @transform_9(%arg0: i32) -> (i32, i32) {
    %c0_i32 = arith.constant 0 : i32
    %c0_i32_0 = arith.constant 0 : i32
    %c0_i32_1 = arith.constant 0 : i32
    return %c0_i32, %c0_i32_0 : i32, i32
  }
  func.func @transform_10(%arg0: i32) -> (i32, i32) {
    %c0_i32 = arith.constant 0 : i32
    %c0_i32_0 = arith.constant 0 : i32
    %c0_i32_1 = arith.constant 0 : i32
    return %c0_i32, %c0_i32_0 : i32, i32
  }
  func.func @transform_11(%arg0: i32) -> (i32, i32) {
    %c0_i32 = arith.constant 0 : i32
    %c0_i32_0 = arith.constant 0 : i32
    %c0_i32_1 = arith.constant 0 : i32
    return %c0_i32, %c0_i32_0 : i32, i32
  }
  func.func @transform_12(%arg0: i32) -> (i32, i32) {
    %c0_i32 = arith.constant 0 : i32
    %c0_i32_0 = arith.constant 0 : i32
    %c0_i32_1 = arith.constant 0 : i32
    return %c0_i32, %c0_i32_0 : i32, i32
  }
  func.func @transform_13(%arg0: i32) -> (i32, i32) {
    %c0_i32 = arith.constant 0 : i32
    %c0_i32_0 = arith.constant 0 : i32
    %c0_i32_1 = arith.constant 0 : i32
    return %c0_i32, %c0_i32_0 : i32, i32
  }
  func.func @transform_14(%arg0: i32) -> (i32, i32) {
    %c0_i32 = arith.constant 0 : i32
    %c0_i32_0 = arith.constant 0 : i32
    %c0_i32_1 = arith.constant 0 : i32
    return %c0_i32, %c0_i32_0 : i32, i32
  }
  func.func @transform_15(%arg0: i32) -> (i32, i32) {
    %c0_i32 = arith.constant 0 : i32
    %c0_i32_0 = arith.constant 0 : i32
    return %arg0, %c0_i32 : i32, i32
  }
}

</mosaic_0001>

<llo_original>
// kernel: pocket_encoder_forward.9
$region0: #{pocket_encoder_forward.9}
  #allocation0 [shape = 'u32[]', space=smem, size = 0x4, offset = 0x4, fixed_abs, tag = 'smem constant byte address 0x4 - core index']
  #allocation1 [shape = 'u32[144,128]{1,0:T(1,128)}', space=vmem, size = 0x12000, scoped, tag = 'internal scratch']
  %s0 = inlined_call_operand.vmem [shape: f32[16,265], index: 0, kind: input, shape index: {}]
  %s1 = inlined_call_operand.vmem [shape: f32[1,256], index: 1, kind: input, shape index: {}]
  %s2 = inlined_call_operand.vmem [shape: f32[1,256], index: 2, kind: input, shape index: {}]
  %s3 = inlined_call_operand.vmem [shape: f32[16,265], index: 3, kind: output, shape index: {}]
  %s4 = sld [smem:[#allocation0]]
  $region45: #{pocket_encoder_forward.9} parent=0
    _
  %s6 = ssub.s32 1, %s4
  %s7 = scalar_select 0, %s6, %s4
  loop: start=0, step=1, limit=4
  $region2: #{pocket_encoder_forward.9} parent=0 // loop_pre_header
    _
  $region3: #{pocket_encoder_forward.9} parent=0 // loop_header
    %s9 = sphi 0, %s13
    %p10 = scmp.ge.s32.totalorder %s9, 4
    %s19 = sphi 0, %s21
    %s22 = sphi 0, %s19
    %s23 = sphi 0, %s22
    %s39 = sphi 0, %s23
    %s43 = sphi 0, %s43
    %s45 = sphi 0, %s43
    %s46 = sphi 0, %s45
    %s60 = sphi 0, %s46
    %s64 = sphi 0, %s64
    %s66 = sphi 0, %s64
    %s67 = sphi 0, %s66
    %s81 = sphi 0, %s67
    %s87 = sphi 0, %s89
    %s90 = sphi 0, %s87
    %s91 = sphi 0, %s90
    %s107 = sphi 0, %s91
  $region4: #{pocket_encoder_forward.9} parent=0 // loop_header_branch
    %12 = sbr.rel (%p10) target = $region8
  $region5: #{pocket_encoder_forward.9} parent=0 // loop_body
    %s14 = ssub.s32 %s9, 1
    %s15 = ssub.s32 %s9, 2
    %s16 = sadd.s32 %s9, 1
    %s17 = ssub.s32 %s9, %s16
    %p18 = scmp.eq.s32.totalorder %s17, 0
    %s20 = sadd.s32 %s19, 1
    %s21 = scalar_select %p18, %s19, %s20
    %p24 = pneg %p18
    %p25 = scmp.eq.s32.totalorder %s9, 1
    %p26 = por %p24, %p25
    %p27 = scmp.ne.s32.totalorder %s19, %s22
    %p28 = scmp.eq.s32.totalorder %s9, 0
    %p29 = por %p27, %p28
    %p30 = scmp.ne.s32.totalorder %s19, %s22
    %p31 = scmp.eq.s32.totalorder %s14, 1
    %p32 = por %p30, %p31
    %p33 = scmp.ne.s32.totalorder %s22, %s23
    %p34 = scmp.eq.s32.totalorder %s14, 0
    %p35 = por %p33, %p34
    %p36 = scmp.ne.s32.totalorder %s22, %s23
    %p37 = scmp.eq.s32.totalorder %s15, 1
    %p38 = por %p36, %p37
    %p40 = scmp.ne.s32.totalorder %s23, %s39
    %p41 = scmp.eq.s32.totalorder %s15, 0
    %p42 = por %p40, %p41
    %s44 = sadd.s32 %s43, 1
    %p47 = scmp.eq.s32.totalorder %s9, 1
    %p48 = scmp.ne.s32.totalorder %s43, %s45
    %p49 = scmp.eq.s32.totalorder %s9, 0
    %p50 = por %p48, %p49
    %p51 = scmp.ne.s32.totalorder %s43, %s45
    %p52 = scmp.eq.s32.totalorder %s14, 1
    %p53 = por %p51, %p52
    %p54 = scmp.ne.s32.totalorder %s45, %s46
    %p55 = scmp.eq.s32.totalorder %s14, 0
    %p56 = por %p54, %p55
    %p57 = scmp.ne.s32.totalorder %s45, %s46
    %p58 = scmp.eq.s32.totalorder %s15, 1
    %p59 = por %p57, %p58
    %p61 = scmp.ne.s32.totalorder %s46, %s60
    %p62 = scmp.eq.s32.totalorder %s15, 0
    %p63 = por %p61, %p62
    %s65 = sadd.s32 %s64, 1
    %p68 = scmp.eq.s32.totalorder %s9, 1
    %p69 = scmp.ne.s32.totalorder %s64, %s66
    %p70 = scmp.eq.s32.totalorder %s9, 0
    %p71 = por %p69, %p70
    %p72 = scmp.ne.s32.totalorder %s64, %s66
    %p73 = scmp.eq.s32.totalorder %s14, 1
    %p74 = por %p72, %p73
    %p75 = scmp.ne.s32.totalorder %s66, %s67
    %p76 = scmp.eq.s32.totalorder %s14, 0
    %p77 = por %p75, %p76
    %p78 = scmp.ne.s32.totalorder %s66, %s67
    %p79 = scmp.eq.s32.totalorder %s15, 1
    %p80 = por %p78, %p79
    %p82 = scmp.ne.s32.totalorder %s67, %s81
    %p83 = scmp.eq.s32.totalorder %s15, 0
    %p84 = por %p82, %p83
    %s85 = ssub.s32 %s9, %s16
    %p86 = scmp.eq.s32.totalorder %s85, 0
    %s88 = sadd.s32 %s87, 1
    %s89 = scalar_select %p86, %s87, %s88
    %p92 = pneg %p86
    %p93 = scmp.eq.s32.totalorder %s9, 1
    %p94 = por %p92, %p93
    %p95 = scmp.ne.s32.totalorder %s87, %s90
    %p96 = scmp.eq.s32.totalorder %s9, 0
    %p97 = por %p95, %p96
    %p98 = scmp.ne.s32.totalorder %s87, %s90
    %p99 = scmp.eq.s32.totalorder %s14, 1
    %p100 = por %p98, %p99
    %p101 = scmp.ne.s32.totalorder %s90, %s91
    %p102 = scmp.eq.s32.totalorder %s14, 0
    %p103 = por %p101, %p102
    %p104 = scmp.ne.s32.totalorder %s90, %s91
    %p105 = scmp.eq.s32.totalorder %s15, 1
    %p106 = por %p104, %p105
    %p108 = scmp.ne.s32.totalorder %s91, %s107
    %p109 = scmp.eq.s32.totalorder %s15, 0
    %p110 = por %p108, %p109
    %p111 = scmp.le.s32.totalorder 1, %s9
    %p112 = scmp.lt.s32.totalorder %s9, 3
    %p113 = pnand %p111, %p112
    %p114 = pneg %p113
    // Predicated region
    $region9: #{pocket_encoder_forward.9} parent=5 // pred_check
      _
    $region10: #{pocket_encoder_forward.9} parent=5 // pred_check_branch
      %116 = sbr.rel (%p113) target = $region12
    $region11: #{pocket_encoder_forward.9} parent=5 // pred_region
      %s117 = ssub.s32 %s9, 1
      // Predicated region
      $region13: #{pocket_encoder_forward.9} parent=11 // pred_check
        %p118 = pneg %p56
      $region14: #{pocket_encoder_forward.9} parent=11 // pred_check_branch
        %120 = sbr.rel (%p118) target = $region16
      $region15: #{pocket_encoder_forward.9} parent=11 // pred_region
        _
      $region16: #{pocket_encoder_forward.9} parent=11 // pred_fallthru
        _
      // Predicated region
      $region17: #{pocket_encoder_forward.9} parent=11 // pred_check
        %p121 = pneg %p77
      $region18: #{pocket_encoder_forward.9} parent=11 // pred_check_branch
        %123 = sbr.rel (%p121) target = $region20
      $region19: #{pocket_encoder_forward.9} parent=11 // pred_region
        _
      $region20: #{pocket_encoder_forward.9} parent=11 // pred_fallthru
        _
    $region12: #{pocket_encoder_forward.9} parent=5 // pred_fallthru
      _
    %p124 = scmp.lt.s32.totalorder %s9, 2
    // Predicated region
    $region21: #{pocket_encoder_forward.9} parent=5 // pred_check
      %p125 = pneg %p124
    $region22: #{pocket_encoder_forward.9} parent=5 // pred_check_branch
      %127 = sbr.rel (%p125) target = $region24
    $region23: #{pocket_encoder_forward.9} parent=5 // pred_region
      // Predicated region
      $region25: #{pocket_encoder_forward.9} parent=23 // pred_check
        %p128 = pneg %p29
      $region26: #{pocket_encoder_forward.9} parent=23 // pred_check_branch
        %130 = sbr.rel (%p128) target = $region28
      $region27: #{pocket_encoder_forward.9} parent=23 // pred_region
        %p131 = scmp.lt.s32.totalorder %s9, 1
        %s132 = scalar_select %p131, %s9, 1
        %s133 = smul.addr %s132, 3
        %s134 = smul.addr %s133, 8
        %s135 = scalar_lea.vmem %s0, %s134
      $region28: #{pocket_encoder_forward.9} parent=23 // pred_fallthru
        _
    $region24: #{pocket_encoder_forward.9} parent=5 // pred_fallthru
      _
    %p136 = scmp.le.s32.totalorder 1, %s9
    %p137 = scmp.lt.s32.totalorder %s9, 3
    %p138 = pnand %p136, %p137
    %p139 = pneg %p138
    // Predicated region
    $region29: #{pocket_encoder_forward.9} parent=5 // pred_check
      _
    $region30: #{pocket_encoder_forward.9} parent=5 // pred_check_branch
      %141 = sbr.rel (%p138) target = $region32
    $region31: #{pocket_encoder_forward.9} parent=5 // pred_region
      %s142 = ssub.s32 %s9, 1
      %p143 = scmp.lt.s32.totalorder %s14, 1
      %s144 = scalar_select %p143, %s14, 1
      %s145 = smul.addr %s144, 3
      %s146 = smul.addr %s145, 8
      %s147 = scalar_lea.vmem %s0, %s146
      %p148 = pneg %p35
      %p149 = pneg %p32
      %p150 = pneg %p56
      %p151 = pneg %p53
      %p152 = pneg %p77
      %p153 = pneg %p74
      %p154 = pneg %p103
      %p155 = pneg %p100
      %p156 = scmp.lt.s32.totalorder %s14, 1
      %s157 = scalar_select %p156, %s14, 1
      %s158 = smul.addr %s157, 3
      %s159 = smul.addr %s158, 8
      %s160 = scalar_lea.vmem %s3, %s159
      %p161 = scmp.lt.s32.totalorder %s14, 1
      %s162 = scalar_select %p161, %s14, 1
      %s163 = smul.addr %s162, 3
      %s164 = smul.addr %s163, 8
      %s165 = scalar_lea.vmem %s0, %s164
      %p166 = scmp.lt.s32.totalorder %s14, 1
      %s167 = scalar_select %p166, %s14, 1
      %s168 = smul.addr %s167, 3
      %s169 = smul.addr %s168, 8
      %s170 = scalar_lea.vmem %s3, %s169
      %v171 = vld [vmem:[%s165] sm:$0xff]
      %v172 = vld [vmem:[%s165 + $0x8] sm:$0xff]
      %v173 = vld [vmem:[%s165 + $0x10] sm:$0xff]
      %v174 = vld [vmem:[%s1] sm:$0x3]
      %v175 = vld [vmem:[%s2] sm:$0x3]
      %v176 = vadd.f32 %v171, %v172
      %177 = vadd.xlane.f32.xlu0 %v176
      %v178 = vpop.xlane.xlu0 %177
      %v179 = vrcp.pop 256.0
      %v180 = vmul.f32 %v178, %v179
      %v181 = vsub.f32 %v171, %v180
      %v182 = vsub.f32 %v172, %v180
      %v183 = vmul.f32 %v181, %v181
      %v184 = vmul.f32 %v182, %v182
      %v185 = vadd.f32 %v183, %v184
      %186 = vadd.xlane.f32.xlu0 %v185
      %v187 = vpop.xlane.xlu0 %186
      %v188 = vmul.f32 %v187, %v179
      %v189 = vadd.f32 %v188, 1e-05
      %v190 = vrsqrt.pop %v189
      %v191 = vmul.f32 %v181, %v190
      %v192 = vmul.f32 %v182, %v190
      %v194 = vlaneseq
      %v195 = vshrl.u32 %v194, 7
      %v196 = vsub.s32 0, %v195
      %v197 = vrot.slane %v174, %v196
      %v198 = vlaneseq
      %v199 = vshrl.u32 %v198, 7
      %v200 = vsub.s32 1, %v199
      %v201 = vrot.slane %v174, %v200
      %v204 = vmul.f32 %v191, %v197
      %v205 = vmul.f32 %v192, %v201
      %v207 = vlaneseq
      %v208 = vshrl.u32 %v207, 7
      %v209 = vsub.s32 0, %v208
      %v210 = vrot.slane %v175, %v209
      %v211 = vlaneseq
      %v212 = vshrl.u32 %v211, 7
      %v213 = vsub.s32 1, %v212
      %v214 = vrot.slane %v175, %v213
      %v217 = vadd.f32 %v204, %v210
      %v218 = vadd.f32 %v205, %v214
      %v219 = vmul.f32 %v173, %v173
      %221 = vrot.lane.b32.xlu0 %v219, 125
      %v222 = vpop.permute.xlu0 %221
      %v224 = vadd.f32 %v219, %v222
      %225 = vrot.lane.b32.xlu0 %v219, 122
      %v226 = vpop.permute.xlu0 %225
      %v228 = vadd.f32 %v224, %v226
      %v229 = vmax.f32 %v228, 1e-08
      %vm230 = vcmask 23552
      %v231 = vsel %vm230, %v229, 0.0
      %232 = vadd.xlane.f32.xlu0 %v231
      %v233 = vpop.xlane.xlu0 %232
      %v234 = vrcp.pop 3.0
      %v235 = vmul.f32 %v233, %v234
      %v236 = vrsqrt.pop %v235
      %v237 = vmul.f32 %v173, %v236
      %vm238 = vcmask 48128
      %v239 = vsel %vm238, %v237, %v237
      %240 = vst [vmem:[%s170] sm:$0xff] %v217
      %241 = vst [vmem:[%s170 + $0x8] sm:$0xff] %v218
      %vm242 = vcmask 72704
      %243 = vst.msk [vmem:[%s170 + $0x10] sm:$0xff] %vm242, %v239
      %p244 = scmp.lt.s32.totalorder %s14, 1
      %s245 = scalar_select %p244, %s14, 1
      %s246 = smul.addr %s245, 3
      %s247 = smul.addr %s246, 8
      %s248 = scalar_lea.vmem %s3, %s247
      // Predicated region
      $region33: #{pocket_encoder_forward.9} parent=31 // pred_check
        %p249 = pneg %p100
      $region34: #{pocket_encoder_forward.9} parent=31 // pred_check_branch
        %251 = sbr.rel (%p249) target = $region36
      $region35: #{pocket_encoder_forward.9} parent=31 // pred_region
        _
      $region36: #{pocket_encoder_forward.9} parent=31 // pred_fallthru
        _
    $region32: #{pocket_encoder_forward.9} parent=5 // pred_fallthru
      _
    %p252 = scmp.le.s32.totalorder 2, %s9
    // Predicated region
    $region37: #{pocket_encoder_forward.9} parent=5 // pred_check
      %p253 = pneg %p252
    $region38: #{pocket_encoder_forward.9} parent=5 // pred_check_branch
      %255 = sbr.rel (%p253) target = $region40
    $region39: #{pocket_encoder_forward.9} parent=5 // pred_region
      %s256 = ssub.s32 %s9, 2
      // Predicated region
      $region41: #{pocket_encoder_forward.9} parent=39 // pred_check
        %p257 = pneg %p106
      $region42: #{pocket_encoder_forward.9} parent=39 // pred_check_branch
        %259 = sbr.rel (%p257) target = $region44
      $region43: #{pocket_encoder_forward.9} parent=39 // pred_region
        %p260 = scmp.lt.s32.totalorder %s15, 1
        %s261 = scalar_select %p260, %s15, 1
        %s262 = smul.addr %s261, 3
        %s263 = smul.addr %s262, 8
        %s264 = scalar_lea.vmem %s3, %s263
      $region44: #{pocket_encoder_forward.9} parent=39 // pred_fallthru
        _
    $region40: #{pocket_encoder_forward.9} parent=5 // pred_fallthru
      _
  $region6: #{pocket_encoder_forward.9} parent=0 // loop_footer
    %s13 = sadd.s32 1, %s9
  $region7: #{pocket_encoder_forward.9} parent=0 // loop_footer_branch
    %8 = sbr.rel target = $region3
  $region8: #{pocket_encoder_forward.9} parent=0 // loop_exit
    _

// kernel: pocket_encoder_forward.11
$region0: #{pocket_encoder_forward.11}
  #allocation0 [shape = 'u32[]', space=smem, size = 0x4, offset = 0x4, fixed_abs, tag = 'smem constant byte address 0x4 - core index']
  #allocation1 [shape = 'u32[144,128]{1,0:T(1,128)}', space=vmem, size = 0x12000, scoped, tag = 'internal scratch']
  %s0 = inlined_call_operand.vmem [shape: f32[16,265], index: 0, kind: input, shape index: {}]
  %s1 = inlined_call_operand.vmem [shape: f32[16,265], index: 1, kind: input, shape index: {}]
  %s2 = inlined_call_operand.vmem [shape: f32[1,256], index: 2, kind: input, shape index: {}]
  %s3 = inlined_call_operand.vmem [shape: f32[1,256], index: 3, kind: input, shape index: {}]
  %s4 = inlined_call_operand.vmem [shape: f32[16,265], index: 4, kind: output, shape index: {}]
  %s5 = sld [smem:[#allocation0]]
  $region49: #{pocket_encoder_forward.11} parent=0
    _
  %s7 = ssub.s32 1, %s5
  %s8 = scalar_select 0, %s7, %s5
  loop: start=0, step=1, limit=4
  $region2: #{pocket_encoder_forward.11} parent=0 // loop_pre_header
    _
  $region3: #{pocket_encoder_forward.11} parent=0 // loop_header
    %s10 = sphi 0, %s14
    %p11 = scmp.ge.s32.totalorder %s10, 4
    %s20 = sphi 0, %s22
    %s23 = sphi 0, %s20
    %s24 = sphi 0, %s23
    %s40 = sphi 0, %s24
    %s46 = sphi 0, %s48
    %s49 = sphi 0, %s46
    %s50 = sphi 0, %s49
    %s66 = sphi 0, %s50
    %s70 = sphi 0, %s70
    %s72 = sphi 0, %s70
    %s73 = sphi 0, %s72
    %s87 = sphi 0, %s73
    %s91 = sphi 0, %s91
    %s93 = sphi 0, %s91
    %s94 = sphi 0, %s93
    %s108 = sphi 0, %s94
    %s114 = sphi 0, %s116
    %s117 = sphi 0, %s114
    %s118 = sphi 0, %s117
    %s134 = sphi 0, %s118
  $region4: #{pocket_encoder_forward.11} parent=0 // loop_header_branch
    %13 = sbr.rel (%p11) target = $region8
  $region5: #{pocket_encoder_forward.11} parent=0 // loop_body
    %s15 = ssub.s32 %s10, 1
    %s16 = ssub.s32 %s10, 2
    %s17 = sadd.s32 %s10, 1
    %s18 = ssub.s32 %s10, %s17
    %p19 = scmp.eq.s32.totalorder %s18, 0
    %s21 = sadd.s32 %s20, 1
    %s22 = scalar_select %p19, %s20, %s21
    %p25 = pneg %p19
    %p26 = scmp.eq.s32.totalorder %s10, 1
    %p27 = por %p25, %p26
    %p28 = scmp.ne.s32.totalorder %s20, %s23
    %p29 = scmp.eq.s32.totalorder %s10, 0
    %p30 = por %p28, %p29
    %p31 = scmp.ne.s32.totalorder %s20, %s23
    %p32 = scmp.eq.s32.totalorder %s15, 1
    %p33 = por %p31, %p32
    %p34 = scmp.ne.s32.totalorder %s23, %s24
    %p35 = scmp.eq.s32.totalorder %s15, 0
    %p36 = por %p34, %p35
    %p37 = scmp.ne.s32.totalorder %s23, %s24
    %p38 = scmp.eq.s32.totalorder %s16, 1
    %p39 = por %p37, %p38
    %p41 = scmp.ne.s32.totalorder %s24, %s40
    %p42 = scmp.eq.s32.totalorder %s16, 0
    %p43 = por %p41, %p42
    %s44 = ssub.s32 %s10, %s17
    %p45 = scmp.eq.s32.totalorder %s44, 0
    %s47 = sadd.s32 %s46, 1
    %s48 = scalar_select %p45, %s46, %s47
    %p51 = pneg %p45
    %p52 = scmp.eq.s32.totalorder %s10, 1
    %p53 = por %p51, %p52
    %p54 = scmp.ne.s32.totalorder %s46, %s49
    %p55 = scmp.eq.s32.totalorder %s10, 0
    %p56 = por %p54, %p55
    %p57 = scmp.ne.s32.totalorder %s46, %s49
    %p58 = scmp.eq.s32.totalorder %s15, 1
    %p59 = por %p57, %p58
    %p60 = scmp.ne.s32.totalorder %s49, %s50
    %p61 = scmp.eq.s32.totalorder %s15, 0
    %p62 = por %p60, %p61
    %p63 = scmp.ne.s32.totalorder %s49, %s50
    %p64 = scmp.eq.s32.totalorder %s16, 1
    %p65 = por %p63, %p64
    %p67 = scmp.ne.s32.totalorder %s50, %s66
    %p68 = scmp.eq.s32.totalorder %s16, 0
    %p69 = por %p67, %p68
    %s71 = sadd.s32 %s70, 1
    %p74 = scmp.eq.s32.totalorder %s10, 1
    %p75 = scmp.ne.s32.totalorder %s70, %s72
    %p76 = scmp.eq.s32.totalorder %s10, 0
    %p77 = por %p75, %p76
    %p78 = scmp.ne.s32.totalorder %s70, %s72
    %p79 = scmp.eq.s32.totalorder %s15, 1
    %p80 = por %p78, %p79
    %p81 = scmp.ne.s32.totalorder %s72, %s73
    %p82 = scmp.eq.s32.totalorder %s15, 0
    %p83 = por %p81, %p82
    %p84 = scmp.ne.s32.totalorder %s72, %s73
    %p85 = scmp.eq.s32.totalorder %s16, 1
    %p86 = por %p84, %p85
    %p88 = scmp.ne.s32.totalorder %s73, %s87
    %p89 = scmp.eq.s32.totalorder %s16, 0
    %p90 = por %p88, %p89
    %s92 = sadd.s32 %s91, 1
    %p95 = scmp.eq.s32.totalorder %s10, 1
    %p96 = scmp.ne.s32.totalorder %s91, %s93
    %p97 = scmp.eq.s32.totalorder %s10, 0
    %p98 = por %p96, %p97
    %p99 = scmp.ne.s32.totalorder %s91, %s93
    %p100 = scmp.eq.s32.totalorder %s15, 1
    %p101 = por %p99, %p100
    %p102 = scmp.ne.s32.totalorder %s93, %s94
    %p103 = scmp.eq.s32.totalorder %s15, 0
    %p104 = por %p102, %p103
    %p105 = scmp.ne.s32.totalorder %s93, %s94
    %p106 = scmp.eq.s32.totalorder %s16, 1
    %p107 = por %p105, %p106
    %p109 = scmp.ne.s32.totalorder %s94, %s108
    %p110 = scmp.eq.s32.totalorder %s16, 0
    %p111 = por %p109, %p110
    %s112 = ssub.s32 %s10, %s17
    %p113 = scmp.eq.s32.totalorder %s112, 0
    %s115 = sadd.s32 %s114, 1
    %s116 = scalar_select %p113, %s114, %s115
    %p119 = pneg %p113
    %p120 = scmp.eq.s32.totalorder %s10, 1
    %p121 = por %p119, %p120
    %p122 = scmp.ne.s32.totalorder %s114, %s117
    %p123 = scmp.eq.s32.totalorder %s10, 0
    %p124 = por %p122, %p123
    %p125 = scmp.ne.s32.totalorder %s114, %s117
    %p126 = scmp.eq.s32.totalorder %s15, 1
    %p127 = por %p125, %p126
    %p128 = scmp.ne.s32.totalorder %s117, %s118
    %p129 = scmp.eq.s32.totalorder %s15, 0
    %p130 = por %p128, %p129
    %p131 = scmp.ne.s32.totalorder %s117, %s118
    %p132 = scmp.eq.s32.totalorder %s16, 1
    %p133 = por %p131, %p132
    %p135 = scmp.ne.s32.totalorder %s118, %s134
    %p136 = scmp.eq.s32.totalorder %s16, 0
    %p137 = por %p135, %p136
    %p138 = scmp.le.s32.totalorder 1, %s10
    %p139 = scmp.lt.s32.totalorder %s10, 3
    %p140 = pnand %p138, %p139
    %p141 = pneg %p140
    // Predicated region
    $region9: #{pocket_encoder_forward.11} parent=5 // pred_check
      _
    $region10: #{pocket_encoder_forward.11} parent=5 // pred_check_branch
      %143 = sbr.rel (%p140) target = $region12
    $region11: #{pocket_encoder_forward.11} parent=5 // pred_region
      %s144 = ssub.s32 %s10, 1
      // Predicated region
      $region13: #{pocket_encoder_forward.11} parent=11 // pred_check
        %p145 = pneg %p83
      $region14: #{pocket_encoder_forward.11} parent=11 // pred_check_branch
        %147 = sbr.rel (%p145) target = $region16
      $region15: #{pocket_encoder_forward.11} parent=11 // pred_region
        _
      $region16: #{pocket_encoder_forward.11} parent=11 // pred_fallthru
        _
      // Predicated region
      $region17: #{pocket_encoder_forward.11} parent=11 // pred_check
        %p148 = pneg %p104
      $region18: #{pocket_encoder_forward.11} parent=11 // pred_check_branch
        %150 = sbr.rel (%p148) target = $region20
      $region19: #{pocket_encoder_forward.11} parent=11 // pred_region
        _
      $region20: #{pocket_encoder_forward.11} parent=11 // pred_fallthru
        _
    $region12: #{pocket_encoder_forward.11} parent=5 // pred_fallthru
      _
    %p151 = scmp.lt.s32.totalorder %s10, 2
    // Predicated region
    $region21: #{pocket_encoder_forward.11} parent=5 // pred_check
      %p152 = pneg %p151
    $region22: #{pocket_encoder_forward.11} parent=5 // pred_check_branch
      %154 = sbr.rel (%p152) target = $region24
    $region23: #{pocket_encoder_forward.11} parent=5 // pred_region
      // Predicated region
      $region25: #{pocket_encoder_forward.11} parent=23 // pred_check
        %p155 = pneg %p30
      $region26: #{pocket_encoder_forward.11} parent=23 // pred_check_branch
        %157 = sbr.rel (%p155) target = $region28
      $region27: #{pocket_encoder_forward.11} parent=23 // pred_region
        %p158 = scmp.lt.s32.totalorder %s10, 1
        %s159 = scalar_select %p158, %s10, 1
        %s160 = smul.addr %s159, 3
        %s161 = smul.addr %s160, 8
        %s162 = scalar_lea.vmem %s0, %s161
      $region28: #{pocket_encoder_forward.11} parent=23 // pred_fallthru
        _
      // Predicated region
      $region29: #{pocket_encoder_forward.11} parent=23 // pred_check
        %p163 = pneg %p56
      $region30: #{pocket_encoder_forward.11} parent=23 // pred_check_branch
        %165 = sbr.rel (%p163) target = $region32
      $region31: #{pocket_encoder_forward.11} parent=23 // pred_region
        %p166 = scmp.lt.s32.totalorder %s10, 1
        %s167 = scalar_select %p166, %s10, 1
        %s168 = smul.addr %s167, 3
        %s169 = smul.addr %s168, 8
        %s170 = scalar_lea.vmem %s1, %s169
      $region32: #{pocket_encoder_forward.11} parent=23 // pred_fallthru
        _
    $region24: #{pocket_encoder_forward.11} parent=5 // pred_fallthru
      _
    %p171 = scmp.le.s32.totalorder 1, %s10
    %p172 = scmp.lt.s32.totalorder %s10, 3
    %p173 = pnand %p171, %p172
    %p174 = pneg %p173
    // Predicated region
    $region33: #{pocket_encoder_forward.11} parent=5 // pred_check
      _
    $region34: #{pocket_encoder_forward.11} parent=5 // pred_check_branch
      %176 = sbr.rel (%p173) target = $region36
    $region35: #{pocket_encoder_forward.11} parent=5 // pred_region
      %s177 = ssub.s32 %s10, 1
      %p178 = scmp.lt.s32.totalorder %s15, 1
      %s179 = scalar_select %p178, %s15, 1
      %s180 = smul.addr %s179, 3
      %s181 = smul.addr %s180, 8
      %s182 = scalar_lea.vmem %s0, %s181
      %p183 = pneg %p36
      %p184 = pneg %p33
      %p185 = scmp.lt.s32.totalorder %s15, 1
      %s186 = scalar_select %p185, %s15, 1
      %s187 = smul.addr %s186, 3
      %s188 = smul.addr %s187, 8
      %s189 = scalar_lea.vmem %s1, %s188
      %p190 = pneg %p62
      %p191 = pneg %p59
      %p192 = pneg %p83
      %p193 = pneg %p80
      %p194 = pneg %p104
      %p195 = pneg %p101
      %p196 = pneg %p130
      %p197 = pneg %p127
      %p198 = scmp.lt.s32.totalorder %s15, 1
      %s199 = scalar_select %p198, %s15, 1
      %s200 = smul.addr %s199, 3
      %s201 = smul.addr %s200, 8
      %s202 = scalar_lea.vmem %s4, %s201
      %p203 = scmp.lt.s32.totalorder %s15, 1
      %s204 = scalar_select %p203, %s15, 1
      %s205 = smul.addr %s204, 3
      %s206 = smul.addr %s205, 8
      %s207 = scalar_lea.vmem %s0, %s206
      %p208 = scmp.lt.s32.totalorder %s15, 1
      %s209 = scalar_select %p208, %s15, 1
      %s210 = smul.addr %s209, 3
      %s211 = smul.addr %s210, 8
      %s212 = scalar_lea.vmem %s1, %s211
      %p213 = scmp.lt.s32.totalorder %s15, 1
      %s214 = scalar_select %p213, %s15, 1
      %s215 = smul.addr %s214, 3
      %s216 = smul.addr %s215, 8
      %s217 = scalar_lea.vmem %s4, %s216
      %v218 = vld [vmem:[%s207] sm:$0xff]
      %v219 = vld [vmem:[%s207 + $0x8] sm:$0xff]
      %v220 = vld [vmem:[%s207 + $0x10] sm:$0xff]
      %v221 = vld [vmem:[%s212] sm:$0xff]
      %v222 = vld [vmem:[%s212 + $0x8] sm:$0xff]
      %v223 = vld [vmem:[%s212 + $0x10] sm:$0xff]
      %v224 = vadd.f32 %v218, %v221
      %v225 = vadd.f32 %v219, %v222
      %v226 = vadd.f32 %v220, %v223
      %v227 = vld [vmem:[%s2] sm:$0x3]
      %v228 = vld [vmem:[%s3] sm:$0x3]
      %v229 = vadd.f32 %v224, %v225
      %230 = vadd.xlane.f32.xlu0 %v229
      %v231 = vpop.xlane.xlu0 %230
      %v232 = vrcp.pop 256.0
      %v233 = vmul.f32 %v231, %v232
      %v234 = vsub.f32 %v224, %v233
      %v235 = vsub.f32 %v225, %v233
      %v236 = vmul.f32 %v234, %v234
      %v237 = vmul.f32 %v235, %v235
      %v238 = vadd.f32 %v236, %v237
      %239 = vadd.xlane.f32.xlu0 %v238
      %v240 = vpop.xlane.xlu0 %239
      %v241 = vmul.f32 %v240, %v232
      %v242 = vadd.f32 %v241, 1e-05
      %v243 = vrsqrt.pop %v242
      %v244 = vmul.f32 %v234, %v243
      %v245 = vmul.f32 %v235, %v243
      %v247 = vlaneseq
      %v248 = vshrl.u32 %v247, 7
      %v249 = vsub.s32 0, %v248
      %v250 = vrot.slane %v227, %v249
      %v251 = vlaneseq
      %v252 = vshrl.u32 %v251, 7
      %v253 = vsub.s32 1, %v252
      %v254 = vrot.slane %v227, %v253
      %v257 = vmul.f32 %v244, %v250
      %v258 = vmul.f32 %v245, %v254
      %v260 = vlaneseq
      %v261 = vshrl.u32 %v260, 7
      %v262 = vsub.s32 0, %v261
      %v263 = vrot.slane %v228, %v262
      %v264 = vlaneseq
      %v265 = vshrl.u32 %v264, 7
      %v266 = vsub.s32 1, %v265
      %v267 = vrot.slane %v228, %v266
      %v270 = vadd.f32 %v257, %v263
      %v271 = vadd.f32 %v258, %v267
      %v272 = vmul.f32 %v226, %v226
      %274 = vrot.lane.b32.xlu0 %v272, 125
      %v275 = vpop.permute.xlu0 %274
      %v277 = vadd.f32 %v272, %v275
      %278 = vrot.lane.b32.xlu0 %v272, 122
      %v279 = vpop.permute.xlu0 %278
      %v281 = vadd.f32 %v277, %v279
      %v282 = vmax.f32 %v281, 1e-08
      %vm283 = vcmask 23552
      %v284 = vsel %vm283, %v282, 0.0
      %285 = vadd.xlane.f32.xlu0 %v284
      %v286 = vpop.xlane.xlu0 %285
      %v287 = vrcp.pop 3.0
      %v288 = vmul.f32 %v286, %v287
      %v289 = vrsqrt.pop %v288
      %v290 = vmul.f32 %v226, %v289
      %vm291 = vcmask 48128
      %v292 = vsel %vm291, %v290, %v290
      %293 = vst [vmem:[%s217] sm:$0xff] %v270
      %294 = vst [vmem:[%s217 + $0x8] sm:$0xff] %v271
      %vm295 = vcmask 72704
      %296 = vst.msk [vmem:[%s217 + $0x10] sm:$0xff] %vm295, %v292
      %p297 = scmp.lt.s32.totalorder %s15, 1
      %s298 = scalar_select %p297, %s15, 1
      %s299 = smul.addr %s298, 3
      %s300 = smul.addr %s299, 8
      %s301 = scalar_lea.vmem %s4, %s300
      // Predicated region
      $region37: #{pocket_encoder_forward.11} parent=35 // pred_check
        %p302 = pneg %p127
      $region38: #{pocket_encoder_forward.11} parent=35 // pred_check_branch
        %304 = sbr.rel (%p302) target = $region40
      $region39: #{pocket_encoder_forward.11} parent=35 // pred_region
        _
      $region40: #{pocket_encoder_forward.11} parent=35 // pred_fallthru
        _
    $region36: #{pocket_encoder_forward.11} parent=5 // pred_fallthru
      _
    %p305 = scmp.le.s32.totalorder 2, %s10
    // Predicated region
    $region41: #{pocket_encoder_forward.11} parent=5 // pred_check
      %p306 = pneg %p305
    $region42: #{pocket_encoder_forward.11} parent=5 // pred_check_branch
      %308 = sbr.rel (%p306) target = $region44
    $region43: #{pocket_encoder_forward.11} parent=5 // pred_region
      %s309 = ssub.s32 %s10, 2
      // Predicated region
      $region45: #{pocket_encoder_forward.11} parent=43 // pred_check
        %p310 = pneg %p133
      $region46: #{pocket_encoder_forward.11} parent=43 // pred_check_branch
        %312 = sbr.rel (%p310) target = $region48
      $region47: #{pocket_encoder_forward.11} parent=43 // pred_region
        %p313 = scmp.lt.s32.totalorder %s16, 1
        %s314 = scalar_select %p313, %s16, 1
        %s315 = smul.addr %s314, 3
        %s316 = smul.addr %s315, 8
        %s317 = scalar_lea.vmem %s4, %s316
      $region48: #{pocket_encoder_forward.11} parent=43 // pred_fallthru
        _
    $region44: #{pocket_encoder_forward.11} parent=5 // pred_fallthru
      _
  $region6: #{pocket_encoder_forward.11} parent=0 // loop_footer
    %s14 = sadd.s32 1, %s10
  $region7: #{pocket_encoder_forward.11} parent=0 // loop_footer_branch
    %9 = sbr.rel target = $region3
  $region8: #{pocket_encoder_forward.11} parent=0 // loop_exit
    _

// kernel: pocket_encoder_forward.8
$region0: #{pocket_encoder_forward.8}
  #allocation0 [shape = 'u32[]', space=smem, size = 0x4, offset = 0x4, fixed_abs, tag = 'smem constant byte address 0x4 - core index']
  #allocation1 [shape = 'u32[144,128]{1,0:T(1,128)}', space=vmem, size = 0x12000, scoped, tag = 'internal scratch']
  %s0 = inlined_call_operand.vmem [shape: f32[32,41], index: 0, kind: input, shape index: {}]
  %s1 = inlined_call_operand.vmem [shape: f32[32,41], index: 1, kind: input, shape index: {}]
  %s2 = inlined_call_operand.vmem [shape: f32[32,35], index: 2, kind: input, shape index: {}]
  %s3 = inlined_call_operand.vmem [shape: bf16[3,7], index: 3, kind: input, shape index: {}]
  %s4 = inlined_call_operand.vmem [shape: bf16[1,7], index: 4, kind: input, shape index: {}]
  %s5 = inlined_call_operand.vmem [shape: bf16[3,7], index: 5, kind: input, shape index: {}]
  %s6 = inlined_call_operand.vmem [shape: bf16[32,256], index: 6, kind: input, shape index: {}]
  %s7 = inlined_call_operand.vmem [shape: bf16[32,256], index: 7, kind: input, shape index: {}]
  %s8 = inlined_call_operand.vmem [shape: bf16[32,256], index: 8, kind: input, shape index: {}]
  %s9 = inlined_call_operand.vmem [shape: bf16[7,256], index: 9, kind: input, shape index: {}]
  %s10 = inlined_call_operand.vmem [shape: f32[1,256], index: 10, kind: input, shape index: {}]
  %s11 = inlined_call_operand.vmem [shape: bf16[7,3], index: 11, kind: input, shape index: {}]
  %s12 = inlined_call_operand.vmem [shape: bf16[3,3], index: 12, kind: input, shape index: {}]
  %s13 = inlined_call_operand.vmem [shape: bf16[256,256], index: 13, kind: input, shape index: {}]
  %s14 = inlined_call_operand.vmem [shape: bf16[3,256], index: 14, kind: input, shape index: {}]
  %s15 = inlined_call_operand.vmem [shape: f32[1,256], index: 15, kind: input, shape index: {}]
  %s16 = inlined_call_operand.vmem [shape: bf16[3,3], index: 16, kind: input, shape index: {}]
  %s17 = inlined_call_operand.vmem [shape: bf16[3,3], index: 17, kind: input, shape index: {}]
  %s18 = inlined_call_operand.vmem [shape: bf16[256,256], index: 18, kind: input, shape index: {}]
  %s19 = inlined_call_operand.vmem [shape: bf16[3,256], index: 19, kind: input, shape index: {}]
  %s20 = inlined_call_operand.vmem [shape: f32[1,256], index: 20, kind: input, shape index: {}]
  %s21 = inlined_call_operand.vmem [shape: bf16[3,3], index: 21, kind: input, shape index: {}]
  %s22 = inlined_call_operand.vmem [shape: f32[32,265], index: 22, kind: output, shape index: {}]
  %s23 = sld [smem:[#allocation0]]
  $region121: #{pocket_encoder_forward.8} parent=0
    _
  %s25 = ssub.s32 1, %s23
  %s26 = scalar_select 0, %s25, %s23
  loop: start=0, step=1, limit=4
  $region2: #{pocket_encoder_forward.8} parent=0 // loop_pre_header
    _
  $region3: #{pocket_encoder_forward.8} parent=0 // loop_header
    %s28 = sphi 0, %s32
    %p29 = scmp.ge.s32.totalorder %s28, 4
    %s38 = sphi 0, %s40
    %s41 = sphi 0, %s38
    %s42 = sphi 0, %s41
    %s58 = sphi 0, %s42
    %s64 = sphi 0, %s66
    %s67 = sphi 0, %s64
    %s68 = sphi 0, %s67
    %s84 = sphi 0, %s68
    %s90 = sphi 0, %s92
    %s93 = sphi 0, %s90
    %s94 = sphi 0, %s93
    %s110 = sphi 0, %s94
    %s114 = sphi 0, %s114
    %s116 = sphi 0, %s114
    %s117 = sphi 0, %s116
    %s131 = sphi 0, %s117
    %s135 = sphi 0, %s135
    %s137 = sphi 0, %s135
    %s138 = sphi 0, %s137
    %s152 = sphi 0, %s138
    %s156 = sphi 0, %s156
    %s158 = sphi 0, %s156
    %s159 = sphi 0, %s158
    %s173 = sphi 0, %s159
    %s177 = sphi 0, %s177
    %s179 = sphi 0, %s177
    %s180 = sphi 0, %s179
    %s194 = sphi 0, %s180
    %s198 = sphi 0, %s198
    %s200 = sphi 0, %s198
    %s201 = sphi 0, %s200
    %s215 = sphi 0, %s201
    %s219 = sphi 0, %s219
    %s221 = sphi 0, %s219
    %s222 = sphi 0, %s221
    %s236 = sphi 0, %s222
    %s240 = sphi 0, %s240
    %s242 = sphi 0, %s240
    %s243 = sphi 0, %s242
    %s257 = sphi 0, %s243
    %s261 = sphi 0, %s261
    %s263 = sphi 0, %s261
    %s264 = sphi 0, %s263
    %s278 = sphi 0, %s264
    %s282 = sphi 0, %s282
    %s284 = sphi 0, %s282
    %s285 = sphi 0, %s284
    %s299 = sphi 0, %s285
    %s303 = sphi 0, %s303
    %s305 = sphi 0, %s303
    %s306 = sphi 0, %s305
    %s320 = sphi 0, %s306
    %s324 = sphi 0, %s324
    %s326 = sphi 0, %s324
    %s327 = sphi 0, %s326
    %s341 = sphi 0, %s327
    %s345 = sphi 0, %s345
    %s347 = sphi 0, %s345
    %s348 = sphi 0, %s347
    %s362 = sphi 0, %s348
    %s366 = sphi 0, %s366
    %s368 = sphi 0, %s366
    %s369 = sphi 0, %s368
    %s383 = sphi 0, %s369
    %s387 = sphi 0, %s387
    %s389 = sphi 0, %s387
    %s390 = sphi 0, %s389
    %s404 = sphi 0, %s390
    %s408 = sphi 0, %s408
    %s410 = sphi 0, %s408
    %s411 = sphi 0, %s410
    %s425 = sphi 0, %s411
    %s429 = sphi 0, %s429
    %s431 = sphi 0, %s429
    %s432 = sphi 0, %s431
    %s446 = sphi 0, %s432
    %s450 = sphi 0, %s450
    %s452 = sphi 0, %s450
    %s453 = sphi 0, %s452
    %s467 = sphi 0, %s453
    %s471 = sphi 0, %s471
    %s473 = sphi 0, %s471
    %s474 = sphi 0, %s473
    %s488 = sphi 0, %s474
    %s492 = sphi 0, %s492
    %s494 = sphi 0, %s492
    %s495 = sphi 0, %s494
    %s509 = sphi 0, %s495
    %s515 = sphi 0, %s517
    %s518 = sphi 0, %s515
    %s519 = sphi 0, %s518
    %s535 = sphi 0, %s519
  $region4: #{pocket_encoder_forward.8} parent=0 // loop_header_branch
    %31 = sbr.rel (%p29) target = $region8
  $region5: #{pocket_encoder_forward.8} parent=0 // loop_body
    %s33 = ssub.s32 %s28, 1
    %s34 = ssub.s32 %s28, 2
    %s35 = sadd.s32 %s28, 1
    %s36 = ssub.s32 %s28, %s35
    %p37 = scmp.eq.s32.totalorder %s36, 0
    %s39 = sadd.s32 %s38, 1
    %s40 = scalar_select %p37, %s38, %s39
    %p43 = pneg %p37
    %p44 = scmp.eq.s32.totalorder %s28, 1
    %p45 = por %p43, %p44
    %p46 = scmp.ne.s32.totalorder %s38, %s41
    %p47 = scmp.eq.s32.totalorder %s28, 0
    %p48 = por %p46, %p47
    %p49 = scmp.ne.s32.totalorder %s38, %s41
    %p50 = scmp.eq.s32.totalorder %s33, 1
    %p51 = por %p49, %p50
    %p52 = scmp.ne.s32.totalorder %s41, %s42
    %p53 = scmp.eq.s32.totalorder %s33, 0
    %p54 = por %p52, %p53
    %p55 = scmp.ne.s32.totalorder %s41, %s42
    %p56 = scmp.eq.s32.totalorder %s34, 1
    %p57 = por %p55, %p56
    %p59 = scmp.ne.s32.totalorder %s42, %s58
    %p60 = scmp.eq.s32.totalorder %s34, 0
    %p61 = por %p59, %p60
    %s62 = ssub.s32 %s28, %s35
    %p63 = scmp.eq.s32.totalorder %s62, 0
    %s65 = sadd.s32 %s64, 1
    %s66 = scalar_select %p63, %s64, %s65
    %p69 = pneg %p63
    %p70 = scmp.eq.s32.totalorder %s28, 1
    %p71 = por %p69, %p70
    %p72 = scmp.ne.s32.totalorder %s64, %s67
    %p73 = scmp.eq.s32.totalorder %s28, 0
    %p74 = por %p72, %p73
    %p75 = scmp.ne.s32.totalorder %s64, %s67
    %p76 = scmp.eq.s32.totalorder %s33, 1
    %p77 = por %p75, %p76
    %p78 = scmp.ne.s32.totalorder %s67, %s68
    %p79 = scmp.eq.s32.totalorder %s33, 0
    %p80 = por %p78, %p79
    %p81 = scmp.ne.s32.totalorder %s67, %s68
    %p82 = scmp.eq.s32.totalorder %s34, 1
    %p83 = por %p81, %p82
    %p85 = scmp.ne.s32.totalorder %s68, %s84
    %p86 = scmp.eq.s32.totalorder %s34, 0
    %p87 = por %p85, %p86
    %s88 = ssub.s32 %s28, %s35
    %p89 = scmp.eq.s32.totalorder %s88, 0
    %s91 = sadd.s32 %s90, 1
    %s92 = scalar_select %p89, %s90, %s91
    %p95 = pneg %p89
    %p96 = scmp.eq.s32.totalorder %s28, 1
    %p97 = por %p95, %p96
    %p98 = scmp.ne.s32.totalorder %s90, %s93
    %p99 = scmp.eq.s32.totalorder %s28, 0
    %p100 = por %p98, %p99
    %p101 = scmp.ne.s32.totalorder %s90, %s93
    %p102 = scmp.eq.s32.totalorder %s33, 1
    %p103 = por %p101, %p102
    %p104 = scmp.ne.s32.totalorder %s93, %s94
    %p105 = scmp.eq.s32.totalorder %s33, 0
    %p106 = por %p104, %p105
    %p107 = scmp.ne.s32.totalorder %s93, %s94
    %p108 = scmp.eq.s32.totalorder %s34, 1
    %p109 = por %p107, %p108
    %p111 = scmp.ne.s32.totalorder %s94, %s110
    %p112 = scmp.eq.s32.totalorder %s34, 0
    %p113 = por %p111, %p112
    %s115 = sadd.s32 %s114, 1
    %p118 = scmp.eq.s32.totalorder %s28, 1
    %p119 = scmp.ne.s32.totalorder %s114, %s116
    %p120 = scmp.eq.s32.totalorder %s28, 0
    %p121 = por %p119, %p120
    %p122 = scmp.ne.s32.totalorder %s114, %s116
    %p123 = scmp.eq.s32.totalorder %s33, 1
    %p124 = por %p122, %p123
    %p125 = scmp.ne.s32.totalorder %s116, %s117
    %p126 = scmp.eq.s32.totalorder %s33, 0
    %p127 = por %p125, %p126
    %p128 = scmp.ne.s32.totalorder %s116, %s117
    %p129 = scmp.eq.s32.totalorder %s34, 1
    %p130 = por %p128, %p129
    %p132 = scmp.ne.s32.totalorder %s117, %s131
    %p133 = scmp.eq.s32.totalorder %s34, 0
    %p134 = por %p132, %p133
    %s136 = sadd.s32 %s135, 1
    %p139 = scmp.eq.s32.totalorder %s28, 1
    %p140 = scmp.ne.s32.totalorder %s135, %s137
    %p141 = scmp.eq.s32.totalorder %s28, 0
    %p142 = por %p140, %p141
    %p143 = scmp.ne.s32.totalorder %s135, %s137
    %p144 = scmp.eq.s32.totalorder %s33, 1
    %p145 = por %p143, %p144
    %p146 = scmp.ne.s32.totalorder %s137, %s138
    %p147 = scmp.eq.s32.totalorder %s33, 0
    %p148 = por %p146, %p147
    %p149 = scmp.ne.s32.totalorder %s137, %s138
    %p150 = scmp.eq.s32.totalorder %s34, 1
    %p151 = por %p149, %p150
    %p153 = scmp.ne.s32.totalorder %s138, %s152
    %p154 = scmp.eq.s32.totalorder %s34, 0
    %p155 = por %p153, %p154
    %s157 = sadd.s32 %s156, 1
    %p160 = scmp.eq.s32.totalorder %s28, 1
    %p161 = scmp.ne.s32.totalorder %s156, %s158
    %p162 = scmp.eq.s32.totalorder %s28, 0
    %p163 = por %p161, %p162
    %p164 = scmp.ne.s32.totalorder %s156, %s158
    %p165 = scmp.eq.s32.totalorder %s33, 1
    %p166 = por %p164, %p165
    %p167 = scmp.ne.s32.totalorder %s158, %s159
    %p168 = scmp.eq.s32.totalorder %s33, 0
    %p169 = por %p167, %p168
    %p170 = scmp.ne.s32.totalorder %s158, %s159
    %p171 = scmp.eq.s32.totalorder %s34, 1
    %p172 = por %p170, %p171
    %p174 = scmp.ne.s32.totalorder %s159, %s173
    %p175 = scmp.eq.s32.totalorder %s34, 0
    %p176 = por %p174, %p175
    %s178 = sadd.s32 %s177, 1
    %p181 = scmp.eq.s32.totalorder %s28, 1
    %p182 = scmp.ne.s32.totalorder %s177, %s179
    %p183 = scmp.eq.s32.totalorder %s28, 0
    %p184 = por %p182, %p183
    %p185 = scmp.ne.s32.totalorder %s177, %s179
    %p186 = scmp.eq.s32.totalorder %s33, 1
    %p187 = por %p185, %p186
    %p188 = scmp.ne.s32.totalorder %s179, %s180
    %p189 = scmp.eq.s32.totalorder %s33, 0
    %p190 = por %p188, %p189
    %p191 = scmp.ne.s32.totalorder %s179, %s180
    %p192 = scmp.eq.s32.totalorder %s34, 1
    %p193 = por %p191, %p192
    %p195 = scmp.ne.s32.totalorder %s180, %s194
    %p196 = scmp.eq.s32.totalorder %s34, 0
    %p197 = por %p195, %p196
    %s199 = sadd.s32 %s198, 1
    %p202 = scmp.eq.s32.totalorder %s28, 1
    %p203 = scmp.ne.s32.totalorder %s198, %s200
    %p204 = scmp.eq.s32.totalorder %s28, 0
    %p205 = por %p203, %p204
    %p206 = scmp.ne.s32.totalorder %s198, %s200
    %p207 = scmp.eq.s32.totalorder %s33, 1
    %p208 = por %p206, %p207
    %p209 = scmp.ne.s32.totalorder %s200, %s201
    %p210 = scmp.eq.s32.totalorder %s33, 0
    %p211 = por %p209, %p210
    %p212 = scmp.ne.s32.totalorder %s200, %s201
    %p213 = scmp.eq.s32.totalorder %s34, 1
    %p214 = por %p212, %p213
    %p216 = scmp.ne.s32.totalorder %s201, %s215
    %p217 = scmp.eq.s32.totalorder %s34, 0
    %p218 = por %p216, %p217
    %s220 = sadd.s32 %s219, 1
    %p223 = scmp.eq.s32.totalorder %s28, 1
    %p224 = scmp.ne.s32.totalorder %s219, %s221
    %p225 = scmp.eq.s32.totalorder %s28, 0
    %p226 = por %p224, %p225
    %p227 = scmp.ne.s32.totalorder %s219, %s221
    %p228 = scmp.eq.s32.totalorder %s33, 1
    %p229 = por %p227, %p228
    %p230 = scmp.ne.s32.totalorder %s221, %s222
    %p231 = scmp.eq.s32.totalorder %s33, 0
    %p232 = por %p230, %p231
    %p233 = scmp.ne.s32.totalorder %s221, %s222
    %p234 = scmp.eq.s32.totalorder %s34, 1
    %p235 = por %p233, %p234
    %p237 = scmp.ne.s32.totalorder %s222, %s236
    %p238 = scmp.eq.s32.totalorder %s34, 0
    %p239 = por %p237, %p238
    %s241 = sadd.s32 %s240, 1
    %p244 = scmp.eq.s32.totalorder %s28, 1
    %p245 = scmp.ne.s32.totalorder %s240, %s242
    %p246 = scmp.eq.s32.totalorder %s28, 0
    %p247 = por %p245, %p246
    %p248 = scmp.ne.s32.totalorder %s240, %s242
    %p249 = scmp.eq.s32.totalorder %s33, 1
    %p250 = por %p248, %p249
    %p251 = scmp.ne.s32.totalorder %s242, %s243
    %p252 = scmp.eq.s32.totalorder %s33, 0
    %p253 = por %p251, %p252
    %p254 = scmp.ne.s32.totalorder %s242, %s243
    %p255 = scmp.eq.s32.totalorder %s34, 1
    %p256 = por %p254, %p255
    %p258 = scmp.ne.s32.totalorder %s243, %s257
    %p259 = scmp.eq.s32.totalorder %s34, 0
    %p260 = por %p258, %p259
    %s262 = sadd.s32 %s261, 1
    %p265 = scmp.eq.s32.totalorder %s28, 1
    %p266 = scmp.ne.s32.totalorder %s261, %s263
    %p267 = scmp.eq.s32.totalorder %s28, 0
    %p268 = por %p266, %p267
    %p269 = scmp.ne.s32.totalorder %s261, %s263
    %p270 = scmp.eq.s32.totalorder %s33, 1
    %p271 = por %p269, %p270
    %p272 = scmp.ne.s32.totalorder %s263, %s264
    %p273 = scmp.eq.s32.totalorder %s33, 0
    %p274 = por %p272, %p273
    %p275 = scmp.ne.s32.totalorder %s263, %s264
    %p276 = scmp.eq.s32.totalorder %s34, 1
    %p277 = por %p275, %p276
    %p279 = scmp.ne.s32.totalorder %s264, %s278
    %p280 = scmp.eq.s32.totalorder %s34, 0
    %p281 = por %p279, %p280
    %s283 = sadd.s32 %s282, 1
    %p286 = scmp.eq.s32.totalorder %s28, 1
    %p287 = scmp.ne.s32.totalorder %s282, %s284
    %p288 = scmp.eq.s32.totalorder %s28, 0
    %p289 = por %p287, %p288
    %p290 = scmp.ne.s32.totalorder %s282, %s284
    %p291 = scmp.eq.s32.totalorder %s33, 1
    %p292 = por %p290, %p291
    %p293 = scmp.ne.s32.totalorder %s284, %s285
    %p294 = scmp.eq.s32.totalorder %s33, 0
    %p295 = por %p293, %p294
    %p296 = scmp.ne.s32.totalorder %s284, %s285
    %p297 = scmp.eq.s32.totalorder %s34, 1
    %p298 = por %p296, %p297
    %p300 = scmp.ne.s32.totalorder %s285, %s299
    %p301 = scmp.eq.s32.totalorder %s34, 0
    %p302 = por %p300, %p301
    %s304 = sadd.s32 %s303, 1
    %p307 = scmp.eq.s32.totalorder %s28, 1
    %p308 = scmp.ne.s32.totalorder %s303, %s305
    %p309 = scmp.eq.s32.totalorder %s28, 0
    %p310 = por %p308, %p309
    %p311 = scmp.ne.s32.totalorder %s303, %s305
    %p312 = scmp.eq.s32.totalorder %s33, 1
    %p313 = por %p311, %p312
    %p314 = scmp.ne.s32.totalorder %s305, %s306
    %p315 = scmp.eq.s32.totalorder %s33, 0
    %p316 = por %p314, %p315
    %p317 = scmp.ne.s32.totalorder %s305, %s306
    %p318 = scmp.eq.s32.totalorder %s34, 1
    %p319 = por %p317, %p318
    %p321 = scmp.ne.s32.totalorder %s306, %s320
    %p322 = scmp.eq.s32.totalorder %s34, 0
    %p323 = por %p321, %p322
    %s325 = sadd.s32 %s324, 1
    %p328 = scmp.eq.s32.totalorder %s28, 1
    %p329 = scmp.ne.s32.totalorder %s324, %s326
    %p330 = scmp.eq.s32.totalorder %s28, 0
    %p331 = por %p329, %p330
    %p332 = scmp.ne.s32.totalorder %s324, %s326
    %p333 = scmp.eq.s32.totalorder %s33, 1
    %p334 = por %p332, %p333
    %p335 = scmp.ne.s32.totalorder %s326, %s327
    %p336 = scmp.eq.s32.totalorder %s33, 0
    %p337 = por %p335, %p336
    %p338 = scmp.ne.s32.totalorder %s326, %s327
    %p339 = scmp.eq.s32.totalorder %s34, 1
    %p340 = por %p338, %p339
    %p342 = scmp.ne.s32.totalorder %s327, %s341
    %p343 = scmp.eq.s32.totalorder %s34, 0
    %p344 = por %p342, %p343
    %s346 = sadd.s32 %s345, 1
    %p349 = scmp.eq.s32.totalorder %s28, 1
    %p350 = scmp.ne.s32.totalorder %s345, %s347
    %p351 = scmp.eq.s32.totalorder %s28, 0
    %p352 = por %p350, %p351
    %p353 = scmp.ne.s32.totalorder %s345, %s347
    %p354 = scmp.eq.s32.totalorder %s33, 1
    %p355 = por %p353, %p354
    %p356 = scmp.ne.s32.totalorder %s347, %s348
    %p357 = scmp.eq.s32.totalorder %s33, 0
    %p358 = por %p356, %p357
    %p359 = scmp.ne.s32.totalorder %s347, %s348
    %p360 = scmp.eq.s32.totalorder %s34, 1
    %p361 = por %p359, %p360
    %p363 = scmp.ne.s32.totalorder %s348, %s362
    %p364 = scmp.eq.s32.totalorder %s34, 0
    %p365 = por %p363, %p364
    %s367 = sadd.s32 %s366, 1
    %p370 = scmp.eq.s32.totalorder %s28, 1
    %p371 = scmp.ne.s32.totalorder %s366, %s368
    %p372 = scmp.eq.s32.totalorder %s28, 0
    %p373 = por %p371, %p372
    %p374 = scmp.ne.s32.totalorder %s366, %s368
    %p375 = scmp.eq.s32.totalorder %s33, 1
    %p376 = por %p374, %p375
    %p377 = scmp.ne.s32.totalorder %s368, %s369
    %p378 = scmp.eq.s32.totalorder %s33, 0
    %p379 = por %p377, %p378
    %p380 = scmp.ne.s32.totalorder %s368, %s369
    %p381 = scmp.eq.s32.totalorder %s34, 1
    %p382 = por %p380, %p381
    %p384 = scmp.ne.s32.totalorder %s369, %s383
    %p385 = scmp.eq.s32.totalorder %s34, 0
    %p386 = por %p384, %p385
    %s388 = sadd.s32 %s387, 1
    %p391 = scmp.eq.s32.totalorder %s28, 1
    %p392 = scmp.ne.s32.totalorder %s387, %s389
    %p393 = scmp.eq.s32.totalorder %s28, 0
    %p394 = por %p392, %p393
    %p395 = scmp.ne.s32.totalorder %s387, %s389
    %p396 = scmp.eq.s32.totalorder %s33, 1
    %p397 = por %p395, %p396
    %p398 = scmp.ne.s32.totalorder %s389, %s390
    %p399 = scmp.eq.s32.totalorder %s33, 0
    %p400 = por %p398, %p399
    %p401 = scmp.ne.s32.totalorder %s389, %s390
    %p402 = scmp.eq.s32.totalorder %s34, 1
    %p403 = por %p401, %p402
    %p405 = scmp.ne.s32.totalorder %s390, %s404
    %p406 = scmp.eq.s32.totalorder %s34, 0
    %p407 = por %p405, %p406
    %s409 = sadd.s32 %s408, 1
    %p412 = scmp.eq.s32.totalorder %s28, 1
    %p413 = scmp.ne.s32.totalorder %s408, %s410
    %p414 = scmp.eq.s32.totalorder %s28, 0
    %p415 = por %p413, %p414
    %p416 = scmp.ne.s32.totalorder %s408, %s410
    %p417 = scmp.eq.s32.totalorder %s33, 1
    %p418 = por %p416, %p417
    %p419 = scmp.ne.s32.totalorder %s410, %s411
    %p420 = scmp.eq.s32.totalorder %s33, 0
    %p421 = por %p419, %p420
    %p422 = scmp.ne.s32.totalorder %s410, %s411
    %p423 = scmp.eq.s32.totalorder %s34, 1
    %p424 = por %p422, %p423
    %p426 = scmp.ne.s32.totalorder %s411, %s425
    %p427 = scmp.eq.s32.totalorder %s34, 0
    %p428 = por %p426, %p427
    %s430 = sadd.s32 %s429, 1
    %p433 = scmp.eq.s32.totalorder %s28, 1
    %p434 = scmp.ne.s32.totalorder %s429, %s431
    %p435 = scmp.eq.s32.totalorder %s28, 0
    %p436 = por %p434, %p435
    %p437 = scmp.ne.s32.totalorder %s429, %s431
    %p438 = scmp.eq.s32.totalorder %s33, 1
    %p439 = por %p437, %p438
    %p440 = scmp.ne.s32.totalorder %s431, %s432
    %p441 = scmp.eq.s32.totalorder %s33, 0
    %p442 = por %p440, %p441
    %p443 = scmp.ne.s32.totalorder %s431, %s432
    %p444 = scmp.eq.s32.totalorder %s34, 1
    %p445 = por %p443, %p444
    %p447 = scmp.ne.s32.totalorder %s432, %s446
    %p448 = scmp.eq.s32.totalorder %s34, 0
    %p449 = por %p447, %p448
    %s451 = sadd.s32 %s450, 1
    %p454 = scmp.eq.s32.totalorder %s28, 1
    %p455 = scmp.ne.s32.totalorder %s450, %s452
    %p456 = scmp.eq.s32.totalorder %s28, 0
    %p457 = por %p455, %p456
    %p458 = scmp.ne.s32.totalorder %s450, %s452
    %p459 = scmp.eq.s32.totalorder %s33, 1
    %p460 = por %p458, %p459
    %p461 = scmp.ne.s32.totalorder %s452, %s453
    %p462 = scmp.eq.s32.totalorder %s33, 0
    %p463 = por %p461, %p462
    %p464 = scmp.ne.s32.totalorder %s452, %s453
    %p465 = scmp.eq.s32.totalorder %s34, 1
    %p466 = por %p464, %p465
    %p468 = scmp.ne.s32.totalorder %s453, %s467
    %p469 = scmp.eq.s32.totalorder %s34, 0
    %p470 = por %p468, %p469
    %s472 = sadd.s32 %s471, 1
    %p475 = scmp.eq.s32.totalorder %s28, 1
    %p476 = scmp.ne.s32.totalorder %s471, %s473
    %p477 = scmp.eq.s32.totalorder %s28, 0
    %p478 = por %p476, %p477
    %p479 = scmp.ne.s32.totalorder %s471, %s473
    %p480 = scmp.eq.s32.totalorder %s33, 1
    %p481 = por %p479, %p480
    %p482 = scmp.ne.s32.totalorder %s473, %s474
    %p483 = scmp.eq.s32.totalorder %s33, 0
    %p484 = por %p482, %p483
    %p485 = scmp.ne.s32.totalorder %s473, %s474
    %p486 = scmp.eq.s32.totalorder %s34, 1
    %p487 = por %p485, %p486
    %p489 = scmp.ne.s32.totalorder %s474, %s488
    %p490 = scmp.eq.s32.totalorder %s34, 0
    %p491 = por %p489, %p490
    %s493 = sadd.s32 %s492, 1
    %p496 = scmp.eq.s32.totalorder %s28, 1
    %p497 = scmp.ne.s32.totalorder %s492, %s494
    %p498 = scmp.eq.s32.totalorder %s28, 0
    %p499 = por %p497, %p498
    %p500 = scmp.ne.s32.totalorder %s492, %s494
    %p501 = scmp.eq.s32.totalorder %s33, 1
    %p502 = por %p500, %p501
    %p503 = scmp.ne.s32.totalorder %s494, %s495
    %p504 = scmp.eq.s32.totalorder %s33, 0
    %p505 = por %p503, %p504
    %p506 = scmp.ne.s32.totalorder %s494, %s495
    %p507 = scmp.eq.s32.totalorder %s34, 1
    %p508 = por %p506, %p507
    %p510 = scmp.ne.s32.totalorder %s495, %s509
    %p511 = scmp.eq.s32.totalorder %s34, 0
    %p512 = por %p510, %p511
    %s513 = ssub.s32 %s28, %s35
    %p514 = scmp.eq.s32.totalorder %s513, 0
    %s516 = sadd.s32 %s515, 1
    %s517 = scalar_select %p514, %s515, %s516
    %p520 = pneg %p514
    %p521 = scmp.eq.s32.totalorder %s28, 1
    %p522 = por %p520, %p521
    %p523 = scmp.ne.s32.totalorder %s515, %s518
    %p524 = scmp.eq.s32.totalorder %s28, 0
    %p525 = por %p523, %p524
    %p526 = scmp.ne.s32.totalorder %s515, %s518
    %p527 = scmp.eq.s32.totalorder %s33, 1
    %p528 = por %p526, %p527
    %p529 = scmp.ne.s32.totalorder %s518, %s519
    %p530 = scmp.eq.s32.totalorder %s33, 0
    %p531 = por %p529, %p530
    %p532 = scmp.ne.s32.totalorder %s518, %s519
    %p533 = scmp.eq.s32.totalorder %s34, 1
    %p534 = por %p532, %p533
    %p536 = scmp.ne.s32.totalorder %s519, %s535
    %p537 = scmp.eq.s32.totalorder %s34, 0
    %p538 = por %p536, %p537
    %p539 = scmp.le.s32.totalorder 1, %s28
    %p540 = scmp.lt.s32.totalorder %s28, 3
    %p541 = pnand %p539, %p540
    %p542 = pneg %p541
    // Predicated region
    $region9: #{pocket_encoder_forward.8} parent=5 // pred_check
      _
    $region10: #{pocket_encoder_forward.8} parent=5 // pred_check_branch
      %544 = sbr.rel (%p541) target = $region12
    $region11: #{pocket_encoder_forward.8} parent=5 // pred_region
      %s545 = ssub.s32 %s28, 1
      // Predicated region
      $region13: #{pocket_encoder_forward.8} parent=11 // pred_check
        %p546 = pneg %p127
      $region14: #{pocket_encoder_forward.8} parent=11 // pred_check_branch
        %548 = sbr.rel (%p546) target = $region16
      $region15: #{pocket_encoder_forward.8} parent=11 // pred_region
        _
      $region16: #{pocket_encoder_forward.8} parent=11 // pred_fallthru
        _
      // Predicated region
      $region17: #{pocket_encoder_forward.8} parent=11 // pred_check
        %p549 = pneg %p148
      $region18: #{pocket_encoder_forward.8} parent=11 // pred_check_branch
        %551 = sbr.rel (%p549) target = $region20
      $region19: #{pocket_encoder_forward.8} parent=11 // pred_region
        _
      $region20: #{pocket_encoder_forward.8} parent=11 // pred_fallthru
        _
      // Predicated region
      $region21: #{pocket_encoder_forward.8} parent=11 // pred_check
        %p552 = pneg %p169
      $region22: #{pocket_encoder_forward.8} parent=11 // pred_check_branch
        %554 = sbr.rel (%p552) target = $region24
      $region23: #{pocket_encoder_forward.8} parent=11 // pred_region
        _
      $region24: #{pocket_encoder_forward.8} parent=11 // pred_fallthru
        _
      // Predicated region
      $region25: #{pocket_encoder_forward.8} parent=11 // pred_check
        %p555 = pneg %p190
      $region26: #{pocket_encoder_forward.8} parent=11 // pred_check_branch
        %557 = sbr.rel (%p555) target = $region28
      $region27: #{pocket_encoder_forward.8} parent=11 // pred_region
        _
      $region28: #{pocket_encoder_forward.8} parent=11 // pred_fallthru
        _
      // Predicated region
      $region29: #{pocket_encoder_forward.8} parent=11 // pred_check
        %p558 = pneg %p211
      $region30: #{pocket_encoder_forward.8} parent=11 // pred_check_branch
        %560 = sbr.rel (%p558) target = $region32
      $region31: #{pocket_encoder_forward.8} parent=11 // pred_region
        _
      $region32: #{pocket_encoder_forward.8} parent=11 // pred_fallthru
        _
      // Predicated region
      $region33: #{pocket_encoder_forward.8} parent=11 // pred_check
        %p561 = pneg %p232
      $region34: #{pocket_encoder_forward.8} parent=11 // pred_check_branch
        %563 = sbr.rel (%p561) target = $region36
      $region35: #{pocket_encoder_forward.8} parent=11 // pred_region
        _
      $region36: #{pocket_encoder_forward.8} parent=11 // pred_fallthru
        _
      // Predicated region
      $region37: #{pocket_encoder_forward.8} parent=11 // pred_check
        %p564 = pneg %p253
      $region38: #{pocket_encoder_forward.8} parent=11 // pred_check_branch
        %566 = sbr.rel (%p564) target = $region40
      $region39: #{pocket_encoder_forward.8} parent=11 // pred_region
        _
      $region40: #{pocket_encoder_forward.8} parent=11 // pred_fallthru
        _
      // Predicated region
      $region41: #{pocket_encoder_forward.8} parent=11 // pred_check
        %p567 = pneg %p274
      $region42: #{pocket_encoder_forward.8} parent=11 // pred_check_branch
        %569 = sbr.rel (%p567) target = $region44
      $region43: #{pocket_encoder_forward.8} parent=11 // pred_region
        _
      $region44: #{pocket_encoder_forward.8} parent=11 // pred_fallthru
        _
      // Predicated region
      $region45: #{pocket_encoder_forward.8} parent=11 // pred_check
        %p570 = pneg %p295
      $region46: #{pocket_encoder_forward.8} parent=11 // pred_check_branch
        %572 = sbr.rel (%p570) target = $region48
      $region47: #{pocket_encoder_forward.8} parent=11 // pred_region
        _
      $region48: #{pocket_encoder_forward.8} parent=11 // pred_fallthru
        _
      // Predicated region
      $region49: #{pocket_encoder_forward.8} parent=11 // pred_check
        %p573 = pneg %p316
      $region50: #{pocket_encoder_forward.8} parent=11 // pred_check_branch
        %575 = sbr.rel (%p573) target = $region52
      $region51: #{pocket_encoder_forward.8} parent=11 // pred_region
        _
      $region52: #{pocket_encoder_forward.8} parent=11 // pred_fallthru
        _
      // Predicated region
      $region53: #{pocket_encoder_forward.8} parent=11 // pred_check
        %p576 = pneg %p337
      $region54: #{pocket_encoder_forward.8} parent=11 // pred_check_branch
        %578 = sbr.rel (%p576) target = $region56
      $region55: #{pocket_encoder_forward.8} parent=11 // pred_region
        _
      $region56: #{pocket_encoder_forward.8} parent=11 // pred_fallthru
        _
      // Predicated region
      $region57: #{pocket_encoder_forward.8} parent=11 // pred_check
        %p579 = pneg %p358
      $region58: #{pocket_encoder_forward.8} parent=11 // pred_check_branch
        %581 = sbr.rel (%p579) target = $region60
      $region59: #{pocket_encoder_forward.8} parent=11 // pred_region
        _
      $region60: #{pocket_encoder_forward.8} parent=11 // pred_fallthru
        _
      // Predicated region
      $region61: #{pocket_encoder_forward.8} parent=11 // pred_check
        %p582 = pneg %p379
      $region62: #{pocket_encoder_forward.8} parent=11 // pred_check_branch
        %584 = sbr.rel (%p582) target = $region64
      $region63: #{pocket_encoder_forward.8} parent=11 // pred_region
        _
      $region64: #{pocket_encoder_forward.8} parent=11 // pred_fallthru
        _
      // Predicated region
      $region65: #{pocket_encoder_forward.8} parent=11 // pred_check
        %p585 = pneg %p400
      $region66: #{pocket_encoder_forward.8} parent=11 // pred_check_branch
        %587 = sbr.rel (%p585) target = $region68
      $region67: #{pocket_encoder_forward.8} parent=11 // pred_region
        _
      $region68: #{pocket_encoder_forward.8} parent=11 // pred_fallthru
        _
      // Predicated region
      $region69: #{pocket_encoder_forward.8} parent=11 // pred_check
        %p588 = pneg %p421
      $region70: #{pocket_encoder_forward.8} parent=11 // pred_check_branch
        %590 = sbr.rel (%p588) target = $region72
      $region71: #{pocket_encoder_forward.8} parent=11 // pred_region
        _
      $region72: #{pocket_encoder_forward.8} parent=11 // pred_fallthru
        _
      // Predicated region
      $region73: #{pocket_encoder_forward.8} parent=11 // pred_check
        %p591 = pneg %p442
      $region74: #{pocket_encoder_forward.8} parent=11 // pred_check_branch
        %593 = sbr.rel (%p591) target = $region76
      $region75: #{pocket_encoder_forward.8} parent=11 // pred_region
        _
      $region76: #{pocket_encoder_forward.8} parent=11 // pred_fallthru
        _
      // Predicated region
      $region77: #{pocket_encoder_forward.8} parent=11 // pred_check
        %p594 = pneg %p463
      $region78: #{pocket_encoder_forward.8} parent=11 // pred_check_branch
        %596 = sbr.rel (%p594) target = $region80
      $region79: #{pocket_encoder_forward.8} parent=11 // pred_region
        _
      $region80: #{pocket_encoder_forward.8} parent=11 // pred_fallthru
        _
      // Predicated region
      $region81: #{pocket_encoder_forward.8} parent=11 // pred_check
        %p597 = pneg %p484
      $region82: #{pocket_encoder_forward.8} parent=11 // pred_check_branch
        %599 = sbr.rel (%p597) target = $region84
      $region83: #{pocket_encoder_forward.8} parent=11 // pred_region
        _
      $region84: #{pocket_encoder_forward.8} parent=11 // pred_fallthru
        _
      // Predicated region
      $region85: #{pocket_encoder_forward.8} parent=11 // pred_check
        %p600 = pneg %p505
      $region86: #{pocket_encoder_forward.8} parent=11 // pred_check_branch
        %602 = sbr.rel (%p600) target = $region88
      $region87: #{pocket_encoder_forward.8} parent=11 // pred_region
        _
      $region88: #{pocket_encoder_forward.8} parent=11 // pred_fallthru
        _
    $region12: #{pocket_encoder_forward.8} parent=5 // pred_fallthru
      _
    %p603 = scmp.lt.s32.totalorder %s28, 2
    // Predicated region
    $region89: #{pocket_encoder_forward.8} parent=5 // pred_check
      %p604 = pneg %p603
    $region90: #{pocket_encoder_forward.8} parent=5 // pred_check_branch
      %606 = sbr.rel (%p604) target = $region92
    $region91: #{pocket_encoder_forward.8} parent=5 // pred_region
      // Predicated region
      $region93: #{pocket_encoder_forward.8} parent=91 // pred_check
        %p607 = pneg %p48
      $region94: #{pocket_encoder_forward.8} parent=91 // pred_check_branch
        %609 = sbr.rel (%p607) target = $region96
      $region95: #{pocket_encoder_forward.8} parent=91 // pred_region
        %s610 = smul.u32 2, %s28
        %p611 = scmp.lt.s32.totalorder %s610, 3
        %s612 = scalar_select %p611, %s610, 3
        %s613 = smul.addr %s612, 8
        %s614 = scalar_lea.vmem %s0, %s613
        %s615 = smul.u32 2, %s28
      $region96: #{pocket_encoder_forward.8} parent=91 // pred_fallthru
        _
      // Predicated region
      $region97: #{pocket_encoder_forward.8} parent=91 // pred_check
        %p616 = pneg %p74
      $region98: #{pocket_encoder_forward.8} parent=91 // pred_check_branch
        %618 = sbr.rel (%p616) target = $region100
      $region99: #{pocket_encoder_forward.8} parent=91 // pred_region
        %s619 = smul.u32 2, %s28
        %p620 = scmp.lt.s32.totalorder %s619, 3
        %s621 = scalar_select %p620, %s619, 3
        %s622 = smul.addr %s621, 8
        %s623 = scalar_lea.vmem %s1, %s622
        %s624 = smul.u32 2, %s28
      $region100: #{pocket_encoder_forward.8} parent=91 // pred_fallthru
        _
      // Predicated region
      $region101: #{pocket_encoder_forward.8} parent=91 // pred_check
        %p625 = pneg %p100
      $region102: #{pocket_encoder_forward.8} parent=91 // pred_check_branch
        %627 = sbr.rel (%p625) target = $region104
      $region103: #{pocket_encoder_forward.8} parent=91 // pred_region
        %s628 = smul.u32 2, %s28
        %p629 = scmp.lt.s32.totalorder %s628, 3
        %s630 = scalar_select %p629, %s628, 3
        %s631 = smul.addr %s630, 8
        %s632 = scalar_lea.vmem %s2, %s631
        %s633 = smul.u32 2, %s28
      $region104: #{pocket_encoder_forward.8} parent=91 // pred_fallthru
        _
    $region92: #{pocket_encoder_forward.8} parent=5 // pred_fallthru
      _
    %p634 = scmp.le.s32.totalorder 1, %s28
    %p635 = scmp.lt.s32.totalorder %s28, 3
    %p636 = pnand %p634, %p635
    %p637 = pneg %p636
    // Predicated region
    $region105: #{pocket_encoder_forward.8} parent=5 // pred_check
      _
    $region106: #{pocket_encoder_forward.8} parent=5 // pred_check_branch
      %639 = sbr.rel (%p636) target = $region108
    $region107: #{pocket_encoder_forward.8} parent=5 // pred_region
      %s640 = ssub.s32 %s28, 1
      %s641 = smul.u32 2, %s33
      %p642 = scmp.lt.s32.totalorder %s641, 3
      %s643 = scalar_select %p642, %s641, 3
      %s644 = smul.addr %s643, 8
      %s645 = scalar_lea.vmem %s0, %s644
      %p646 = pneg %p54
      %p647 = pneg %p51
      %s648 = smul.u32 2, %s33
      %p649 = scmp.lt.s32.totalorder %s648, 3
      %s650 = scalar_select %p649, %s648, 3
      %s651 = smul.addr %s650, 8
      %s652 = scalar_lea.vmem %s1, %s651
      %p653 = pneg %p80
      %p654 = pneg %p77
      %s655 = smul.u32 2, %s33
      %p656 = scmp.lt.s32.totalorder %s655, 3
      %s657 = scalar_select %p656, %s655, 3
      %s658 = smul.addr %s657, 8
      %s659 = scalar_lea.vmem %s2, %s658
      %p660 = pneg %p106
      %p661 = pneg %p103
      %p662 = pneg %p127
      %p663 = pneg %p124
      %p664 = pneg %p148
      %p665 = pneg %p145
      %p666 = pneg %p169
      %p667 = pneg %p166
      %p668 = pneg %p190
      %p669 = pneg %p187
      %p670 = pneg %p211
      %p671 = pneg %p208
      %p672 = pneg %p232
      %p673 = pneg %p229
      %p674 = pneg %p253
      %p675 = pneg %p250
      %p676 = pneg %p274
      %p677 = pneg %p271
      %p678 = pneg %p295
      %p679 = pneg %p292
      %p680 = pneg %p316
      %p681 = pneg %p313
      %p682 = pneg %p337
      %p683 = pneg %p334
      %p684 = pneg %p358
      %p685 = pneg %p355
      %p686 = pneg %p379
      %p687 = pneg %p376
      %p688 = pneg %p400
      %p689 = pneg %p397
      %p690 = pneg %p421
      %p691 = pneg %p418
      %p692 = pneg %p442
      %p693 = pneg %p439
      %p694 = pneg %p463
      %p695 = pneg %p460
      %p696 = pneg %p484
      %p697 = pneg %p481
      %p698 = pneg %p505
      %p699 = pneg %p502
      %p700 = pneg %p531
      %p701 = pneg %p528
      %s702 = smul.u32 2, %s33
      %p703 = scmp.lt.s32.totalorder %s702, 3
      %s704 = scalar_select %p703, %s702, 3
      %s705 = smul.addr %s704, 3
      %s706 = smul.addr %s705, 8
      %s707 = scalar_lea.vmem %s22, %s706
      %s708 = smul.u32 2, %s33
      %p709 = scmp.lt.s32.totalorder %s708, 3
      %s710 = scalar_select %p709, %s708, 3
      %s711 = smul.addr %s710, 8
      %s712 = scalar_lea.vmem %s0, %s711
      %s713 = smul.u32 2, %s33
      %s714 = smul.u32 2, %s33
      %p715 = scmp.lt.s32.totalorder %s714, 3
      %s716 = scalar_select %p715, %s714, 3
      %s717 = smul.addr %s716, 8
      %s718 = scalar_lea.vmem %s1, %s717
      %s719 = smul.u32 2, %s33
      %s720 = smul.u32 2, %s33
      %p721 = scmp.lt.s32.totalorder %s720, 3
      %s722 = scalar_select %p721, %s720, 3
      %s723 = smul.addr %s722, 8
      %s724 = scalar_lea.vmem %s2, %s723
      %s725 = smul.u32 2, %s33
      %s726 = smul.u32 2, %s33
      %p727 = scmp.lt.s32.totalorder %s726, 3
      %s728 = scalar_select %p727, %s726, 3
      %s729 = smul.addr %s728, 3
      %s730 = smul.addr %s729, 8
      %s731 = scalar_lea.vmem %s22, %s730
      %s732 = smul.u32 2, %s33
      %v734 = vld [vmem:[%s712] sm:$0xff]
      %v735 = vld [vmem:[%s712 + $0x8] sm:$0xff]
      %v736 = vld [vmem:[%s718] sm:$0xff]
      %v737 = vld [vmem:[%s718 + $0x8] sm:$0xff]
      %v738 = vld [vmem:[%s724] sm:$0xff]
      %v739 = vld [vmem:[%s724 + $0x8] sm:$0xff]
      %742 = vrot.lane.b32.xlu0 %v734, 125
      %v743 = vpop.permute.xlu0 %742
      %744 = vrot.lane.b32.xlu0 %v735, 125
      %v745 = vpop.permute.xlu0 %744
      %748 = vrot.lane.b32.xlu0 %v734, 122
      %v749 = vpop.permute.xlu0 %748
      %750 = vrot.lane.b32.xlu0 %v735, 122
      %v751 = vpop.permute.xlu0 %750
      %756 = vrot.lane.b32.xlu0 %v738, 127
      %v757 = vpop.permute.xlu0 %756
      %758 = vrot.lane.b32.xlu0 %v739, 127
      %v759 = vpop.permute.xlu0 %758
      %760 = vrot.lane.b32.xlu0 %v738, 126
      %v761 = vpop.permute.xlu0 %760
      %762 = vrot.lane.b32.xlu0 %v739, 126
      %v763 = vpop.permute.xlu0 %762
      %766 = vrot.lane.b32.xlu0 %v736, 125
      %v767 = vpop.permute.xlu0 %766
      %768 = vrot.lane.b32.xlu0 %v737, 125
      %v769 = vpop.permute.xlu0 %768
      %772 = vrot.lane.b32.xlu0 %v736, 122
      %v773 = vpop.permute.xlu0 %772
      %774 = vrot.lane.b32.xlu0 %v737, 122
      %v775 = vpop.permute.xlu0 %774
      %v778 = vld [vmem:[%s3] sm:$0x3]
      %v779 = vpack.c.bf16 %v735, %v734
      %v780 = vpack.c.bf16 %v745, %v743
      %v781 = vpack.c.bf16 %v751, %v749
      %v782 = vld [vmem:[%s5] sm:$0x3]
      %v783 = vpack.c.bf16 %v737, %v736
      %v784 = vpack.c.bf16 %v769, %v767
      %v785 = vpack.c.bf16 %v775, %v773
      %789 = vrot.lane.b32.xlu0 %v783, 96
      %v790 = vpop.permute.xlu0 %789
      %791 = vrot.lane.b32.xlu0 %v784, 96
      %v792 = vpop.permute.xlu0 %791
      %793 = vrot.lane.b32.xlu0 %v785, 96
      %v794 = vpop.permute.xlu0 %793
      %vm795 = vcmask 23552
      %v797 = vsel %vm795, %v790, 0
      %v800 = vsel %vm795, %v792, 0
      %v803 = vsel %vm795, %v794, 0
      %vm805 = vcmask 1040384
      %vm806 = vcmask 1041408
      %v807 = vsel %vm805, 4294967295, 65535
      %v808 = vsel %vm806, %v807, 0
      %v810 = vand.u32 %v782, %v808
      %812 = vmatprep.subr.bf16.mxu0 0
      %813 = vmatpush1.bf16.msra.mxu0 0
      %814 = vmatprep.subr.bf16.mxu0 0
      %815 = vmatpush1.bf16.msra.mxu0 0
      %816 = vmatprep.subr.bf16.mxu0 0
      %817 = vmatpush1.bf16.msra.mxu0 0
      %818 = vmatprep.subr.bf16.mxu0 0
      %819 = vmatpush1.bf16.msra.mxu0 0
      %820 = vmatprep.subr.bf16.mxu0 0
      %821 = vmatpush1.bf16.msra.mxu0 0
      %822 = vmatprep.subr.bf16.mxu0 0
      %823 = vmatpush1.bf16.msra.mxu0 0
      %824 = vmatprep.subr.bf16.mxu0 0
      %825 = vmatpush1.bf16.msra.mxu0 0
      %826 = vmatprep.subr.bf16.mxu0 0
      %827 = vmatpush1.bf16.msra.mxu0 %v810
      %828 = vmatprep.subr.bf16.mxu0 0
      %829 = vmatpush2.bf16.msra.mxu0 0
      %830 = vmatprep.subr.bf16.mxu0 0
      %831 = vmatpush2.bf16.msra.mxu0 0
      %832 = vmatprep.subr.bf16.mxu0 0
      %833 = vmatpush2.bf16.msra.mxu0 0
      %834 = vmatprep.subr.bf16.mxu0 0
      %835 = vmatpush2.bf16.msra.mxu0 0
      %836 = vmatprep.subr.bf16.mxu0 0
      %837 = vmatpush2.bf16.msra.mxu0 0
      %838 = vmatprep.subr.bf16.mxu0 0
      %839 = vmatpush2.bf16.msra.mxu0 0
      %840 = vmatprep.subr.bf16.mxu0 0
      %841 = vmatpush2.bf16.msra.mxu0 0
      %842 = vmatprep.subr.bf16.mxu0 0
      %843 = vmatpush2.bf16.msra.mxu0 0
      %844 = vmatprep.mubr.bf16.mxu0 0
      %845 = vmatmul.mubr.bf16.gmra.mxu0 %v797
      %v846 = vpop.f32.mrf.mxu0
      %v847 = vadd.f32 0.0, %v846
      %v848 = vpop.f32.mrf.mxu0
      %v849 = vpop.f32.mrf.mxu0
      %v850 = vadd.f32 0.0, %v849
      %v851 = vpop.f32.mrf.mxu0
      %852 = vmatprep.mubr.bf16.mxu0 0
      %853 = vmatmul.mubr.bf16.gmra.mxu0 %v800
      %v854 = vpop.f32.mrf.mxu0
      %v855 = vadd.f32 0.0, %v854
      %v856 = vpop.f32.mrf.mxu0
      %v857 = vpop.f32.mrf.mxu0
      %v858 = vadd.f32 0.0, %v857
      %v859 = vpop.f32.mrf.mxu0
      %860 = vmatprep.mubr.bf16.mxu0 0
      %861 = vmatmul.mubr.bf16.gmra.mxu0 %v803
      %v862 = vpop.f32.mrf.mxu0
      %v863 = vadd.f32 0.0, %v862
      %v864 = vpop.f32.mrf.mxu0
      %v865 = vpop.f32.mrf.mxu0
      %v866 = vadd.f32 0.0, %v865
      %v867 = vpop.f32.mrf.mxu0
      %868 = vdwg.mxu0
      %872 = vrot.lane.b32.xlu0 %v779, 96
      %v873 = vpop.permute.xlu0 %872
      %874 = vrot.lane.b32.xlu0 %v780, 96
      %v875 = vpop.permute.xlu0 %874
      %876 = vrot.lane.b32.xlu0 %v781, 96
      %v877 = vpop.permute.xlu0 %876
      %v879 = vsel %vm795, %v873, 0
      %v882 = vsel %vm795, %v875, 0
      %v885 = vsel %vm795, %v877, 0
      %v888 = vand.u32 %v778, %v808
      %890 = vmatprep.subr.bf16.mxu0 0
      %891 = vmatpush1.bf16.msra.mxu0 0
      %892 = vmatprep.subr.bf16.mxu0 0
      %893 = vmatpush1.bf16.msra.mxu0 0
      %894 = vmatprep.subr.bf16.mxu0 0
      %895 = vmatpush1.bf16.msra.mxu0 0
      %896 = vmatprep.subr.bf16.mxu0 0
      %897 = vmatpush1.bf16.msra.mxu0 0
      %898 = vmatprep.subr.bf16.mxu0 0
      %899 = vmatpush1.bf16.msra.mxu0 0
      %900 = vmatprep.subr.bf16.mxu0 0
      %901 = vmatpush1.bf16.msra.mxu0 0
      %902 = vmatprep.subr.bf16.mxu0 0
      %903 = vmatpush1.bf16.msra.mxu0 0
      %904 = vmatprep.subr.bf16.mxu0 0
      %905 = vmatpush1.bf16.msra.mxu0 %v888
      %906 = vmatprep.subr.bf16.mxu0 0
      %907 = vmatpush2.bf16.msra.mxu0 0
      %908 = vmatprep.subr.bf16.mxu0 0
      %909 = vmatpush2.bf16.msra.mxu0 0
      %910 = vmatprep.subr.bf16.mxu0 0
      %911 = vmatpush2.bf16.msra.mxu0 0
      %912 = vmatprep.subr.bf16.mxu0 0
      %913 = vmatpush2.bf16.msra.mxu0 0
      %914 = vmatprep.subr.bf16.mxu0 0
      %915 = vmatpush2.bf16.msra.mxu0 0
      %916 = vmatprep.subr.bf16.mxu0 0
      %917 = vmatpush2.bf16.msra.mxu0 0
      %918 = vmatprep.subr.bf16.mxu0 0
      %919 = vmatpush2.bf16.msra.mxu0 0
      %920 = vmatprep.subr.bf16.mxu0 0
      %921 = vmatpush2.bf16.msra.mxu0 0
      %922 = vmatprep.mubr.bf16.mxu0 0
      %923 = vmatmul.mubr.bf16.gmra.mxu0 %v879
      %v924 = vpop.f32.mrf.mxu0
      %v925 = vadd.f32 %v847, %v924
      %v926 = vpop.f32.mrf.mxu0
      %v927 = vpop.f32.mrf.mxu0
      %v928 = vadd.f32 %v850, %v927
      %v929 = vpop.f32.mrf.mxu0
      %930 = vmatprep.mubr.bf16.mxu0 0
      %931 = vmatmul.mubr.bf16.gmra.mxu0 %v882
      %v932 = vpop.f32.mrf.mxu0
      %v933 = vadd.f32 %v855, %v932
      %v934 = vpop.f32.mrf.mxu0
      %v935 = vpop.f32.mrf.mxu0
      %v936 = vadd.f32 %v858, %v935
      %v937 = vpop.f32.mrf.mxu0
      %938 = vmatprep.mubr.bf16.mxu0 0
      %939 = vmatmul.mubr.bf16.gmra.mxu0 %v885
      %v940 = vpop.f32.mrf.mxu0
      %v941 = vadd.f32 %v863, %v940
      %v942 = vpop.f32.mrf.mxu0
      %v943 = vpop.f32.mrf.mxu0
      %v944 = vadd.f32 %v866, %v943
      %v945 = vpop.f32.mrf.mxu0
      %946 = vdwg.mxu0
      %v947 = vld [vmem:[%s4] sm:$0x1]
      %v948 = vunpack.c.l.bf16 %v947
      %949 = vset.pattern.permute.xlu0 32
      %950 = vperm.xlu0 %949, %v738
      %v951 = vpop.permute.xlu0 %950
      %953 = vset.pattern.permute.xlu0 32
      %954 = vperm.xlu0 %953, %v739
      %v955 = vpop.permute.xlu0 %954
      %957 = vset.pattern.permute.xlu0 32
      %958 = vperm.xlu0 %957, %v757
      %v959 = vpop.permute.xlu0 %958
      %961 = vset.pattern.permute.xlu0 32
      %962 = vperm.xlu0 %961, %v759
      %v963 = vpop.permute.xlu0 %962
      %965 = vset.pattern.permute.xlu0 32
      %966 = vperm.xlu0 %965, %v761
      %v967 = vpop.permute.xlu0 %966
      %969 = vset.pattern.permute.xlu0 32
      %970 = vperm.xlu0 %969, %v763
      %v971 = vpop.permute.xlu0 %970
      %v973 = vlaneseq
      %v974 = vshrl.u32 %v973, 7
      %v975 = vsub.s32 0, %v974
      %v976 = vrot.slane %v948, %v975
      %v977 = vmul.f32 %v951, %v976
      %v978 = vmul.f32 %v955, %v976
      %v979 = vmul.f32 %v959, %v976
      %v980 = vmul.f32 %v963, %v976
      %v981 = vmul.f32 %v967, %v976
      %v982 = vmul.f32 %v971, %v976
      %v983 = vadd.f32 %v925, %v977
      %v984 = vadd.f32 %v928, %v978
      %v985 = vadd.f32 %v933, %v979
      %v986 = vadd.f32 %v936, %v980
      %v987 = vadd.f32 %v941, %v981
      %v988 = vadd.f32 %v944, %v982
      %v989 = vld [vmem:[%s6] sm:$0xff]
      %v990 = vld [vmem:[%s6 + $0x8] sm:$0xff]
      %v991 = vld [vmem:[%s6 + $0x10] sm:$0xff]
      %v992 = vld [vmem:[%s6 + $0x18] sm:$0xff]
      %v993 = vld [vmem:[%s7] sm:$0xff]
      %v994 = vld [vmem:[%s7 + $0x8] sm:$0xff]
      %v995 = vld [vmem:[%s7 + $0x10] sm:$0xff]
      %v996 = vld [vmem:[%s7 + $0x18] sm:$0xff]
      %v997 = vpack.c.bf16 %v739, %v738
      %v1002 = vunpack.c.l.b16 %v993
      %v1003 = vunpack.c.h.b16 %v993
      %v1004 = vunpack.c.l.b16 %v994
      %v1005 = vunpack.c.h.b16 %v994
      %v1006 = vunpack.c.l.b16 %v995
      %v1007 = vunpack.c.h.b16 %v995
      %v1008 = vunpack.c.l.b16 %v996
      %v1009 = vunpack.c.h.b16 %v996
      %v1010 = vpack.c.b16 %v1004, %v1002
      %v1011 = vpack.c.b16 %v1005, %v1003
      %v1012 = vpack.c.b16 %v1008, %v1006
      %v1013 = vpack.c.b16 %v1009, %v1007
      %vm1018 = vcmask 261120
      %v1020 = vsel %vm1018, %v997, 0
      %1022 = vmatprep.subr.bf16.mxu0 0
      %1023 = vmatpush1.bf16.msra.mxu0 0
      %1024 = vmatprep.subr.bf16.mxu0 0
      %1025 = vmatpush1.bf16.msra.mxu0 0
      %1026 = vmatprep.subr.bf16.mxu0 0
      %1027 = vmatpush1.bf16.msra.mxu0 0
      %1028 = vmatprep.subr.bf16.mxu0 0
      %1029 = vmatpush1.bf16.msra.mxu0 0
      %1030 = vmatprep.subr.bf16.mxu0 0
      %1031 = vmatpush1.bf16.msra.mxu0 0
      %1032 = vmatprep.subr.bf16.mxu0 0
      %1033 = vmatpush1.bf16.msra.mxu0 0
      %1034 = vmatprep.subr.bf16.mxu0 %v1013
      %1035 = vmatpush1.bf16.msra.mxu0 %v1012
      %1036 = vmatprep.subr.bf16.mxu0 %v1011
      %1037 = vmatpush1.bf16.msra.mxu0 %v1010
      %1038 = vmatprep.subr.bf16.mxu0 0
      %1039 = vmatpush2.bf16.msra.mxu0 0
      %1040 = vmatprep.subr.bf16.mxu0 0
      %1041 = vmatpush2.bf16.msra.mxu0 0
      %1042 = vmatprep.subr.bf16.mxu0 0
      %1043 = vmatpush2.bf16.msra.mxu0 0
      %1044 = vmatprep.subr.bf16.mxu0 0
      %1045 = vmatpush2.bf16.msra.mxu0 0
      %1046 = vmatprep.subr.bf16.mxu0 0
      %1047 = vmatpush2.bf16.msra.mxu0 0
      %1048 = vmatprep.subr.bf16.mxu0 0
      %1049 = vmatpush2.bf16.msra.mxu0 0
      %1050 = vmatprep.subr.bf16.mxu0 0
      %1051 = vmatpush2.bf16.msra.mxu0 0
      %1052 = vmatprep.subr.bf16.mxu0 0
      %1053 = vmatpush2.bf16.msra.mxu0 0
      %1054 = vmatprep.mubr.bf16.mxu0 0
      %1055 = vmatmul.mubr.bf16.gmra.mxu0 %v1020
      %v1056 = vpop.f32.mrf.mxu0
      %v1057 = vadd.f32 0.0, %v1056
      %v1058 = vpop.f32.mrf.mxu0
      %v1059 = vadd.f32 0.0, %v1058
      %v1060 = vpop.f32.mrf.mxu0
      %v1061 = vadd.f32 0.0, %v1060
      %v1062 = vpop.f32.mrf.mxu0
      %v1063 = vadd.f32 0.0, %v1062
      %1064 = vdwg.mxu0
      %v1069 = vunpack.c.l.b16 %v989
      %v1070 = vunpack.c.h.b16 %v989
      %v1071 = vunpack.c.l.b16 %v990
      %v1072 = vunpack.c.h.b16 %v990
      %v1073 = vunpack.c.l.b16 %v991
      %v1074 = vunpack.c.h.b16 %v991
      %v1075 = vunpack.c.l.b16 %v992
      %v1076 = vunpack.c.h.b16 %v992
      %v1077 = vpack.c.b16 %v1071, %v1069
      %v1078 = vpack.c.b16 %v1072, %v1070
      %v1079 = vpack.c.b16 %v1075, %v1073
      %v1080 = vpack.c.b16 %v1076, %v1074
      %v1086 = vsel %vm1018, %v779, 0
      %1088 = vmatprep.subr.bf16.mxu0 0
      %1089 = vmatpush1.bf16.msra.mxu0 0
      %1090 = vmatprep.subr.bf16.mxu0 0
      %1091 = vmatpush1.bf16.msra.mxu0 0
      %1092 = vmatprep.subr.bf16.mxu0 0
      %1093 = vmatpush1.bf16.msra.mxu0 0
      %1094 = vmatprep.subr.bf16.mxu0 0
      %1095 = vmatpush1.bf16.msra.mxu0 0
      %1096 = vmatprep.subr.bf16.mxu0 0
      %1097 = vmatpush1.bf16.msra.mxu0 0
      %1098 = vmatprep.subr.bf16.mxu0 0
      %1099 = vmatpush1.bf16.msra.mxu0 0
      %1100 = vmatprep.subr.bf16.mxu0 %v1080
      %1101 = vmatpush1.bf16.msra.mxu0 %v1079
      %1102 = vmatprep.subr.bf16.mxu0 %v1078
      %1103 = vmatpush1.bf16.msra.mxu0 %v1077
      %1104 = vmatprep.subr.bf16.mxu0 0
      %1105 = vmatpush2.bf16.msra.mxu0 0
      %1106 = vmatprep.subr.bf16.mxu0 0
      %1107 = vmatpush2.bf16.msra.mxu0 0
      %1108 = vmatprep.subr.bf16.mxu0 0
      %1109 = vmatpush2.bf16.msra.mxu0 0
      %1110 = vmatprep.subr.bf16.mxu0 0
      %1111 = vmatpush2.bf16.msra.mxu0 0
      %1112 = vmatprep.subr.bf16.mxu0 0
      %1113 = vmatpush2.bf16.msra.mxu0 0
      %1114 = vmatprep.subr.bf16.mxu0 0
      %1115 = vmatpush2.bf16.msra.mxu0 0
      %1116 = vmatprep.subr.bf16.mxu0 0
      %1117 = vmatpush2.bf16.msra.mxu0 0
      %1118 = vmatprep.subr.bf16.mxu0 0
      %1119 = vmatpush2.bf16.msra.mxu0 0
      %1120 = vmatprep.mubr.bf16.mxu0 0
      %1121 = vmatmul.mubr.bf16.gmra.mxu0 %v1086
      %v1122 = vpop.f32.mrf.mxu0
      %v1123 = vadd.f32 %v1057, %v1122
      %v1124 = vpop.f32.mrf.mxu0
      %v1125 = vadd.f32 %v1059, %v1124
      %v1126 = vpop.f32.mrf.mxu0
      %v1127 = vadd.f32 %v1061, %v1126
      %v1128 = vpop.f32.mrf.mxu0
      %v1129 = vadd.f32 %v1063, %v1128
      %1130 = vdwg.mxu0
      %v1131 = vld [vmem:[%s8] sm:$0xff]
      %v1132 = vld [vmem:[%s8 + $0x8] sm:$0xff]
      %v1133 = vld [vmem:[%s8 + $0x10] sm:$0xff]
      %v1134 = vld [vmem:[%s8 + $0x18] sm:$0xff]
      %v1139 = vunpack.c.l.b16 %v1131
      %v1140 = vunpack.c.h.b16 %v1131
      %v1141 = vunpack.c.l.b16 %v1132
      %v1142 = vunpack.c.h.b16 %v1132
      %v1143 = vunpack.c.l.b16 %v1133
      %v1144 = vunpack.c.h.b16 %v1133
      %v1145 = vunpack.c.l.b16 %v1134
      %v1146 = vunpack.c.h.b16 %v1134
      %v1147 = vpack.c.b16 %v1141, %v1139
      %v1148 = vpack.c.b16 %v1142, %v1140
      %v1149 = vpack.c.b16 %v1145, %v1143
      %v1150 = vpack.c.b16 %v1146, %v1144
      %v1156 = vsel %vm1018, %v783, 0
      %1158 = vmatprep.subr.bf16.mxu0 0
      %1159 = vmatpush1.bf16.msra.mxu0 0
      %1160 = vmatprep.subr.bf16.mxu0 0
      %1161 = vmatpush1.bf16.msra.mxu0 0
      %1162 = vmatprep.subr.bf16.mxu0 0
      %1163 = vmatpush1.bf16.msra.mxu0 0
      %1164 = vmatprep.subr.bf16.mxu0 0
      %1165 = vmatpush1.bf16.msra.mxu0 0
      %1166 = vmatprep.subr.bf16.mxu0 0
      %1167 = vmatpush1.bf16.msra.mxu0 0
      %1168 = vmatprep.subr.bf16.mxu0 0
      %1169 = vmatpush1.bf16.msra.mxu0 0
      %1170 = vmatprep.subr.bf16.mxu0 %v1150
      %1171 = vmatpush1.bf16.msra.mxu0 %v1149
      %1172 = vmatprep.subr.bf16.mxu0 %v1148
      %1173 = vmatpush1.bf16.msra.mxu0 %v1147
      %1174 = vmatprep.subr.bf16.mxu0 0
      %1175 = vmatpush2.bf16.msra.mxu0 0
      %1176 = vmatprep.subr.bf16.mxu0 0
      %1177 = vmatpush2.bf16.msra.mxu0 0
      %1178 = vmatprep.subr.bf16.mxu0 0
      %1179 = vmatpush2.bf16.msra.mxu0 0
      %1180 = vmatprep.subr.bf16.mxu0 0
      %1181 = vmatpush2.bf16.msra.mxu0 0
      %1182 = vmatprep.subr.bf16.mxu0 0
      %1183 = vmatpush2.bf16.msra.mxu0 0
      %1184 = vmatprep.subr.bf16.mxu0 0
      %1185 = vmatpush2.bf16.msra.mxu0 0
      %1186 = vmatprep.subr.bf16.mxu0 0
      %1187 = vmatpush2.bf16.msra.mxu0 0
      %1188 = vmatprep.subr.bf16.mxu0 0
      %1189 = vmatpush2.bf16.msra.mxu0 0
      %1190 = vmatprep.mubr.bf16.mxu0 0
      %1191 = vmatmul.mubr.bf16.gmra.mxu0 %v1156
      %v1192 = vpop.f32.mrf.mxu0
      %v1193 = vadd.f32 0.0, %v1192
      %v1194 = vpop.f32.mrf.mxu0
      %v1195 = vadd.f32 0.0, %v1194
      %v1196 = vpop.f32.mrf.mxu0
      %v1197 = vadd.f32 0.0, %v1196
      %v1198 = vpop.f32.mrf.mxu0
      %v1199 = vadd.f32 0.0, %v1198
      %1200 = vdwg.mxu0
      %v1201 = vadd.f32 %v1123, %v1193
      %v1202 = vadd.f32 %v1125, %v1195
      %v1203 = vadd.f32 %v1127, %v1197
      %v1204 = vadd.f32 %v1129, %v1199
      %v1205 = vmul.f32 %v983, %v983
      %v1206 = vmul.f32 %v984, %v984
      %v1207 = vmul.f32 %v985, %v985
      %v1208 = vmul.f32 %v986, %v986
      %v1209 = vadd.f32 %v1205, %v1207
      %v1210 = vadd.f32 %v1206, %v1208
      %v1211 = vmul.f32 %v987, %v987
      %v1212 = vmul.f32 %v988, %v988
      %v1213 = vadd.f32 %v1209, %v1211
      %v1214 = vadd.f32 %v1210, %v1212
      %v1215 = vmax.f32 %v1213, 1e-08
      %v1216 = vmax.f32 %v1214, 1e-08
      %v1217 = vrsqrt.pop %v1215
      %v1218 = vmul.f32 %v1215, %v1217
      %vm1219 = vcmp.eq.f32.partialorder %v1215, inf
      %v1220 = vsel %vm1219, %v1215, %v1218
      %vm1221 = vcmp.eq.f32.partialorder %v1215, 0.0
      %v1222 = vand.u32 %v1215, 2147483648
      %v1223 = vsel %vm1221, %v1222, %v1220
      %v1224 = vrsqrt.pop %v1216
      %v1225 = vmul.f32 %v1216, %v1224
      %vm1226 = vcmp.eq.f32.partialorder %v1216, inf
      %v1227 = vsel %vm1226, %v1216, %v1225
      %vm1228 = vcmp.eq.f32.partialorder %v1216, 0.0
      %v1229 = vand.u32 %v1216, 2147483648
      %v1230 = vsel %vm1228, %v1229, %v1227
      %v1231 = vld [vmem:[%s9] sm:$0xff]
      %v1232 = vpack.c.bf16 %v1230, %v1223
      %v1234 = vunpack.c.l.b16 %v1231
      %v1235 = vunpack.c.h.b16 %v1231
      %v1236 = vpack.c.b16 %v1234, %v1234
      %v1237 = vpack.c.b16 %v1235, %v1235
      %vm1238 = vcmask 56320
      %v1240 = vsel %vm1238, %v1232, 0
      %vm1242 = vcmask 1042432
      %vm1243 = vcmask 1043456
      %v1244 = vsel %vm1242, 4294967295, 65535
      %v1245 = vsel %vm1243, %v1244, 0
      %v1247 = vand.u32 %v1236, %v1245
      %v1250 = vand.u32 %v1237, %v1245
      %1252 = vmatprep.subr.bf16.mxu0 0
      %1253 = vmatpush1.bf16.msra.mxu0 0
      %1254 = vmatprep.subr.bf16.mxu0 0
      %1255 = vmatpush1.bf16.msra.mxu0 0
      %1256 = vmatprep.subr.bf16.mxu0 0
      %1257 = vmatpush1.bf16.msra.mxu0 0
      %1258 = vmatprep.subr.bf16.mxu0 0
      %1259 = vmatpush1.bf16.msra.mxu0 0
      %1260 = vmatprep.subr.bf16.mxu0 0
      %1261 = vmatpush1.bf16.msra.mxu0 0
      %1262 = vmatprep.subr.bf16.mxu0 0
      %1263 = vmatpush1.bf16.msra.mxu0 0
      %1264 = vmatprep.subr.bf16.mxu0 0
      %1265 = vmatpush1.bf16.msra.mxu0 0
      %1266 = vmatprep.subr.bf16.mxu0 %v1250
      %1267 = vmatpush1.bf16.msra.mxu0 %v1247
      %1268 = vmatprep.subr.bf16.mxu0 0
      %1269 = vmatpush2.bf16.msra.mxu0 0
      %1270 = vmatprep.subr.bf16.mxu0 0
      %1271 = vmatpush2.bf16.msra.mxu0 0
      %1272 = vmatprep.subr.bf16.mxu0 0
      %1273 = vmatpush2.bf16.msra.mxu0 0
      %1274 = vmatprep.subr.bf16.mxu0 0
      %1275 = vmatpush2.bf16.msra.mxu0 0
      %1276 = vmatprep.subr.bf16.mxu0 0
      %1277 = vmatpush2.bf16.msra.mxu0 0
      %1278 = vmatprep.subr.bf16.mxu0 0
      %1279 = vmatpush2.bf16.msra.mxu0 0
      %1280 = vmatprep.subr.bf16.mxu0 0
      %1281 = vmatpush2.bf16.msra.mxu0 0
      %1282 = vmatprep.subr.bf16.mxu0 0
      %1283 = vmatpush2.bf16.msra.mxu0 0
      %1284 = vmatprep.mubr.bf16.mxu0 0
      %1285 = vmatmul.mubr.bf16.gmra.mxu0 %v1240
      %v1286 = vpop.f32.mrf.mxu0
      %v1287 = vadd.f32 0.0, %v1286
      %v1288 = vpop.f32.mrf.mxu0
      %v1289 = vadd.f32 0.0, %v1288
      %v1290 = vpop.f32.mrf.mxu0
      %v1291 = vadd.f32 0.0, %v1290
      %v1292 = vpop.f32.mrf.mxu0
      %v1293 = vadd.f32 0.0, %v1292
      %1294 = vdwg.mxu0
      %v1295 = vadd.f32 %v1201, %v1287
      %v1296 = vadd.f32 %v1202, %v1289
      %v1297 = vadd.f32 %v1203, %v1291
      %v1298 = vadd.f32 %v1204, %v1293
      %v1299 = vld [vmem:[%s10] sm:$0x3]
      %v1301 = vlaneseq
      %v1302 = vshrl.u32 %v1301, 7
      %v1303 = vsub.s32 0, %v1302
      %v1304 = vrot.slane %v1299, %v1303
      %v1305 = vlaneseq
      %v1306 = vshrl.u32 %v1305, 7
      %v1307 = vsub.s32 1, %v1306
      %v1308 = vrot.slane %v1299, %v1307
      %v1311 = vadd.f32 %v1295, %v1304
      %v1312 = vadd.f32 %v1296, %v1308
      %v1313 = vadd.f32 %v1297, %v1304
      %v1314 = vadd.f32 %v1298, %v1308
      %v1315 = vld [vmem:[%s11] sm:$0xf]
      %v1316 = vpack.c.bf16 %v984, %v983
      %v1317 = vpack.c.bf16 %v986, %v985
      %v1318 = vpack.c.bf16 %v988, %v987
      %v1320 = vsel %vm1238, %v1316, 0
      %v1323 = vsel %vm1238, %v1317, 0
      %v1326 = vsel %vm1238, %v1318, 0
      %v1329 = vand.u32 %v1315, %v1245
      %1331 = vmatprep.subr.bf16.mxu0 0
      %1332 = vmatpush1.bf16.msra.mxu0 0
      %1333 = vmatprep.subr.bf16.mxu0 0
      %1334 = vmatpush1.bf16.msra.mxu0 0
      %1335 = vmatprep.subr.bf16.mxu0 0
      %1336 = vmatpush1.bf16.msra.mxu0 0
      %1337 = vmatprep.subr.bf16.mxu0 0
      %1338 = vmatpush1.bf16.msra.mxu0 0
      %1339 = vmatprep.subr.bf16.mxu0 0
      %1340 = vmatpush1.bf16.msra.mxu0 0
      %1341 = vmatprep.subr.bf16.mxu0 0
      %1342 = vmatpush1.bf16.msra.mxu0 0
      %1343 = vmatprep.subr.bf16.mxu0 0
      %1344 = vmatpush1.bf16.msra.mxu0 0
      %1345 = vmatprep.subr.bf16.mxu0 0
      %1346 = vmatpush1.bf16.msra.mxu0 %v1329
      %1347 = vmatprep.subr.bf16.mxu0 0
      %1348 = vmatpush2.bf16.msra.mxu0 0
      %1349 = vmatprep.subr.bf16.mxu0 0
      %1350 = vmatpush2.bf16.msra.mxu0 0
      %1351 = vmatprep.subr.bf16.mxu0 0
      %1352 = vmatpush2.bf16.msra.mxu0 0
      %1353 = vmatprep.subr.bf16.mxu0 0
      %1354 = vmatpush2.bf16.msra.mxu0 0
      %1355 = vmatprep.subr.bf16.mxu0 0
      %1356 = vmatpush2.bf16.msra.mxu0 0
      %1357 = vmatprep.subr.bf16.mxu0 0
      %1358 = vmatpush2.bf16.msra.mxu0 0
      %1359 = vmatprep.subr.bf16.mxu0 0
      %1360 = vmatpush2.bf16.msra.mxu0 0
      %1361 = vmatprep.subr.bf16.mxu0 0
      %1362 = vmatpush2.bf16.msra.mxu0 0
      %1363 = vmatprep.mubr.bf16.mxu0 0
      %1364 = vmatmul.mubr.bf16.gmra.mxu0 %v1320
      %v1365 = vpop.f32.mrf.mxu0
      %v1366 = vadd.f32 0.0, %v1365
      %v1367 = vpop.f32.mrf.mxu0
      %v1368 = vpop.f32.mrf.mxu0
      %v1369 = vadd.f32 0.0, %v1368
      %v1370 = vpop.f32.mrf.mxu0
      %1371 = vmatprep.mubr.bf16.mxu0 0
      %1372 = vmatmul.mubr.bf16.gmra.mxu0 %v1323
      %v1373 = vpop.f32.mrf.mxu0
      %v1374 = vadd.f32 0.0, %v1373
      %v1375 = vpop.f32.mrf.mxu0
      %v1376 = vpop.f32.mrf.mxu0
      %v1377 = vadd.f32 0.0, %v1376
      %v1378 = vpop.f32.mrf.mxu0
      %1379 = vmatprep.mubr.bf16.mxu0 0
      %1380 = vmatmul.mubr.bf16.gmra.mxu0 %v1326
      %v1381 = vpop.f32.mrf.mxu0
      %v1382 = vadd.f32 0.0, %v1381
      %v1383 = vpop.f32.mrf.mxu0
      %v1384 = vpop.f32.mrf.mxu0
      %v1385 = vadd.f32 0.0, %v1384
      %v1386 = vpop.f32.mrf.mxu0
      %1387 = vdwg.mxu0
      %v1388 = vmul.f32 %v1366, %v1366
      %v1389 = vmul.f32 %v1369, %v1369
      %v1390 = vmul.f32 %v1374, %v1374
      %v1391 = vmul.f32 %v1377, %v1377
      %v1392 = vadd.f32 %v1388, %v1390
      %v1393 = vadd.f32 %v1389, %v1391
      %v1394 = vmul.f32 %v1382, %v1382
      %v1395 = vmul.f32 %v1385, %v1385
      %v1396 = vadd.f32 %v1392, %v1394
      %v1397 = vadd.f32 %v1393, %v1395
      %v1398 = vmax.f32 %v1396, 1e-08
      %v1399 = vmax.f32 %v1397, 1e-08
      %v1400 = vrsqrt.pop %v1398
      %v1401 = vmul.f32 %v1398, %v1400
      %vm1402 = vcmp.eq.f32.partialorder %v1398, inf
      %v1403 = vsel %vm1402, %v1398, %v1401
      %vm1404 = vcmp.eq.f32.partialorder %v1398, 0.0
      %v1405 = vand.u32 %v1398, 2147483648
      %v1406 = vsel %vm1404, %v1405, %v1403
      %v1407 = vrsqrt.pop %v1399
      %v1408 = vmul.f32 %v1399, %v1407
      %vm1409 = vcmp.eq.f32.partialorder %v1399, inf
      %v1410 = vsel %vm1409, %v1399, %v1408
      %vm1411 = vcmp.eq.f32.partialorder %v1399, 0.0
      %v1412 = vand.u32 %v1399, 2147483648
      %v1413 = vsel %vm1411, %v1412, %v1410
      %v1414 = vsub.f32 0.0, %v1406
      %v1415 = vsub.f32 0.0, %v1413
      %v1416 = vmul.f32 %v1414, 1.442695
      %v1417 = vpow.pop %v1416
      %v1418 = vmul.f32 %v1415, 1.442695
      %v1419 = vpow.pop %v1418
      %v1420 = vadd.f32 %v1417, 1.0
      %v1421 = vadd.f32 %v1419, 1.0
      %v1422 = vrcp.pop %v1420
      %v1423 = vrcp.pop %v1421
      %v1424 = vmul.f32 %v1366, %v1422
      %v1425 = vmul.f32 %v1369, %v1423
      %v1426 = vmul.f32 %v1374, %v1422
      %v1427 = vmul.f32 %v1377, %v1423
      %v1428 = vmul.f32 %v1382, %v1422
      %v1429 = vmul.f32 %v1385, %v1423
      %v1430 = vmax.f32 %v1311, 0.0
      %v1431 = vmax.f32 %v1312, 0.0
      %v1432 = vmax.f32 %v1313, 0.0
      %v1433 = vmax.f32 %v1314, 0.0
      %v1434 = vld [vmem:[%s12] sm:$0x3]
      %v1435 = vpack.c.bf16 %v1425, %v1424
      %v1436 = vpack.c.bf16 %v1427, %v1426
      %v1437 = vpack.c.bf16 %v1429, %v1428
      %v1439 = vsel %vm795, %v1435, 0
      %v1442 = vsel %vm795, %v1436, 0
      %v1445 = vsel %vm795, %v1437, 0
      %v1448 = vand.u32 %v1434, %v808
      %1450 = vmatprep.subr.bf16.mxu0 0
      %1451 = vmatpush1.bf16.msra.mxu0 0
      %1452 = vmatprep.subr.bf16.mxu0 0
      %1453 = vmatpush1.bf16.msra.mxu0 0
      %1454 = vmatprep.subr.bf16.mxu0 0
      %1455 = vmatpush1.bf16.msra.mxu0 0
      %1456 = vmatprep.subr.bf16.mxu0 0
      %1457 = vmatpush1.bf16.msra.mxu0 0
      %1458 = vmatprep.subr.bf16.mxu0 0
      %1459 = vmatpush1.bf16.msra.mxu0 0
      %1460 = vmatprep.subr.bf16.mxu0 0
      %1461 = vmatpush1.bf16.msra.mxu0 0
      %1462 = vmatprep.subr.bf16.mxu0 0
      %1463 = vmatpush1.bf16.msra.mxu0 0
      %1464 = vmatprep.subr.bf16.mxu0 0
      %1465 = vmatpush1.bf16.msra.mxu0 %v1448
      %1466 = vmatprep.subr.bf16.mxu0 0
      %1467 = vmatpush2.bf16.msra.mxu0 0
      %1468 = vmatprep.subr.bf16.mxu0 0
      %1469 = vmatpush2.bf16.msra.mxu0 0
      %1470 = vmatprep.subr.bf16.mxu0 0
      %1471 = vmatpush2.bf16.msra.mxu0 0
      %1472 = vmatprep.subr.bf16.mxu0 0
      %1473 = vmatpush2.bf16.msra.mxu0 0
      %1474 = vmatprep.subr.bf16.mxu0 0
      %1475 = vmatpush2.bf16.msra.mxu0 0
      %1476 = vmatprep.subr.bf16.mxu0 0
      %1477 = vmatpush2.bf16.msra.mxu0 0
      %1478 = vmatprep.subr.bf16.mxu0 0
      %1479 = vmatpush2.bf16.msra.mxu0 0
      %1480 = vmatprep.subr.bf16.mxu0 0
      %1481 = vmatpush2.bf16.msra.mxu0 0
      %1482 = vmatprep.mubr.bf16.mxu0 0
      %1483 = vmatmul.mubr.bf16.gmra.mxu0 %v1439
      %v1484 = vpop.f32.mrf.mxu0
      %v1485 = vadd.f32 0.0, %v1484
      %v1486 = vpop.f32.mrf.mxu0
      %v1487 = vpop.f32.mrf.mxu0
      %v1488 = vadd.f32 0.0, %v1487
      %v1489 = vpop.f32.mrf.mxu0
      %1490 = vmatprep.mubr.bf16.mxu0 0
      %1491 = vmatmul.mubr.bf16.gmra.mxu0 %v1442
      %v1492 = vpop.f32.mrf.mxu0
      %v1493 = vadd.f32 0.0, %v1492
      %v1494 = vpop.f32.mrf.mxu0
      %v1495 = vpop.f32.mrf.mxu0
      %v1496 = vadd.f32 0.0, %v1495
      %v1497 = vpop.f32.mrf.mxu0
      %1498 = vmatprep.mubr.bf16.mxu0 0
      %1499 = vmatmul.mubr.bf16.gmra.mxu0 %v1445
      %v1500 = vpop.f32.mrf.mxu0
      %v1501 = vadd.f32 0.0, %v1500
      %v1502 = vpop.f32.mrf.mxu0
      %v1503 = vpop.f32.mrf.mxu0
      %v1504 = vadd.f32 0.0, %v1503
      %v1505 = vpop.f32.mrf.mxu0
      %1506 = vdwg.mxu0
      %v1507 = vld [vmem:[%s13] sm:$0xff]
      %v1508 = vld [vmem:[%s13 + $0x8] sm:$0xff]
      %v1509 = vld [vmem:[%s13 + $0x10] sm:$0xff]
      %v1510 = vld [vmem:[%s13 + $0x18] sm:$0xff]
      %v1511 = vld [vmem:[%s13 + $0x20] sm:$0xff]
      %v1512 = vld [vmem:[%s13 + $0x28] sm:$0xff]
      %v1513 = vld [vmem:[%s13 + $0x30] sm:$0xff]
      %v1514 = vld [vmem:[%s13 + $0x38] sm:$0xff]
      %v1515 = vld [vmem:[%s13 + $0x40] sm:$0xff]
      %v1516 = vld [vmem:[%s13 + $0x48] sm:$0xff]
      %v1517 = vld [vmem:[%s13 + $0x50] sm:$0xff]
      %v1518 = vld [vmem:[%s13 + $0x58] sm:$0xff]
      %v1519 = vld [vmem:[%s13 + $0x60] sm:$0xff]
      %v1520 = vld [vmem:[%s13 + $0x68] sm:$0xff]
      %v1521 = vld [vmem:[%s13 + $0x70] sm:$0xff]
      %v1522 = vld [vmem:[%s13 + $0x78] sm:$0xff]
      %v1523 = vld [vmem:[%s13 + $0x80] sm:$0xff]
      %v1524 = vld [vmem:[%s13 + $0x88] sm:$0xff]
      %v1525 = vld [vmem:[%s13 + $0x90] sm:$0xff]
      %v1526 = vld [vmem:[%s13 + $0x98] sm:$0xff]
      %v1527 = vld [vmem:[%s13 + $0xa0] sm:$0xff]
      %v1528 = vld [vmem:[%s13 + $0xa8] sm:$0xff]
      %v1529 = vld [vmem:[%s13 + $0xb0] sm:$0xff]
      %v1530 = vld [vmem:[%s13 + $0xb8] sm:$0xff]
      %v1531 = vld [vmem:[%s13 + $0xc0] sm:$0xff]
      %v1532 = vld [vmem:[%s13 + $0xc8] sm:$0xff]
      %v1533 = vld [vmem:[%s13 + $0xd0] sm:$0xff]
      %v1534 = vld [vmem:[%s13 + $0xd8] sm:$0xff]
      %v1535 = vld [vmem:[%s13 + $0xe0] sm:$0xff]
      %v1536 = vld [vmem:[%s13 + $0xe8] sm:$0xff]
      %v1537 = vld [vmem:[%s13 + $0xf0] sm:$0xff]
      %v1538 = vld [vmem:[%s13 + $0xf8] sm:$0xff]
      %v1539 = vpack.c.bf16 %v1432, %v1430
      %v1540 = vpack.c.bf16 %v1433, %v1431
      %v1541 = vmul.f32 %v1485, %v1485
      %v1542 = vmul.f32 %v1488, %v1488
      %v1543 = vmul.f32 %v1493, %v1493
      %v1544 = vmul.f32 %v1496, %v1496
      %v1545 = vadd.f32 %v1541, %v1543
      %v1546 = vadd.f32 %v1542, %v1544
      %v1547 = vmul.f32 %v1501, %v1501
      %v1548 = vmul.f32 %v1504, %v1504
      %v1549 = vadd.f32 %v1545, %v1547
      %v1550 = vadd.f32 %v1546, %v1548
      %v1551 = vmax.f32 %v1549, 1e-08
      %v1552 = vmax.f32 %v1550, 1e-08
      %v1553 = vrsqrt.pop %v1551
      %v1554 = vmul.f32 %v1551, %v1553
      %vm1555 = vcmp.eq.f32.partialorder %v1551, inf
      %v1556 = vsel %vm1555, %v1551, %v1554
      %vm1557 = vcmp.eq.f32.partialorder %v1551, 0.0
      %v1558 = vand.u32 %v1551, 2147483648
      %v1559 = vsel %vm1557, %v1558, %v1556
      %v1560 = vrsqrt.pop %v1552
      %v1561 = vmul.f32 %v1552, %v1560
      %vm1562 = vcmp.eq.f32.partialorder %v1552, inf
      %v1563 = vsel %vm1562, %v1552, %v1561
      %vm1564 = vcmp.eq.f32.partialorder %v1552, 0.0
      %v1565 = vand.u32 %v1552, 2147483648
      %v1566 = vsel %vm1564, %v1565, %v1563
      %v1567 = vld [vmem:[%s14] sm:$0xf]
      %v1568 = vpack.c.bf16 %v1566, %v1559
      %v1571 = vunpack.c.l.s4 1983009808
      %v1572 = vunpack.c.0.s8 %v1571
      %v1573 = vlaneseq
      %v1574 = vshrl.u32 %v1573, 7
      %v1575 = vsub.s32 %v1572, %v1574
      %v1576 = vrot.slane %v1567, %v1575
      %v1577 = vcombine.high %v1576, %v1576
      %v1579 = vsel %vm795, %v1568, 0
      %v1582 = vand.u32 %v1576, %v808
      %v1585 = vand.u32 %v1577, %v808
      %1587 = vmatprep.subr.bf16.mxu0 0
      %1588 = vmatpush1.bf16.msra.mxu0 0
      %1589 = vmatprep.subr.bf16.mxu0 0
      %1590 = vmatpush1.bf16.msra.mxu0 0
      %1591 = vmatprep.subr.bf16.mxu0 0
      %1592 = vmatpush1.bf16.msra.mxu0 0
      %1593 = vmatprep.subr.bf16.mxu0 0
      %1594 = vmatpush1.bf16.msra.mxu0 0
      %1595 = vmatprep.subr.bf16.mxu0 0
      %1596 = vmatpush1.bf16.msra.mxu0 0
      %1597 = vmatprep.subr.bf16.mxu0 0
      %1598 = vmatpush1.bf16.msra.mxu0 0
      %1599 = vmatprep.subr.bf16.mxu0 0
      %1600 = vmatpush1.bf16.msra.mxu0 0
      %1601 = vmatprep.subr.bf16.mxu0 %v1585
      %1602 = vmatpush1.bf16.msra.mxu0 %v1582
      %1603 = vmatprep.subr.bf16.mxu0 0
      %1604 = vmatpush2.bf16.msra.mxu0 0
      %1605 = vmatprep.subr.bf16.mxu0 0
      %1606 = vmatpush2.bf16.msra.mxu0 0
      %1607 = vmatprep.subr.bf16.mxu0 0
      %1608 = vmatpush2.bf16.msra.mxu0 0
      %1609 = vmatprep.subr.bf16.mxu0 0
      %1610 = vmatpush2.bf16.msra.mxu0 0
      %1611 = vmatprep.subr.bf16.mxu0 0
      %1612 = vmatpush2.bf16.msra.mxu0 0
      %1613 = vmatprep.subr.bf16.mxu0 0
      %1614 = vmatpush2.bf16.msra.mxu0 0
      %1615 = vmatprep.subr.bf16.mxu0 0
      %1616 = vmatpush2.bf16.msra.mxu0 0
      %1617 = vmatprep.subr.bf16.mxu0 0
      %1618 = vmatpush2.bf16.msra.mxu0 0
      %1619 = vmatprep.mubr.bf16.mxu0 0
      %1620 = vmatmul.mubr.bf16.gmra.mxu0 %v1579
      %v1621 = vpop.f32.mrf.mxu0
      %v1622 = vadd.f32 0.0, %v1621
      %v1623 = vpop.f32.mrf.mxu0
      %v1624 = vadd.f32 0.0, %v1623
      %v1625 = vpop.f32.mrf.mxu0
      %v1626 = vadd.f32 0.0, %v1625
      %v1627 = vpop.f32.mrf.mxu0
      %v1628 = vadd.f32 0.0, %v1627
      %1629 = vdwg.mxu0
      %v1662 = vunpack.c.l.b16 %v1507
      %v1663 = vunpack.c.h.b16 %v1507
      %v1664 = vunpack.c.l.b16 %v1508
      %v1665 = vunpack.c.h.b16 %v1508
      %v1666 = vunpack.c.l.b16 %v1509
      %v1667 = vunpack.c.h.b16 %v1509
      %v1668 = vunpack.c.l.b16 %v1510
      %v1669 = vunpack.c.h.b16 %v1510
      %v1670 = vunpack.c.l.b16 %v1511
      %v1671 = vunpack.c.h.b16 %v1511
      %v1672 = vunpack.c.l.b16 %v1512
      %v1673 = vunpack.c.h.b16 %v1512
      %v1674 = vunpack.c.l.b16 %v1513
      %v1675 = vunpack.c.h.b16 %v1513
      %v1676 = vunpack.c.l.b16 %v1514
      %v1677 = vunpack.c.h.b16 %v1514
      %v1678 = vunpack.c.l.b16 %v1515
      %v1679 = vunpack.c.h.b16 %v1515
      %v1680 = vunpack.c.l.b16 %v1516
      %v1681 = vunpack.c.h.b16 %v1516
      %v1682 = vunpack.c.l.b16 %v1517
      %v1683 = vunpack.c.h.b16 %v1517
      %v1684 = vunpack.c.l.b16 %v1518
      %v1685 = vunpack.c.h.b16 %v1518
      %v1686 = vunpack.c.l.b16 %v1519
      %v1687 = vunpack.c.h.b16 %v1519
      %v1688 = vunpack.c.l.b16 %v1520
      %v1689 = vunpack.c.h.b16 %v1520
      %v1690 = vunpack.c.l.b16 %v1521
      %v1691 = vunpack.c.h.b16 %v1521
      %v1692 = vunpack.c.l.b16 %v1522
      %v1693 = vunpack.c.h.b16 %v1522
      %v1694 = vunpack.c.l.b16 %v1523
      %v1695 = vunpack.c.h.b16 %v1523
      %v1696 = vunpack.c.l.b16 %v1524
      %v1697 = vunpack.c.h.b16 %v1524
      %v1698 = vunpack.c.l.b16 %v1525
      %v1699 = vunpack.c.h.b16 %v1525
      %v1700 = vunpack.c.l.b16 %v1526
      %v1701 = vunpack.c.h.b16 %v1526
      %v1702 = vunpack.c.l.b16 %v1527
      %v1703 = vunpack.c.h.b16 %v1527
      %v1704 = vunpack.c.l.b16 %v1528
      %v1705 = vunpack.c.h.b16 %v1528
      %v1706 = vunpack.c.l.b16 %v1529
      %v1707 = vunpack.c.h.b16 %v1529
      %v1708 = vunpack.c.l.b16 %v1530
      %v1709 = vunpack.c.h.b16 %v1530
      %v1710 = vunpack.c.l.b16 %v1531
      %v1711 = vunpack.c.h.b16 %v1531
      %v1712 = vunpack.c.l.b16 %v1532
      %v1713 = vunpack.c.h.b16 %v1532
      %v1714 = vunpack.c.l.b16 %v1533
      %v1715 = vunpack.c.h.b16 %v1533
      %v1716 = vunpack.c.l.b16 %v1534
      %v1717 = vunpack.c.h.b16 %v1534
      %v1718 = vunpack.c.l.b16 %v1535
      %v1719 = vunpack.c.h.b16 %v1535
      %v1720 = vunpack.c.l.b16 %v1536
      %v1721 = vunpack.c.h.b16 %v1536
      %v1722 = vunpack.c.l.b16 %v1537
      %v1723 = vunpack.c.h.b16 %v1537
      %v1724 = vunpack.c.l.b16 %v1538
      %v1725 = vunpack.c.h.b16 %v1538
      %v1726 = vpack.c.b16 %v1664, %v1662
      %v1727 = vpack.c.b16 %v1665, %v1663
      %v1728 = vpack.c.b16 %v1668, %v1666
      %v1729 = vpack.c.b16 %v1669, %v1667
      %v1730 = vpack.c.b16 %v1672, %v1670
      %v1731 = vpack.c.b16 %v1673, %v1671
      %v1732 = vpack.c.b16 %v1676, %v1674
      %v1733 = vpack.c.b16 %v1677, %v1675
      %v1734 = vpack.c.b16 %v1680, %v1678
      %v1735 = vpack.c.b16 %v1681, %v1679
      %v1736 = vpack.c.b16 %v1684, %v1682
      %v1737 = vpack.c.b16 %v1685, %v1683
      %v1738 = vpack.c.b16 %v1688, %v1686
      %v1739 = vpack.c.b16 %v1689, %v1687
      %v1740 = vpack.c.b16 %v1692, %v1690
      %v1741 = vpack.c.b16 %v1693, %v1691
      %v1742 = vpack.c.b16 %v1696, %v1694
      %v1743 = vpack.c.b16 %v1697, %v1695
      %v1744 = vpack.c.b16 %v1700, %v1698
      %v1745 = vpack.c.b16 %v1701, %v1699
      %v1746 = vpack.c.b16 %v1704, %v1702
      %v1747 = vpack.c.b16 %v1705, %v1703
      %v1748 = vpack.c.b16 %v1708, %v1706
      %v1749 = vpack.c.b16 %v1709, %v1707
      %v1750 = vpack.c.b16 %v1712, %v1710
      %v1751 = vpack.c.b16 %v1713, %v1711
      %v1752 = vpack.c.b16 %v1716, %v1714
      %v1753 = vpack.c.b16 %v1717, %v1715
      %v1754 = vpack.c.b16 %v1720, %v1718
      %v1755 = vpack.c.b16 %v1721, %v1719
      %v1756 = vpack.c.b16 %v1724, %v1722
      %v1757 = vpack.c.b16 %v1725, %v1723
      %1790 = vmatprep.subr.bf16.mxu0 %v1741
      %1791 = vmatpush1.bf16.msra.mxu0 %v1740
      %1792 = vmatprep.subr.bf16.mxu0 %v1739
      %1793 = vmatpush1.bf16.msra.mxu0 %v1738
      %1794 = vmatprep.subr.bf16.mxu0 %v1737
      %1795 = vmatpush1.bf16.msra.mxu0 %v1736
      %1796 = vmatprep.subr.bf16.mxu0 %v1735
      %1797 = vmatpush1.bf16.msra.mxu0 %v1734
      %1798 = vmatprep.subr.bf16.mxu0 %v1733
      %1799 = vmatpush1.bf16.msra.mxu0 %v1732
      %1800 = vmatprep.subr.bf16.mxu0 %v1731
      %1801 = vmatpush1.bf16.msra.mxu0 %v1730
      %1802 = vmatprep.subr.bf16.mxu0 %v1729
      %1803 = vmatpush1.bf16.msra.mxu0 %v1728
      %1804 = vmatprep.subr.bf16.mxu0 %v1727
      %1805 = vmatpush1.bf16.msra.mxu0 %v1726
      %1806 = vmatprep.subr.bf16.mxu0 %v1757
      %1807 = vmatpush2.bf16.msra.mxu0 %v1756
      %1808 = vmatprep.subr.bf16.mxu0 %v1755
      %1809 = vmatpush2.bf16.msra.mxu0 %v1754
      %1810 = vmatprep.subr.bf16.mxu0 %v1753
      %1811 = vmatpush2.bf16.msra.mxu0 %v1752
      %1812 = vmatprep.subr.bf16.mxu0 %v1751
      %1813 = vmatpush2.bf16.msra.mxu0 %v1750
      %1814 = vmatprep.subr.bf16.mxu0 %v1749
      %1815 = vmatpush2.bf16.msra.mxu0 %v1748
      %1816 = vmatprep.subr.bf16.mxu0 %v1747
      %1817 = vmatpush2.bf16.msra.mxu0 %v1746
      %1818 = vmatprep.subr.bf16.mxu0 %v1745
      %1819 = vmatpush2.bf16.msra.mxu0 %v1744
      %1820 = vmatprep.subr.bf16.mxu0 %v1743
      %1821 = vmatpush2.bf16.msra.mxu0 %v1742
      %1822 = vmatprep.mubr.bf16.mxu0 %v1540
      %1823 = vmatmul.mubr.bf16.gmra.mxu0 %v1539
      %v1824 = vpop.f32.mrf.mxu0
      %v1825 = vadd.f32 %v1622, %v1824
      %v1826 = vpop.f32.mrf.mxu0
      %v1827 = vadd.f32 %v1624, %v1826
      %v1828 = vpop.f32.mrf.mxu0
      %v1829 = vadd.f32 %v1626, %v1828
      %v1830 = vpop.f32.mrf.mxu0
      %v1831 = vadd.f32 %v1628, %v1830
      %1832 = vdwg.mxu0
      %v1833 = vld [vmem:[%s15] sm:$0x3]
      %v1835 = vlaneseq
      %v1836 = vshrl.u32 %v1835, 7
      %v1837 = vsub.s32 0, %v1836
      %v1838 = vrot.slane %v1833, %v1837
      %v1839 = vlaneseq
      %v1840 = vshrl.u32 %v1839, 7
      %v1841 = vsub.s32 1, %v1840
      %v1842 = vrot.slane %v1833, %v1841
      %v1845 = vadd.f32 %v1825, %v1838
      %v1846 = vadd.f32 %v1827, %v1842
      %v1847 = vadd.f32 %v1829, %v1838
      %v1848 = vadd.f32 %v1831, %v1842
      %v1849 = vld [vmem:[%s16] sm:$0x3]
      %v1850 = vpack.c.bf16 %v1488, %v1485
      %v1851 = vpack.c.bf16 %v1496, %v1493
      %v1852 = vpack.c.bf16 %v1504, %v1501
      %v1854 = vsel %vm795, %v1850, 0
      %v1857 = vsel %vm795, %v1851, 0
      %v1860 = vsel %vm795, %v1852, 0
      %v1863 = vand.u32 %v1849, %v808
      %1865 = vmatprep.subr.bf16.mxu0 0
      %1866 = vmatpush1.bf16.msra.mxu0 0
      %1867 = vmatprep.subr.bf16.mxu0 0
      %1868 = vmatpush1.bf16.msra.mxu0 0
      %1869 = vmatprep.subr.bf16.mxu0 0
      %1870 = vmatpush1.bf16.msra.mxu0 0
      %1871 = vmatprep.subr.bf16.mxu0 0
      %1872 = vmatpush1.bf16.msra.mxu0 0
      %1873 = vmatprep.subr.bf16.mxu0 0
      %1874 = vmatpush1.bf16.msra.mxu0 0
      %1875 = vmatprep.subr.bf16.mxu0 0
      %1876 = vmatpush1.bf16.msra.mxu0 0
      %1877 = vmatprep.subr.bf16.mxu0 0
      %1878 = vmatpush1.bf16.msra.mxu0 0
      %1879 = vmatprep.subr.bf16.mxu0 0
      %1880 = vmatpush1.bf16.msra.mxu0 %v1863
      %1881 = vmatprep.subr.bf16.mxu0 0
      %1882 = vmatpush2.bf16.msra.mxu0 0
      %1883 = vmatprep.subr.bf16.mxu0 0
      %1884 = vmatpush2.bf16.msra.mxu0 0
      %1885 = vmatprep.subr.bf16.mxu0 0
      %1886 = vmatpush2.bf16.msra.mxu0 0
      %1887 = vmatprep.subr.bf16.mxu0 0
      %1888 = vmatpush2.bf16.msra.mxu0 0
      %1889 = vmatprep.subr.bf16.mxu0 0
      %1890 = vmatpush2.bf16.msra.mxu0 0
      %1891 = vmatprep.subr.bf16.mxu0 0
      %1892 = vmatpush2.bf16.msra.mxu0 0
      %1893 = vmatprep.subr.bf16.mxu0 0
      %1894 = vmatpush2.bf16.msra.mxu0 0
      %1895 = vmatprep.subr.bf16.mxu0 0
      %1896 = vmatpush2.bf16.msra.mxu0 0
      %1897 = vmatprep.mubr.bf16.mxu0 0
      %1898 = vmatmul.mubr.bf16.gmra.mxu0 %v1854
      %v1899 = vpop.f32.mrf.mxu0
      %v1900 = vadd.f32 0.0, %v1899
      %v1901 = vpop.f32.mrf.mxu0
      %v1902 = vpop.f32.mrf.mxu0
      %v1903 = vadd.f32 0.0, %v1902
      %v1904 = vpop.f32.mrf.mxu0
      %1905 = vmatprep.mubr.bf16.mxu0 0
      %1906 = vmatmul.mubr.bf16.gmra.mxu0 %v1857
      %v1907 = vpop.f32.mrf.mxu0
      %v1908 = vadd.f32 0.0, %v1907
      %v1909 = vpop.f32.mrf.mxu0
      %v1910 = vpop.f32.mrf.mxu0
      %v1911 = vadd.f32 0.0, %v1910
      %v1912 = vpop.f32.mrf.mxu0
      %1913 = vmatprep.mubr.bf16.mxu0 0
      %1914 = vmatmul.mubr.bf16.gmra.mxu0 %v1860
      %v1915 = vpop.f32.mrf.mxu0
      %v1916 = vadd.f32 0.0, %v1915
      %v1917 = vpop.f32.mrf.mxu0
      %v1918 = vpop.f32.mrf.mxu0
      %v1919 = vadd.f32 0.0, %v1918
      %v1920 = vpop.f32.mrf.mxu0
      %1921 = vdwg.mxu0
      %v1922 = vmul.f32 %v1900, %v1900
      %v1923 = vmul.f32 %v1903, %v1903
      %v1924 = vmul.f32 %v1908, %v1908
      %v1925 = vmul.f32 %v1911, %v1911
      %v1926 = vadd.f32 %v1922, %v1924
      %v1927 = vadd.f32 %v1923, %v1925
      %v1928 = vmul.f32 %v1916, %v1916
      %v1929 = vmul.f32 %v1919, %v1919
      %v1930 = vadd.f32 %v1926, %v1928
      %v1931 = vadd.f32 %v1927, %v1929
      %v1932 = vmax.f32 %v1930, 1e-08
      %v1933 = vmax.f32 %v1931, 1e-08
      %v1934 = vrsqrt.pop %v1932
      %v1935 = vmul.f32 %v1932, %v1934
      %vm1936 = vcmp.eq.f32.partialorder %v1932, inf
      %v1937 = vsel %vm1936, %v1932, %v1935
      %vm1938 = vcmp.eq.f32.partialorder %v1932, 0.0
      %v1939 = vand.u32 %v1932, 2147483648
      %v1940 = vsel %vm1938, %v1939, %v1937
      %v1941 = vrsqrt.pop %v1933
      %v1942 = vmul.f32 %v1933, %v1941
      %vm1943 = vcmp.eq.f32.partialorder %v1933, inf
      %v1944 = vsel %vm1943, %v1933, %v1942
      %vm1945 = vcmp.eq.f32.partialorder %v1933, 0.0
      %v1946 = vand.u32 %v1933, 2147483648
      %v1947 = vsel %vm1945, %v1946, %v1944
      %v1948 = vsub.f32 0.0, %v1940
      %v1949 = vsub.f32 0.0, %v1947
      %v1950 = vmul.f32 %v1948, 1.442695
      %v1951 = vpow.pop %v1950
      %v1952 = vmul.f32 %v1949, 1.442695
      %v1953 = vpow.pop %v1952
      %v1954 = vadd.f32 %v1951, 1.0
      %v1955 = vadd.f32 %v1953, 1.0
      %v1956 = vrcp.pop %v1954
      %v1957 = vrcp.pop %v1955
      %v1958 = vmul.f32 %v1900, %v1956
      %v1959 = vmul.f32 %v1903, %v1957
      %v1960 = vmul.f32 %v1908, %v1956
      %v1961 = vmul.f32 %v1911, %v1957
      %v1962 = vmul.f32 %v1916, %v1956
      %v1963 = vmul.f32 %v1919, %v1957
      %v1964 = vmax.f32 %v1845, 0.0
      %v1965 = vmax.f32 %v1846, 0.0
      %v1966 = vmax.f32 %v1847, 0.0
      %v1967 = vmax.f32 %v1848, 0.0
      %v1968 = vld [vmem:[%s17] sm:$0x3]
      %v1969 = vpack.c.bf16 %v1959, %v1958
      %v1970 = vpack.c.bf16 %v1961, %v1960
      %v1971 = vpack.c.bf16 %v1963, %v1962
      %v1973 = vsel %vm795, %v1969, 0
      %v1976 = vsel %vm795, %v1970, 0
      %v1979 = vsel %vm795, %v1971, 0
      %v1982 = vand.u32 %v1968, %v808
      %1984 = vmatprep.subr.bf16.mxu0 0
      %1985 = vmatpush1.bf16.msra.mxu0 0
      %1986 = vmatprep.subr.bf16.mxu0 0
      %1987 = vmatpush1.bf16.msra.mxu0 0
      %1988 = vmatprep.subr.bf16.mxu0 0
      %1989 = vmatpush1.bf16.msra.mxu0 0
      %1990 = vmatprep.subr.bf16.mxu0 0
      %1991 = vmatpush1.bf16.msra.mxu0 0
      %1992 = vmatprep.subr.bf16.mxu0 0
      %1993 = vmatpush1.bf16.msra.mxu0 0
      %1994 = vmatprep.subr.bf16.mxu0 0
      %1995 = vmatpush1.bf16.msra.mxu0 0
      %1996 = vmatprep.subr.bf16.mxu0 0
      %1997 = vmatpush1.bf16.msra.mxu0 0
      %1998 = vmatprep.subr.bf16.mxu0 0
      %1999 = vmatpush1.bf16.msra.mxu0 %v1982
      %2000 = vmatprep.subr.bf16.mxu0 0
      %2001 = vmatpush2.bf16.msra.mxu0 0
      %2002 = vmatprep.subr.bf16.mxu0 0
      %2003 = vmatpush2.bf16.msra.mxu0 0
      %2004 = vmatprep.subr.bf16.mxu0 0
      %2005 = vmatpush2.bf16.msra.mxu0 0
      %2006 = vmatprep.subr.bf16.mxu0 0
      %2007 = vmatpush2.bf16.msra.mxu0 0
      %2008 = vmatprep.subr.bf16.mxu0 0
      %2009 = vmatpush2.bf16.msra.mxu0 0
      %2010 = vmatprep.subr.bf16.mxu0 0
      %2011 = vmatpush2.bf16.msra.mxu0 0
      %2012 = vmatprep.subr.bf16.mxu0 0
      %2013 = vmatpush2.bf16.msra.mxu0 0
      %2014 = vmatprep.subr.bf16.mxu0 0
      %2015 = vmatpush2.bf16.msra.mxu0 0
      %2016 = vmatprep.mubr.bf16.mxu0 0
      %2017 = vmatmul.mubr.bf16.gmra.mxu0 %v1973
      %v2018 = vpop.f32.mrf.mxu0
      %v2019 = vadd.f32 0.0, %v2018
      %v2020 = vpop.f32.mrf.mxu0
      %v2021 = vpop.f32.mrf.mxu0
      %v2022 = vadd.f32 0.0, %v2021
      %v2023 = vpop.f32.mrf.mxu0
      %2024 = vmatprep.mubr.bf16.mxu0 0
      %2025 = vmatmul.mubr.bf16.gmra.mxu0 %v1976
      %v2026 = vpop.f32.mrf.mxu0
      %v2027 = vadd.f32 0.0, %v2026
      %v2028 = vpop.f32.mrf.mxu0
      %v2029 = vpop.f32.mrf.mxu0
      %v2030 = vadd.f32 0.0, %v2029
      %v2031 = vpop.f32.mrf.mxu0
      %2032 = vmatprep.mubr.bf16.mxu0 0
      %2033 = vmatmul.mubr.bf16.gmra.mxu0 %v1979
      %v2034 = vpop.f32.mrf.mxu0
      %v2035 = vadd.f32 0.0, %v2034
      %v2036 = vpop.f32.mrf.mxu0
      %v2037 = vpop.f32.mrf.mxu0
      %v2038 = vadd.f32 0.0, %v2037
      %v2039 = vpop.f32.mrf.mxu0
      %2040 = vdwg.mxu0
      %v2041 = vld [vmem:[%s18] sm:$0xff]
      %v2042 = vld [vmem:[%s18 + $0x8] sm:$0xff]
      %v2043 = vld [vmem:[%s18 + $0x10] sm:$0xff]
      %v2044 = vld [vmem:[%s18 + $0x18] sm:$0xff]
      %v2045 = vld [vmem:[%s18 + $0x20] sm:$0xff]
      %v2046 = vld [vmem:[%s18 + $0x28] sm:$0xff]
      %v2047 = vld [vmem:[%s18 + $0x30] sm:$0xff]
      %v2048 = vld [vmem:[%s18 + $0x38] sm:$0xff]
      %v2049 = vld [vmem:[%s18 + $0x40] sm:$0xff]
      %v2050 = vld [vmem:[%s18 + $0x48] sm:$0xff]
      %v2051 = vld [vmem:[%s18 + $0x50] sm:$0xff]
      %v2052 = vld [vmem:[%s18 + $0x58] sm:$0xff]
      %v2053 = vld [vmem:[%s18 + $0x60] sm:$0xff]
      %v2054 = vld [vmem:[%s18 + $0x68] sm:$0xff]
      %v2055 = vld [vmem:[%s18 + $0x70] sm:$0xff]
      %v2056 = vld [vmem:[%s18 + $0x78] sm:$0xff]
      %v2057 = vld [vmem:[%s18 + $0x80] sm:$0xff]
      %v2058 = vld [vmem:[%s18 + $0x88] sm:$0xff]
      %v2059 = vld [vmem:[%s18 + $0x90] sm:$0xff]
      %v2060 = vld [vmem:[%s18 + $0x98] sm:$0xff]
      %v2061 = vld [vmem:[%s18 + $0xa0] sm:$0xff]
      %v2062 = vld [vmem:[%s18 + $0xa8] sm:$0xff]
      %v2063 = vld [vmem:[%s18 + $0xb0] sm:$0xff]
      %v2064 = vld [vmem:[%s18 + $0xb8] sm:$0xff]
      %v2065 = vld [vmem:[%s18 + $0xc0] sm:$0xff]
      %v2066 = vld [vmem:[%s18 + $0xc8] sm:$0xff]
      %v2067 = vld [vmem:[%s18 + $0xd0] sm:$0xff]
      %v2068 = vld [vmem:[%s18 + $0xd8] sm:$0xff]
      %v2069 = vld [vmem:[%s18 + $0xe0] sm:$0xff]
      %v2070 = vld [vmem:[%s18 + $0xe8] sm:$0xff]
      %v2071 = vld [vmem:[%s18 + $0xf0] sm:$0xff]
      %v2072 = vld [vmem:[%s18 + $0xf8] sm:$0xff]
      %v2073 = vpack.c.bf16 %v1966, %v1964
      %v2074 = vpack.c.bf16 %v1967, %v1965
      %v2075 = vmul.f32 %v2019, %v2019
      %v2076 = vmul.f32 %v2022, %v2022
      %v2077 = vmul.f32 %v2027, %v2027
      %v2078 = vmul.f32 %v2030, %v2030
      %v2079 = vadd.f32 %v2075, %v2077
      %v2080 = vadd.f32 %v2076, %v2078
      %v2081 = vmul.f32 %v2035, %v2035
      %v2082 = vmul.f32 %v2038, %v2038
      %v2083 = vadd.f32 %v2079, %v2081
      %v2084 = vadd.f32 %v2080, %v2082
      %v2085 = vmax.f32 %v2083, 1e-08
      %v2086 = vmax.f32 %v2084, 1e-08
      %v2087 = vrsqrt.pop %v2085
      %v2088 = vmul.f32 %v2085, %v2087
      %vm2089 = vcmp.eq.f32.partialorder %v2085, inf
      %v2090 = vsel %vm2089, %v2085, %v2088
      %vm2091 = vcmp.eq.f32.partialorder %v2085, 0.0
      %v2092 = vand.u32 %v2085, 2147483648
      %v2093 = vsel %vm2091, %v2092, %v2090
      %v2094 = vrsqrt.pop %v2086
      %v2095 = vmul.f32 %v2086, %v2094
      %vm2096 = vcmp.eq.f32.partialorder %v2086, inf
      %v2097 = vsel %vm2096, %v2086, %v2095
      %vm2098 = vcmp.eq.f32.partialorder %v2086, 0.0
      %v2099 = vand.u32 %v2086, 2147483648
      %v2100 = vsel %vm2098, %v2099, %v2097
      %v2101 = vld [vmem:[%s19] sm:$0xf]
      %v2102 = vpack.c.bf16 %v2100, %v2093
      %v2105 = vunpack.c.l.s4 1983009808
      %v2106 = vunpack.c.0.s8 %v2105
      %v2107 = vlaneseq
      %v2108 = vshrl.u32 %v2107, 7
      %v2109 = vsub.s32 %v2106, %v2108
      %v2110 = vrot.slane %v2101, %v2109
      %v2111 = vcombine.high %v2110, %v2110
      %v2113 = vsel %vm795, %v2102, 0
      %v2116 = vand.u32 %v2110, %v808
      %v2119 = vand.u32 %v2111, %v808
      %2121 = vmatprep.subr.bf16.mxu0 0
      %2122 = vmatpush1.bf16.msra.mxu0 0
      %2123 = vmatprep.subr.bf16.mxu0 0
      %2124 = vmatpush1.bf16.msra.mxu0 0
      %2125 = vmatprep.subr.bf16.mxu0 0
      %2126 = vmatpush1.bf16.msra.mxu0 0
      %2127 = vmatprep.subr.bf16.mxu0 0
      %2128 = vmatpush1.bf16.msra.mxu0 0
      %2129 = vmatprep.subr.bf16.mxu0 0
      %2130 = vmatpush1.bf16.msra.mxu0 0
      %2131 = vmatprep.subr.bf16.mxu0 0
      %2132 = vmatpush1.bf16.msra.mxu0 0
      %2133 = vmatprep.subr.bf16.mxu0 0
      %2134 = vmatpush1.bf16.msra.mxu0 0
      %2135 = vmatprep.subr.bf16.mxu0 %v2119
      %2136 = vmatpush1.bf16.msra.mxu0 %v2116
      %2137 = vmatprep.subr.bf16.mxu0 0
      %2138 = vmatpush2.bf16.msra.mxu0 0
      %2139 = vmatprep.subr.bf16.mxu0 0
      %2140 = vmatpush2.bf16.msra.mxu0 0
      %2141 = vmatprep.subr.bf16.mxu0 0
      %2142 = vmatpush2.bf16.msra.mxu0 0
      %2143 = vmatprep.subr.bf16.mxu0 0
      %2144 = vmatpush2.bf16.msra.mxu0 0
      %2145 = vmatprep.subr.bf16.mxu0 0
      %2146 = vmatpush2.bf16.msra.mxu0 0
      %2147 = vmatprep.subr.bf16.mxu0 0
      %2148 = vmatpush2.bf16.msra.mxu0 0
      %2149 = vmatprep.subr.bf16.mxu0 0
      %2150 = vmatpush2.bf16.msra.mxu0 0
      %2151 = vmatprep.subr.bf16.mxu0 0
      %2152 = vmatpush2.bf16.msra.mxu0 0
      %2153 = vmatprep.mubr.bf16.mxu0 0
      %2154 = vmatmul.mubr.bf16.gmra.mxu0 %v2113
      %v2155 = vpop.f32.mrf.mxu0
      %v2156 = vadd.f32 0.0, %v2155
      %v2157 = vpop.f32.mrf.mxu0
      %v2158 = vadd.f32 0.0, %v2157
      %v2159 = vpop.f32.mrf.mxu0
      %v2160 = vadd.f32 0.0, %v2159
      %v2161 = vpop.f32.mrf.mxu0
      %v2162 = vadd.f32 0.0, %v2161
      %2163 = vdwg.mxu0
      %v2196 = vunpack.c.l.b16 %v2041
      %v2197 = vunpack.c.h.b16 %v2041
      %v2198 = vunpack.c.l.b16 %v2042
      %v2199 = vunpack.c.h.b16 %v2042
      %v2200 = vunpack.c.l.b16 %v2043
      %v2201 = vunpack.c.h.b16 %v2043
      %v2202 = vunpack.c.l.b16 %v2044
      %v2203 = vunpack.c.h.b16 %v2044
      %v2204 = vunpack.c.l.b16 %v2045
      %v2205 = vunpack.c.h.b16 %v2045
      %v2206 = vunpack.c.l.b16 %v2046
      %v2207 = vunpack.c.h.b16 %v2046
      %v2208 = vunpack.c.l.b16 %v2047
      %v2209 = vunpack.c.h.b16 %v2047
      %v2210 = vunpack.c.l.b16 %v2048
      %v2211 = vunpack.c.h.b16 %v2048
      %v2212 = vunpack.c.l.b16 %v2049
      %v2213 = vunpack.c.h.b16 %v2049
      %v2214 = vunpack.c.l.b16 %v2050
      %v2215 = vunpack.c.h.b16 %v2050
      %v2216 = vunpack.c.l.b16 %v2051
      %v2217 = vunpack.c.h.b16 %v2051
      %v2218 = vunpack.c.l.b16 %v2052
      %v2219 = vunpack.c.h.b16 %v2052
      %v2220 = vunpack.c.l.b16 %v2053
      %v2221 = vunpack.c.h.b16 %v2053
      %v2222 = vunpack.c.l.b16 %v2054
      %v2223 = vunpack.c.h.b16 %v2054
      %v2224 = vunpack.c.l.b16 %v2055
      %v2225 = vunpack.c.h.b16 %v2055
      %v2226 = vunpack.c.l.b16 %v2056
      %v2227 = vunpack.c.h.b16 %v2056
      %v2228 = vunpack.c.l.b16 %v2057
      %v2229 = vunpack.c.h.b16 %v2057
      %v2230 = vunpack.c.l.b16 %v2058
      %v2231 = vunpack.c.h.b16 %v2058
      %v2232 = vunpack.c.l.b16 %v2059
      %v2233 = vunpack.c.h.b16 %v2059
      %v2234 = vunpack.c.l.b16 %v2060
      %v2235 = vunpack.c.h.b16 %v2060
      %v2236 = vunpack.c.l.b16 %v2061
      %v2237 = vunpack.c.h.b16 %v2061
      %v2238 = vunpack.c.l.b16 %v2062
      %v2239 = vunpack.c.h.b16 %v2062
      %v2240 = vunpack.c.l.b16 %v2063
      %v2241 = vunpack.c.h.b16 %v2063
      %v2242 = vunpack.c.l.b16 %v2064
      %v2243 = vunpack.c.h.b16 %v2064
      %v2244 = vunpack.c.l.b16 %v2065
      %v2245 = vunpack.c.h.b16 %v2065
      %v2246 = vunpack.c.l.b16 %v2066
      %v2247 = vunpack.c.h.b16 %v2066
      %v2248 = vunpack.c.l.b16 %v2067
      %v2249 = vunpack.c.h.b16 %v2067
      %v2250 = vunpack.c.l.b16 %v2068
      %v2251 = vunpack.c.h.b16 %v2068
      %v2252 = vunpack.c.l.b16 %v2069
      %v2253 = vunpack.c.h.b16 %v2069
      %v2254 = vunpack.c.l.b16 %v2070
      %v2255 = vunpack.c.h.b16 %v2070
      %v2256 = vunpack.c.l.b16 %v2071
      %v2257 = vunpack.c.h.b16 %v2071
      %v2258 = vunpack.c.l.b16 %v2072
      %v2259 = vunpack.c.h.b16 %v2072
      %v2260 = vpack.c.b16 %v2198, %v2196
      %v2261 = vpack.c.b16 %v2199, %v2197
      %v2262 = vpack.c.b16 %v2202, %v2200
      %v2263 = vpack.c.b16 %v2203, %v2201
      %v2264 = vpack.c.b16 %v2206, %v2204
      %v2265 = vpack.c.b16 %v2207, %v2205
      %v2266 = vpack.c.b16 %v2210, %v2208
      %v2267 = vpack.c.b16 %v2211, %v2209
      %v2268 = vpack.c.b16 %v2214, %v2212
      %v2269 = vpack.c.b16 %v2215, %v2213
      %v2270 = vpack.c.b16 %v2218, %v2216
      %v2271 = vpack.c.b16 %v2219, %v2217
      %v2272 = vpack.c.b16 %v2222, %v2220
      %v2273 = vpack.c.b16 %v2223, %v2221
      %v2274 = vpack.c.b16 %v2226, %v2224
      %v2275 = vpack.c.b16 %v2227, %v2225
      %v2276 = vpack.c.b16 %v2230, %v2228
      %v2277 = vpack.c.b16 %v2231, %v2229
      %v2278 = vpack.c.b16 %v2234, %v2232
      %v2279 = vpack.c.b16 %v2235, %v2233
      %v2280 = vpack.c.b16 %v2238, %v2236
      %v2281 = vpack.c.b16 %v2239, %v2237
      %v2282 = vpack.c.b16 %v2242, %v2240
      %v2283 = vpack.c.b16 %v2243, %v2241
      %v2284 = vpack.c.b16 %v2246, %v2244
      %v2285 = vpack.c.b16 %v2247, %v2245
      %v2286 = vpack.c.b16 %v2250, %v2248
      %v2287 = vpack.c.b16 %v2251, %v2249
      %v2288 = vpack.c.b16 %v2254, %v2252
      %v2289 = vpack.c.b16 %v2255, %v2253
      %v2290 = vpack.c.b16 %v2258, %v2256
      %v2291 = vpack.c.b16 %v2259, %v2257
      %2324 = vmatprep.subr.bf16.mxu0 %v2275
      %2325 = vmatpush1.bf16.msra.mxu0 %v2274
      %2326 = vmatprep.subr.bf16.mxu0 %v2273
      %2327 = vmatpush1.bf16.msra.mxu0 %v2272
      %2328 = vmatprep.subr.bf16.mxu0 %v2271
      %2329 = vmatpush1.bf16.msra.mxu0 %v2270
      %2330 = vmatprep.subr.bf16.mxu0 %v2269
      %2331 = vmatpush1.bf16.msra.mxu0 %v2268
      %2332 = vmatprep.subr.bf16.mxu0 %v2267
      %2333 = vmatpush1.bf16.msra.mxu0 %v2266
      %2334 = vmatprep.subr.bf16.mxu0 %v2265
      %2335 = vmatpush1.bf16.msra.mxu0 %v2264
      %2336 = vmatprep.subr.bf16.mxu0 %v2263
      %2337 = vmatpush1.bf16.msra.mxu0 %v2262
      %2338 = vmatprep.subr.bf16.mxu0 %v2261
      %2339 = vmatpush1.bf16.msra.mxu0 %v2260
      %2340 = vmatprep.subr.bf16.mxu0 %v2291
      %2341 = vmatpush2.bf16.msra.mxu0 %v2290
      %2342 = vmatprep.subr.bf16.mxu0 %v2289
      %2343 = vmatpush2.bf16.msra.mxu0 %v2288
      %2344 = vmatprep.subr.bf16.mxu0 %v2287
      %2345 = vmatpush2.bf16.msra.mxu0 %v2286
      %2346 = vmatprep.subr.bf16.mxu0 %v2285
      %2347 = vmatpush2.bf16.msra.mxu0 %v2284
      %2348 = vmatprep.subr.bf16.mxu0 %v2283
      %2349 = vmatpush2.bf16.msra.mxu0 %v2282
      %2350 = vmatprep.subr.bf16.mxu0 %v2281
      %2351 = vmatpush2.bf16.msra.mxu0 %v2280
      %2352 = vmatprep.subr.bf16.mxu0 %v2279
      %2353 = vmatpush2.bf16.msra.mxu0 %v2278
      %2354 = vmatprep.subr.bf16.mxu0 %v2277
      %2355 = vmatpush2.bf16.msra.mxu0 %v2276
      %2356 = vmatprep.mubr.bf16.mxu0 %v2074
      %2357 = vmatmul.mubr.bf16.gmra.mxu0 %v2073
      %v2358 = vpop.f32.mrf.mxu0
      %v2359 = vadd.f32 %v2156, %v2358
      %v2360 = vpop.f32.mrf.mxu0
      %v2361 = vadd.f32 %v2158, %v2360
      %v2362 = vpop.f32.mrf.mxu0
      %v2363 = vadd.f32 %v2160, %v2362
      %v2364 = vpop.f32.mrf.mxu0
      %v2365 = vadd.f32 %v2162, %v2364
      %2366 = vdwg.mxu0
      %v2367 = vld [vmem:[%s20] sm:$0x3]
      %v2369 = vlaneseq
      %v2370 = vshrl.u32 %v2369, 7
      %v2371 = vsub.s32 0, %v2370
      %v2372 = vrot.slane %v2367, %v2371
      %v2373 = vlaneseq
      %v2374 = vshrl.u32 %v2373, 7
      %v2375 = vsub.s32 1, %v2374
      %v2376 = vrot.slane %v2367, %v2375
      %v2379 = vadd.f32 %v2359, %v2372
      %v2380 = vadd.f32 %v2361, %v2376
      %v2381 = vadd.f32 %v2363, %v2372
      %v2382 = vadd.f32 %v2365, %v2376
      %v2383 = vld [vmem:[%s21] sm:$0x3]
      %v2384 = vpack.c.bf16 %v2022, %v2019
      %v2385 = vpack.c.bf16 %v2030, %v2027
      %v2386 = vpack.c.bf16 %v2038, %v2035
      %v2388 = vsel %vm795, %v2384, 0
      %v2391 = vsel %vm795, %v2385, 0
      %v2394 = vsel %vm795, %v2386, 0
      %v2397 = vand.u32 %v2383, %v808
      %2399 = vmatprep.subr.bf16.mxu0 0
      %2400 = vmatpush1.bf16.msra.mxu0 0
      %2401 = vmatprep.subr.bf16.mxu0 0
      %2402 = vmatpush1.bf16.msra.mxu0 0
      %2403 = vmatprep.subr.bf16.mxu0 0
      %2404 = vmatpush1.bf16.msra.mxu0 0
      %2405 = vmatprep.subr.bf16.mxu0 0
      %2406 = vmatpush1.bf16.msra.mxu0 0
      %2407 = vmatprep.subr.bf16.mxu0 0
      %2408 = vmatpush1.bf16.msra.mxu0 0
      %2409 = vmatprep.subr.bf16.mxu0 0
      %2410 = vmatpush1.bf16.msra.mxu0 0
      %2411 = vmatprep.subr.bf16.mxu0 0
      %2412 = vmatpush1.bf16.msra.mxu0 0
      %2413 = vmatprep.subr.bf16.mxu0 0
      %2414 = vmatpush1.bf16.msra.mxu0 %v2397
      %2415 = vmatprep.subr.bf16.mxu0 0
      %2416 = vmatpush2.bf16.msra.mxu0 0
      %2417 = vmatprep.subr.bf16.mxu0 0
      %2418 = vmatpush2.bf16.msra.mxu0 0
      %2419 = vmatprep.subr.bf16.mxu0 0
      %2420 = vmatpush2.bf16.msra.mxu0 0
      %2421 = vmatprep.subr.bf16.mxu0 0
      %2422 = vmatpush2.bf16.msra.mxu0 0
      %2423 = vmatprep.subr.bf16.mxu0 0
      %2424 = vmatpush2.bf16.msra.mxu0 0
      %2425 = vmatprep.subr.bf16.mxu0 0
      %2426 = vmatpush2.bf16.msra.mxu0 0
      %2427 = vmatprep.subr.bf16.mxu0 0
      %2428 = vmatpush2.bf16.msra.mxu0 0
      %2429 = vmatprep.subr.bf16.mxu0 0
      %2430 = vmatpush2.bf16.msra.mxu0 0
      %2431 = vmatprep.mubr.bf16.mxu0 0
      %2432 = vmatmul.mubr.bf16.gmra.mxu0 %v2388
      %v2433 = vpop.f32.mrf.mxu0
      %v2434 = vadd.f32 0.0, %v2433
      %v2435 = vpop.f32.mrf.mxu0
      %v2436 = vpop.f32.mrf.mxu0
      %v2437 = vadd.f32 0.0, %v2436
      %v2438 = vpop.f32.mrf.mxu0
      %2439 = vmatprep.mubr.bf16.mxu0 0
      %2440 = vmatmul.mubr.bf16.gmra.mxu0 %v2391
      %v2441 = vpop.f32.mrf.mxu0
      %v2442 = vadd.f32 0.0, %v2441
      %v2443 = vpop.f32.mrf.mxu0
      %v2444 = vpop.f32.mrf.mxu0
      %v2445 = vadd.f32 0.0, %v2444
      %v2446 = vpop.f32.mrf.mxu0
      %2447 = vmatprep.mubr.bf16.mxu0 0
      %2448 = vmatmul.mubr.bf16.gmra.mxu0 %v2394
      %v2449 = vpop.f32.mrf.mxu0
      %v2450 = vadd.f32 0.0, %v2449
      %v2451 = vpop.f32.mrf.mxu0
      %v2452 = vpop.f32.mrf.mxu0
      %v2453 = vadd.f32 0.0, %v2452
      %v2454 = vpop.f32.mrf.mxu0
      %2455 = vdwg.mxu0
      %2458 = vrot.lane.b32.xlu0 %v2442, 3
      %v2459 = vpop.permute.xlu0 %2458
      %2460 = vrot.lane.b32.xlu0 %v2445, 3
      %v2461 = vpop.permute.xlu0 %2460
      %2466 = vrot.lane.b32.xlu0 %v2450, 6
      %v2467 = vpop.permute.xlu0 %2466
      %2468 = vrot.lane.b32.xlu0 %v2453, 6
      %v2469 = vpop.permute.xlu0 %2468
      %v2472 = vsel %vm795, %v2434, %v2459
      %v2473 = vsel %vm795, %v2437, %v2461
      %vm2474 = vcmask 48128
      %v2475 = vsel %vm2474, %v2472, %v2467
      %v2476 = vsel %vm2474, %v2473, %v2469
      %2477 = vst [vmem:[%s731] sm:$0xff] %v2379
      %2478 = vst [vmem:[%s731 + $0x8] sm:$0xff] %v2380
      %vm2479 = vcmask 72704
      %2480 = vst.msk [vmem:[%s731 + $0x10] sm:$0xff] %vm2479, %v2475
      %2481 = vst [vmem:[%s731 + $0x18] sm:$0xff] %v2381
      %2482 = vst [vmem:[%s731 + $0x20] sm:$0xff] %v2382
      %2483 = vst.msk [vmem:[%s731 + $0x28] sm:$0xff] %vm2479, %v2476
      %s2484 = smul.u32 2, %s33
      %p2485 = scmp.lt.s32.totalorder %s2484, 3
      %s2486 = scalar_select %p2485, %s2484, 3
      %s2487 = smul.addr %s2486, 3
      %s2488 = smul.addr %s2487, 8
      %s2489 = scalar_lea.vmem %s22, %s2488
      // Predicated region
      $region109: #{pocket_encoder_forward.8} parent=107 // pred_check
        %p2490 = pneg %p528
      $region110: #{pocket_encoder_forward.8} parent=107 // pred_check_branch
        %2492 = sbr.rel (%p2490) target = $region112
      $region111: #{pocket_encoder_forward.8} parent=107 // pred_region
        %s2493 = smul.u32 2, %s33
      $region112: #{pocket_encoder_forward.8} parent=107 // pred_fallthru
        _
    $region108: #{pocket_encoder_forward.8} parent=5 // pred_fallthru
      _
    %p2494 = scmp.le.s32.totalorder 2, %s28
    // Predicated region
    $region113: #{pocket_encoder_forward.8} parent=5 // pred_check
      %p2495 = pneg %p2494
    $region114: #{pocket_encoder_forward.8} parent=5 // pred_check_branch
      %2497 = sbr.rel (%p2495) target = $region116
    $region115: #{pocket_encoder_forward.8} parent=5 // pred_region
      %s2498 = ssub.s32 %s28, 2
      // Predicated region
      $region117: #{pocket_encoder_forward.8} parent=115 // pred_check
        %p2499 = pneg %p534
      $region118: #{pocket_encoder_forward.8} parent=115 // pred_check_branch
        %2501 = sbr.rel (%p2499) target = $region120
      $region119: #{pocket_encoder_forward.8} parent=115 // pred_region
        %s2502 = smul.u32 2, %s34
        %p2503 = scmp.lt.s32.totalorder %s2502, 3
        %s2504 = scalar_select %p2503, %s2502, 3
        %s2505 = smul.addr %s2504, 3
        %s2506 = smul.addr %s2505, 8
        %s2507 = scalar_lea.vmem %s22, %s2506
      $region120: #{pocket_encoder_forward.8} parent=115 // pred_fallthru
        _
    $region116: #{pocket_encoder_forward.8} parent=5 // pred_fallthru
      _
  $region6: #{pocket_encoder_forward.8} parent=0 // loop_footer
    %s32 = sadd.s32 1, %s28
  $region7: #{pocket_encoder_forward.8} parent=0 // loop_footer_branch
    %27 = sbr.rel target = $region3
  $region8: #{pocket_encoder_forward.8} parent=0 // loop_exit
    _

// kernel: pocket_encoder_forward.10
$region0: #{pocket_encoder_forward.10}
  #allocation0 [shape = 'u32[]', space=smem, size = 0x4, offset = 0x4, fixed_abs, tag = 'smem constant byte address 0x4 - core index']
  #allocation1 [shape = 'u32[144,128]{1,0:T(1,128)}', space=vmem, size = 0x12000, scoped, tag = 'internal scratch']
  %s0 = inlined_call_operand.vmem [shape: f32[32,265], index: 0, kind: input, shape index: {}]
  %s1 = inlined_call_operand.vmem [shape: f32[32,265], index: 1, kind: input, shape index: {}]
  %s2 = inlined_call_operand.vmem [shape: f32[32,35], index: 2, kind: input, shape index: {}]
  %s3 = inlined_call_operand.vmem [shape: bf16[3,7], index: 3, kind: input, shape index: {}]
  %s4 = inlined_call_operand.vmem [shape: bf16[1,7], index: 4, kind: input, shape index: {}]
  %s5 = inlined_call_operand.vmem [shape: bf16[3,7], index: 5, kind: input, shape index: {}]
  %s6 = inlined_call_operand.vmem [shape: bf16[256,256], index: 6, kind: input, shape index: {}]
  %s7 = inlined_call_operand.vmem [shape: bf16[32,256], index: 7, kind: input, shape index: {}]
  %s8 = inlined_call_operand.vmem [shape: bf16[256,256], index: 8, kind: input, shape index: {}]
  %s9 = inlined_call_operand.vmem [shape: bf16[7,256], index: 9, kind: input, shape index: {}]
  %s10 = inlined_call_operand.vmem [shape: f32[1,256], index: 10, kind: input, shape index: {}]
  %s11 = inlined_call_operand.vmem [shape: bf16[7,3], index: 11, kind: input, shape index: {}]
  %s12 = inlined_call_operand.vmem [shape: bf16[3,3], index: 12, kind: input, shape index: {}]
  %s13 = inlined_call_operand.vmem [shape: bf16[256,256], index: 13, kind: input, shape index: {}]
  %s14 = inlined_call_operand.vmem [shape: bf16[3,256], index: 14, kind: input, shape index: {}]
  %s15 = inlined_call_operand.vmem [shape: f32[1,256], index: 15, kind: input, shape index: {}]
  %s16 = inlined_call_operand.vmem [shape: bf16[3,3], index: 16, kind: input, shape index: {}]
  %s17 = inlined_call_operand.vmem [shape: bf16[3,3], index: 17, kind: input, shape index: {}]
  %s18 = inlined_call_operand.vmem [shape: bf16[256,256], index: 18, kind: input, shape index: {}]
  %s19 = inlined_call_operand.vmem [shape: bf16[3,256], index: 19, kind: input, shape index: {}]
  %s20 = inlined_call_operand.vmem [shape: f32[1,256], index: 20, kind: input, shape index: {}]
  %s21 = inlined_call_operand.vmem [shape: bf16[3,3], index: 21, kind: input, shape index: {}]
  %s22 = inlined_call_operand.vmem [shape: f32[32,265], index: 22, kind: output, shape index: {}]
  %s23 = sld [smem:[#allocation0]]
  $region121: #{pocket_encoder_forward.10} parent=0
    _
  %s25 = ssub.s32 1, %s23
  %s26 = scalar_select 0, %s25, %s23
  loop: start=0, step=1, limit=4
  $region2: #{pocket_encoder_forward.10} parent=0 // loop_pre_header
    _
  $region3: #{pocket_encoder_forward.10} parent=0 // loop_header
    %s28 = sphi 0, %s32
    %p29 = scmp.ge.s32.totalorder %s28, 4
    %s38 = sphi 0, %s40
    %s41 = sphi 0, %s38
    %s42 = sphi 0, %s41
    %s58 = sphi 0, %s42
    %s64 = sphi 0, %s66
    %s67 = sphi 0, %s64
    %s68 = sphi 0, %s67
    %s84 = sphi 0, %s68
    %s90 = sphi 0, %s92
    %s93 = sphi 0, %s90
    %s94 = sphi 0, %s93
    %s110 = sphi 0, %s94
    %s114 = sphi 0, %s114
    %s116 = sphi 0, %s114
    %s117 = sphi 0, %s116
    %s131 = sphi 0, %s117
    %s135 = sphi 0, %s135
    %s137 = sphi 0, %s135
    %s138 = sphi 0, %s137
    %s152 = sphi 0, %s138
    %s156 = sphi 0, %s156
    %s158 = sphi 0, %s156
    %s159 = sphi 0, %s158
    %s173 = sphi 0, %s159
    %s177 = sphi 0, %s177
    %s179 = sphi 0, %s177
    %s180 = sphi 0, %s179
    %s194 = sphi 0, %s180
    %s198 = sphi 0, %s198
    %s200 = sphi 0, %s198
    %s201 = sphi 0, %s200
    %s215 = sphi 0, %s201
    %s219 = sphi 0, %s219
    %s221 = sphi 0, %s219
    %s222 = sphi 0, %s221
    %s236 = sphi 0, %s222
    %s240 = sphi 0, %s240
    %s242 = sphi 0, %s240
    %s243 = sphi 0, %s242
    %s257 = sphi 0, %s243
    %s261 = sphi 0, %s261
    %s263 = sphi 0, %s261
    %s264 = sphi 0, %s263
    %s278 = sphi 0, %s264
    %s282 = sphi 0, %s282
    %s284 = sphi 0, %s282
    %s285 = sphi 0, %s284
    %s299 = sphi 0, %s285
    %s303 = sphi 0, %s303
    %s305 = sphi 0, %s303
    %s306 = sphi 0, %s305
    %s320 = sphi 0, %s306
    %s324 = sphi 0, %s324
    %s326 = sphi 0, %s324
    %s327 = sphi 0, %s326
    %s341 = sphi 0, %s327
    %s345 = sphi 0, %s345
    %s347 = sphi 0, %s345
    %s348 = sphi 0, %s347
    %s362 = sphi 0, %s348
    %s366 = sphi 0, %s366
    %s368 = sphi 0, %s366
    %s369 = sphi 0, %s368
    %s383 = sphi 0, %s369
    %s387 = sphi 0, %s387
    %s389 = sphi 0, %s387
    %s390 = sphi 0, %s389
    %s404 = sphi 0, %s390
    %s408 = sphi 0, %s408
    %s410 = sphi 0, %s408
    %s411 = sphi 0, %s410
    %s425 = sphi 0, %s411
    %s429 = sphi 0, %s429
    %s431 = sphi 0, %s429
    %s432 = sphi 0, %s431
    %s446 = sphi 0, %s432
    %s450 = sphi 0, %s450
    %s452 = sphi 0, %s450
    %s453 = sphi 0, %s452
    %s467 = sphi 0, %s453
    %s471 = sphi 0, %s471
    %s473 = sphi 0, %s471
    %s474 = sphi 0, %s473
    %s488 = sphi 0, %s474
    %s492 = sphi 0, %s492
    %s494 = sphi 0, %s492
    %s495 = sphi 0, %s494
    %s509 = sphi 0, %s495
    %s515 = sphi 0, %s517
    %s518 = sphi 0, %s515
    %s519 = sphi 0, %s518
    %s535 = sphi 0, %s519
  $region4: #{pocket_encoder_forward.10} parent=0 // loop_header_branch
    %31 = sbr.rel (%p29) target = $region8
  $region5: #{pocket_encoder_forward.10} parent=0 // loop_body
    %s33 = ssub.s32 %s28, 1
    %s34 = ssub.s32 %s28, 2
    %s35 = sadd.s32 %s28, 1
    %s36 = ssub.s32 %s28, %s35
    %p37 = scmp.eq.s32.totalorder %s36, 0
    %s39 = sadd.s32 %s38, 1
    %s40 = scalar_select %p37, %s38, %s39
    %p43 = pneg %p37
    %p44 = scmp.eq.s32.totalorder %s28, 1
    %p45 = por %p43, %p44
    %p46 = scmp.ne.s32.totalorder %s38, %s41
    %p47 = scmp.eq.s32.totalorder %s28, 0
    %p48 = por %p46, %p47
    %p49 = scmp.ne.s32.totalorder %s38, %s41
    %p50 = scmp.eq.s32.totalorder %s33, 1
    %p51 = por %p49, %p50
    %p52 = scmp.ne.s32.totalorder %s41, %s42
    %p53 = scmp.eq.s32.totalorder %s33, 0
    %p54 = por %p52, %p53
    %p55 = scmp.ne.s32.totalorder %s41, %s42
    %p56 = scmp.eq.s32.totalorder %s34, 1
    %p57 = por %p55, %p56
    %p59 = scmp.ne.s32.totalorder %s42, %s58
    %p60 = scmp.eq.s32.totalorder %s34, 0
    %p61 = por %p59, %p60
    %s62 = ssub.s32 %s28, %s35
    %p63 = scmp.eq.s32.totalorder %s62, 0
    %s65 = sadd.s32 %s64, 1
    %s66 = scalar_select %p63, %s64, %s65
    %p69 = pneg %p63
    %p70 = scmp.eq.s32.totalorder %s28, 1
    %p71 = por %p69, %p70
    %p72 = scmp.ne.s32.totalorder %s64, %s67
    %p73 = scmp.eq.s32.totalorder %s28, 0
    %p74 = por %p72, %p73
    %p75 = scmp.ne.s32.totalorder %s64, %s67
    %p76 = scmp.eq.s32.totalorder %s33, 1
    %p77 = por %p75, %p76
    %p78 = scmp.ne.s32.totalorder %s67, %s68
    %p79 = scmp.eq.s32.totalorder %s33, 0
    %p80 = por %p78, %p79
    %p81 = scmp.ne.s32.totalorder %s67, %s68
    %p82 = scmp.eq.s32.totalorder %s34, 1
    %p83 = por %p81, %p82
    %p85 = scmp.ne.s32.totalorder %s68, %s84
    %p86 = scmp.eq.s32.totalorder %s34, 0
    %p87 = por %p85, %p86
    %s88 = ssub.s32 %s28, %s35
    %p89 = scmp.eq.s32.totalorder %s88, 0
    %s91 = sadd.s32 %s90, 1
    %s92 = scalar_select %p89, %s90, %s91
    %p95 = pneg %p89
    %p96 = scmp.eq.s32.totalorder %s28, 1
    %p97 = por %p95, %p96
    %p98 = scmp.ne.s32.totalorder %s90, %s93
    %p99 = scmp.eq.s32.totalorder %s28, 0
    %p100 = por %p98, %p99
    %p101 = scmp.ne.s32.totalorder %s90, %s93
    %p102 = scmp.eq.s32.totalorder %s33, 1
    %p103 = por %p101, %p102
    %p104 = scmp.ne.s32.totalorder %s93, %s94
    %p105 = scmp.eq.s32.totalorder %s33, 0
    %p106 = por %p104, %p105
    %p107 = scmp.ne.s32.totalorder %s93, %s94
    %p108 = scmp.eq.s32.totalorder %s34, 1
    %p109 = por %p107, %p108
    %p111 = scmp.ne.s32.totalorder %s94, %s110
    %p112 = scmp.eq.s32.totalorder %s34, 0
    %p113 = por %p111, %p112
    %s115 = sadd.s32 %s114, 1
    %p118 = scmp.eq.s32.totalorder %s28, 1
    %p119 = scmp.ne.s32.totalorder %s114, %s116
    %p120 = scmp.eq.s32.totalorder %s28, 0
    %p121 = por %p119, %p120
    %p122 = scmp.ne.s32.totalorder %s114, %s116
    %p123 = scmp.eq.s32.totalorder %s33, 1
    %p124 = por %p122, %p123
    %p125 = scmp.ne.s32.totalorder %s116, %s117
    %p126 = scmp.eq.s32.totalorder %s33, 0
    %p127 = por %p125, %p126
    %p128 = scmp.ne.s32.totalorder %s116, %s117
    %p129 = scmp.eq.s32.totalorder %s34, 1
    %p130 = por %p128, %p129
    %p132 = scmp.ne.s32.totalorder %s117, %s131
    %p133 = scmp.eq.s32.totalorder %s34, 0
    %p134 = por %p132, %p133
    %s136 = sadd.s32 %s135, 1
    %p139 = scmp.eq.s32.totalorder %s28, 1
    %p140 = scmp.ne.s32.totalorder %s135, %s137
    %p141 = scmp.eq.s32.totalorder %s28, 0
    %p142 = por %p140, %p141
    %p143 = scmp.ne.s32.totalorder %s135, %s137
    %p144 = scmp.eq.s32.totalorder %s33, 1
    %p145 = por %p143, %p144
    %p146 = scmp.ne.s32.totalorder %s137, %s138
    %p147 = scmp.eq.s32.totalorder %s33, 0
    %p148 = por %p146, %p147
    %p149 = scmp.ne.s32.totalorder %s137, %s138
    %p150 = scmp.eq.s32.totalorder %s34, 1
    %p151 = por %p149, %p150
    %p153 = scmp.ne.s32.totalorder %s138, %s152
    %p154 = scmp.eq.s32.totalorder %s34, 0
    %p155 = por %p153, %p154
    %s157 = sadd.s32 %s156, 1
    %p160 = scmp.eq.s32.totalorder %s28, 1
    %p161 = scmp.ne.s32.totalorder %s156, %s158
    %p162 = scmp.eq.s32.totalorder %s28, 0
    %p163 = por %p161, %p162
    %p164 = scmp.ne.s32.totalorder %s156, %s158
    %p165 = scmp.eq.s32.totalorder %s33, 1
    %p166 = por %p164, %p165
    %p167 = scmp.ne.s32.totalorder %s158, %s159
    %p168 = scmp.eq.s32.totalorder %s33, 0
    %p169 = por %p167, %p168
    %p170 = scmp.ne.s32.totalorder %s158, %s159
    %p171 = scmp.eq.s32.totalorder %s34, 1
    %p172 = por %p170, %p171
    %p174 = scmp.ne.s32.totalorder %s159, %s173
    %p175 = scmp.eq.s32.totalorder %s34, 0
    %p176 = por %p174, %p175
    %s178 = sadd.s32 %s177, 1
    %p181 = scmp.eq.s32.totalorder %s28, 1
    %p182 = scmp.ne.s32.totalorder %s177, %s179
    %p183 = scmp.eq.s32.totalorder %s28, 0
    %p184 = por %p182, %p183
    %p185 = scmp.ne.s32.totalorder %s177, %s179
    %p186 = scmp.eq.s32.totalorder %s33, 1
    %p187 = por %p185, %p186
    %p188 = scmp.ne.s32.totalorder %s179, %s180
    %p189 = scmp.eq.s32.totalorder %s33, 0
    %p190 = por %p188, %p189
    %p191 = scmp.ne.s32.totalorder %s179, %s180
    %p192 = scmp.eq.s32.totalorder %s34, 1
    %p193 = por %p191, %p192
    %p195 = scmp.ne.s32.totalorder %s180, %s194
    %p196 = scmp.eq.s32.totalorder %s34, 0
    %p197 = por %p195, %p196
    %s199 = sadd.s32 %s198, 1
    %p202 = scmp.eq.s32.totalorder %s28, 1
    %p203 = scmp.ne.s32.totalorder %s198, %s200
    %p204 = scmp.eq.s32.totalorder %s28, 0
    %p205 = por %p203, %p204
    %p206 = scmp.ne.s32.totalorder %s198, %s200
    %p207 = scmp.eq.s32.totalorder %s33, 1
    %p208 = por %p206, %p207
    %p209 = scmp.ne.s32.totalorder %s200, %s201
    %p210 = scmp.eq.s32.totalorder %s33, 0
    %p211 = por %p209, %p210
    %p212 = scmp.ne.s32.totalorder %s200, %s201
    %p213 = scmp.eq.s32.totalorder %s34, 1
    %p214 = por %p212, %p213
    %p216 = scmp.ne.s32.totalorder %s201, %s215
    %p217 = scmp.eq.s32.totalorder %s34, 0
    %p218 = por %p216, %p217
    %s220 = sadd.s32 %s219, 1
    %p223 = scmp.eq.s32.totalorder %s28, 1
    %p224 = scmp.ne.s32.totalorder %s219, %s221
    %p225 = scmp.eq.s32.totalorder %s28, 0
    %p226 = por %p224, %p225
    %p227 = scmp.ne.s32.totalorder %s219, %s221
    %p228 = scmp.eq.s32.totalorder %s33, 1
    %p229 = por %p227, %p228
    %p230 = scmp.ne.s32.totalorder %s221, %s222
    %p231 = scmp.eq.s32.totalorder %s33, 0
    %p232 = por %p230, %p231
    %p233 = scmp.ne.s32.totalorder %s221, %s222
    %p234 = scmp.eq.s32.totalorder %s34, 1
    %p235 = por %p233, %p234
    %p237 = scmp.ne.s32.totalorder %s222, %s236
    %p238 = scmp.eq.s32.totalorder %s34, 0
    %p239 = por %p237, %p238
    %s241 = sadd.s32 %s240, 1
    %p244 = scmp.eq.s32.totalorder %s28, 1
    %p245 = scmp.ne.s32.totalorder %s240, %s242
    %p246 = scmp.eq.s32.totalorder %s28, 0
    %p247 = por %p245, %p246
    %p248 = scmp.ne.s32.totalorder %s240, %s242
    %p249 = scmp.eq.s32.totalorder %s33, 1
    %p250 = por %p248, %p249
    %p251 = scmp.ne.s32.totalorder %s242, %s243
    %p252 = scmp.eq.s32.totalorder %s33, 0
    %p253 = por %p251, %p252
    %p254 = scmp.ne.s32.totalorder %s242, %s243
    %p255 = scmp.eq.s32.totalorder %s34, 1
    %p256 = por %p254, %p255
    %p258 = scmp.ne.s32.totalorder %s243, %s257
    %p259 = scmp.eq.s32.totalorder %s34, 0
    %p260 = por %p258, %p259
    %s262 = sadd.s32 %s261, 1
    %p265 = scmp.eq.s32.totalorder %s28, 1
    %p266 = scmp.ne.s32.totalorder %s261, %s263
    %p267 = scmp.eq.s32.totalorder %s28, 0
    %p268 = por %p266, %p267
    %p269 = scmp.ne.s32.totalorder %s261, %s263
    %p270 = scmp.eq.s32.totalorder %s33, 1
    %p271 = por %p269, %p270
    %p272 = scmp.ne.s32.totalorder %s263, %s264
    %p273 = scmp.eq.s32.totalorder %s33, 0
    %p274 = por %p272, %p273
    %p275 = scmp.ne.s32.totalorder %s263, %s264
    %p276 = scmp.eq.s32.totalorder %s34, 1
    %p277 = por %p275, %p276
    %p279 = scmp.ne.s32.totalorder %s264, %s278
    %p280 = scmp.eq.s32.totalorder %s34, 0
    %p281 = por %p279, %p280
    %s283 = sadd.s32 %s282, 1
    %p286 = scmp.eq.s32.totalorder %s28, 1
    %p287 = scmp.ne.s32.totalorder %s282, %s284
    %p288 = scmp.eq.s32.totalorder %s28, 0
    %p289 = por %p287, %p288
    %p290 = scmp.ne.s32.totalorder %s282, %s284
    %p291 = scmp.eq.s32.totalorder %s33, 1
    %p292 = por %p290, %p291
    %p293 = scmp.ne.s32.totalorder %s284, %s285
    %p294 = scmp.eq.s32.totalorder %s33, 0
    %p295 = por %p293, %p294
    %p296 = scmp.ne.s32.totalorder %s284, %s285
    %p297 = scmp.eq.s32.totalorder %s34, 1
    %p298 = por %p296, %p297
    %p300 = scmp.ne.s32.totalorder %s285, %s299
    %p301 = scmp.eq.s32.totalorder %s34, 0
    %p302 = por %p300, %p301
    %s304 = sadd.s32 %s303, 1
    %p307 = scmp.eq.s32.totalorder %s28, 1
    %p308 = scmp.ne.s32.totalorder %s303, %s305
    %p309 = scmp.eq.s32.totalorder %s28, 0
    %p310 = por %p308, %p309
    %p311 = scmp.ne.s32.totalorder %s303, %s305
    %p312 = scmp.eq.s32.totalorder %s33, 1
    %p313 = por %p311, %p312
    %p314 = scmp.ne.s32.totalorder %s305, %s306
    %p315 = scmp.eq.s32.totalorder %s33, 0
    %p316 = por %p314, %p315
    %p317 = scmp.ne.s32.totalorder %s305, %s306
    %p318 = scmp.eq.s32.totalorder %s34, 1
    %p319 = por %p317, %p318
    %p321 = scmp.ne.s32.totalorder %s306, %s320
    %p322 = scmp.eq.s32.totalorder %s34, 0
    %p323 = por %p321, %p322
    %s325 = sadd.s32 %s324, 1
    %p328 = scmp.eq.s32.totalorder %s28, 1
    %p329 = scmp.ne.s32.totalorder %s324, %s326
    %p330 = scmp.eq.s32.totalorder %s28, 0
    %p331 = por %p329, %p330
    %p332 = scmp.ne.s32.totalorder %s324, %s326
    %p333 = scmp.eq.s32.totalorder %s33, 1
    %p334 = por %p332, %p333
    %p335 = scmp.ne.s32.totalorder %s326, %s327
    %p336 = scmp.eq.s32.totalorder %s33, 0
    %p337 = por %p335, %p336
    %p338 = scmp.ne.s32.totalorder %s326, %s327
    %p339 = scmp.eq.s32.totalorder %s34, 1
    %p340 = por %p338, %p339
    %p342 = scmp.ne.s32.totalorder %s327, %s341
    %p343 = scmp.eq.s32.totalorder %s34, 0
    %p344 = por %p342, %p343
    %s346 = sadd.s32 %s345, 1
    %p349 = scmp.eq.s32.totalorder %s28, 1
    %p350 = scmp.ne.s32.totalorder %s345, %s347
    %p351 = scmp.eq.s32.totalorder %s28, 0
    %p352 = por %p350, %p351
    %p353 = scmp.ne.s32.totalorder %s345, %s347
    %p354 = scmp.eq.s32.totalorder %s33, 1
    %p355 = por %p353, %p354
    %p356 = scmp.ne.s32.totalorder %s347, %s348
    %p357 = scmp.eq.s32.totalorder %s33, 0
    %p358 = por %p356, %p357
    %p359 = scmp.ne.s32.totalorder %s347, %s348
    %p360 = scmp.eq.s32.totalorder %s34, 1
    %p361 = por %p359, %p360
    %p363 = scmp.ne.s32.totalorder %s348, %s362
    %p364 = scmp.eq.s32.totalorder %s34, 0
    %p365 = por %p363, %p364
    %s367 = sadd.s32 %s366, 1
    %p370 = scmp.eq.s32.totalorder %s28, 1
    %p371 = scmp.ne.s32.totalorder %s366, %s368
    %p372 = scmp.eq.s32.totalorder %s28, 0
    %p373 = por %p371, %p372
    %p374 = scmp.ne.s32.totalorder %s366, %s368
    %p375 = scmp.eq.s32.totalorder %s33, 1
    %p376 = por %p374, %p375
    %p377 = scmp.ne.s32.totalorder %s368, %s369
    %p378 = scmp.eq.s32.totalorder %s33, 0
    %p379 = por %p377, %p378
    %p380 = scmp.ne.s32.totalorder %s368, %s369
    %p381 = scmp.eq.s32.totalorder %s34, 1
    %p382 = por %p380, %p381
    %p384 = scmp.ne.s32.totalorder %s369, %s383
    %p385 = scmp.eq.s32.totalorder %s34, 0
    %p386 = por %p384, %p385
    %s388 = sadd.s32 %s387, 1
    %p391 = scmp.eq.s32.totalorder %s28, 1
    %p392 = scmp.ne.s32.totalorder %s387, %s389
    %p393 = scmp.eq.s32.totalorder %s28, 0
    %p394 = por %p392, %p393
    %p395 = scmp.ne.s32.totalorder %s387, %s389
    %p396 = scmp.eq.s32.totalorder %s33, 1
    %p397 = por %p395, %p396
    %p398 = scmp.ne.s32.totalorder %s389, %s390
    %p399 = scmp.eq.s32.totalorder %s33, 0
    %p400 = por %p398, %p399
    %p401 = scmp.ne.s32.totalorder %s389, %s390
    %p402 = scmp.eq.s32.totalorder %s34, 1
    %p403 = por %p401, %p402
    %p405 = scmp.ne.s32.totalorder %s390, %s404
    %p406 = scmp.eq.s32.totalorder %s34, 0
    %p407 = por %p405, %p406
    %s409 = sadd.s32 %s408, 1
    %p412 = scmp.eq.s32.totalorder %s28, 1
    %p413 = scmp.ne.s32.totalorder %s408, %s410
    %p414 = scmp.eq.s32.totalorder %s28, 0
    %p415 = por %p413, %p414
    %p416 = scmp.ne.s32.totalorder %s408, %s410
    %p417 = scmp.eq.s32.totalorder %s33, 1
    %p418 = por %p416, %p417
    %p419 = scmp.ne.s32.totalorder %s410, %s411
    %p420 = scmp.eq.s32.totalorder %s33, 0
    %p421 = por %p419, %p420
    %p422 = scmp.ne.s32.totalorder %s410, %s411
    %p423 = scmp.eq.s32.totalorder %s34, 1
    %p424 = por %p422, %p423
    %p426 = scmp.ne.s32.totalorder %s411, %s425
    %p427 = scmp.eq.s32.totalorder %s34, 0
    %p428 = por %p426, %p427
    %s430 = sadd.s32 %s429, 1
    %p433 = scmp.eq.s32.totalorder %s28, 1
    %p434 = scmp.ne.s32.totalorder %s429, %s431
    %p435 = scmp.eq.s32.totalorder %s28, 0
    %p436 = por %p434, %p435
    %p437 = scmp.ne.s32.totalorder %s429, %s431
    %p438 = scmp.eq.s32.totalorder %s33, 1
    %p439 = por %p437, %p438
    %p440 = scmp.ne.s32.totalorder %s431, %s432
    %p441 = scmp.eq.s32.totalorder %s33, 0
    %p442 = por %p440, %p441
    %p443 = scmp.ne.s32.totalorder %s431, %s432
    %p444 = scmp.eq.s32.totalorder %s34, 1
    %p445 = por %p443, %p444
    %p447 = scmp.ne.s32.totalorder %s432, %s446
    %p448 = scmp.eq.s32.totalorder %s34, 0
    %p449 = por %p447, %p448
    %s451 = sadd.s32 %s450, 1
    %p454 = scmp.eq.s32.totalorder %s28, 1
    %p455 = scmp.ne.s32.totalorder %s450, %s452
    %p456 = scmp.eq.s32.totalorder %s28, 0
    %p457 = por %p455, %p456
    %p458 = scmp.ne.s32.totalorder %s450, %s452
    %p459 = scmp.eq.s32.totalorder %s33, 1
    %p460 = por %p458, %p459
    %p461 = scmp.ne.s32.totalorder %s452, %s453
    %p462 = scmp.eq.s32.totalorder %s33, 0
    %p463 = por %p461, %p462
    %p464 = scmp.ne.s32.totalorder %s452, %s453
    %p465 = scmp.eq.s32.totalorder %s34, 1
    %p466 = por %p464, %p465
    %p468 = scmp.ne.s32.totalorder %s453, %s467
    %p469 = scmp.eq.s32.totalorder %s34, 0
    %p470 = por %p468, %p469
    %s472 = sadd.s32 %s471, 1
    %p475 = scmp.eq.s32.totalorder %s28, 1
    %p476 = scmp.ne.s32.totalorder %s471, %s473
    %p477 = scmp.eq.s32.totalorder %s28, 0
    %p478 = por %p476, %p477
    %p479 = scmp.ne.s32.totalorder %s471, %s473
    %p480 = scmp.eq.s32.totalorder %s33, 1
    %p481 = por %p479, %p480
    %p482 = scmp.ne.s32.totalorder %s473, %s474
    %p483 = scmp.eq.s32.totalorder %s33, 0
    %p484 = por %p482, %p483
    %p485 = scmp.ne.s32.totalorder %s473, %s474
    %p486 = scmp.eq.s32.totalorder %s34, 1
    %p487 = por %p485, %p486
    %p489 = scmp.ne.s32.totalorder %s474, %s488
    %p490 = scmp.eq.s32.totalorder %s34, 0
    %p491 = por %p489, %p490
    %s493 = sadd.s32 %s492, 1
    %p496 = scmp.eq.s32.totalorder %s28, 1
    %p497 = scmp.ne.s32.totalorder %s492, %s494
    %p498 = scmp.eq.s32.totalorder %s28, 0
    %p499 = por %p497, %p498
    %p500 = scmp.ne.s32.totalorder %s492, %s494
    %p501 = scmp.eq.s32.totalorder %s33, 1
    %p502 = por %p500, %p501
    %p503 = scmp.ne.s32.totalorder %s494, %s495
    %p504 = scmp.eq.s32.totalorder %s33, 0
    %p505 = por %p503, %p504
    %p506 = scmp.ne.s32.totalorder %s494, %s495
    %p507 = scmp.eq.s32.totalorder %s34, 1
    %p508 = por %p506, %p507
    %p510 = scmp.ne.s32.totalorder %s495, %s509
    %p511 = scmp.eq.s32.totalorder %s34, 0
    %p512 = por %p510, %p511
    %s513 = ssub.s32 %s28, %s35
    %p514 = scmp.eq.s32.totalorder %s513, 0
    %s516 = sadd.s32 %s515, 1
    %s517 = scalar_select %p514, %s515, %s516
    %p520 = pneg %p514
    %p521 = scmp.eq.s32.totalorder %s28, 1
    %p522 = por %p520, %p521
    %p523 = scmp.ne.s32.totalorder %s515, %s518
    %p524 = scmp.eq.s32.totalorder %s28, 0
    %p525 = por %p523, %p524
    %p526 = scmp.ne.s32.totalorder %s515, %s518
    %p527 = scmp.eq.s32.totalorder %s33, 1
    %p528 = por %p526, %p527
    %p529 = scmp.ne.s32.totalorder %s518, %s519
    %p530 = scmp.eq.s32.totalorder %s33, 0
    %p531 = por %p529, %p530
    %p532 = scmp.ne.s32.totalorder %s518, %s519
    %p533 = scmp.eq.s32.totalorder %s34, 1
    %p534 = por %p532, %p533
    %p536 = scmp.ne.s32.totalorder %s519, %s535
    %p537 = scmp.eq.s32.totalorder %s34, 0
    %p538 = por %p536, %p537
    %p539 = scmp.le.s32.totalorder 1, %s28
    %p540 = scmp.lt.s32.totalorder %s28, 3
    %p541 = pnand %p539, %p540
    %p542 = pneg %p541
    // Predicated region
    $region9: #{pocket_encoder_forward.10} parent=5 // pred_check
      _
    $region10: #{pocket_encoder_forward.10} parent=5 // pred_check_branch
      %544 = sbr.rel (%p541) target = $region12
    $region11: #{pocket_encoder_forward.10} parent=5 // pred_region
      %s545 = ssub.s32 %s28, 1
      // Predicated region
      $region13: #{pocket_encoder_forward.10} parent=11 // pred_check
        %p546 = pneg %p127
      $region14: #{pocket_encoder_forward.10} parent=11 // pred_check_branch
        %548 = sbr.rel (%p546) target = $region16
      $region15: #{pocket_encoder_forward.10} parent=11 // pred_region
        _
      $region16: #{pocket_encoder_forward.10} parent=11 // pred_fallthru
        _
      // Predicated region
      $region17: #{pocket_encoder_forward.10} parent=11 // pred_check
        %p549 = pneg %p148
      $region18: #{pocket_encoder_forward.10} parent=11 // pred_check_branch
        %551 = sbr.rel (%p549) target = $region20
      $region19: #{pocket_encoder_forward.10} parent=11 // pred_region
        _
      $region20: #{pocket_encoder_forward.10} parent=11 // pred_fallthru
        _
      // Predicated region
      $region21: #{pocket_encoder_forward.10} parent=11 // pred_check
        %p552 = pneg %p169
      $region22: #{pocket_encoder_forward.10} parent=11 // pred_check_branch
        %554 = sbr.rel (%p552) target = $region24
      $region23: #{pocket_encoder_forward.10} parent=11 // pred_region
        _
      $region24: #{pocket_encoder_forward.10} parent=11 // pred_fallthru
        _
      // Predicated region
      $region25: #{pocket_encoder_forward.10} parent=11 // pred_check
        %p555 = pneg %p190
      $region26: #{pocket_encoder_forward.10} parent=11 // pred_check_branch
        %557 = sbr.rel (%p555) target = $region28
      $region27: #{pocket_encoder_forward.10} parent=11 // pred_region
        _
      $region28: #{pocket_encoder_forward.10} parent=11 // pred_fallthru
        _
      // Predicated region
      $region29: #{pocket_encoder_forward.10} parent=11 // pred_check
        %p558 = pneg %p211
      $region30: #{pocket_encoder_forward.10} parent=11 // pred_check_branch
        %560 = sbr.rel (%p558) target = $region32
      $region31: #{pocket_encoder_forward.10} parent=11 // pred_region
        _
      $region32: #{pocket_encoder_forward.10} parent=11 // pred_fallthru
        _
      // Predicated region
      $region33: #{pocket_encoder_forward.10} parent=11 // pred_check
        %p561 = pneg %p232
      $region34: #{pocket_encoder_forward.10} parent=11 // pred_check_branch
        %563 = sbr.rel (%p561) target = $region36
      $region35: #{pocket_encoder_forward.10} parent=11 // pred_region
        _
      $region36: #{pocket_encoder_forward.10} parent=11 // pred_fallthru
        _
      // Predicated region
      $region37: #{pocket_encoder_forward.10} parent=11 // pred_check
        %p564 = pneg %p253
      $region38: #{pocket_encoder_forward.10} parent=11 // pred_check_branch
        %566 = sbr.rel (%p564) target = $region40
      $region39: #{pocket_encoder_forward.10} parent=11 // pred_region
        _
      $region40: #{pocket_encoder_forward.10} parent=11 // pred_fallthru
        _
      // Predicated region
      $region41: #{pocket_encoder_forward.10} parent=11 // pred_check
        %p567 = pneg %p274
      $region42: #{pocket_encoder_forward.10} parent=11 // pred_check_branch
        %569 = sbr.rel (%p567) target = $region44
      $region43: #{pocket_encoder_forward.10} parent=11 // pred_region
        _
      $region44: #{pocket_encoder_forward.10} parent=11 // pred_fallthru
        _
      // Predicated region
      $region45: #{pocket_encoder_forward.10} parent=11 // pred_check
        %p570 = pneg %p295
      $region46: #{pocket_encoder_forward.10} parent=11 // pred_check_branch
        %572 = sbr.rel (%p570) target = $region48
      $region47: #{pocket_encoder_forward.10} parent=11 // pred_region
        _
      $region48: #{pocket_encoder_forward.10} parent=11 // pred_fallthru
        _
      // Predicated region
      $region49: #{pocket_encoder_forward.10} parent=11 // pred_check
        %p573 = pneg %p316
      $region50: #{pocket_encoder_forward.10} parent=11 // pred_check_branch
        %575 = sbr.rel (%p573) target = $region52
      $region51: #{pocket_encoder_forward.10} parent=11 // pred_region
        _
      $region52: #{pocket_encoder_forward.10} parent=11 // pred_fallthru
        _
      // Predicated region
      $region53: #{pocket_encoder_forward.10} parent=11 // pred_check
        %p576 = pneg %p337
      $region54: #{pocket_encoder_forward.10} parent=11 // pred_check_branch
        %578 = sbr.rel (%p576) target = $region56
      $region55: #{pocket_encoder_forward.10} parent=11 // pred_region
        _
      $region56: #{pocket_encoder_forward.10} parent=11 // pred_fallthru
        _
      // Predicated region
      $region57: #{pocket_encoder_forward.10} parent=11 // pred_check
        %p579 = pneg %p358
      $region58: #{pocket_encoder_forward.10} parent=11 // pred_check_branch
        %581 = sbr.rel (%p579) target = $region60
      $region59: #{pocket_encoder_forward.10} parent=11 // pred_region
        _
      $region60: #{pocket_encoder_forward.10} parent=11 // pred_fallthru
        _
      // Predicated region
      $region61: #{pocket_encoder_forward.10} parent=11 // pred_check
        %p582 = pneg %p379
      $region62: #{pocket_encoder_forward.10} parent=11 // pred_check_branch
        %584 = sbr.rel (%p582) target = $region64
      $region63: #{pocket_encoder_forward.10} parent=11 // pred_region
        _
      $region64: #{pocket_encoder_forward.10} parent=11 // pred_fallthru
        _
      // Predicated region
      $region65: #{pocket_encoder_forward.10} parent=11 // pred_check
        %p585 = pneg %p400
      $region66: #{pocket_encoder_forward.10} parent=11 // pred_check_branch
        %587 = sbr.rel (%p585) target = $region68
      $region67: #{pocket_encoder_forward.10} parent=11 // pred_region
        _
      $region68: #{pocket_encoder_forward.10} parent=11 // pred_fallthru
        _
      // Predicated region
      $region69: #{pocket_encoder_forward.10} parent=11 // pred_check
        %p588 = pneg %p421
      $region70: #{pocket_encoder_forward.10} parent=11 // pred_check_branch
        %590 = sbr.rel (%p588) target = $region72
      $region71: #{pocket_encoder_forward.10} parent=11 // pred_region
        _
      $region72: #{pocket_encoder_forward.10} parent=11 // pred_fallthru
        _
      // Predicated region
      $region73: #{pocket_encoder_forward.10} parent=11 // pred_check
        %p591 = pneg %p442
      $region74: #{pocket_encoder_forward.10} parent=11 // pred_check_branch
        %593 = sbr.rel (%p591) target = $region76
      $region75: #{pocket_encoder_forward.10} parent=11 // pred_region
        _
      $region76: #{pocket_encoder_forward.10} parent=11 // pred_fallthru
        _
      // Predicated region
      $region77: #{pocket_encoder_forward.10} parent=11 // pred_check
        %p594 = pneg %p463
      $region78: #{pocket_encoder_forward.10} parent=11 // pred_check_branch
        %596 = sbr.rel (%p594) target = $region80
      $region79: #{pocket_encoder_forward.10} parent=11 // pred_region
        _
      $region80: #{pocket_encoder_forward.10} parent=11 // pred_fallthru
        _
      // Predicated region
      $region81: #{pocket_encoder_forward.10} parent=11 // pred_check
        %p597 = pneg %p484
      $region82: #{pocket_encoder_forward.10} parent=11 // pred_check_branch
        %599 = sbr.rel (%p597) target = $region84
      $region83: #{pocket_encoder_forward.10} parent=11 // pred_region
        _
      $region84: #{pocket_encoder_forward.10} parent=11 // pred_fallthru
        _
      // Predicated region
      $region85: #{pocket_encoder_forward.10} parent=11 // pred_check
        %p600 = pneg %p505
      $region86: #{pocket_encoder_forward.10} parent=11 // pred_check_branch
        %602 = sbr.rel (%p600) target = $region88
      $region87: #{pocket_encoder_forward.10} parent=11 // pred_region
        _
      $region88: #{pocket_encoder_forward.10} parent=11 // pred_fallthru
        _
    $region12: #{pocket_encoder_forward.10} parent=5 // pred_fallthru
      _
    %p603 = scmp.lt.s32.totalorder %s28, 2
    // Predicated region
    $region89: #{pocket_encoder_forward.10} parent=5 // pred_check
      %p604 = pneg %p603
    $region90: #{pocket_encoder_forward.10} parent=5 // pred_check_branch
      %606 = sbr.rel (%p604) target = $region92
    $region91: #{pocket_encoder_forward.10} parent=5 // pred_region
      // Predicated region
      $region93: #{pocket_encoder_forward.10} parent=91 // pred_check
        %p607 = pneg %p48
      $region94: #{pocket_encoder_forward.10} parent=91 // pred_check_branch
        %609 = sbr.rel (%p607) target = $region96
      $region95: #{pocket_encoder_forward.10} parent=91 // pred_region
        %s610 = smul.u32 2, %s28
        %p611 = scmp.lt.s32.totalorder %s610, 3
        %s612 = scalar_select %p611, %s610, 3
        %s613 = smul.addr %s612, 3
        %s614 = smul.addr %s613, 8
        %s615 = scalar_lea.vmem %s0, %s614
        %s616 = smul.u32 2, %s28
      $region96: #{pocket_encoder_forward.10} parent=91 // pred_fallthru
        _
      // Predicated region
      $region97: #{pocket_encoder_forward.10} parent=91 // pred_check
        %p617 = pneg %p74
      $region98: #{pocket_encoder_forward.10} parent=91 // pred_check_branch
        %619 = sbr.rel (%p617) target = $region100
      $region99: #{pocket_encoder_forward.10} parent=91 // pred_region
        %s620 = smul.u32 2, %s28
        %p621 = scmp.lt.s32.totalorder %s620, 3
        %s622 = scalar_select %p621, %s620, 3
        %s623 = smul.addr %s622, 3
        %s624 = smul.addr %s623, 8
        %s625 = scalar_lea.vmem %s1, %s624
        %s626 = smul.u32 2, %s28
      $region100: #{pocket_encoder_forward.10} parent=91 // pred_fallthru
        _
      // Predicated region
      $region101: #{pocket_encoder_forward.10} parent=91 // pred_check
        %p627 = pneg %p100
      $region102: #{pocket_encoder_forward.10} parent=91 // pred_check_branch
        %629 = sbr.rel (%p627) target = $region104
      $region103: #{pocket_encoder_forward.10} parent=91 // pred_region
        %s630 = smul.u32 2, %s28
        %p631 = scmp.lt.s32.totalorder %s630, 3
        %s632 = scalar_select %p631, %s630, 3
        %s633 = smul.addr %s632, 8
        %s634 = scalar_lea.vmem %s2, %s633
        %s635 = smul.u32 2, %s28
      $region104: #{pocket_encoder_forward.10} parent=91 // pred_fallthru
        _
    $region92: #{pocket_encoder_forward.10} parent=5 // pred_fallthru
      _
    %p636 = scmp.le.s32.totalorder 1, %s28
    %p637 = scmp.lt.s32.totalorder %s28, 3
    %p638 = pnand %p636, %p637
    %p639 = pneg %p638
    // Predicated region
    $region105: #{pocket_encoder_forward.10} parent=5 // pred_check
      _
    $region106: #{pocket_encoder_forward.10} parent=5 // pred_check_branch
      %641 = sbr.rel (%p638) target = $region108
    $region107: #{pocket_encoder_forward.10} parent=5 // pred_region
      %s642 = ssub.s32 %s28, 1
      %s643 = smul.u32 2, %s33
      %p644 = scmp.lt.s32.totalorder %s643, 3
      %s645 = scalar_select %p644, %s643, 3
      %s646 = smul.addr %s645, 3
      %s647 = smul.addr %s646, 8
      %s648 = scalar_lea.vmem %s0, %s647
      %p649 = pneg %p54
      %p650 = pneg %p51
      %s651 = smul.u32 2, %s33
      %p652 = scmp.lt.s32.totalorder %s651, 3
      %s653 = scalar_select %p652, %s651, 3
      %s654 = smul.addr %s653, 3
      %s655 = smul.addr %s654, 8
      %s656 = scalar_lea.vmem %s1, %s655
      %p657 = pneg %p80
      %p658 = pneg %p77
      %s659 = smul.u32 2, %s33
      %p660 = scmp.lt.s32.totalorder %s659, 3
      %s661 = scalar_select %p660, %s659, 3
      %s662 = smul.addr %s661, 8
      %s663 = scalar_lea.vmem %s2, %s662
      %p664 = pneg %p106
      %p665 = pneg %p103
      %p666 = pneg %p127
      %p667 = pneg %p124
      %p668 = pneg %p148
      %p669 = pneg %p145
      %p670 = pneg %p169
      %p671 = pneg %p166
      %p672 = pneg %p190
      %p673 = pneg %p187
      %p674 = pneg %p211
      %p675 = pneg %p208
      %p676 = pneg %p232
      %p677 = pneg %p229
      %p678 = pneg %p253
      %p679 = pneg %p250
      %p680 = pneg %p274
      %p681 = pneg %p271
      %p682 = pneg %p295
      %p683 = pneg %p292
      %p684 = pneg %p316
      %p685 = pneg %p313
      %p686 = pneg %p337
      %p687 = pneg %p334
      %p688 = pneg %p358
      %p689 = pneg %p355
      %p690 = pneg %p379
      %p691 = pneg %p376
      %p692 = pneg %p400
      %p693 = pneg %p397
      %p694 = pneg %p421
      %p695 = pneg %p418
      %p696 = pneg %p442
      %p697 = pneg %p439
      %p698 = pneg %p463
      %p699 = pneg %p460
      %p700 = pneg %p484
      %p701 = pneg %p481
      %p702 = pneg %p505
      %p703 = pneg %p502
      %p704 = pneg %p531
      %p705 = pneg %p528
      %s706 = smul.u32 2, %s33
      %p707 = scmp.lt.s32.totalorder %s706, 3
      %s708 = scalar_select %p707, %s706, 3
      %s709 = smul.addr %s708, 3
      %s710 = smul.addr %s709, 8
      %s711 = scalar_lea.vmem %s22, %s710
      %s712 = smul.u32 2, %s33
      %p713 = scmp.lt.s32.totalorder %s712, 3
      %s714 = scalar_select %p713, %s712, 3
      %s715 = smul.addr %s714, 3
      %s716 = smul.addr %s715, 8
      %s717 = scalar_lea.vmem %s0, %s716
      %s718 = smul.u32 2, %s33
      %s719 = smul.u32 2, %s33
      %p720 = scmp.lt.s32.totalorder %s719, 3
      %s721 = scalar_select %p720, %s719, 3
      %s722 = smul.addr %s721, 3
      %s723 = smul.addr %s722, 8
      %s724 = scalar_lea.vmem %s1, %s723
      %s725 = smul.u32 2, %s33
      %s726 = smul.u32 2, %s33
      %p727 = scmp.lt.s32.totalorder %s726, 3
      %s728 = scalar_select %p727, %s726, 3
      %s729 = smul.addr %s728, 8
      %s730 = scalar_lea.vmem %s2, %s729
      %s731 = smul.u32 2, %s33
      %s732 = smul.u32 2, %s33
      %p733 = scmp.lt.s32.totalorder %s732, 3
      %s734 = scalar_select %p733, %s732, 3
      %s735 = smul.addr %s734, 3
      %s736 = smul.addr %s735, 8
      %s737 = scalar_lea.vmem %s22, %s736
      %s738 = smul.u32 2, %s33
      %v740 = vld [vmem:[%s717] sm:$0xff]
      %v741 = vld [vmem:[%s717 + $0x8] sm:$0xff]
      %v742 = vld [vmem:[%s717 + $0x10] sm:$0xff]
      %v743 = vld [vmem:[%s717 + $0x18] sm:$0xff]
      %v744 = vld [vmem:[%s717 + $0x20] sm:$0xff]
      %v745 = vld [vmem:[%s717 + $0x28] sm:$0xff]
      %v746 = vld [vmem:[%s724] sm:$0xff]
      %v747 = vld [vmem:[%s724 + $0x8] sm:$0xff]
      %v748 = vld [vmem:[%s724 + $0x10] sm:$0xff]
      %v749 = vld [vmem:[%s724 + $0x18] sm:$0xff]
      %v750 = vld [vmem:[%s724 + $0x20] sm:$0xff]
      %v751 = vld [vmem:[%s724 + $0x28] sm:$0xff]
      %v752 = vld [vmem:[%s730] sm:$0xff]
      %v753 = vld [vmem:[%s730 + $0x8] sm:$0xff]
      %756 = vrot.lane.b32.xlu0 %v742, 125
      %v757 = vpop.permute.xlu0 %756
      %758 = vrot.lane.b32.xlu0 %v745, 125
      %v759 = vpop.permute.xlu0 %758
      %762 = vrot.lane.b32.xlu0 %v742, 122
      %v763 = vpop.permute.xlu0 %762
      %764 = vrot.lane.b32.xlu0 %v745, 122
      %v765 = vpop.permute.xlu0 %764
      %770 = vrot.lane.b32.xlu0 %v752, 127
      %v771 = vpop.permute.xlu0 %770
      %772 = vrot.lane.b32.xlu0 %v753, 127
      %v773 = vpop.permute.xlu0 %772
      %774 = vrot.lane.b32.xlu0 %v752, 126
      %v775 = vpop.permute.xlu0 %774
      %776 = vrot.lane.b32.xlu0 %v753, 126
      %v777 = vpop.permute.xlu0 %776
      %780 = vrot.lane.b32.xlu0 %v748, 125
      %v781 = vpop.permute.xlu0 %780
      %782 = vrot.lane.b32.xlu0 %v751, 125
      %v783 = vpop.permute.xlu0 %782
      %786 = vrot.lane.b32.xlu0 %v748, 122
      %v787 = vpop.permute.xlu0 %786
      %788 = vrot.lane.b32.xlu0 %v751, 122
      %v789 = vpop.permute.xlu0 %788
      %v792 = vld [vmem:[%s3] sm:$0x3]
      %v793 = vpack.c.bf16 %v745, %v742
      %v794 = vpack.c.bf16 %v759, %v757
      %v795 = vpack.c.bf16 %v765, %v763
      %v796 = vld [vmem:[%s5] sm:$0x3]
      %v797 = vpack.c.bf16 %v751, %v748
      %v798 = vpack.c.bf16 %v783, %v781
      %v799 = vpack.c.bf16 %v789, %v787
      %vm800 = vcmask 23552
      %v802 = vsel %vm800, %v797, 0
      %v805 = vsel %vm800, %v798, 0
      %v808 = vsel %vm800, %v799, 0
      %vm810 = vcmask 1040384
      %vm811 = vcmask 1041408
      %v812 = vsel %vm810, 4294967295, 65535
      %v813 = vsel %vm811, %v812, 0
      %v815 = vand.u32 %v796, %v813
      %817 = vmatprep.subr.bf16.mxu0 0
      %818 = vmatpush1.bf16.msra.mxu0 0
      %819 = vmatprep.subr.bf16.mxu0 0
      %820 = vmatpush1.bf16.msra.mxu0 0
      %821 = vmatprep.subr.bf16.mxu0 0
      %822 = vmatpush1.bf16.msra.mxu0 0
      %823 = vmatprep.subr.bf16.mxu0 0
      %824 = vmatpush1.bf16.msra.mxu0 0
      %825 = vmatprep.subr.bf16.mxu0 0
      %826 = vmatpush1.bf16.msra.mxu0 0
      %827 = vmatprep.subr.bf16.mxu0 0
      %828 = vmatpush1.bf16.msra.mxu0 0
      %829 = vmatprep.subr.bf16.mxu0 0
      %830 = vmatpush1.bf16.msra.mxu0 0
      %831 = vmatprep.subr.bf16.mxu0 0
      %832 = vmatpush1.bf16.msra.mxu0 %v815
      %833 = vmatprep.subr.bf16.mxu0 0
      %834 = vmatpush2.bf16.msra.mxu0 0
      %835 = vmatprep.subr.bf16.mxu0 0
      %836 = vmatpush2.bf16.msra.mxu0 0
      %837 = vmatprep.subr.bf16.mxu0 0
      %838 = vmatpush2.bf16.msra.mxu0 0
      %839 = vmatprep.subr.bf16.mxu0 0
      %840 = vmatpush2.bf16.msra.mxu0 0
      %841 = vmatprep.subr.bf16.mxu0 0
      %842 = vmatpush2.bf16.msra.mxu0 0
      %843 = vmatprep.subr.bf16.mxu0 0
      %844 = vmatpush2.bf16.msra.mxu0 0
      %845 = vmatprep.subr.bf16.mxu0 0
      %846 = vmatpush2.bf16.msra.mxu0 0
      %847 = vmatprep.subr.bf16.mxu0 0
      %848 = vmatpush2.bf16.msra.mxu0 0
      %849 = vmatprep.mubr.bf16.mxu0 0
      %850 = vmatmul.mubr.bf16.gmra.mxu0 %v802
      %v851 = vpop.f32.mrf.mxu0
      %v852 = vadd.f32 0.0, %v851
      %v853 = vpop.f32.mrf.mxu0
      %v854 = vpop.f32.mrf.mxu0
      %v855 = vadd.f32 0.0, %v854
      %v856 = vpop.f32.mrf.mxu0
      %857 = vmatprep.mubr.bf16.mxu0 0
      %858 = vmatmul.mubr.bf16.gmra.mxu0 %v805
      %v859 = vpop.f32.mrf.mxu0
      %v860 = vadd.f32 0.0, %v859
      %v861 = vpop.f32.mrf.mxu0
      %v862 = vpop.f32.mrf.mxu0
      %v863 = vadd.f32 0.0, %v862
      %v864 = vpop.f32.mrf.mxu0
      %865 = vmatprep.mubr.bf16.mxu0 0
      %866 = vmatmul.mubr.bf16.gmra.mxu0 %v808
      %v867 = vpop.f32.mrf.mxu0
      %v868 = vadd.f32 0.0, %v867
      %v869 = vpop.f32.mrf.mxu0
      %v870 = vpop.f32.mrf.mxu0
      %v871 = vadd.f32 0.0, %v870
      %v872 = vpop.f32.mrf.mxu0
      %873 = vdwg.mxu0
      %v875 = vsel %vm800, %v793, 0
      %v878 = vsel %vm800, %v794, 0
      %v881 = vsel %vm800, %v795, 0
      %v884 = vand.u32 %v792, %v813
      %886 = vmatprep.subr.bf16.mxu0 0
      %887 = vmatpush1.bf16.msra.mxu0 0
      %888 = vmatprep.subr.bf16.mxu0 0
      %889 = vmatpush1.bf16.msra.mxu0 0
      %890 = vmatprep.subr.bf16.mxu0 0
      %891 = vmatpush1.bf16.msra.mxu0 0
      %892 = vmatprep.subr.bf16.mxu0 0
      %893 = vmatpush1.bf16.msra.mxu0 0
      %894 = vmatprep.subr.bf16.mxu0 0
      %895 = vmatpush1.bf16.msra.mxu0 0
      %896 = vmatprep.subr.bf16.mxu0 0
      %897 = vmatpush1.bf16.msra.mxu0 0
      %898 = vmatprep.subr.bf16.mxu0 0
      %899 = vmatpush1.bf16.msra.mxu0 0
      %900 = vmatprep.subr.bf16.mxu0 0
      %901 = vmatpush1.bf16.msra.mxu0 %v884
      %902 = vmatprep.subr.bf16.mxu0 0
      %903 = vmatpush2.bf16.msra.mxu0 0
      %904 = vmatprep.subr.bf16.mxu0 0
      %905 = vmatpush2.bf16.msra.mxu0 0
      %906 = vmatprep.subr.bf16.mxu0 0
      %907 = vmatpush2.bf16.msra.mxu0 0
      %908 = vmatprep.subr.bf16.mxu0 0
      %909 = vmatpush2.bf16.msra.mxu0 0
      %910 = vmatprep.subr.bf16.mxu0 0
      %911 = vmatpush2.bf16.msra.mxu0 0
      %912 = vmatprep.subr.bf16.mxu0 0
      %913 = vmatpush2.bf16.msra.mxu0 0
      %914 = vmatprep.subr.bf16.mxu0 0
      %915 = vmatpush2.bf16.msra.mxu0 0
      %916 = vmatprep.subr.bf16.mxu0 0
      %917 = vmatpush2.bf16.msra.mxu0 0
      %918 = vmatprep.mubr.bf16.mxu0 0
      %919 = vmatmul.mubr.bf16.gmra.mxu0 %v875
      %v920 = vpop.f32.mrf.mxu0
      %v921 = vadd.f32 %v852, %v920
      %v922 = vpop.f32.mrf.mxu0
      %v923 = vpop.f32.mrf.mxu0
      %v924 = vadd.f32 %v855, %v923
      %v925 = vpop.f32.mrf.mxu0
      %926 = vmatprep.mubr.bf16.mxu0 0
      %927 = vmatmul.mubr.bf16.gmra.mxu0 %v878
      %v928 = vpop.f32.mrf.mxu0
      %v929 = vadd.f32 %v860, %v928
      %v930 = vpop.f32.mrf.mxu0
      %v931 = vpop.f32.mrf.mxu0
      %v932 = vadd.f32 %v863, %v931
      %v933 = vpop.f32.mrf.mxu0
      %934 = vmatprep.mubr.bf16.mxu0 0
      %935 = vmatmul.mubr.bf16.gmra.mxu0 %v881
      %v936 = vpop.f32.mrf.mxu0
      %v937 = vadd.f32 %v868, %v936
      %v938 = vpop.f32.mrf.mxu0
      %v939 = vpop.f32.mrf.mxu0
      %v940 = vadd.f32 %v871, %v939
      %v941 = vpop.f32.mrf.mxu0
      %942 = vdwg.mxu0
      %v943 = vld [vmem:[%s4] sm:$0x1]
      %v944 = vunpack.c.l.bf16 %v943
      %945 = vset.pattern.permute.xlu0 32
      %946 = vperm.xlu0 %945, %v752
      %v947 = vpop.permute.xlu0 %946
      %949 = vset.pattern.permute.xlu0 32
      %950 = vperm.xlu0 %949, %v753
      %v951 = vpop.permute.xlu0 %950
      %953 = vset.pattern.permute.xlu0 32
      %954 = vperm.xlu0 %953, %v771
      %v955 = vpop.permute.xlu0 %954
      %957 = vset.pattern.permute.xlu0 32
      %958 = vperm.xlu0 %957, %v773
      %v959 = vpop.permute.xlu0 %958
      %961 = vset.pattern.permute.xlu0 32
      %962 = vperm.xlu0 %961, %v775
      %v963 = vpop.permute.xlu0 %962
      %965 = vset.pattern.permute.xlu0 32
      %966 = vperm.xlu0 %965, %v777
      %v967 = vpop.permute.xlu0 %966
      %v969 = vlaneseq
      %v970 = vshrl.u32 %v969, 7
      %v971 = vsub.s32 0, %v970
      %v972 = vrot.slane %v944, %v971
      %v973 = vmul.f32 %v947, %v972
      %v974 = vmul.f32 %v951, %v972
      %v975 = vmul.f32 %v955, %v972
      %v976 = vmul.f32 %v959, %v972
      %v977 = vmul.f32 %v963, %v972
      %v978 = vmul.f32 %v967, %v972
      %v979 = vadd.f32 %v921, %v973
      %v980 = vadd.f32 %v924, %v974
      %v981 = vadd.f32 %v929, %v975
      %v982 = vadd.f32 %v932, %v976
      %v983 = vadd.f32 %v937, %v977
      %v984 = vadd.f32 %v940, %v978
      %v985 = vld [vmem:[%s6] sm:$0xff]
      %v986 = vld [vmem:[%s6 + $0x8] sm:$0xff]
      %v987 = vld [vmem:[%s6 + $0x10] sm:$0xff]
      %v988 = vld [vmem:[%s6 + $0x18] sm:$0xff]
      %v989 = vld [vmem:[%s6 + $0x20] sm:$0xff]
      %v990 = vld [vmem:[%s6 + $0x28] sm:$0xff]
      %v991 = vld [vmem:[%s6 + $0x30] sm:$0xff]
      %v992 = vld [vmem:[%s6 + $0x38] sm:$0xff]
      %v993 = vld [vmem:[%s6 + $0x40] sm:$0xff]
      %v994 = vld [vmem:[%s6 + $0x48] sm:$0xff]
      %v995 = vld [vmem:[%s6 + $0x50] sm:$0xff]
      %v996 = vld [vmem:[%s6 + $0x58] sm:$0xff]
      %v997 = vld [vmem:[%s6 + $0x60] sm:$0xff]
      %v998 = vld [vmem:[%s6 + $0x68] sm:$0xff]
      %v999 = vld [vmem:[%s6 + $0x70] sm:$0xff]
      %v1000 = vld [vmem:[%s6 + $0x78] sm:$0xff]
      %v1001 = vld [vmem:[%s6 + $0x80] sm:$0xff]
      %v1002 = vld [vmem:[%s6 + $0x88] sm:$0xff]
      %v1003 = vld [vmem:[%s6 + $0x90] sm:$0xff]
      %v1004 = vld [vmem:[%s6 + $0x98] sm:$0xff]
      %v1005 = vld [vmem:[%s6 + $0xa0] sm:$0xff]
      %v1006 = vld [vmem:[%s6 + $0xa8] sm:$0xff]
      %v1007 = vld [vmem:[%s6 + $0xb0] sm:$0xff]
      %v1008 = vld [vmem:[%s6 + $0xb8] sm:$0xff]
      %v1009 = vld [vmem:[%s6 + $0xc0] sm:$0xff]
      %v1010 = vld [vmem:[%s6 + $0xc8] sm:$0xff]
      %v1011 = vld [vmem:[%s6 + $0xd0] sm:$0xff]
      %v1012 = vld [vmem:[%s6 + $0xd8] sm:$0xff]
      %v1013 = vld [vmem:[%s6 + $0xe0] sm:$0xff]
      %v1014 = vld [vmem:[%s6 + $0xe8] sm:$0xff]
      %v1015 = vld [vmem:[%s6 + $0xf0] sm:$0xff]
      %v1016 = vld [vmem:[%s6 + $0xf8] sm:$0xff]
      %v1017 = vpack.c.bf16 %v743, %v740
      %v1018 = vpack.c.bf16 %v744, %v741
      %v1019 = vld [vmem:[%s7] sm:$0xff]
      %v1020 = vld [vmem:[%s7 + $0x8] sm:$0xff]
      %v1021 = vld [vmem:[%s7 + $0x10] sm:$0xff]
      %v1022 = vld [vmem:[%s7 + $0x18] sm:$0xff]
      %v1023 = vpack.c.bf16 %v753, %v752
      %v1028 = vunpack.c.l.b16 %v1019
      %v1029 = vunpack.c.h.b16 %v1019
      %v1030 = vunpack.c.l.b16 %v1020
      %v1031 = vunpack.c.h.b16 %v1020
      %v1032 = vunpack.c.l.b16 %v1021
      %v1033 = vunpack.c.h.b16 %v1021
      %v1034 = vunpack.c.l.b16 %v1022
      %v1035 = vunpack.c.h.b16 %v1022
      %v1036 = vpack.c.b16 %v1030, %v1028
      %v1037 = vpack.c.b16 %v1031, %v1029
      %v1038 = vpack.c.b16 %v1034, %v1032
      %v1039 = vpack.c.b16 %v1035, %v1033
      %vm1044 = vcmask 261120
      %v1046 = vsel %vm1044, %v1023, 0
      %1048 = vmatprep.subr.bf16.mxu0 0
      %1049 = vmatpush1.bf16.msra.mxu0 0
      %1050 = vmatprep.subr.bf16.mxu0 0
      %1051 = vmatpush1.bf16.msra.mxu0 0
      %1052 = vmatprep.subr.bf16.mxu0 0
      %1053 = vmatpush1.bf16.msra.mxu0 0
      %1054 = vmatprep.subr.bf16.mxu0 0
      %1055 = vmatpush1.bf16.msra.mxu0 0
      %1056 = vmatprep.subr.bf16.mxu0 0
      %1057 = vmatpush1.bf16.msra.mxu0 0
      %1058 = vmatprep.subr.bf16.mxu0 0
      %1059 = vmatpush1.bf16.msra.mxu0 0
      %1060 = vmatprep.subr.bf16.mxu0 %v1039
      %1061 = vmatpush1.bf16.msra.mxu0 %v1038
      %1062 = vmatprep.subr.bf16.mxu0 %v1037
      %1063 = vmatpush1.bf16.msra.mxu0 %v1036
      %1064 = vmatprep.subr.bf16.mxu0 0
      %1065 = vmatpush2.bf16.msra.mxu0 0
      %1066 = vmatprep.subr.bf16.mxu0 0
      %1067 = vmatpush2.bf16.msra.mxu0 0
      %1068 = vmatprep.subr.bf16.mxu0 0
      %1069 = vmatpush2.bf16.msra.mxu0 0
      %1070 = vmatprep.subr.bf16.mxu0 0
      %1071 = vmatpush2.bf16.msra.mxu0 0
      %1072 = vmatprep.subr.bf16.mxu0 0
      %1073 = vmatpush2.bf16.msra.mxu0 0
      %1074 = vmatprep.subr.bf16.mxu0 0
      %1075 = vmatpush2.bf16.msra.mxu0 0
      %1076 = vmatprep.subr.bf16.mxu0 0
      %1077 = vmatpush2.bf16.msra.mxu0 0
      %1078 = vmatprep.subr.bf16.mxu0 0
      %1079 = vmatpush2.bf16.msra.mxu0 0
      %1080 = vmatprep.mubr.bf16.mxu0 0
      %1081 = vmatmul.mubr.bf16.gmra.mxu0 %v1046
      %v1082 = vpop.f32.mrf.mxu0
      %v1083 = vadd.f32 0.0, %v1082
      %v1084 = vpop.f32.mrf.mxu0
      %v1085 = vadd.f32 0.0, %v1084
      %v1086 = vpop.f32.mrf.mxu0
      %v1087 = vadd.f32 0.0, %v1086
      %v1088 = vpop.f32.mrf.mxu0
      %v1089 = vadd.f32 0.0, %v1088
      %1090 = vdwg.mxu0
      %v1123 = vunpack.c.l.b16 %v985
      %v1124 = vunpack.c.h.b16 %v985
      %v1125 = vunpack.c.l.b16 %v986
      %v1126 = vunpack.c.h.b16 %v986
      %v1127 = vunpack.c.l.b16 %v987
      %v1128 = vunpack.c.h.b16 %v987
      %v1129 = vunpack.c.l.b16 %v988
      %v1130 = vunpack.c.h.b16 %v988
      %v1131 = vunpack.c.l.b16 %v989
      %v1132 = vunpack.c.h.b16 %v989
      %v1133 = vunpack.c.l.b16 %v990
      %v1134 = vunpack.c.h.b16 %v990
      %v1135 = vunpack.c.l.b16 %v991
      %v1136 = vunpack.c.h.b16 %v991
      %v1137 = vunpack.c.l.b16 %v992
      %v1138 = vunpack.c.h.b16 %v992
      %v1139 = vunpack.c.l.b16 %v993
      %v1140 = vunpack.c.h.b16 %v993
      %v1141 = vunpack.c.l.b16 %v994
      %v1142 = vunpack.c.h.b16 %v994
      %v1143 = vunpack.c.l.b16 %v995
      %v1144 = vunpack.c.h.b16 %v995
      %v1145 = vunpack.c.l.b16 %v996
      %v1146 = vunpack.c.h.b16 %v996
      %v1147 = vunpack.c.l.b16 %v997
      %v1148 = vunpack.c.h.b16 %v997
      %v1149 = vunpack.c.l.b16 %v998
      %v1150 = vunpack.c.h.b16 %v998
      %v1151 = vunpack.c.l.b16 %v999
      %v1152 = vunpack.c.h.b16 %v999
      %v1153 = vunpack.c.l.b16 %v1000
      %v1154 = vunpack.c.h.b16 %v1000
      %v1155 = vunpack.c.l.b16 %v1001
      %v1156 = vunpack.c.h.b16 %v1001
      %v1157 = vunpack.c.l.b16 %v1002
      %v1158 = vunpack.c.h.b16 %v1002
      %v1159 = vunpack.c.l.b16 %v1003
      %v1160 = vunpack.c.h.b16 %v1003
      %v1161 = vunpack.c.l.b16 %v1004
      %v1162 = vunpack.c.h.b16 %v1004
      %v1163 = vunpack.c.l.b16 %v1005
      %v1164 = vunpack.c.h.b16 %v1005
      %v1165 = vunpack.c.l.b16 %v1006
      %v1166 = vunpack.c.h.b16 %v1006
      %v1167 = vunpack.c.l.b16 %v1007
      %v1168 = vunpack.c.h.b16 %v1007
      %v1169 = vunpack.c.l.b16 %v1008
      %v1170 = vunpack.c.h.b16 %v1008
      %v1171 = vunpack.c.l.b16 %v1009
      %v1172 = vunpack.c.h.b16 %v1009
      %v1173 = vunpack.c.l.b16 %v1010
      %v1174 = vunpack.c.h.b16 %v1010
      %v1175 = vunpack.c.l.b16 %v1011
      %v1176 = vunpack.c.h.b16 %v1011
      %v1177 = vunpack.c.l.b16 %v1012
      %v1178 = vunpack.c.h.b16 %v1012
      %v1179 = vunpack.c.l.b16 %v1013
      %v1180 = vunpack.c.h.b16 %v1013
      %v1181 = vunpack.c.l.b16 %v1014
      %v1182 = vunpack.c.h.b16 %v1014
      %v1183 = vunpack.c.l.b16 %v1015
      %v1184 = vunpack.c.h.b16 %v1015
      %v1185 = vunpack.c.l.b16 %v1016
      %v1186 = vunpack.c.h.b16 %v1016
      %v1187 = vpack.c.b16 %v1125, %v1123
      %v1188 = vpack.c.b16 %v1126, %v1124
      %v1189 = vpack.c.b16 %v1129, %v1127
      %v1190 = vpack.c.b16 %v1130, %v1128
      %v1191 = vpack.c.b16 %v1133, %v1131
      %v1192 = vpack.c.b16 %v1134, %v1132
      %v1193 = vpack.c.b16 %v1137, %v1135
      %v1194 = vpack.c.b16 %v1138, %v1136
      %v1195 = vpack.c.b16 %v1141, %v1139
      %v1196 = vpack.c.b16 %v1142, %v1140
      %v1197 = vpack.c.b16 %v1145, %v1143
      %v1198 = vpack.c.b16 %v1146, %v1144
      %v1199 = vpack.c.b16 %v1149, %v1147
      %v1200 = vpack.c.b16 %v1150, %v1148
      %v1201 = vpack.c.b16 %v1153, %v1151
      %v1202 = vpack.c.b16 %v1154, %v1152
      %v1203 = vpack.c.b16 %v1157, %v1155
      %v1204 = vpack.c.b16 %v1158, %v1156
      %v1205 = vpack.c.b16 %v1161, %v1159
      %v1206 = vpack.c.b16 %v1162, %v1160
      %v1207 = vpack.c.b16 %v1165, %v1163
      %v1208 = vpack.c.b16 %v1166, %v1164
      %v1209 = vpack.c.b16 %v1169, %v1167
      %v1210 = vpack.c.b16 %v1170, %v1168
      %v1211 = vpack.c.b16 %v1173, %v1171
      %v1212 = vpack.c.b16 %v1174, %v1172
      %v1213 = vpack.c.b16 %v1177, %v1175
      %v1214 = vpack.c.b16 %v1178, %v1176
      %v1215 = vpack.c.b16 %v1181, %v1179
      %v1216 = vpack.c.b16 %v1182, %v1180
      %v1217 = vpack.c.b16 %v1185, %v1183
      %v1218 = vpack.c.b16 %v1186, %v1184
      %1251 = vmatprep.subr.bf16.mxu0 %v1202
      %1252 = vmatpush1.bf16.msra.mxu0 %v1201
      %1253 = vmatprep.subr.bf16.mxu0 %v1200
      %1254 = vmatpush1.bf16.msra.mxu0 %v1199
      %1255 = vmatprep.subr.bf16.mxu0 %v1198
      %1256 = vmatpush1.bf16.msra.mxu0 %v1197
      %1257 = vmatprep.subr.bf16.mxu0 %v1196
      %1258 = vmatpush1.bf16.msra.mxu0 %v1195
      %1259 = vmatprep.subr.bf16.mxu0 %v1194
      %1260 = vmatpush1.bf16.msra.mxu0 %v1193
      %1261 = vmatprep.subr.bf16.mxu0 %v1192
      %1262 = vmatpush1.bf16.msra.mxu0 %v1191
      %1263 = vmatprep.subr.bf16.mxu0 %v1190
      %1264 = vmatpush1.bf16.msra.mxu0 %v1189
      %1265 = vmatprep.subr.bf16.mxu0 %v1188
      %1266 = vmatpush1.bf16.msra.mxu0 %v1187
      %1267 = vmatprep.subr.bf16.mxu0 %v1218
      %1268 = vmatpush2.bf16.msra.mxu0 %v1217
      %1269 = vmatprep.subr.bf16.mxu0 %v1216
      %1270 = vmatpush2.bf16.msra.mxu0 %v1215
      %1271 = vmatprep.subr.bf16.mxu0 %v1214
      %1272 = vmatpush2.bf16.msra.mxu0 %v1213
      %1273 = vmatprep.subr.bf16.mxu0 %v1212
      %1274 = vmatpush2.bf16.msra.mxu0 %v1211
      %1275 = vmatprep.subr.bf16.mxu0 %v1210
      %1276 = vmatpush2.bf16.msra.mxu0 %v1209
      %1277 = vmatprep.subr.bf16.mxu0 %v1208
      %1278 = vmatpush2.bf16.msra.mxu0 %v1207
      %1279 = vmatprep.subr.bf16.mxu0 %v1206
      %1280 = vmatpush2.bf16.msra.mxu0 %v1205
      %1281 = vmatprep.subr.bf16.mxu0 %v1204
      %1282 = vmatpush2.bf16.msra.mxu0 %v1203
      %1283 = vmatprep.mubr.bf16.mxu0 %v1018
      %1284 = vmatmul.mubr.bf16.gmra.mxu0 %v1017
      %v1285 = vpop.f32.mrf.mxu0
      %v1286 = vadd.f32 %v1083, %v1285
      %v1287 = vpop.f32.mrf.mxu0
      %v1288 = vadd.f32 %v1085, %v1287
      %v1289 = vpop.f32.mrf.mxu0
      %v1290 = vadd.f32 %v1087, %v1289
      %v1291 = vpop.f32.mrf.mxu0
      %v1292 = vadd.f32 %v1089, %v1291
      %1293 = vdwg.mxu0
      %v1294 = vld [vmem:[%s8] sm:$0xff]
      %v1295 = vld [vmem:[%s8 + $0x8] sm:$0xff]
      %v1296 = vld [vmem:[%s8 + $0x10] sm:$0xff]
      %v1297 = vld [vmem:[%s8 + $0x18] sm:$0xff]
      %v1298 = vld [vmem:[%s8 + $0x20] sm:$0xff]
      %v1299 = vld [vmem:[%s8 + $0x28] sm:$0xff]
      %v1300 = vld [vmem:[%s8 + $0x30] sm:$0xff]
      %v1301 = vld [vmem:[%s8 + $0x38] sm:$0xff]
      %v1302 = vld [vmem:[%s8 + $0x40] sm:$0xff]
      %v1303 = vld [vmem:[%s8 + $0x48] sm:$0xff]
      %v1304 = vld [vmem:[%s8 + $0x50] sm:$0xff]
      %v1305 = vld [vmem:[%s8 + $0x58] sm:$0xff]
      %v1306 = vld [vmem:[%s8 + $0x60] sm:$0xff]
      %v1307 = vld [vmem:[%s8 + $0x68] sm:$0xff]
      %v1308 = vld [vmem:[%s8 + $0x70] sm:$0xff]
      %v1309 = vld [vmem:[%s8 + $0x78] sm:$0xff]
      %v1310 = vld [vmem:[%s8 + $0x80] sm:$0xff]
      %v1311 = vld [vmem:[%s8 + $0x88] sm:$0xff]
      %v1312 = vld [vmem:[%s8 + $0x90] sm:$0xff]
      %v1313 = vld [vmem:[%s8 + $0x98] sm:$0xff]
      %v1314 = vld [vmem:[%s8 + $0xa0] sm:$0xff]
      %v1315 = vld [vmem:[%s8 + $0xa8] sm:$0xff]
      %v1316 = vld [vmem:[%s8 + $0xb0] sm:$0xff]
      %v1317 = vld [vmem:[%s8 + $0xb8] sm:$0xff]
      %v1318 = vld [vmem:[%s8 + $0xc0] sm:$0xff]
      %v1319 = vld [vmem:[%s8 + $0xc8] sm:$0xff]
      %v1320 = vld [vmem:[%s8 + $0xd0] sm:$0xff]
      %v1321 = vld [vmem:[%s8 + $0xd8] sm:$0xff]
      %v1322 = vld [vmem:[%s8 + $0xe0] sm:$0xff]
      %v1323 = vld [vmem:[%s8 + $0xe8] sm:$0xff]
      %v1324 = vld [vmem:[%s8 + $0xf0] sm:$0xff]
      %v1325 = vld [vmem:[%s8 + $0xf8] sm:$0xff]
      %v1326 = vpack.c.bf16 %v749, %v746
      %v1327 = vpack.c.bf16 %v750, %v747
      %v1360 = vunpack.c.l.b16 %v1294
      %v1361 = vunpack.c.h.b16 %v1294
      %v1362 = vunpack.c.l.b16 %v1295
      %v1363 = vunpack.c.h.b16 %v1295
      %v1364 = vunpack.c.l.b16 %v1296
      %v1365 = vunpack.c.h.b16 %v1296
      %v1366 = vunpack.c.l.b16 %v1297
      %v1367 = vunpack.c.h.b16 %v1297
      %v1368 = vunpack.c.l.b16 %v1298
      %v1369 = vunpack.c.h.b16 %v1298
      %v1370 = vunpack.c.l.b16 %v1299
      %v1371 = vunpack.c.h.b16 %v1299
      %v1372 = vunpack.c.l.b16 %v1300
      %v1373 = vunpack.c.h.b16 %v1300
      %v1374 = vunpack.c.l.b16 %v1301
      %v1375 = vunpack.c.h.b16 %v1301
      %v1376 = vunpack.c.l.b16 %v1302
      %v1377 = vunpack.c.h.b16 %v1302
      %v1378 = vunpack.c.l.b16 %v1303
      %v1379 = vunpack.c.h.b16 %v1303
      %v1380 = vunpack.c.l.b16 %v1304
      %v1381 = vunpack.c.h.b16 %v1304
      %v1382 = vunpack.c.l.b16 %v1305
      %v1383 = vunpack.c.h.b16 %v1305
      %v1384 = vunpack.c.l.b16 %v1306
      %v1385 = vunpack.c.h.b16 %v1306
      %v1386 = vunpack.c.l.b16 %v1307
      %v1387 = vunpack.c.h.b16 %v1307
      %v1388 = vunpack.c.l.b16 %v1308
      %v1389 = vunpack.c.h.b16 %v1308
      %v1390 = vunpack.c.l.b16 %v1309
      %v1391 = vunpack.c.h.b16 %v1309
      %v1392 = vunpack.c.l.b16 %v1310
      %v1393 = vunpack.c.h.b16 %v1310
      %v1394 = vunpack.c.l.b16 %v1311
      %v1395 = vunpack.c.h.b16 %v1311
      %v1396 = vunpack.c.l.b16 %v1312
      %v1397 = vunpack.c.h.b16 %v1312
      %v1398 = vunpack.c.l.b16 %v1313
      %v1399 = vunpack.c.h.b16 %v1313
      %v1400 = vunpack.c.l.b16 %v1314
      %v1401 = vunpack.c.h.b16 %v1314
      %v1402 = vunpack.c.l.b16 %v1315
      %v1403 = vunpack.c.h.b16 %v1315
      %v1404 = vunpack.c.l.b16 %v1316
      %v1405 = vunpack.c.h.b16 %v1316
      %v1406 = vunpack.c.l.b16 %v1317
      %v1407 = vunpack.c.h.b16 %v1317
      %v1408 = vunpack.c.l.b16 %v1318
      %v1409 = vunpack.c.h.b16 %v1318
      %v1410 = vunpack.c.l.b16 %v1319
      %v1411 = vunpack.c.h.b16 %v1319
      %v1412 = vunpack.c.l.b16 %v1320
      %v1413 = vunpack.c.h.b16 %v1320
      %v1414 = vunpack.c.l.b16 %v1321
      %v1415 = vunpack.c.h.b16 %v1321
      %v1416 = vunpack.c.l.b16 %v1322
      %v1417 = vunpack.c.h.b16 %v1322
      %v1418 = vunpack.c.l.b16 %v1323
      %v1419 = vunpack.c.h.b16 %v1323
      %v1420 = vunpack.c.l.b16 %v1324
      %v1421 = vunpack.c.h.b16 %v1324
      %v1422 = vunpack.c.l.b16 %v1325
      %v1423 = vunpack.c.h.b16 %v1325
      %v1424 = vpack.c.b16 %v1362, %v1360
      %v1425 = vpack.c.b16 %v1363, %v1361
      %v1426 = vpack.c.b16 %v1366, %v1364
      %v1427 = vpack.c.b16 %v1367, %v1365
      %v1428 = vpack.c.b16 %v1370, %v1368
      %v1429 = vpack.c.b16 %v1371, %v1369
      %v1430 = vpack.c.b16 %v1374, %v1372
      %v1431 = vpack.c.b16 %v1375, %v1373
      %v1432 = vpack.c.b16 %v1378, %v1376
      %v1433 = vpack.c.b16 %v1379, %v1377
      %v1434 = vpack.c.b16 %v1382, %v1380
      %v1435 = vpack.c.b16 %v1383, %v1381
      %v1436 = vpack.c.b16 %v1386, %v1384
      %v1437 = vpack.c.b16 %v1387, %v1385
      %v1438 = vpack.c.b16 %v1390, %v1388
      %v1439 = vpack.c.b16 %v1391, %v1389
      %v1440 = vpack.c.b16 %v1394, %v1392
      %v1441 = vpack.c.b16 %v1395, %v1393
      %v1442 = vpack.c.b16 %v1398, %v1396
      %v1443 = vpack.c.b16 %v1399, %v1397
      %v1444 = vpack.c.b16 %v1402, %v1400
      %v1445 = vpack.c.b16 %v1403, %v1401
      %v1446 = vpack.c.b16 %v1406, %v1404
      %v1447 = vpack.c.b16 %v1407, %v1405
      %v1448 = vpack.c.b16 %v1410, %v1408
      %v1449 = vpack.c.b16 %v1411, %v1409
      %v1450 = vpack.c.b16 %v1414, %v1412
      %v1451 = vpack.c.b16 %v1415, %v1413
      %v1452 = vpack.c.b16 %v1418, %v1416
      %v1453 = vpack.c.b16 %v1419, %v1417
      %v1454 = vpack.c.b16 %v1422, %v1420
      %v1455 = vpack.c.b16 %v1423, %v1421
      %1488 = vmatprep.subr.bf16.mxu0 %v1439
      %1489 = vmatpush1.bf16.msra.mxu0 %v1438
      %1490 = vmatprep.subr.bf16.mxu0 %v1437
      %1491 = vmatpush1.bf16.msra.mxu0 %v1436
      %1492 = vmatprep.subr.bf16.mxu0 %v1435
      %1493 = vmatpush1.bf16.msra.mxu0 %v1434
      %1494 = vmatprep.subr.bf16.mxu0 %v1433
      %1495 = vmatpush1.bf16.msra.mxu0 %v1432
      %1496 = vmatprep.subr.bf16.mxu0 %v1431
      %1497 = vmatpush1.bf16.msra.mxu0 %v1430
      %1498 = vmatprep.subr.bf16.mxu0 %v1429
      %1499 = vmatpush1.bf16.msra.mxu0 %v1428
      %1500 = vmatprep.subr.bf16.mxu0 %v1427
      %1501 = vmatpush1.bf16.msra.mxu0 %v1426
      %1502 = vmatprep.subr.bf16.mxu0 %v1425
      %1503 = vmatpush1.bf16.msra.mxu0 %v1424
      %1504 = vmatprep.subr.bf16.mxu0 %v1455
      %1505 = vmatpush2.bf16.msra.mxu0 %v1454
      %1506 = vmatprep.subr.bf16.mxu0 %v1453
      %1507 = vmatpush2.bf16.msra.mxu0 %v1452
      %1508 = vmatprep.subr.bf16.mxu0 %v1451
      %1509 = vmatpush2.bf16.msra.mxu0 %v1450
      %1510 = vmatprep.subr.bf16.mxu0 %v1449
      %1511 = vmatpush2.bf16.msra.mxu0 %v1448
      %1512 = vmatprep.subr.bf16.mxu0 %v1447
      %1513 = vmatpush2.bf16.msra.mxu0 %v1446
      %1514 = vmatprep.subr.bf16.mxu0 %v1445
      %1515 = vmatpush2.bf16.msra.mxu0 %v1444
      %1516 = vmatprep.subr.bf16.mxu0 %v1443
      %1517 = vmatpush2.bf16.msra.mxu0 %v1442
      %1518 = vmatprep.subr.bf16.mxu0 %v1441
      %1519 = vmatpush2.bf16.msra.mxu0 %v1440
      %1520 = vmatprep.mubr.bf16.mxu0 %v1327
      %1521 = vmatmul.mubr.bf16.gmra.mxu0 %v1326
      %v1522 = vpop.f32.mrf.mxu0
      %v1523 = vadd.f32 0.0, %v1522
      %v1524 = vpop.f32.mrf.mxu0
      %v1525 = vadd.f32 0.0, %v1524
      %v1526 = vpop.f32.mrf.mxu0
      %v1527 = vadd.f32 0.0, %v1526
      %v1528 = vpop.f32.mrf.mxu0
      %v1529 = vadd.f32 0.0, %v1528
      %1530 = vdwg.mxu0
      %v1531 = vadd.f32 %v1286, %v1523
      %v1532 = vadd.f32 %v1288, %v1525
      %v1533 = vadd.f32 %v1290, %v1527
      %v1534 = vadd.f32 %v1292, %v1529
      %v1535 = vmul.f32 %v979, %v979
      %v1536 = vmul.f32 %v980, %v980
      %v1537 = vmul.f32 %v981, %v981
      %v1538 = vmul.f32 %v982, %v982
      %v1539 = vadd.f32 %v1535, %v1537
      %v1540 = vadd.f32 %v1536, %v1538
      %v1541 = vmul.f32 %v983, %v983
      %v1542 = vmul.f32 %v984, %v984
      %v1543 = vadd.f32 %v1539, %v1541
      %v1544 = vadd.f32 %v1540, %v1542
      %v1545 = vmax.f32 %v1543, 1e-08
      %v1546 = vmax.f32 %v1544, 1e-08
      %v1547 = vrsqrt.pop %v1545
      %v1548 = vmul.f32 %v1545, %v1547
      %vm1549 = vcmp.eq.f32.partialorder %v1545, inf
      %v1550 = vsel %vm1549, %v1545, %v1548
      %vm1551 = vcmp.eq.f32.partialorder %v1545, 0.0
      %v1552 = vand.u32 %v1545, 2147483648
      %v1553 = vsel %vm1551, %v1552, %v1550
      %v1554 = vrsqrt.pop %v1546
      %v1555 = vmul.f32 %v1546, %v1554
      %vm1556 = vcmp.eq.f32.partialorder %v1546, inf
      %v1557 = vsel %vm1556, %v1546, %v1555
      %vm1558 = vcmp.eq.f32.partialorder %v1546, 0.0
      %v1559 = vand.u32 %v1546, 2147483648
      %v1560 = vsel %vm1558, %v1559, %v1557
      %v1561 = vld [vmem:[%s9] sm:$0xff]
      %v1562 = vpack.c.bf16 %v1560, %v1553
      %v1564 = vunpack.c.l.b16 %v1561
      %v1565 = vunpack.c.h.b16 %v1561
      %v1566 = vpack.c.b16 %v1564, %v1564
      %v1567 = vpack.c.b16 %v1565, %v1565
      %vm1568 = vcmask 56320
      %v1570 = vsel %vm1568, %v1562, 0
      %vm1572 = vcmask 1042432
      %vm1573 = vcmask 1043456
      %v1574 = vsel %vm1572, 4294967295, 65535
      %v1575 = vsel %vm1573, %v1574, 0
      %v1577 = vand.u32 %v1566, %v1575
      %v1580 = vand.u32 %v1567, %v1575
      %1582 = vmatprep.subr.bf16.mxu0 0
      %1583 = vmatpush1.bf16.msra.mxu0 0
      %1584 = vmatprep.subr.bf16.mxu0 0
      %1585 = vmatpush1.bf16.msra.mxu0 0
      %1586 = vmatprep.subr.bf16.mxu0 0
      %1587 = vmatpush1.bf16.msra.mxu0 0
      %1588 = vmatprep.subr.bf16.mxu0 0
      %1589 = vmatpush1.bf16.msra.mxu0 0
      %1590 = vmatprep.subr.bf16.mxu0 0
      %1591 = vmatpush1.bf16.msra.mxu0 0
      %1592 = vmatprep.subr.bf16.mxu0 0
      %1593 = vmatpush1.bf16.msra.mxu0 0
      %1594 = vmatprep.subr.bf16.mxu0 0
      %1595 = vmatpush1.bf16.msra.mxu0 0
      %1596 = vmatprep.subr.bf16.mxu0 %v1580
      %1597 = vmatpush1.bf16.msra.mxu0 %v1577
      %1598 = vmatprep.subr.bf16.mxu0 0
      %1599 = vmatpush2.bf16.msra.mxu0 0
      %1600 = vmatprep.subr.bf16.mxu0 0
      %1601 = vmatpush2.bf16.msra.mxu0 0
      %1602 = vmatprep.subr.bf16.mxu0 0
      %1603 = vmatpush2.bf16.msra.mxu0 0
      %1604 = vmatprep.subr.bf16.mxu0 0
      %1605 = vmatpush2.bf16.msra.mxu0 0
      %1606 = vmatprep.subr.bf16.mxu0 0
      %1607 = vmatpush2.bf16.msra.mxu0 0
      %1608 = vmatprep.subr.bf16.mxu0 0
      %1609 = vmatpush2.bf16.msra.mxu0 0
      %1610 = vmatprep.subr.bf16.mxu0 0
      %1611 = vmatpush2.bf16.msra.mxu0 0
      %1612 = vmatprep.subr.bf16.mxu0 0
      %1613 = vmatpush2.bf16.msra.mxu0 0
      %1614 = vmatprep.mubr.bf16.mxu0 0
      %1615 = vmatmul.mubr.bf16.gmra.mxu0 %v1570
      %v1616 = vpop.f32.mrf.mxu0
      %v1617 = vadd.f32 0.0, %v1616
      %v1618 = vpop.f32.mrf.mxu0
      %v1619 = vadd.f32 0.0, %v1618
      %v1620 = vpop.f32.mrf.mxu0
      %v1621 = vadd.f32 0.0, %v1620
      %v1622 = vpop.f32.mrf.mxu0
      %v1623 = vadd.f32 0.0, %v1622
      %1624 = vdwg.mxu0
      %v1625 = vadd.f32 %v1531, %v1617
      %v1626 = vadd.f32 %v1532, %v1619
      %v1627 = vadd.f32 %v1533, %v1621
      %v1628 = vadd.f32 %v1534, %v1623
      %v1629 = vld [vmem:[%s10] sm:$0x3]
      %v1631 = vlaneseq
      %v1632 = vshrl.u32 %v1631, 7
      %v1633 = vsub.s32 0, %v1632
      %v1634 = vrot.slane %v1629, %v1633
      %v1635 = vlaneseq
      %v1636 = vshrl.u32 %v1635, 7
      %v1637 = vsub.s32 1, %v1636
      %v1638 = vrot.slane %v1629, %v1637
      %v1641 = vadd.f32 %v1625, %v1634
      %v1642 = vadd.f32 %v1626, %v1638
      %v1643 = vadd.f32 %v1627, %v1634
      %v1644 = vadd.f32 %v1628, %v1638
      %v1645 = vld [vmem:[%s11] sm:$0xf]
      %v1646 = vpack.c.bf16 %v980, %v979
      %v1647 = vpack.c.bf16 %v982, %v981
      %v1648 = vpack.c.bf16 %v984, %v983
      %v1650 = vsel %vm1568, %v1646, 0
      %v1653 = vsel %vm1568, %v1647, 0
      %v1656 = vsel %vm1568, %v1648, 0
      %v1659 = vand.u32 %v1645, %v1575
      %1661 = vmatprep.subr.bf16.mxu0 0
      %1662 = vmatpush1.bf16.msra.mxu0 0
      %1663 = vmatprep.subr.bf16.mxu0 0
      %1664 = vmatpush1.bf16.msra.mxu0 0
      %1665 = vmatprep.subr.bf16.mxu0 0
      %1666 = vmatpush1.bf16.msra.mxu0 0
      %1667 = vmatprep.subr.bf16.mxu0 0
      %1668 = vmatpush1.bf16.msra.mxu0 0
      %1669 = vmatprep.subr.bf16.mxu0 0
      %1670 = vmatpush1.bf16.msra.mxu0 0
      %1671 = vmatprep.subr.bf16.mxu0 0
      %1672 = vmatpush1.bf16.msra.mxu0 0
      %1673 = vmatprep.subr.bf16.mxu0 0
      %1674 = vmatpush1.bf16.msra.mxu0 0
      %1675 = vmatprep.subr.bf16.mxu0 0
      %1676 = vmatpush1.bf16.msra.mxu0 %v1659
      %1677 = vmatprep.subr.bf16.mxu0 0
      %1678 = vmatpush2.bf16.msra.mxu0 0
      %1679 = vmatprep.subr.bf16.mxu0 0
      %1680 = vmatpush2.bf16.msra.mxu0 0
      %1681 = vmatprep.subr.bf16.mxu0 0
      %1682 = vmatpush2.bf16.msra.mxu0 0
      %1683 = vmatprep.subr.bf16.mxu0 0
      %1684 = vmatpush2.bf16.msra.mxu0 0
      %1685 = vmatprep.subr.bf16.mxu0 0
      %1686 = vmatpush2.bf16.msra.mxu0 0
      %1687 = vmatprep.subr.bf16.mxu0 0
      %1688 = vmatpush2.bf16.msra.mxu0 0
      %1689 = vmatprep.subr.bf16.mxu0 0
      %1690 = vmatpush2.bf16.msra.mxu0 0
      %1691 = vmatprep.subr.bf16.mxu0 0
      %1692 = vmatpush2.bf16.msra.mxu0 0
      %1693 = vmatprep.mubr.bf16.mxu0 0
      %1694 = vmatmul.mubr.bf16.gmra.mxu0 %v1650
      %v1695 = vpop.f32.mrf.mxu0
      %v1696 = vadd.f32 0.0, %v1695
      %v1697 = vpop.f32.mrf.mxu0
      %v1698 = vpop.f32.mrf.mxu0
      %v1699 = vadd.f32 0.0, %v1698
      %v1700 = vpop.f32.mrf.mxu0
      %1701 = vmatprep.mubr.bf16.mxu0 0
      %1702 = vmatmul.mubr.bf16.gmra.mxu0 %v1653
      %v1703 = vpop.f32.mrf.mxu0
      %v1704 = vadd.f32 0.0, %v1703
      %v1705 = vpop.f32.mrf.mxu0
      %v1706 = vpop.f32.mrf.mxu0
      %v1707 = vadd.f32 0.0, %v1706
      %v1708 = vpop.f32.mrf.mxu0
      %1709 = vmatprep.mubr.bf16.mxu0 0
      %1710 = vmatmul.mubr.bf16.gmra.mxu0 %v1656
      %v1711 = vpop.f32.mrf.mxu0
      %v1712 = vadd.f32 0.0, %v1711
      %v1713 = vpop.f32.mrf.mxu0
      %v1714 = vpop.f32.mrf.mxu0
      %v1715 = vadd.f32 0.0, %v1714
      %v1716 = vpop.f32.mrf.mxu0
      %1717 = vdwg.mxu0
      %v1718 = vmul.f32 %v1696, %v1696
      %v1719 = vmul.f32 %v1699, %v1699
      %v1720 = vmul.f32 %v1704, %v1704
      %v1721 = vmul.f32 %v1707, %v1707
      %v1722 = vadd.f32 %v1718, %v1720
      %v1723 = vadd.f32 %v1719, %v1721
      %v1724 = vmul.f32 %v1712, %v1712
      %v1725 = vmul.f32 %v1715, %v1715
      %v1726 = vadd.f32 %v1722, %v1724
      %v1727 = vadd.f32 %v1723, %v1725
      %v1728 = vmax.f32 %v1726, 1e-08
      %v1729 = vmax.f32 %v1727, 1e-08
      %v1730 = vrsqrt.pop %v1728
      %v1731 = vmul.f32 %v1728, %v1730
      %vm1732 = vcmp.eq.f32.partialorder %v1728, inf
      %v1733 = vsel %vm1732, %v1728, %v1731
      %vm1734 = vcmp.eq.f32.partialorder %v1728, 0.0
      %v1735 = vand.u32 %v1728, 2147483648
      %v1736 = vsel %vm1734, %v1735, %v1733
      %v1737 = vrsqrt.pop %v1729
      %v1738 = vmul.f32 %v1729, %v1737
      %vm1739 = vcmp.eq.f32.partialorder %v1729, inf
      %v1740 = vsel %vm1739, %v1729, %v1738
      %vm1741 = vcmp.eq.f32.partialorder %v1729, 0.0
      %v1742 = vand.u32 %v1729, 2147483648
      %v1743 = vsel %vm1741, %v1742, %v1740
      %v1744 = vsub.f32 0.0, %v1736
      %v1745 = vsub.f32 0.0, %v1743
      %v1746 = vmul.f32 %v1744, 1.442695
      %v1747 = vpow.pop %v1746
      %v1748 = vmul.f32 %v1745, 1.442695
      %v1749 = vpow.pop %v1748
      %v1750 = vadd.f32 %v1747, 1.0
      %v1751 = vadd.f32 %v1749, 1.0
      %v1752 = vrcp.pop %v1750
      %v1753 = vrcp.pop %v1751
      %v1754 = vmul.f32 %v1696, %v1752
      %v1755 = vmul.f32 %v1699, %v1753
      %v1756 = vmul.f32 %v1704, %v1752
      %v1757 = vmul.f32 %v1707, %v1753
      %v1758 = vmul.f32 %v1712, %v1752
      %v1759 = vmul.f32 %v1715, %v1753
      %v1760 = vmax.f32 %v1641, 0.0
      %v1761 = vmax.f32 %v1642, 0.0
      %v1762 = vmax.f32 %v1643, 0.0
      %v1763 = vmax.f32 %v1644, 0.0
      %v1764 = vld [vmem:[%s12] sm:$0x3]
      %v1765 = vpack.c.bf16 %v1755, %v1754
      %v1766 = vpack.c.bf16 %v1757, %v1756
      %v1767 = vpack.c.bf16 %v1759, %v1758
      %v1769 = vsel %vm800, %v1765, 0
      %v1772 = vsel %vm800, %v1766, 0
      %v1775 = vsel %vm800, %v1767, 0
      %v1778 = vand.u32 %v1764, %v813
      %1780 = vmatprep.subr.bf16.mxu0 0
      %1781 = vmatpush1.bf16.msra.mxu0 0
      %1782 = vmatprep.subr.bf16.mxu0 0
      %1783 = vmatpush1.bf16.msra.mxu0 0
      %1784 = vmatprep.subr.bf16.mxu0 0
      %1785 = vmatpush1.bf16.msra.mxu0 0
      %1786 = vmatprep.subr.bf16.mxu0 0
      %1787 = vmatpush1.bf16.msra.mxu0 0
      %1788 = vmatprep.subr.bf16.mxu0 0
      %1789 = vmatpush1.bf16.msra.mxu0 0
      %1790 = vmatprep.subr.bf16.mxu0 0
      %1791 = vmatpush1.bf16.msra.mxu0 0
      %1792 = vmatprep.subr.bf16.mxu0 0
      %1793 = vmatpush1.bf16.msra.mxu0 0
      %1794 = vmatprep.subr.bf16.mxu0 0
      %1795 = vmatpush1.bf16.msra.mxu0 %v1778
      %1796 = vmatprep.subr.bf16.mxu0 0
      %1797 = vmatpush2.bf16.msra.mxu0 0
      %1798 = vmatprep.subr.bf16.mxu0 0
      %1799 = vmatpush2.bf16.msra.mxu0 0
      %1800 = vmatprep.subr.bf16.mxu0 0
      %1801 = vmatpush2.bf16.msra.mxu0 0
      %1802 = vmatprep.subr.bf16.mxu0 0
      %1803 = vmatpush2.bf16.msra.mxu0 0
      %1804 = vmatprep.subr.bf16.mxu0 0
      %1805 = vmatpush2.bf16.msra.mxu0 0
      %1806 = vmatprep.subr.bf16.mxu0 0
      %1807 = vmatpush2.bf16.msra.mxu0 0
      %1808 = vmatprep.subr.bf16.mxu0 0
      %1809 = vmatpush2.bf16.msra.mxu0 0
      %1810 = vmatprep.subr.bf16.mxu0 0
      %1811 = vmatpush2.bf16.msra.mxu0 0
      %1812 = vmatprep.mubr.bf16.mxu0 0
      %1813 = vmatmul.mubr.bf16.gmra.mxu0 %v1769
      %v1814 = vpop.f32.mrf.mxu0
      %v1815 = vadd.f32 0.0, %v1814
      %v1816 = vpop.f32.mrf.mxu0
      %v1817 = vpop.f32.mrf.mxu0
      %v1818 = vadd.f32 0.0, %v1817
      %v1819 = vpop.f32.mrf.mxu0
      %1820 = vmatprep.mubr.bf16.mxu0 0
      %1821 = vmatmul.mubr.bf16.gmra.mxu0 %v1772
      %v1822 = vpop.f32.mrf.mxu0
      %v1823 = vadd.f32 0.0, %v1822
      %v1824 = vpop.f32.mrf.mxu0
      %v1825 = vpop.f32.mrf.mxu0
      %v1826 = vadd.f32 0.0, %v1825
      %v1827 = vpop.f32.mrf.mxu0
      %1828 = vmatprep.mubr.bf16.mxu0 0
      %1829 = vmatmul.mubr.bf16.gmra.mxu0 %v1775
      %v1830 = vpop.f32.mrf.mxu0
      %v1831 = vadd.f32 0.0, %v1830
      %v1832 = vpop.f32.mrf.mxu0
      %v1833 = vpop.f32.mrf.mxu0
      %v1834 = vadd.f32 0.0, %v1833
      %v1835 = vpop.f32.mrf.mxu0
      %1836 = vdwg.mxu0
      %v1837 = vld [vmem:[%s13] sm:$0xff]
      %v1838 = vld [vmem:[%s13 + $0x8] sm:$0xff]
      %v1839 = vld [vmem:[%s13 + $0x10] sm:$0xff]
      %v1840 = vld [vmem:[%s13 + $0x18] sm:$0xff]
      %v1841 = vld [vmem:[%s13 + $0x20] sm:$0xff]
      %v1842 = vld [vmem:[%s13 + $0x28] sm:$0xff]
      %v1843 = vld [vmem:[%s13 + $0x30] sm:$0xff]
      %v1844 = vld [vmem:[%s13 + $0x38] sm:$0xff]
      %v1845 = vld [vmem:[%s13 + $0x40] sm:$0xff]
      %v1846 = vld [vmem:[%s13 + $0x48] sm:$0xff]
      %v1847 = vld [vmem:[%s13 + $0x50] sm:$0xff]
      %v1848 = vld [vmem:[%s13 + $0x58] sm:$0xff]
      %v1849 = vld [vmem:[%s13 + $0x60] sm:$0xff]
      %v1850 = vld [vmem:[%s13 + $0x68] sm:$0xff]
      %v1851 = vld [vmem:[%s13 + $0x70] sm:$0xff]
      %v1852 = vld [vmem:[%s13 + $0x78] sm:$0xff]
      %v1853 = vld [vmem:[%s13 + $0x80] sm:$0xff]
      %v1854 = vld [vmem:[%s13 + $0x88] sm:$0xff]
      %v1855 = vld [vmem:[%s13 + $0x90] sm:$0xff]
      %v1856 = vld [vmem:[%s13 + $0x98] sm:$0xff]
      %v1857 = vld [vmem:[%s13 + $0xa0] sm:$0xff]
      %v1858 = vld [vmem:[%s13 + $0xa8] sm:$0xff]
      %v1859 = vld [vmem:[%s13 + $0xb0] sm:$0xff]
      %v1860 = vld [vmem:[%s13 + $0xb8] sm:$0xff]
      %v1861 = vld [vmem:[%s13 + $0xc0] sm:$0xff]
      %v1862 = vld [vmem:[%s13 + $0xc8] sm:$0xff]
      %v1863 = vld [vmem:[%s13 + $0xd0] sm:$0xff]
      %v1864 = vld [vmem:[%s13 + $0xd8] sm:$0xff]
      %v1865 = vld [vmem:[%s13 + $0xe0] sm:$0xff]
      %v1866 = vld [vmem:[%s13 + $0xe8] sm:$0xff]
      %v1867 = vld [vmem:[%s13 + $0xf0] sm:$0xff]
      %v1868 = vld [vmem:[%s13 + $0xf8] sm:$0xff]
      %v1869 = vpack.c.bf16 %v1762, %v1760
      %v1870 = vpack.c.bf16 %v1763, %v1761
      %v1871 = vmul.f32 %v1815, %v1815
      %v1872 = vmul.f32 %v1818, %v1818
      %v1873 = vmul.f32 %v1823, %v1823
      %v1874 = vmul.f32 %v1826, %v1826
      %v1875 = vadd.f32 %v1871, %v1873
      %v1876 = vadd.f32 %v1872, %v1874
      %v1877 = vmul.f32 %v1831, %v1831
      %v1878 = vmul.f32 %v1834, %v1834
      %v1879 = vadd.f32 %v1875, %v1877
      %v1880 = vadd.f32 %v1876, %v1878
      %v1881 = vmax.f32 %v1879, 1e-08
      %v1882 = vmax.f32 %v1880, 1e-08
      %v1883 = vrsqrt.pop %v1881
      %v1884 = vmul.f32 %v1881, %v1883
      %vm1885 = vcmp.eq.f32.partialorder %v1881, inf
      %v1886 = vsel %vm1885, %v1881, %v1884
      %vm1887 = vcmp.eq.f32.partialorder %v1881, 0.0
      %v1888 = vand.u32 %v1881, 2147483648
      %v1889 = vsel %vm1887, %v1888, %v1886
      %v1890 = vrsqrt.pop %v1882
      %v1891 = vmul.f32 %v1882, %v1890
      %vm1892 = vcmp.eq.f32.partialorder %v1882, inf
      %v1893 = vsel %vm1892, %v1882, %v1891
      %vm1894 = vcmp.eq.f32.partialorder %v1882, 0.0
      %v1895 = vand.u32 %v1882, 2147483648
      %v1896 = vsel %vm1894, %v1895, %v1893
      %v1897 = vld [vmem:[%s14] sm:$0xf]
      %v1898 = vpack.c.bf16 %v1896, %v1889
      %v1901 = vunpack.c.l.s4 1983009808
      %v1902 = vunpack.c.0.s8 %v1901
      %v1903 = vlaneseq
      %v1904 = vshrl.u32 %v1903, 7
      %v1905 = vsub.s32 %v1902, %v1904
      %v1906 = vrot.slane %v1897, %v1905
      %v1907 = vcombine.high %v1906, %v1906
      %v1909 = vsel %vm800, %v1898, 0
      %v1912 = vand.u32 %v1906, %v813
      %v1915 = vand.u32 %v1907, %v813
      %1917 = vmatprep.subr.bf16.mxu0 0
      %1918 = vmatpush1.bf16.msra.mxu0 0
      %1919 = vmatprep.subr.bf16.mxu0 0
      %1920 = vmatpush1.bf16.msra.mxu0 0
      %1921 = vmatprep.subr.bf16.mxu0 0
      %1922 = vmatpush1.bf16.msra.mxu0 0
      %1923 = vmatprep.subr.bf16.mxu0 0
      %1924 = vmatpush1.bf16.msra.mxu0 0
      %1925 = vmatprep.subr.bf16.mxu0 0
      %1926 = vmatpush1.bf16.msra.mxu0 0
      %1927 = vmatprep.subr.bf16.mxu0 0
      %1928 = vmatpush1.bf16.msra.mxu0 0
      %1929 = vmatprep.subr.bf16.mxu0 0
      %1930 = vmatpush1.bf16.msra.mxu0 0
      %1931 = vmatprep.subr.bf16.mxu0 %v1915
      %1932 = vmatpush1.bf16.msra.mxu0 %v1912
      %1933 = vmatprep.subr.bf16.mxu0 0
      %1934 = vmatpush2.bf16.msra.mxu0 0
      %1935 = vmatprep.subr.bf16.mxu0 0
      %1936 = vmatpush2.bf16.msra.mxu0 0
      %1937 = vmatprep.subr.bf16.mxu0 0
      %1938 = vmatpush2.bf16.msra.mxu0 0
      %1939 = vmatprep.subr.bf16.mxu0 0
      %1940 = vmatpush2.bf16.msra.mxu0 0
      %1941 = vmatprep.subr.bf16.mxu0 0
      %1942 = vmatpush2.bf16.msra.mxu0 0
      %1943 = vmatprep.subr.bf16.mxu0 0
      %1944 = vmatpush2.bf16.msra.mxu0 0
      %1945 = vmatprep.subr.bf16.mxu0 0
      %1946 = vmatpush2.bf16.msra.mxu0 0
      %1947 = vmatprep.subr.bf16.mxu0 0
      %1948 = vmatpush2.bf16.msra.mxu0 0
      %1949 = vmatprep.mubr.bf16.mxu0 0
      %1950 = vmatmul.mubr.bf16.gmra.mxu0 %v1909
      %v1951 = vpop.f32.mrf.mxu0
      %v1952 = vadd.f32 0.0, %v1951
      %v1953 = vpop.f32.mrf.mxu0
      %v1954 = vadd.f32 0.0, %v1953
      %v1955 = vpop.f32.mrf.mxu0
      %v1956 = vadd.f32 0.0, %v1955
      %v1957 = vpop.f32.mrf.mxu0
      %v1958 = vadd.f32 0.0, %v1957
      %1959 = vdwg.mxu0
      %v1992 = vunpack.c.l.b16 %v1837
      %v1993 = vunpack.c.h.b16 %v1837
      %v1994 = vunpack.c.l.b16 %v1838
      %v1995 = vunpack.c.h.b16 %v1838
      %v1996 = vunpack.c.l.b16 %v1839
      %v1997 = vunpack.c.h.b16 %v1839
      %v1998 = vunpack.c.l.b16 %v1840
      %v1999 = vunpack.c.h.b16 %v1840
      %v2000 = vunpack.c.l.b16 %v1841
      %v2001 = vunpack.c.h.b16 %v1841
      %v2002 = vunpack.c.l.b16 %v1842
      %v2003 = vunpack.c.h.b16 %v1842
      %v2004 = vunpack.c.l.b16 %v1843
      %v2005 = vunpack.c.h.b16 %v1843
      %v2006 = vunpack.c.l.b16 %v1844
      %v2007 = vunpack.c.h.b16 %v1844
      %v2008 = vunpack.c.l.b16 %v1845
      %v2009 = vunpack.c.h.b16 %v1845
      %v2010 = vunpack.c.l.b16 %v1846
      %v2011 = vunpack.c.h.b16 %v1846
      %v2012 = vunpack.c.l.b16 %v1847
      %v2013 = vunpack.c.h.b16 %v1847
      %v2014 = vunpack.c.l.b16 %v1848
      %v2015 = vunpack.c.h.b16 %v1848
      %v2016 = vunpack.c.l.b16 %v1849
      %v2017 = vunpack.c.h.b16 %v1849
      %v2018 = vunpack.c.l.b16 %v1850
      %v2019 = vunpack.c.h.b16 %v1850
      %v2020 = vunpack.c.l.b16 %v1851
      %v2021 = vunpack.c.h.b16 %v1851
      %v2022 = vunpack.c.l.b16 %v1852
      %v2023 = vunpack.c.h.b16 %v1852
      %v2024 = vunpack.c.l.b16 %v1853
      %v2025 = vunpack.c.h.b16 %v1853
      %v2026 = vunpack.c.l.b16 %v1854
      %v2027 = vunpack.c.h.b16 %v1854
      %v2028 = vunpack.c.l.b16 %v1855
      %v2029 = vunpack.c.h.b16 %v1855
      %v2030 = vunpack.c.l.b16 %v1856
      %v2031 = vunpack.c.h.b16 %v1856
      %v2032 = vunpack.c.l.b16 %v1857
      %v2033 = vunpack.c.h.b16 %v1857
      %v2034 = vunpack.c.l.b16 %v1858
      %v2035 = vunpack.c.h.b16 %v1858
      %v2036 = vunpack.c.l.b16 %v1859
      %v2037 = vunpack.c.h.b16 %v1859
      %v2038 = vunpack.c.l.b16 %v1860
      %v2039 = vunpack.c.h.b16 %v1860
      %v2040 = vunpack.c.l.b16 %v1861
      %v2041 = vunpack.c.h.b16 %v1861
      %v2042 = vunpack.c.l.b16 %v1862
      %v2043 = vunpack.c.h.b16 %v1862
      %v2044 = vunpack.c.l.b16 %v1863
      %v2045 = vunpack.c.h.b16 %v1863
      %v2046 = vunpack.c.l.b16 %v1864
      %v2047 = vunpack.c.h.b16 %v1864
      %v2048 = vunpack.c.l.b16 %v1865
      %v2049 = vunpack.c.h.b16 %v1865
      %v2050 = vunpack.c.l.b16 %v1866
      %v2051 = vunpack.c.h.b16 %v1866
      %v2052 = vunpack.c.l.b16 %v1867
      %v2053 = vunpack.c.h.b16 %v1867
      %v2054 = vunpack.c.l.b16 %v1868
      %v2055 = vunpack.c.h.b16 %v1868
      %v2056 = vpack.c.b16 %v1994, %v1992
      %v2057 = vpack.c.b16 %v1995, %v1993
      %v2058 = vpack.c.b16 %v1998, %v1996
      %v2059 = vpack.c.b16 %v1999, %v1997
      %v2060 = vpack.c.b16 %v2002, %v2000
      %v2061 = vpack.c.b16 %v2003, %v2001
      %v2062 = vpack.c.b16 %v2006, %v2004
      %v2063 = vpack.c.b16 %v2007, %v2005
      %v2064 = vpack.c.b16 %v2010, %v2008
      %v2065 = vpack.c.b16 %v2011, %v2009
      %v2066 = vpack.c.b16 %v2014, %v2012
      %v2067 = vpack.c.b16 %v2015, %v2013
      %v2068 = vpack.c.b16 %v2018, %v2016
      %v2069 = vpack.c.b16 %v2019, %v2017
      %v2070 = vpack.c.b16 %v2022, %v2020
      %v2071 = vpack.c.b16 %v2023, %v2021
      %v2072 = vpack.c.b16 %v2026, %v2024
      %v2073 = vpack.c.b16 %v2027, %v2025
      %v2074 = vpack.c.b16 %v2030, %v2028
      %v2075 = vpack.c.b16 %v2031, %v2029
      %v2076 = vpack.c.b16 %v2034, %v2032
      %v2077 = vpack.c.b16 %v2035, %v2033
      %v2078 = vpack.c.b16 %v2038, %v2036
      %v2079 = vpack.c.b16 %v2039, %v2037
      %v2080 = vpack.c.b16 %v2042, %v2040
      %v2081 = vpack.c.b16 %v2043, %v2041
      %v2082 = vpack.c.b16 %v2046, %v2044
      %v2083 = vpack.c.b16 %v2047, %v2045
      %v2084 = vpack.c.b16 %v2050, %v2048
      %v2085 = vpack.c.b16 %v2051, %v2049
      %v2086 = vpack.c.b16 %v2054, %v2052
      %v2087 = vpack.c.b16 %v2055, %v2053
      %2120 = vmatprep.subr.bf16.mxu0 %v2071
      %2121 = vmatpush1.bf16.msra.mxu0 %v2070
      %2122 = vmatprep.subr.bf16.mxu0 %v2069
      %2123 = vmatpush1.bf16.msra.mxu0 %v2068
      %2124 = vmatprep.subr.bf16.mxu0 %v2067
      %2125 = vmatpush1.bf16.msra.mxu0 %v2066
      %2126 = vmatprep.subr.bf16.mxu0 %v2065
      %2127 = vmatpush1.bf16.msra.mxu0 %v2064
      %2128 = vmatprep.subr.bf16.mxu0 %v2063
      %2129 = vmatpush1.bf16.msra.mxu0 %v2062
      %2130 = vmatprep.subr.bf16.mxu0 %v2061
      %2131 = vmatpush1.bf16.msra.mxu0 %v2060
      %2132 = vmatprep.subr.bf16.mxu0 %v2059
      %2133 = vmatpush1.bf16.msra.mxu0 %v2058
      %2134 = vmatprep.subr.bf16.mxu0 %v2057
      %2135 = vmatpush1.bf16.msra.mxu0 %v2056
      %2136 = vmatprep.subr.bf16.mxu0 %v2087
      %2137 = vmatpush2.bf16.msra.mxu0 %v2086
      %2138 = vmatprep.subr.bf16.mxu0 %v2085
      %2139 = vmatpush2.bf16.msra.mxu0 %v2084
      %2140 = vmatprep.subr.bf16.mxu0 %v2083
      %2141 = vmatpush2.bf16.msra.mxu0 %v2082
      %2142 = vmatprep.subr.bf16.mxu0 %v2081
      %2143 = vmatpush2.bf16.msra.mxu0 %v2080
      %2144 = vmatprep.subr.bf16.mxu0 %v2079
      %2145 = vmatpush2.bf16.msra.mxu0 %v2078
      %2146 = vmatprep.subr.bf16.mxu0 %v2077
      %2147 = vmatpush2.bf16.msra.mxu0 %v2076
      %2148 = vmatprep.subr.bf16.mxu0 %v2075
      %2149 = vmatpush2.bf16.msra.mxu0 %v2074
      %2150 = vmatprep.subr.bf16.mxu0 %v2073
      %2151 = vmatpush2.bf16.msra.mxu0 %v2072
      %2152 = vmatprep.mubr.bf16.mxu0 %v1870
      %2153 = vmatmul.mubr.bf16.gmra.mxu0 %v1869
      %v2154 = vpop.f32.mrf.mxu0
      %v2155 = vadd.f32 %v1952, %v2154
      %v2156 = vpop.f32.mrf.mxu0
      %v2157 = vadd.f32 %v1954, %v2156
      %v2158 = vpop.f32.mrf.mxu0
      %v2159 = vadd.f32 %v1956, %v2158
      %v2160 = vpop.f32.mrf.mxu0
      %v2161 = vadd.f32 %v1958, %v2160
      %2162 = vdwg.mxu0
      %v2163 = vld [vmem:[%s15] sm:$0x3]
      %v2165 = vlaneseq
      %v2166 = vshrl.u32 %v2165, 7
      %v2167 = vsub.s32 0, %v2166
      %v2168 = vrot.slane %v2163, %v2167
      %v2169 = vlaneseq
      %v2170 = vshrl.u32 %v2169, 7
      %v2171 = vsub.s32 1, %v2170
      %v2172 = vrot.slane %v2163, %v2171
      %v2175 = vadd.f32 %v2155, %v2168
      %v2176 = vadd.f32 %v2157, %v2172
      %v2177 = vadd.f32 %v2159, %v2168
      %v2178 = vadd.f32 %v2161, %v2172
      %v2179 = vld [vmem:[%s16] sm:$0x3]
      %v2180 = vpack.c.bf16 %v1818, %v1815
      %v2181 = vpack.c.bf16 %v1826, %v1823
      %v2182 = vpack.c.bf16 %v1834, %v1831
      %v2184 = vsel %vm800, %v2180, 0
      %v2187 = vsel %vm800, %v2181, 0
      %v2190 = vsel %vm800, %v2182, 0
      %v2193 = vand.u32 %v2179, %v813
      %2195 = vmatprep.subr.bf16.mxu0 0
      %2196 = vmatpush1.bf16.msra.mxu0 0
      %2197 = vmatprep.subr.bf16.mxu0 0
      %2198 = vmatpush1.bf16.msra.mxu0 0
      %2199 = vmatprep.subr.bf16.mxu0 0
      %2200 = vmatpush1.bf16.msra.mxu0 0
      %2201 = vmatprep.subr.bf16.mxu0 0
      %2202 = vmatpush1.bf16.msra.mxu0 0
      %2203 = vmatprep.subr.bf16.mxu0 0
      %2204 = vmatpush1.bf16.msra.mxu0 0
      %2205 = vmatprep.subr.bf16.mxu0 0
      %2206 = vmatpush1.bf16.msra.mxu0 0
      %2207 = vmatprep.subr.bf16.mxu0 0
      %2208 = vmatpush1.bf16.msra.mxu0 0
      %2209 = vmatprep.subr.bf16.mxu0 0
      %2210 = vmatpush1.bf16.msra.mxu0 %v2193
      %2211 = vmatprep.subr.bf16.mxu0 0
      %2212 = vmatpush2.bf16.msra.mxu0 0
      %2213 = vmatprep.subr.bf16.mxu0 0
      %2214 = vmatpush2.bf16.msra.mxu0 0
      %2215 = vmatprep.subr.bf16.mxu0 0
      %2216 = vmatpush2.bf16.msra.mxu0 0
      %2217 = vmatprep.subr.bf16.mxu0 0
      %2218 = vmatpush2.bf16.msra.mxu0 0
      %2219 = vmatprep.subr.bf16.mxu0 0
      %2220 = vmatpush2.bf16.msra.mxu0 0
      %2221 = vmatprep.subr.bf16.mxu0 0
      %2222 = vmatpush2.bf16.msra.mxu0 0
      %2223 = vmatprep.subr.bf16.mxu0 0
      %2224 = vmatpush2.bf16.msra.mxu0 0
      %2225 = vmatprep.subr.bf16.mxu0 0
      %2226 = vmatpush2.bf16.msra.mxu0 0
      %2227 = vmatprep.mubr.bf16.mxu0 0
      %2228 = vmatmul.mubr.bf16.gmra.mxu0 %v2184
      %v2229 = vpop.f32.mrf.mxu0
      %v2230 = vadd.f32 0.0, %v2229
      %v2231 = vpop.f32.mrf.mxu0
      %v2232 = vpop.f32.mrf.mxu0
      %v2233 = vadd.f32 0.0, %v2232
      %v2234 = vpop.f32.mrf.mxu0
      %2235 = vmatprep.mubr.bf16.mxu0 0
      %2236 = vmatmul.mubr.bf16.gmra.mxu0 %v2187
      %v2237 = vpop.f32.mrf.mxu0
      %v2238 = vadd.f32 0.0, %v2237
      %v2239 = vpop.f32.mrf.mxu0
      %v2240 = vpop.f32.mrf.mxu0
      %v2241 = vadd.f32 0.0, %v2240
      %v2242 = vpop.f32.mrf.mxu0
      %2243 = vmatprep.mubr.bf16.mxu0 0
      %2244 = vmatmul.mubr.bf16.gmra.mxu0 %v2190
      %v2245 = vpop.f32.mrf.mxu0
      %v2246 = vadd.f32 0.0, %v2245
      %v2247 = vpop.f32.mrf.mxu0
      %v2248 = vpop.f32.mrf.mxu0
      %v2249 = vadd.f32 0.0, %v2248
      %v2250 = vpop.f32.mrf.mxu0
      %2251 = vdwg.mxu0
      %v2252 = vmul.f32 %v2230, %v2230
      %v2253 = vmul.f32 %v2233, %v2233
      %v2254 = vmul.f32 %v2238, %v2238
      %v2255 = vmul.f32 %v2241, %v2241
      %v2256 = vadd.f32 %v2252, %v2254
      %v2257 = vadd.f32 %v2253, %v2255
      %v2258 = vmul.f32 %v2246, %v2246
      %v2259 = vmul.f32 %v2249, %v2249
      %v2260 = vadd.f32 %v2256, %v2258
      %v2261 = vadd.f32 %v2257, %v2259
      %v2262 = vmax.f32 %v2260, 1e-08
      %v2263 = vmax.f32 %v2261, 1e-08
      %v2264 = vrsqrt.pop %v2262
      %v2265 = vmul.f32 %v2262, %v2264
      %vm2266 = vcmp.eq.f32.partialorder %v2262, inf
      %v2267 = vsel %vm2266, %v2262, %v2265
      %vm2268 = vcmp.eq.f32.partialorder %v2262, 0.0
      %v2269 = vand.u32 %v2262, 2147483648
      %v2270 = vsel %vm2268, %v2269, %v2267
      %v2271 = vrsqrt.pop %v2263
      %v2272 = vmul.f32 %v2263, %v2271
      %vm2273 = vcmp.eq.f32.partialorder %v2263, inf
      %v2274 = vsel %vm2273, %v2263, %v2272
      %vm2275 = vcmp.eq.f32.partialorder %v2263, 0.0
      %v2276 = vand.u32 %v2263, 2147483648
      %v2277 = vsel %vm2275, %v2276, %v2274
      %v2278 = vsub.f32 0.0, %v2270
      %v2279 = vsub.f32 0.0, %v2277
      %v2280 = vmul.f32 %v2278, 1.442695
      %v2281 = vpow.pop %v2280
      %v2282 = vmul.f32 %v2279, 1.442695
      %v2283 = vpow.pop %v2282
      %v2284 = vadd.f32 %v2281, 1.0
      %v2285 = vadd.f32 %v2283, 1.0
      %v2286 = vrcp.pop %v2284
      %v2287 = vrcp.pop %v2285
      %v2288 = vmul.f32 %v2230, %v2286
      %v2289 = vmul.f32 %v2233, %v2287
      %v2290 = vmul.f32 %v2238, %v2286
      %v2291 = vmul.f32 %v2241, %v2287
      %v2292 = vmul.f32 %v2246, %v2286
      %v2293 = vmul.f32 %v2249, %v2287
      %v2294 = vmax.f32 %v2175, 0.0
      %v2295 = vmax.f32 %v2176, 0.0
      %v2296 = vmax.f32 %v2177, 0.0
      %v2297 = vmax.f32 %v2178, 0.0
      %v2298 = vld [vmem:[%s17] sm:$0x3]
      %v2299 = vpack.c.bf16 %v2289, %v2288
      %v2300 = vpack.c.bf16 %v2291, %v2290
      %v2301 = vpack.c.bf16 %v2293, %v2292
      %v2303 = vsel %vm800, %v2299, 0
      %v2306 = vsel %vm800, %v2300, 0
      %v2309 = vsel %vm800, %v2301, 0
      %v2312 = vand.u32 %v2298, %v813
      %2314 = vmatprep.subr.bf16.mxu0 0
      %2315 = vmatpush1.bf16.msra.mxu0 0
      %2316 = vmatprep.subr.bf16.mxu0 0
      %2317 = vmatpush1.bf16.msra.mxu0 0
      %2318 = vmatprep.subr.bf16.mxu0 0
      %2319 = vmatpush1.bf16.msra.mxu0 0
      %2320 = vmatprep.subr.bf16.mxu0 0
      %2321 = vmatpush1.bf16.msra.mxu0 0
      %2322 = vmatprep.subr.bf16.mxu0 0
      %2323 = vmatpush1.bf16.msra.mxu0 0
      %2324 = vmatprep.subr.bf16.mxu0 0
      %2325 = vmatpush1.bf16.msra.mxu0 0
      %2326 = vmatprep.subr.bf16.mxu0 0
      %2327 = vmatpush1.bf16.msra.mxu0 0
      %2328 = vmatprep.subr.bf16.mxu0 0
      %2329 = vmatpush1.bf16.msra.mxu0 %v2312
      %2330 = vmatprep.subr.bf16.mxu0 0
      %2331 = vmatpush2.bf16.msra.mxu0 0
      %2332 = vmatprep.subr.bf16.mxu0 0
      %2333 = vmatpush2.bf16.msra.mxu0 0
      %2334 = vmatprep.subr.bf16.mxu0 0
      %2335 = vmatpush2.bf16.msra.mxu0 0
      %2336 = vmatprep.subr.bf16.mxu0 0
      %2337 = vmatpush2.bf16.msra.mxu0 0
      %2338 = vmatprep.subr.bf16.mxu0 0
      %2339 = vmatpush2.bf16.msra.mxu0 0
      %2340 = vmatprep.subr.bf16.mxu0 0
      %2341 = vmatpush2.bf16.msra.mxu0 0
      %2342 = vmatprep.subr.bf16.mxu0 0
      %2343 = vmatpush2.bf16.msra.mxu0 0
      %2344 = vmatprep.subr.bf16.mxu0 0
      %2345 = vmatpush2.bf16.msra.mxu0 0
      %2346 = vmatprep.mubr.bf16.mxu0 0
      %2347 = vmatmul.mubr.bf16.gmra.mxu0 %v2303
      %v2348 = vpop.f32.mrf.mxu0
      %v2349 = vadd.f32 0.0, %v2348
      %v2350 = vpop.f32.mrf.mxu0
      %v2351 = vpop.f32.mrf.mxu0
      %v2352 = vadd.f32 0.0, %v2351
      %v2353 = vpop.f32.mrf.mxu0
      %2354 = vmatprep.mubr.bf16.mxu0 0
      %2355 = vmatmul.mubr.bf16.gmra.mxu0 %v2306
      %v2356 = vpop.f32.mrf.mxu0
      %v2357 = vadd.f32 0.0, %v2356
      %v2358 = vpop.f32.mrf.mxu0
      %v2359 = vpop.f32.mrf.mxu0
      %v2360 = vadd.f32 0.0, %v2359
      %v2361 = vpop.f32.mrf.mxu0
      %2362 = vmatprep.mubr.bf16.mxu0 0
      %2363 = vmatmul.mubr.bf16.gmra.mxu0 %v2309
      %v2364 = vpop.f32.mrf.mxu0
      %v2365 = vadd.f32 0.0, %v2364
      %v2366 = vpop.f32.mrf.mxu0
      %v2367 = vpop.f32.mrf.mxu0
      %v2368 = vadd.f32 0.0, %v2367
      %v2369 = vpop.f32.mrf.mxu0
      %2370 = vdwg.mxu0
      %v2371 = vld [vmem:[%s18] sm:$0xff]
      %v2372 = vld [vmem:[%s18 + $0x8] sm:$0xff]
      %v2373 = vld [vmem:[%s18 + $0x10] sm:$0xff]
      %v2374 = vld [vmem:[%s18 + $0x18] sm:$0xff]
      %v2375 = vld [vmem:[%s18 + $0x20] sm:$0xff]
      %v2376 = vld [vmem:[%s18 + $0x28] sm:$0xff]
      %v2377 = vld [vmem:[%s18 + $0x30] sm:$0xff]
      %v2378 = vld [vmem:[%s18 + $0x38] sm:$0xff]
      %v2379 = vld [vmem:[%s18 + $0x40] sm:$0xff]
      %v2380 = vld [vmem:[%s18 + $0x48] sm:$0xff]
      %v2381 = vld [vmem:[%s18 + $0x50] sm:$0xff]
      %v2382 = vld [vmem:[%s18 + $0x58] sm:$0xff]
      %v2383 = vld [vmem:[%s18 + $0x60] sm:$0xff]
      %v2384 = vld [vmem:[%s18 + $0x68] sm:$0xff]
      %v2385 = vld [vmem:[%s18 + $0x70] sm:$0xff]
      %v2386 = vld [vmem:[%s18 + $0x78] sm:$0xff]
      %v2387 = vld [vmem:[%s18 + $0x80] sm:$0xff]
      %v2388 = vld [vmem:[%s18 + $0x88] sm:$0xff]
      %v2389 = vld [vmem:[%s18 + $0x90] sm:$0xff]
      %v2390 = vld [vmem:[%s18 + $0x98] sm:$0xff]
      %v2391 = vld [vmem:[%s18 + $0xa0] sm:$0xff]
      %v2392 = vld [vmem:[%s18 + $0xa8] sm:$0xff]
      %v2393 = vld [vmem:[%s18 + $0xb0] sm:$0xff]
      %v2394 = vld [vmem:[%s18 + $0xb8] sm:$0xff]
      %v2395 = vld [vmem:[%s18 + $0xc0] sm:$0xff]
      %v2396 = vld [vmem:[%s18 + $0xc8] sm:$0xff]
      %v2397 = vld [vmem:[%s18 + $0xd0] sm:$0xff]
      %v2398 = vld [vmem:[%s18 + $0xd8] sm:$0xff]
      %v2399 = vld [vmem:[%s18 + $0xe0] sm:$0xff]
      %v2400 = vld [vmem:[%s18 + $0xe8] sm:$0xff]
      %v2401 = vld [vmem:[%s18 + $0xf0] sm:$0xff]
      %v2402 = vld [vmem:[%s18 + $0xf8] sm:$0xff]
      %v2403 = vpack.c.bf16 %v2296, %v2294
      %v2404 = vpack.c.bf16 %v2297, %v2295
      %v2405 = vmul.f32 %v2349, %v2349
      %v2406 = vmul.f32 %v2352, %v2352
      %v2407 = vmul.f32 %v2357, %v2357
      %v2408 = vmul.f32 %v2360, %v2360
      %v2409 = vadd.f32 %v2405, %v2407
      %v2410 = vadd.f32 %v2406, %v2408
      %v2411 = vmul.f32 %v2365, %v2365
      %v2412 = vmul.f32 %v2368, %v2368
      %v2413 = vadd.f32 %v2409, %v2411
      %v2414 = vadd.f32 %v2410, %v2412
      %v2415 = vmax.f32 %v2413, 1e-08
      %v2416 = vmax.f32 %v2414, 1e-08
      %v2417 = vrsqrt.pop %v2415
      %v2418 = vmul.f32 %v2415, %v2417
      %vm2419 = vcmp.eq.f32.partialorder %v2415, inf
      %v2420 = vsel %vm2419, %v2415, %v2418
      %vm2421 = vcmp.eq.f32.partialorder %v2415, 0.0
      %v2422 = vand.u32 %v2415, 2147483648
      %v2423 = vsel %vm2421, %v2422, %v2420
      %v2424 = vrsqrt.pop %v2416
      %v2425 = vmul.f32 %v2416, %v2424
      %vm2426 = vcmp.eq.f32.partialorder %v2416, inf
      %v2427 = vsel %vm2426, %v2416, %v2425
      %vm2428 = vcmp.eq.f32.partialorder %v2416, 0.0
      %v2429 = vand.u32 %v2416, 2147483648
      %v2430 = vsel %vm2428, %v2429, %v2427
      %v2431 = vld [vmem:[%s19] sm:$0xf]
      %v2432 = vpack.c.bf16 %v2430, %v2423
      %v2435 = vunpack.c.l.s4 1983009808
      %v2436 = vunpack.c.0.s8 %v2435
      %v2437 = vlaneseq
      %v2438 = vshrl.u32 %v2437, 7
      %v2439 = vsub.s32 %v2436, %v2438
      %v2440 = vrot.slane %v2431, %v2439
      %v2441 = vcombine.high %v2440, %v2440
      %v2443 = vsel %vm800, %v2432, 0
      %v2446 = vand.u32 %v2440, %v813
      %v2449 = vand.u32 %v2441, %v813
      %2451 = vmatprep.subr.bf16.mxu0 0
      %2452 = vmatpush1.bf16.msra.mxu0 0
      %2453 = vmatprep.subr.bf16.mxu0 0
      %2454 = vmatpush1.bf16.msra.mxu0 0
      %2455 = vmatprep.subr.bf16.mxu0 0
      %2456 = vmatpush1.bf16.msra.mxu0 0
      %2457 = vmatprep.subr.bf16.mxu0 0
      %2458 = vmatpush1.bf16.msra.mxu0 0
      %2459 = vmatprep.subr.bf16.mxu0 0
      %2460 = vmatpush1.bf16.msra.mxu0 0
      %2461 = vmatprep.subr.bf16.mxu0 0
      %2462 = vmatpush1.bf16.msra.mxu0 0
      %2463 = vmatprep.subr.bf16.mxu0 0
      %2464 = vmatpush1.bf16.msra.mxu0 0
      %2465 = vmatprep.subr.bf16.mxu0 %v2449
      %2466 = vmatpush1.bf16.msra.mxu0 %v2446
      %2467 = vmatprep.subr.bf16.mxu0 0
      %2468 = vmatpush2.bf16.msra.mxu0 0
      %2469 = vmatprep.subr.bf16.mxu0 0
      %2470 = vmatpush2.bf16.msra.mxu0 0
      %2471 = vmatprep.subr.bf16.mxu0 0
      %2472 = vmatpush2.bf16.msra.mxu0 0
      %2473 = vmatprep.subr.bf16.mxu0 0
      %2474 = vmatpush2.bf16.msra.mxu0 0
      %2475 = vmatprep.subr.bf16.mxu0 0
      %2476 = vmatpush2.bf16.msra.mxu0 0
      %2477 = vmatprep.subr.bf16.mxu0 0
      %2478 = vmatpush2.bf16.msra.mxu0 0
      %2479 = vmatprep.subr.bf16.mxu0 0
      %2480 = vmatpush2.bf16.msra.mxu0 0
      %2481 = vmatprep.subr.bf16.mxu0 0
      %2482 = vmatpush2.bf16.msra.mxu0 0
      %2483 = vmatprep.mubr.bf16.mxu0 0
      %2484 = vmatmul.mubr.bf16.gmra.mxu0 %v2443
      %v2485 = vpop.f32.mrf.mxu0
      %v2486 = vadd.f32 0.0, %v2485
      %v2487 = vpop.f32.mrf.mxu0
      %v2488 = vadd.f32 0.0, %v2487
      %v2489 = vpop.f32.mrf.mxu0
      %v2490 = vadd.f32 0.0, %v2489
      %v2491 = vpop.f32.mrf.mxu0
      %v2492 = vadd.f32 0.0, %v2491
      %2493 = vdwg.mxu0
      %v2526 = vunpack.c.l.b16 %v2371
      %v2527 = vunpack.c.h.b16 %v2371
      %v2528 = vunpack.c.l.b16 %v2372
      %v2529 = vunpack.c.h.b16 %v2372
      %v2530 = vunpack.c.l.b16 %v2373
      %v2531 = vunpack.c.h.b16 %v2373
      %v2532 = vunpack.c.l.b16 %v2374
      %v2533 = vunpack.c.h.b16 %v2374
      %v2534 = vunpack.c.l.b16 %v2375
      %v2535 = vunpack.c.h.b16 %v2375
      %v2536 = vunpack.c.l.b16 %v2376
      %v2537 = vunpack.c.h.b16 %v2376
      %v2538 = vunpack.c.l.b16 %v2377
      %v2539 = vunpack.c.h.b16 %v2377
      %v2540 = vunpack.c.l.b16 %v2378
      %v2541 = vunpack.c.h.b16 %v2378
      %v2542 = vunpack.c.l.b16 %v2379
      %v2543 = vunpack.c.h.b16 %v2379
      %v2544 = vunpack.c.l.b16 %v2380
      %v2545 = vunpack.c.h.b16 %v2380
      %v2546 = vunpack.c.l.b16 %v2381
      %v2547 = vunpack.c.h.b16 %v2381
      %v2548 = vunpack.c.l.b16 %v2382
      %v2549 = vunpack.c.h.b16 %v2382
      %v2550 = vunpack.c.l.b16 %v2383
      %v2551 = vunpack.c.h.b16 %v2383
      %v2552 = vunpack.c.l.b16 %v2384
      %v2553 = vunpack.c.h.b16 %v2384
      %v2554 = vunpack.c.l.b16 %v2385
      %v2555 = vunpack.c.h.b16 %v2385
      %v2556 = vunpack.c.l.b16 %v2386
      %v2557 = vunpack.c.h.b16 %v2386
      %v2558 = vunpack.c.l.b16 %v2387
      %v2559 = vunpack.c.h.b16 %v2387
      %v2560 = vunpack.c.l.b16 %v2388
      %v2561 = vunpack.c.h.b16 %v2388
      %v2562 = vunpack.c.l.b16 %v2389
      %v2563 = vunpack.c.h.b16 %v2389
      %v2564 = vunpack.c.l.b16 %v2390
      %v2565 = vunpack.c.h.b16 %v2390
      %v2566 = vunpack.c.l.b16 %v2391
      %v2567 = vunpack.c.h.b16 %v2391
      %v2568 = vunpack.c.l.b16 %v2392
      %v2569 = vunpack.c.h.b16 %v2392
      %v2570 = vunpack.c.l.b16 %v2393
      %v2571 = vunpack.c.h.b16 %v2393
      %v2572 = vunpack.c.l.b16 %v2394
      %v2573 = vunpack.c.h.b16 %v2394
      %v2574 = vunpack.c.l.b16 %v2395
      %v2575 = vunpack.c.h.b16 %v2395
      %v2576 = vunpack.c.l.b16 %v2396
      %v2577 = vunpack.c.h.b16 %v2396
      %v2578 = vunpack.c.l.b16 %v2397
      %v2579 = vunpack.c.h.b16 %v2397
      %v2580 = vunpack.c.l.b16 %v2398
      %v2581 = vunpack.c.h.b16 %v2398
      %v2582 = vunpack.c.l.b16 %v2399
      %v2583 = vunpack.c.h.b16 %v2399
      %v2584 = vunpack.c.l.b16 %v2400
      %v2585 = vunpack.c.h.b16 %v2400
      %v2586 = vunpack.c.l.b16 %v2401
      %v2587 = vunpack.c.h.b16 %v2401
      %v2588 = vunpack.c.l.b16 %v2402
      %v2589 = vunpack.c.h.b16 %v2402
      %v2590 = vpack.c.b16 %v2528, %v2526
      %v2591 = vpack.c.b16 %v2529, %v2527
      %v2592 = vpack.c.b16 %v2532, %v2530
      %v2593 = vpack.c.b16 %v2533, %v2531
      %v2594 = vpack.c.b16 %v2536, %v2534
      %v2595 = vpack.c.b16 %v2537, %v2535
      %v2596 = vpack.c.b16 %v2540, %v2538
      %v2597 = vpack.c.b16 %v2541, %v2539
      %v2598 = vpack.c.b16 %v2544, %v2542
      %v2599 = vpack.c.b16 %v2545, %v2543
      %v2600 = vpack.c.b16 %v2548, %v2546
      %v2601 = vpack.c.b16 %v2549, %v2547
      %v2602 = vpack.c.b16 %v2552, %v2550
      %v2603 = vpack.c.b16 %v2553, %v2551
      %v2604 = vpack.c.b16 %v2556, %v2554
      %v2605 = vpack.c.b16 %v2557, %v2555
      %v2606 = vpack.c.b16 %v2560, %v2558
      %v2607 = vpack.c.b16 %v2561, %v2559
      %v2608 = vpack.c.b16 %v2564, %v2562
      %v2609 = vpack.c.b16 %v2565, %v2563
      %v2610 = vpack.c.b16 %v2568, %v2566
      %v2611 = vpack.c.b16 %v2569, %v2567
      %v2612 = vpack.c.b16 %v2572, %v2570
      %v2613 = vpack.c.b16 %v2573, %v2571
      %v2614 = vpack.c.b16 %v2576, %v2574
      %v2615 = vpack.c.b16 %v2577, %v2575
      %v2616 = vpack.c.b16 %v2580, %v2578
      %v2617 = vpack.c.b16 %v2581, %v2579
      %v2618 = vpack.c.b16 %v2584, %v2582
      %v2619 = vpack.c.b16 %v2585, %v2583
      %v2620 = vpack.c.b16 %v2588, %v2586
      %v2621 = vpack.c.b16 %v2589, %v2587
      %2654 = vmatprep.subr.bf16.mxu0 %v2605
      %2655 = vmatpush1.bf16.msra.mxu0 %v2604
      %2656 = vmatprep.subr.bf16.mxu0 %v2603
      %2657 = vmatpush1.bf16.msra.mxu0 %v2602
      %2658 = vmatprep.subr.bf16.mxu0 %v2601
      %2659 = vmatpush1.bf16.msra.mxu0 %v2600
      %2660 = vmatprep.subr.bf16.mxu0 %v2599
      %2661 = vmatpush1.bf16.msra.mxu0 %v2598
      %2662 = vmatprep.subr.bf16.mxu0 %v2597
      %2663 = vmatpush1.bf16.msra.mxu0 %v2596
      %2664 = vmatprep.subr.bf16.mxu0 %v2595
      %2665 = vmatpush1.bf16.msra.mxu0 %v2594
      %2666 = vmatprep.subr.bf16.mxu0 %v2593
      %2667 = vmatpush1.bf16.msra.mxu0 %v2592
      %2668 = vmatprep.subr.bf16.mxu0 %v2591
      %2669 = vmatpush1.bf16.msra.mxu0 %v2590
      %2670 = vmatprep.subr.bf16.mxu0 %v2621
      %2671 = vmatpush2.bf16.msra.mxu0 %v2620
      %2672 = vmatprep.subr.bf16.mxu0 %v2619
      %2673 = vmatpush2.bf16.msra.mxu0 %v2618
      %2674 = vmatprep.subr.bf16.mxu0 %v2617
      %2675 = vmatpush2.bf16.msra.mxu0 %v2616
      %2676 = vmatprep.subr.bf16.mxu0 %v2615
      %2677 = vmatpush2.bf16.msra.mxu0 %v2614
      %2678 = vmatprep.subr.bf16.mxu0 %v2613
      %2679 = vmatpush2.bf16.msra.mxu0 %v2612
      %2680 = vmatprep.subr.bf16.mxu0 %v2611
      %2681 = vmatpush2.bf16.msra.mxu0 %v2610
      %2682 = vmatprep.subr.bf16.mxu0 %v2609
      %2683 = vmatpush2.bf16.msra.mxu0 %v2608
      %2684 = vmatprep.subr.bf16.mxu0 %v2607
      %2685 = vmatpush2.bf16.msra.mxu0 %v2606
      %2686 = vmatprep.mubr.bf16.mxu0 %v2404
      %2687 = vmatmul.mubr.bf16.gmra.mxu0 %v2403
      %v2688 = vpop.f32.mrf.mxu0
      %v2689 = vadd.f32 %v2486, %v2688
      %v2690 = vpop.f32.mrf.mxu0
      %v2691 = vadd.f32 %v2488, %v2690
      %v2692 = vpop.f32.mrf.mxu0
      %v2693 = vadd.f32 %v2490, %v2692
      %v2694 = vpop.f32.mrf.mxu0
      %v2695 = vadd.f32 %v2492, %v2694
      %2696 = vdwg.mxu0
      %v2697 = vld [vmem:[%s20] sm:$0x3]
      %v2699 = vlaneseq
      %v2700 = vshrl.u32 %v2699, 7
      %v2701 = vsub.s32 0, %v2700
      %v2702 = vrot.slane %v2697, %v2701
      %v2703 = vlaneseq
      %v2704 = vshrl.u32 %v2703, 7
      %v2705 = vsub.s32 1, %v2704
      %v2706 = vrot.slane %v2697, %v2705
      %v2709 = vadd.f32 %v2689, %v2702
      %v2710 = vadd.f32 %v2691, %v2706
      %v2711 = vadd.f32 %v2693, %v2702
      %v2712 = vadd.f32 %v2695, %v2706
      %v2713 = vld [vmem:[%s21] sm:$0x3]
      %v2714 = vpack.c.bf16 %v2352, %v2349
      %v2715 = vpack.c.bf16 %v2360, %v2357
      %v2716 = vpack.c.bf16 %v2368, %v2365
      %v2718 = vsel %vm800, %v2714, 0
      %v2721 = vsel %vm800, %v2715, 0
      %v2724 = vsel %vm800, %v2716, 0
      %v2727 = vand.u32 %v2713, %v813
      %2729 = vmatprep.subr.bf16.mxu0 0
      %2730 = vmatpush1.bf16.msra.mxu0 0
      %2731 = vmatprep.subr.bf16.mxu0 0
      %2732 = vmatpush1.bf16.msra.mxu0 0
      %2733 = vmatprep.subr.bf16.mxu0 0
      %2734 = vmatpush1.bf16.msra.mxu0 0
      %2735 = vmatprep.subr.bf16.mxu0 0
      %2736 = vmatpush1.bf16.msra.mxu0 0
      %2737 = vmatprep.subr.bf16.mxu0 0
      %2738 = vmatpush1.bf16.msra.mxu0 0
      %2739 = vmatprep.subr.bf16.mxu0 0
      %2740 = vmatpush1.bf16.msra.mxu0 0
      %2741 = vmatprep.subr.bf16.mxu0 0
      %2742 = vmatpush1.bf16.msra.mxu0 0
      %2743 = vmatprep.subr.bf16.mxu0 0
      %2744 = vmatpush1.bf16.msra.mxu0 %v2727
      %2745 = vmatprep.subr.bf16.mxu0 0
      %2746 = vmatpush2.bf16.msra.mxu0 0
      %2747 = vmatprep.subr.bf16.mxu0 0
      %2748 = vmatpush2.bf16.msra.mxu0 0
      %2749 = vmatprep.subr.bf16.mxu0 0
      %2750 = vmatpush2.bf16.msra.mxu0 0
      %2751 = vmatprep.subr.bf16.mxu0 0
      %2752 = vmatpush2.bf16.msra.mxu0 0
      %2753 = vmatprep.subr.bf16.mxu0 0
      %2754 = vmatpush2.bf16.msra.mxu0 0
      %2755 = vmatprep.subr.bf16.mxu0 0
      %2756 = vmatpush2.bf16.msra.mxu0 0
      %2757 = vmatprep.subr.bf16.mxu0 0
      %2758 = vmatpush2.bf16.msra.mxu0 0
      %2759 = vmatprep.subr.bf16.mxu0 0
      %2760 = vmatpush2.bf16.msra.mxu0 0
      %2761 = vmatprep.mubr.bf16.mxu0 0
      %2762 = vmatmul.mubr.bf16.gmra.mxu0 %v2718
      %v2763 = vpop.f32.mrf.mxu0
      %v2764 = vadd.f32 0.0, %v2763
      %v2765 = vpop.f32.mrf.mxu0
      %v2766 = vpop.f32.mrf.mxu0
      %v2767 = vadd.f32 0.0, %v2766
      %v2768 = vpop.f32.mrf.mxu0
      %2769 = vmatprep.mubr.bf16.mxu0 0
      %2770 = vmatmul.mubr.bf16.gmra.mxu0 %v2721
      %v2771 = vpop.f32.mrf.mxu0
      %v2772 = vadd.f32 0.0, %v2771
      %v2773 = vpop.f32.mrf.mxu0
      %v2774 = vpop.f32.mrf.mxu0
      %v2775 = vadd.f32 0.0, %v2774
      %v2776 = vpop.f32.mrf.mxu0
      %2777 = vmatprep.mubr.bf16.mxu0 0
      %2778 = vmatmul.mubr.bf16.gmra.mxu0 %v2724
      %v2779 = vpop.f32.mrf.mxu0
      %v2780 = vadd.f32 0.0, %v2779
      %v2781 = vpop.f32.mrf.mxu0
      %v2782 = vpop.f32.mrf.mxu0
      %v2783 = vadd.f32 0.0, %v2782
      %v2784 = vpop.f32.mrf.mxu0
      %2785 = vdwg.mxu0
      %2788 = vrot.lane.b32.xlu0 %v2772, 3
      %v2789 = vpop.permute.xlu0 %2788
      %2790 = vrot.lane.b32.xlu0 %v2775, 3
      %v2791 = vpop.permute.xlu0 %2790
      %2796 = vrot.lane.b32.xlu0 %v2780, 6
      %v2797 = vpop.permute.xlu0 %2796
      %2798 = vrot.lane.b32.xlu0 %v2783, 6
      %v2799 = vpop.permute.xlu0 %2798
      %v2802 = vsel %vm800, %v2764, %v2789
      %v2803 = vsel %vm800, %v2767, %v2791
      %vm2804 = vcmask 48128
      %v2805 = vsel %vm2804, %v2802, %v2797
      %v2806 = vsel %vm2804, %v2803, %v2799
      %2807 = vst [vmem:[%s737] sm:$0xff] %v2709
      %2808 = vst [vmem:[%s737 + $0x8] sm:$0xff] %v2710
      %vm2809 = vcmask 72704
      %2810 = vst.msk [vmem:[%s737 + $0x10] sm:$0xff] %vm2809, %v2805
      %2811 = vst [vmem:[%s737 + $0x18] sm:$0xff] %v2711
      %2812 = vst [vmem:[%s737 + $0x20] sm:$0xff] %v2712
      %2813 = vst.msk [vmem:[%s737 + $0x28] sm:$0xff] %vm2809, %v2806
      %s2814 = smul.u32 2, %s33
      %p2815 = scmp.lt.s32.totalorder %s2814, 3
      %s2816 = scalar_select %p2815, %s2814, 3
      %s2817 = smul.addr %s2816, 3
      %s2818 = smul.addr %s2817, 8
      %s2819 = scalar_lea.vmem %s22, %s2818
      // Predicated region
      $region109: #{pocket_encoder_forward.10} parent=107 // pred_check
        %p2820 = pneg %p528
      $region110: #{pocket_encoder_forward.10} parent=107 // pred_check_branch
        %2822 = sbr.rel (%p2820) target = $region112
      $region111: #{pocket_encoder_forward.10} parent=107 // pred_region
        %s2823 = smul.u32 2, %s33
      $region112: #{pocket_encoder_forward.10} parent=107 // pred_fallthru
        _
    $region108: #{pocket_encoder_forward.10} parent=5 // pred_fallthru
      _
    %p2824 = scmp.le.s32.totalorder 2, %s28
    // Predicated region
    $region113: #{pocket_encoder_forward.10} parent=5 // pred_check
      %p2825 = pneg %p2824
    $region114: #{pocket_encoder_forward.10} parent=5 // pred_check_branch
      %2827 = sbr.rel (%p2825) target = $region116
    $region115: #{pocket_encoder_forward.10} parent=5 // pred_region
      %s2828 = ssub.s32 %s28, 2
      // Predicated region
      $region117: #{pocket_encoder_forward.10} parent=115 // pred_check
        %p2829 = pneg %p534
      $region118: #{pocket_encoder_forward.10} parent=115 // pred_check_branch
        %2831 = sbr.rel (%p2829) target = $region120
      $region119: #{pocket_encoder_forward.10} parent=115 // pred_region
        %s2832 = smul.u32 2, %s34
        %p2833 = scmp.lt.s32.totalorder %s2832, 3
        %s2834 = scalar_select %p2833, %s2832, 3
        %s2835 = smul.addr %s2834, 3
        %s2836 = smul.addr %s2835, 8
        %s2837 = scalar_lea.vmem %s22, %s2836
      $region120: #{pocket_encoder_forward.10} parent=115 // pred_fallthru
        _
    $region116: #{pocket_encoder_forward.10} parent=5 // pred_fallthru
      _
  $region6: #{pocket_encoder_forward.10} parent=0 // loop_footer
    %s32 = sadd.s32 1, %s28
  $region7: #{pocket_encoder_forward.10} parent=0 // loop_footer_branch
    %27 = sbr.rel target = $region3
  $region8: #{pocket_encoder_forward.10} parent=0 // loop_exit
    _

// kernel: pocket_encoder_forward.12
$region0: #{pocket_encoder_forward.12}
  #allocation0 [shape = 'u32[]', space=smem, size = 0x4, offset = 0x4, fixed_abs, tag = 'smem constant byte address 0x4 - core index']
  #allocation1 [shape = 'u32[144,128]{1,0:T(1,128)}', space=vmem, size = 0x12000, scoped, tag = 'internal scratch']
  %s0 = inlined_call_operand.vmem [shape: f32[16,265], index: 0, kind: input, shape index: {}]
  %s1 = inlined_call_operand.vmem [shape: bf16[3,6], index: 1, kind: input, shape index: {}]
  %s2 = inlined_call_operand.vmem [shape: bf16[256,1024], index: 2, kind: input, shape index: {}]
  %s3 = inlined_call_operand.vmem [shape: bf16[6,1024], index: 3, kind: input, shape index: {}]
  %s4 = inlined_call_operand.vmem [shape: f32[1,1024], index: 4, kind: input, shape index: {}]
  %s5 = inlined_call_operand.vmem [shape: bf16[6,6], index: 5, kind: input, shape index: {}]
  %s6 = inlined_call_operand.vmem [shape: bf16[6,6], index: 6, kind: input, shape index: {}]
  %s7 = inlined_call_operand.vmem [shape: bf16[1024,256], index: 7, kind: input, shape index: {}]
  %s8 = inlined_call_operand.vmem [shape: bf16[6,256], index: 8, kind: input, shape index: {}]
  %s9 = inlined_call_operand.vmem [shape: f32[1,256], index: 9, kind: input, shape index: {}]
  %s10 = inlined_call_operand.vmem [shape: bf16[6,3], index: 10, kind: input, shape index: {}]
  %s11 = inlined_call_operand.vmem [shape: f32[1,256], index: 11, kind: input, shape index: {}]
  %s12 = inlined_call_operand.vmem [shape: f32[1,256], index: 12, kind: input, shape index: {}]
  %s13 = inlined_call_operand.vmem [shape: f32[1,256], index: 13, kind: input, shape index: {}]
  %s14 = inlined_call_operand.vmem [shape: f32[1,256], index: 14, kind: input, shape index: {}]
  %s15 = inlined_call_operand.vmem [shape: f32[16,265], index: 15, kind: output, shape index: {}]
  %s16 = sld [smem:[#allocation0]]
  $region93: #{pocket_encoder_forward.12} parent=0
    _
  %s18 = ssub.s32 1, %s16
  %s19 = scalar_select 0, %s18, %s16
  loop: start=0, step=1, limit=4
  $region2: #{pocket_encoder_forward.12} parent=0 // loop_pre_header
    _
  $region3: #{pocket_encoder_forward.12} parent=0 // loop_header
    %s21 = sphi 0, %s25
    %p22 = scmp.ge.s32.totalorder %s21, 4
    %s31 = sphi 0, %s33
    %s34 = sphi 0, %s31
    %s35 = sphi 0, %s34
    %s51 = sphi 0, %s35
    %s55 = sphi 0, %s55
    %s57 = sphi 0, %s55
    %s58 = sphi 0, %s57
    %s72 = sphi 0, %s58
    %s76 = sphi 0, %s76
    %s78 = sphi 0, %s76
    %s79 = sphi 0, %s78
    %s93 = sphi 0, %s79
    %s97 = sphi 0, %s97
    %s99 = sphi 0, %s97
    %s100 = sphi 0, %s99
    %s114 = sphi 0, %s100
    %s118 = sphi 0, %s118
    %s120 = sphi 0, %s118
    %s121 = sphi 0, %s120
    %s135 = sphi 0, %s121
    %s139 = sphi 0, %s139
    %s141 = sphi 0, %s139
    %s142 = sphi 0, %s141
    %s156 = sphi 0, %s142
    %s160 = sphi 0, %s160
    %s162 = sphi 0, %s160
    %s163 = sphi 0, %s162
    %s177 = sphi 0, %s163
    %s181 = sphi 0, %s181
    %s183 = sphi 0, %s181
    %s184 = sphi 0, %s183
    %s198 = sphi 0, %s184
    %s202 = sphi 0, %s202
    %s204 = sphi 0, %s202
    %s205 = sphi 0, %s204
    %s219 = sphi 0, %s205
    %s223 = sphi 0, %s223
    %s225 = sphi 0, %s223
    %s226 = sphi 0, %s225
    %s240 = sphi 0, %s226
    %s244 = sphi 0, %s244
    %s246 = sphi 0, %s244
    %s247 = sphi 0, %s246
    %s261 = sphi 0, %s247
    %s265 = sphi 0, %s265
    %s267 = sphi 0, %s265
    %s268 = sphi 0, %s267
    %s282 = sphi 0, %s268
    %s286 = sphi 0, %s286
    %s288 = sphi 0, %s286
    %s289 = sphi 0, %s288
    %s303 = sphi 0, %s289
    %s307 = sphi 0, %s307
    %s309 = sphi 0, %s307
    %s310 = sphi 0, %s309
    %s324 = sphi 0, %s310
    %s328 = sphi 0, %s328
    %s330 = sphi 0, %s328
    %s331 = sphi 0, %s330
    %s345 = sphi 0, %s331
    %s351 = sphi 0, %s353
    %s354 = sphi 0, %s351
    %s355 = sphi 0, %s354
    %s371 = sphi 0, %s355
  $region4: #{pocket_encoder_forward.12} parent=0 // loop_header_branch
    %24 = sbr.rel (%p22) target = $region8
  $region5: #{pocket_encoder_forward.12} parent=0 // loop_body
    %s26 = ssub.s32 %s21, 1
    %s27 = ssub.s32 %s21, 2
    %s28 = sadd.s32 %s21, 1
    %s29 = ssub.s32 %s21, %s28
    %p30 = scmp.eq.s32.totalorder %s29, 0
    %s32 = sadd.s32 %s31, 1
    %s33 = scalar_select %p30, %s31, %s32
    %p36 = pneg %p30
    %p37 = scmp.eq.s32.totalorder %s21, 1
    %p38 = por %p36, %p37
    %p39 = scmp.ne.s32.totalorder %s31, %s34
    %p40 = scmp.eq.s32.totalorder %s21, 0
    %p41 = por %p39, %p40
    %p42 = scmp.ne.s32.totalorder %s31, %s34
    %p43 = scmp.eq.s32.totalorder %s26, 1
    %p44 = por %p42, %p43
    %p45 = scmp.ne.s32.totalorder %s34, %s35
    %p46 = scmp.eq.s32.totalorder %s26, 0
    %p47 = por %p45, %p46
    %p48 = scmp.ne.s32.totalorder %s34, %s35
    %p49 = scmp.eq.s32.totalorder %s27, 1
    %p50 = por %p48, %p49
    %p52 = scmp.ne.s32.totalorder %s35, %s51
    %p53 = scmp.eq.s32.totalorder %s27, 0
    %p54 = por %p52, %p53
    %s56 = sadd.s32 %s55, 1
    %p59 = scmp.eq.s32.totalorder %s21, 1
    %p60 = scmp.ne.s32.totalorder %s55, %s57
    %p61 = scmp.eq.s32.totalorder %s21, 0
    %p62 = por %p60, %p61
    %p63 = scmp.ne.s32.totalorder %s55, %s57
    %p64 = scmp.eq.s32.totalorder %s26, 1
    %p65 = por %p63, %p64
    %p66 = scmp.ne.s32.totalorder %s57, %s58
    %p67 = scmp.eq.s32.totalorder %s26, 0
    %p68 = por %p66, %p67
    %p69 = scmp.ne.s32.totalorder %s57, %s58
    %p70 = scmp.eq.s32.totalorder %s27, 1
    %p71 = por %p69, %p70
    %p73 = scmp.ne.s32.totalorder %s58, %s72
    %p74 = scmp.eq.s32.totalorder %s27, 0
    %p75 = por %p73, %p74
    %s77 = sadd.s32 %s76, 1
    %p80 = scmp.eq.s32.totalorder %s21, 1
    %p81 = scmp.ne.s32.totalorder %s76, %s78
    %p82 = scmp.eq.s32.totalorder %s21, 0
    %p83 = por %p81, %p82
    %p84 = scmp.ne.s32.totalorder %s76, %s78
    %p85 = scmp.eq.s32.totalorder %s26, 1
    %p86 = por %p84, %p85
    %p87 = scmp.ne.s32.totalorder %s78, %s79
    %p88 = scmp.eq.s32.totalorder %s26, 0
    %p89 = por %p87, %p88
    %p90 = scmp.ne.s32.totalorder %s78, %s79
    %p91 = scmp.eq.s32.totalorder %s27, 1
    %p92 = por %p90, %p91
    %p94 = scmp.ne.s32.totalorder %s79, %s93
    %p95 = scmp.eq.s32.totalorder %s27, 0
    %p96 = por %p94, %p95
    %s98 = sadd.s32 %s97, 1
    %p101 = scmp.eq.s32.totalorder %s21, 1
    %p102 = scmp.ne.s32.totalorder %s97, %s99
    %p103 = scmp.eq.s32.totalorder %s21, 0
    %p104 = por %p102, %p103
    %p105 = scmp.ne.s32.totalorder %s97, %s99
    %p106 = scmp.eq.s32.totalorder %s26, 1
    %p107 = por %p105, %p106
    %p108 = scmp.ne.s32.totalorder %s99, %s100
    %p109 = scmp.eq.s32.totalorder %s26, 0
    %p110 = por %p108, %p109
    %p111 = scmp.ne.s32.totalorder %s99, %s100
    %p112 = scmp.eq.s32.totalorder %s27, 1
    %p113 = por %p111, %p112
    %p115 = scmp.ne.s32.totalorder %s100, %s114
    %p116 = scmp.eq.s32.totalorder %s27, 0
    %p117 = por %p115, %p116
    %s119 = sadd.s32 %s118, 1
    %p122 = scmp.eq.s32.totalorder %s21, 1
    %p123 = scmp.ne.s32.totalorder %s118, %s120
    %p124 = scmp.eq.s32.totalorder %s21, 0
    %p125 = por %p123, %p124
    %p126 = scmp.ne.s32.totalorder %s118, %s120
    %p127 = scmp.eq.s32.totalorder %s26, 1
    %p128 = por %p126, %p127
    %p129 = scmp.ne.s32.totalorder %s120, %s121
    %p130 = scmp.eq.s32.totalorder %s26, 0
    %p131 = por %p129, %p130
    %p132 = scmp.ne.s32.totalorder %s120, %s121
    %p133 = scmp.eq.s32.totalorder %s27, 1
    %p134 = por %p132, %p133
    %p136 = scmp.ne.s32.totalorder %s121, %s135
    %p137 = scmp.eq.s32.totalorder %s27, 0
    %p138 = por %p136, %p137
    %s140 = sadd.s32 %s139, 1
    %p143 = scmp.eq.s32.totalorder %s21, 1
    %p144 = scmp.ne.s32.totalorder %s139, %s141
    %p145 = scmp.eq.s32.totalorder %s21, 0
    %p146 = por %p144, %p145
    %p147 = scmp.ne.s32.totalorder %s139, %s141
    %p148 = scmp.eq.s32.totalorder %s26, 1
    %p149 = por %p147, %p148
    %p150 = scmp.ne.s32.totalorder %s141, %s142
    %p151 = scmp.eq.s32.totalorder %s26, 0
    %p152 = por %p150, %p151
    %p153 = scmp.ne.s32.totalorder %s141, %s142
    %p154 = scmp.eq.s32.totalorder %s27, 1
    %p155 = por %p153, %p154
    %p157 = scmp.ne.s32.totalorder %s142, %s156
    %p158 = scmp.eq.s32.totalorder %s27, 0
    %p159 = por %p157, %p158
    %s161 = sadd.s32 %s160, 1
    %p164 = scmp.eq.s32.totalorder %s21, 1
    %p165 = scmp.ne.s32.totalorder %s160, %s162
    %p166 = scmp.eq.s32.totalorder %s21, 0
    %p167 = por %p165, %p166
    %p168 = scmp.ne.s32.totalorder %s160, %s162
    %p169 = scmp.eq.s32.totalorder %s26, 1
    %p170 = por %p168, %p169
    %p171 = scmp.ne.s32.totalorder %s162, %s163
    %p172 = scmp.eq.s32.totalorder %s26, 0
    %p173 = por %p171, %p172
    %p174 = scmp.ne.s32.totalorder %s162, %s163
    %p175 = scmp.eq.s32.totalorder %s27, 1
    %p176 = por %p174, %p175
    %p178 = scmp.ne.s32.totalorder %s163, %s177
    %p179 = scmp.eq.s32.totalorder %s27, 0
    %p180 = por %p178, %p179
    %s182 = sadd.s32 %s181, 1
    %p185 = scmp.eq.s32.totalorder %s21, 1
    %p186 = scmp.ne.s32.totalorder %s181, %s183
    %p187 = scmp.eq.s32.totalorder %s21, 0
    %p188 = por %p186, %p187
    %p189 = scmp.ne.s32.totalorder %s181, %s183
    %p190 = scmp.eq.s32.totalorder %s26, 1
    %p191 = por %p189, %p190
    %p192 = scmp.ne.s32.totalorder %s183, %s184
    %p193 = scmp.eq.s32.totalorder %s26, 0
    %p194 = por %p192, %p193
    %p195 = scmp.ne.s32.totalorder %s183, %s184
    %p196 = scmp.eq.s32.totalorder %s27, 1
    %p197 = por %p195, %p196
    %p199 = scmp.ne.s32.totalorder %s184, %s198
    %p200 = scmp.eq.s32.totalorder %s27, 0
    %p201 = por %p199, %p200
    %s203 = sadd.s32 %s202, 1
    %p206 = scmp.eq.s32.totalorder %s21, 1
    %p207 = scmp.ne.s32.totalorder %s202, %s204
    %p208 = scmp.eq.s32.totalorder %s21, 0
    %p209 = por %p207, %p208
    %p210 = scmp.ne.s32.totalorder %s202, %s204
    %p211 = scmp.eq.s32.totalorder %s26, 1
    %p212 = por %p210, %p211
    %p213 = scmp.ne.s32.totalorder %s204, %s205
    %p214 = scmp.eq.s32.totalorder %s26, 0
    %p215 = por %p213, %p214
    %p216 = scmp.ne.s32.totalorder %s204, %s205
    %p217 = scmp.eq.s32.totalorder %s27, 1
    %p218 = por %p216, %p217
    %p220 = scmp.ne.s32.totalorder %s205, %s219
    %p221 = scmp.eq.s32.totalorder %s27, 0
    %p222 = por %p220, %p221
    %s224 = sadd.s32 %s223, 1
    %p227 = scmp.eq.s32.totalorder %s21, 1
    %p228 = scmp.ne.s32.totalorder %s223, %s225
    %p229 = scmp.eq.s32.totalorder %s21, 0
    %p230 = por %p228, %p229
    %p231 = scmp.ne.s32.totalorder %s223, %s225
    %p232 = scmp.eq.s32.totalorder %s26, 1
    %p233 = por %p231, %p232
    %p234 = scmp.ne.s32.totalorder %s225, %s226
    %p235 = scmp.eq.s32.totalorder %s26, 0
    %p236 = por %p234, %p235
    %p237 = scmp.ne.s32.totalorder %s225, %s226
    %p238 = scmp.eq.s32.totalorder %s27, 1
    %p239 = por %p237, %p238
    %p241 = scmp.ne.s32.totalorder %s226, %s240
    %p242 = scmp.eq.s32.totalorder %s27, 0
    %p243 = por %p241, %p242
    %s245 = sadd.s32 %s244, 1
    %p248 = scmp.eq.s32.totalorder %s21, 1
    %p249 = scmp.ne.s32.totalorder %s244, %s246
    %p250 = scmp.eq.s32.totalorder %s21, 0
    %p251 = por %p249, %p250
    %p252 = scmp.ne.s32.totalorder %s244, %s246
    %p253 = scmp.eq.s32.totalorder %s26, 1
    %p254 = por %p252, %p253
    %p255 = scmp.ne.s32.totalorder %s246, %s247
    %p256 = scmp.eq.s32.totalorder %s26, 0
    %p257 = por %p255, %p256
    %p258 = scmp.ne.s32.totalorder %s246, %s247
    %p259 = scmp.eq.s32.totalorder %s27, 1
    %p260 = por %p258, %p259
    %p262 = scmp.ne.s32.totalorder %s247, %s261
    %p263 = scmp.eq.s32.totalorder %s27, 0
    %p264 = por %p262, %p263
    %s266 = sadd.s32 %s265, 1
    %p269 = scmp.eq.s32.totalorder %s21, 1
    %p270 = scmp.ne.s32.totalorder %s265, %s267
    %p271 = scmp.eq.s32.totalorder %s21, 0
    %p272 = por %p270, %p271
    %p273 = scmp.ne.s32.totalorder %s265, %s267
    %p274 = scmp.eq.s32.totalorder %s26, 1
    %p275 = por %p273, %p274
    %p276 = scmp.ne.s32.totalorder %s267, %s268
    %p277 = scmp.eq.s32.totalorder %s26, 0
    %p278 = por %p276, %p277
    %p279 = scmp.ne.s32.totalorder %s267, %s268
    %p280 = scmp.eq.s32.totalorder %s27, 1
    %p281 = por %p279, %p280
    %p283 = scmp.ne.s32.totalorder %s268, %s282
    %p284 = scmp.eq.s32.totalorder %s27, 0
    %p285 = por %p283, %p284
    %s287 = sadd.s32 %s286, 1
    %p290 = scmp.eq.s32.totalorder %s21, 1
    %p291 = scmp.ne.s32.totalorder %s286, %s288
    %p292 = scmp.eq.s32.totalorder %s21, 0
    %p293 = por %p291, %p292
    %p294 = scmp.ne.s32.totalorder %s286, %s288
    %p295 = scmp.eq.s32.totalorder %s26, 1
    %p296 = por %p294, %p295
    %p297 = scmp.ne.s32.totalorder %s288, %s289
    %p298 = scmp.eq.s32.totalorder %s26, 0
    %p299 = por %p297, %p298
    %p300 = scmp.ne.s32.totalorder %s288, %s289
    %p301 = scmp.eq.s32.totalorder %s27, 1
    %p302 = por %p300, %p301
    %p304 = scmp.ne.s32.totalorder %s289, %s303
    %p305 = scmp.eq.s32.totalorder %s27, 0
    %p306 = por %p304, %p305
    %s308 = sadd.s32 %s307, 1
    %p311 = scmp.eq.s32.totalorder %s21, 1
    %p312 = scmp.ne.s32.totalorder %s307, %s309
    %p313 = scmp.eq.s32.totalorder %s21, 0
    %p314 = por %p312, %p313
    %p315 = scmp.ne.s32.totalorder %s307, %s309
    %p316 = scmp.eq.s32.totalorder %s26, 1
    %p317 = por %p315, %p316
    %p318 = scmp.ne.s32.totalorder %s309, %s310
    %p319 = scmp.eq.s32.totalorder %s26, 0
    %p320 = por %p318, %p319
    %p321 = scmp.ne.s32.totalorder %s309, %s310
    %p322 = scmp.eq.s32.totalorder %s27, 1
    %p323 = por %p321, %p322
    %p325 = scmp.ne.s32.totalorder %s310, %s324
    %p326 = scmp.eq.s32.totalorder %s27, 0
    %p327 = por %p325, %p326
    %s329 = sadd.s32 %s328, 1
    %p332 = scmp.eq.s32.totalorder %s21, 1
    %p333 = scmp.ne.s32.totalorder %s328, %s330
    %p334 = scmp.eq.s32.totalorder %s21, 0
    %p335 = por %p333, %p334
    %p336 = scmp.ne.s32.totalorder %s328, %s330
    %p337 = scmp.eq.s32.totalorder %s26, 1
    %p338 = por %p336, %p337
    %p339 = scmp.ne.s32.totalorder %s330, %s331
    %p340 = scmp.eq.s32.totalorder %s26, 0
    %p341 = por %p339, %p340
    %p342 = scmp.ne.s32.totalorder %s330, %s331
    %p343 = scmp.eq.s32.totalorder %s27, 1
    %p344 = por %p342, %p343
    %p346 = scmp.ne.s32.totalorder %s331, %s345
    %p347 = scmp.eq.s32.totalorder %s27, 0
    %p348 = por %p346, %p347
    %s349 = ssub.s32 %s21, %s28
    %p350 = scmp.eq.s32.totalorder %s349, 0
    %s352 = sadd.s32 %s351, 1
    %s353 = scalar_select %p350, %s351, %s352
    %p356 = pneg %p350
    %p357 = scmp.eq.s32.totalorder %s21, 1
    %p358 = por %p356, %p357
    %p359 = scmp.ne.s32.totalorder %s351, %s354
    %p360 = scmp.eq.s32.totalorder %s21, 0
    %p361 = por %p359, %p360
    %p362 = scmp.ne.s32.totalorder %s351, %s354
    %p363 = scmp.eq.s32.totalorder %s26, 1
    %p364 = por %p362, %p363
    %p365 = scmp.ne.s32.totalorder %s354, %s355
    %p366 = scmp.eq.s32.totalorder %s26, 0
    %p367 = por %p365, %p366
    %p368 = scmp.ne.s32.totalorder %s354, %s355
    %p369 = scmp.eq.s32.totalorder %s27, 1
    %p370 = por %p368, %p369
    %p372 = scmp.ne.s32.totalorder %s355, %s371
    %p373 = scmp.eq.s32.totalorder %s27, 0
    %p374 = por %p372, %p373
    %p375 = scmp.le.s32.totalorder 1, %s21
    %p376 = scmp.lt.s32.totalorder %s21, 3
    %p377 = pnand %p375, %p376
    %p378 = pneg %p377
    // Predicated region
    $region9: #{pocket_encoder_forward.12} parent=5 // pred_check
      _
    $region10: #{pocket_encoder_forward.12} parent=5 // pred_check_branch
      %380 = sbr.rel (%p377) target = $region12
    $region11: #{pocket_encoder_forward.12} parent=5 // pred_region
      %s381 = ssub.s32 %s21, 1
      // Predicated region
      $region13: #{pocket_encoder_forward.12} parent=11 // pred_check
        %p382 = pneg %p68
      $region14: #{pocket_encoder_forward.12} parent=11 // pred_check_branch
        %384 = sbr.rel (%p382) target = $region16
      $region15: #{pocket_encoder_forward.12} parent=11 // pred_region
        _
      $region16: #{pocket_encoder_forward.12} parent=11 // pred_fallthru
        _
      // Predicated region
      $region17: #{pocket_encoder_forward.12} parent=11 // pred_check
        %p385 = pneg %p89
      $region18: #{pocket_encoder_forward.12} parent=11 // pred_check_branch
        %387 = sbr.rel (%p385) target = $region20
      $region19: #{pocket_encoder_forward.12} parent=11 // pred_region
        _
      $region20: #{pocket_encoder_forward.12} parent=11 // pred_fallthru
        _
      // Predicated region
      $region21: #{pocket_encoder_forward.12} parent=11 // pred_check
        %p388 = pneg %p110
      $region22: #{pocket_encoder_forward.12} parent=11 // pred_check_branch
        %390 = sbr.rel (%p388) target = $region24
      $region23: #{pocket_encoder_forward.12} parent=11 // pred_region
        _
      $region24: #{pocket_encoder_forward.12} parent=11 // pred_fallthru
        _
      // Predicated region
      $region25: #{pocket_encoder_forward.12} parent=11 // pred_check
        %p391 = pneg %p131
      $region26: #{pocket_encoder_forward.12} parent=11 // pred_check_branch
        %393 = sbr.rel (%p391) target = $region28
      $region27: #{pocket_encoder_forward.12} parent=11 // pred_region
        _
      $region28: #{pocket_encoder_forward.12} parent=11 // pred_fallthru
        _
      // Predicated region
      $region29: #{pocket_encoder_forward.12} parent=11 // pred_check
        %p394 = pneg %p152
      $region30: #{pocket_encoder_forward.12} parent=11 // pred_check_branch
        %396 = sbr.rel (%p394) target = $region32
      $region31: #{pocket_encoder_forward.12} parent=11 // pred_region
        _
      $region32: #{pocket_encoder_forward.12} parent=11 // pred_fallthru
        _
      // Predicated region
      $region33: #{pocket_encoder_forward.12} parent=11 // pred_check
        %p397 = pneg %p173
      $region34: #{pocket_encoder_forward.12} parent=11 // pred_check_branch
        %399 = sbr.rel (%p397) target = $region36
      $region35: #{pocket_encoder_forward.12} parent=11 // pred_region
        _
      $region36: #{pocket_encoder_forward.12} parent=11 // pred_fallthru
        _
      // Predicated region
      $region37: #{pocket_encoder_forward.12} parent=11 // pred_check
        %p400 = pneg %p194
      $region38: #{pocket_encoder_forward.12} parent=11 // pred_check_branch
        %402 = sbr.rel (%p400) target = $region40
      $region39: #{pocket_encoder_forward.12} parent=11 // pred_region
        _
      $region40: #{pocket_encoder_forward.12} parent=11 // pred_fallthru
        _
      // Predicated region
      $region41: #{pocket_encoder_forward.12} parent=11 // pred_check
        %p403 = pneg %p215
      $region42: #{pocket_encoder_forward.12} parent=11 // pred_check_branch
        %405 = sbr.rel (%p403) target = $region44
      $region43: #{pocket_encoder_forward.12} parent=11 // pred_region
        _
      $region44: #{pocket_encoder_forward.12} parent=11 // pred_fallthru
        _
      // Predicated region
      $region45: #{pocket_encoder_forward.12} parent=11 // pred_check
        %p406 = pneg %p236
      $region46: #{pocket_encoder_forward.12} parent=11 // pred_check_branch
        %408 = sbr.rel (%p406) target = $region48
      $region47: #{pocket_encoder_forward.12} parent=11 // pred_region
        _
      $region48: #{pocket_encoder_forward.12} parent=11 // pred_fallthru
        _
      // Predicated region
      $region49: #{pocket_encoder_forward.12} parent=11 // pred_check
        %p409 = pneg %p257
      $region50: #{pocket_encoder_forward.12} parent=11 // pred_check_branch
        %411 = sbr.rel (%p409) target = $region52
      $region51: #{pocket_encoder_forward.12} parent=11 // pred_region
        _
      $region52: #{pocket_encoder_forward.12} parent=11 // pred_fallthru
        _
      // Predicated region
      $region53: #{pocket_encoder_forward.12} parent=11 // pred_check
        %p412 = pneg %p278
      $region54: #{pocket_encoder_forward.12} parent=11 // pred_check_branch
        %414 = sbr.rel (%p412) target = $region56
      $region55: #{pocket_encoder_forward.12} parent=11 // pred_region
        _
      $region56: #{pocket_encoder_forward.12} parent=11 // pred_fallthru
        _
      // Predicated region
      $region57: #{pocket_encoder_forward.12} parent=11 // pred_check
        %p415 = pneg %p299
      $region58: #{pocket_encoder_forward.12} parent=11 // pred_check_branch
        %417 = sbr.rel (%p415) target = $region60
      $region59: #{pocket_encoder_forward.12} parent=11 // pred_region
        _
      $region60: #{pocket_encoder_forward.12} parent=11 // pred_fallthru
        _
      // Predicated region
      $region61: #{pocket_encoder_forward.12} parent=11 // pred_check
        %p418 = pneg %p320
      $region62: #{pocket_encoder_forward.12} parent=11 // pred_check_branch
        %420 = sbr.rel (%p418) target = $region64
      $region63: #{pocket_encoder_forward.12} parent=11 // pred_region
        _
      $region64: #{pocket_encoder_forward.12} parent=11 // pred_fallthru
        _
      // Predicated region
      $region65: #{pocket_encoder_forward.12} parent=11 // pred_check
        %p421 = pneg %p341
      $region66: #{pocket_encoder_forward.12} parent=11 // pred_check_branch
        %423 = sbr.rel (%p421) target = $region68
      $region67: #{pocket_encoder_forward.12} parent=11 // pred_region
        _
      $region68: #{pocket_encoder_forward.12} parent=11 // pred_fallthru
        _
    $region12: #{pocket_encoder_forward.12} parent=5 // pred_fallthru
      _
    %p424 = scmp.lt.s32.totalorder %s21, 2
    // Predicated region
    $region69: #{pocket_encoder_forward.12} parent=5 // pred_check
      %p425 = pneg %p424
    $region70: #{pocket_encoder_forward.12} parent=5 // pred_check_branch
      %427 = sbr.rel (%p425) target = $region72
    $region71: #{pocket_encoder_forward.12} parent=5 // pred_region
      // Predicated region
      $region73: #{pocket_encoder_forward.12} parent=71 // pred_check
        %p428 = pneg %p41
      $region74: #{pocket_encoder_forward.12} parent=71 // pred_check_branch
        %430 = sbr.rel (%p428) target = $region76
      $region75: #{pocket_encoder_forward.12} parent=71 // pred_region
        %p431 = scmp.lt.s32.totalorder %s21, 1
        %s432 = scalar_select %p431, %s21, 1
        %s433 = smul.addr %s432, 3
        %s434 = smul.addr %s433, 8
        %s435 = scalar_lea.vmem %s0, %s434
      $region76: #{pocket_encoder_forward.12} parent=71 // pred_fallthru
        _
    $region72: #{pocket_encoder_forward.12} parent=5 // pred_fallthru
      _
    %p436 = scmp.le.s32.totalorder 1, %s21
    %p437 = scmp.lt.s32.totalorder %s21, 3
    %p438 = pnand %p436, %p437
    %p439 = pneg %p438
    // Predicated region
    $region77: #{pocket_encoder_forward.12} parent=5 // pred_check
      _
    $region78: #{pocket_encoder_forward.12} parent=5 // pred_check_branch
      %441 = sbr.rel (%p438) target = $region80
    $region79: #{pocket_encoder_forward.12} parent=5 // pred_region
      %s442 = ssub.s32 %s21, 1
      %p443 = scmp.lt.s32.totalorder %s26, 1
      %s444 = scalar_select %p443, %s26, 1
      %s445 = smul.addr %s444, 3
      %s446 = smul.addr %s445, 8
      %s447 = scalar_lea.vmem %s0, %s446
      %p448 = pneg %p47
      %p449 = pneg %p44
      %p450 = pneg %p68
      %p451 = pneg %p65
      %p452 = pneg %p89
      %p453 = pneg %p86
      %p454 = pneg %p110
      %p455 = pneg %p107
      %p456 = pneg %p131
      %p457 = pneg %p128
      %p458 = pneg %p152
      %p459 = pneg %p149
      %p460 = pneg %p173
      %p461 = pneg %p170
      %p462 = pneg %p194
      %p463 = pneg %p191
      %p464 = pneg %p215
      %p465 = pneg %p212
      %p466 = pneg %p236
      %p467 = pneg %p233
      %p468 = pneg %p257
      %p469 = pneg %p254
      %p470 = pneg %p278
      %p471 = pneg %p275
      %p472 = pneg %p299
      %p473 = pneg %p296
      %p474 = pneg %p320
      %p475 = pneg %p317
      %p476 = pneg %p341
      %p477 = pneg %p338
      %p478 = pneg %p367
      %p479 = pneg %p364
      %p480 = scmp.lt.s32.totalorder %s26, 1
      %s481 = scalar_select %p480, %s26, 1
      %s482 = smul.addr %s481, 3
      %s483 = smul.addr %s482, 8
      %s484 = scalar_lea.vmem %s15, %s483
      %p485 = scmp.lt.s32.totalorder %s26, 1
      %s486 = scalar_select %p485, %s26, 1
      %s487 = smul.addr %s486, 3
      %s488 = smul.addr %s487, 8
      %s489 = scalar_lea.vmem %s0, %s488
      %p490 = scmp.lt.s32.totalorder %s26, 1
      %s491 = scalar_select %p490, %s26, 1
      %s492 = smul.addr %s491, 3
      %s493 = smul.addr %s492, 8
      %s494 = scalar_lea.vmem %s15, %s493
      %v496 = vld [vmem:[%s489] sm:$0xff]
      %v497 = vld [vmem:[%s489 + $0x8] sm:$0xff]
      %v498 = vld [vmem:[%s489 + $0x10] sm:$0xff]
      %500 = vrot.lane.b32.xlu0 %v498, 125
      %v501 = vpop.permute.xlu0 %500
      %503 = vrot.lane.b32.xlu0 %v498, 122
      %v504 = vpop.permute.xlu0 %503
      %v506 = vld [vmem:[%s1] sm:$0x3]
      %v507 = vpack.c.bf16 %v501, %v498
      %v508 = vpack.c.bf16 %v504, %v504
      %vm509 = vcmask 23552
      %v511 = vsel %vm509, %v507, 0
      %v514 = vsel %vm509, %v508, 0
      %vm516 = vcmask 1040384
      %vm517 = vcmask 1041408
      %v518 = vsel %vm516, 4294967295, 65535
      %v519 = vsel %vm517, %v518, 0
      %v521 = vand.u32 %v506, %v519
      %523 = vmatprep.subr.bf16.mxu0 0
      %524 = vmatpush1.bf16.msra.mxu0 0
      %525 = vmatprep.subr.bf16.mxu0 0
      %526 = vmatpush1.bf16.msra.mxu0 0
      %527 = vmatprep.subr.bf16.mxu0 0
      %528 = vmatpush1.bf16.msra.mxu0 0
      %529 = vmatprep.subr.bf16.mxu0 0
      %530 = vmatpush1.bf16.msra.mxu0 0
      %531 = vmatprep.subr.bf16.mxu0 0
      %532 = vmatpush1.bf16.msra.mxu0 0
      %533 = vmatprep.subr.bf16.mxu0 0
      %534 = vmatpush1.bf16.msra.mxu0 0
      %535 = vmatprep.subr.bf16.mxu0 0
      %536 = vmatpush1.bf16.msra.mxu0 0
      %537 = vmatprep.subr.bf16.mxu0 0
      %538 = vmatpush1.bf16.msra.mxu0 %v521
      %539 = vmatprep.subr.bf16.mxu0 0
      %540 = vmatpush2.bf16.msra.mxu0 0
      %541 = vmatprep.subr.bf16.mxu0 0
      %542 = vmatpush2.bf16.msra.mxu0 0
      %543 = vmatprep.subr.bf16.mxu0 0
      %544 = vmatpush2.bf16.msra.mxu0 0
      %545 = vmatprep.subr.bf16.mxu0 0
      %546 = vmatpush2.bf16.msra.mxu0 0
      %547 = vmatprep.subr.bf16.mxu0 0
      %548 = vmatpush2.bf16.msra.mxu0 0
      %549 = vmatprep.subr.bf16.mxu0 0
      %550 = vmatpush2.bf16.msra.mxu0 0
      %551 = vmatprep.subr.bf16.mxu0 0
      %552 = vmatpush2.bf16.msra.mxu0 0
      %553 = vmatprep.subr.bf16.mxu0 0
      %554 = vmatpush2.bf16.msra.mxu0 0
      %555 = vmatprep.mubr.bf16.mxu0 0
      %556 = vmatmul.mubr.bf16.gmra.mxu0 %v511
      %v557 = vpop.f32.mrf.mxu0
      %v558 = vadd.f32 0.0, %v557
      %v559 = vpop.f32.mrf.mxu0
      %v560 = vpop.f32.mrf.mxu0
      %v561 = vadd.f32 0.0, %v560
      %v562 = vpop.f32.mrf.mxu0
      %563 = vmatprep.mubr.bf16.mxu0 0
      %564 = vmatmul.mubr.bf16.gmra.mxu0 %v514
      %v565 = vpop.f32.mrf.mxu0
      %v566 = vadd.f32 0.0, %v565
      %v567 = vpop.f32.mrf.mxu0
      %v568 = vpop.f32.mrf.mxu0
      %v569 = vpop.f32.mrf.mxu0
      %570 = vdwg.mxu0
      %v571 = vld [vmem:[%s2] sm:$0xff]
      %v572 = vld [vmem:[%s2 + $0x8] sm:$0xff]
      %v573 = vld [vmem:[%s2 + $0x10] sm:$0xff]
      %v574 = vld [vmem:[%s2 + $0x18] sm:$0xff]
      %v575 = vld [vmem:[%s2 + $0x20] sm:$0xff]
      %v576 = vld [vmem:[%s2 + $0x28] sm:$0xff]
      %v577 = vld [vmem:[%s2 + $0x30] sm:$0xff]
      %v578 = vld [vmem:[%s2 + $0x38] sm:$0xff]
      %v579 = vld [vmem:[%s2 + $0x40] sm:$0xff]
      %v580 = vld [vmem:[%s2 + $0x48] sm:$0xff]
      %v581 = vld [vmem:[%s2 + $0x50] sm:$0xff]
      %v582 = vld [vmem:[%s2 + $0x58] sm:$0xff]
      %v583 = vld [vmem:[%s2 + $0x60] sm:$0xff]
      %v584 = vld [vmem:[%s2 + $0x68] sm:$0xff]
      %v585 = vld [vmem:[%s2 + $0x70] sm:$0xff]
      %v586 = vld [vmem:[%s2 + $0x78] sm:$0xff]
      %v587 = vld [vmem:[%s2 + $0x80] sm:$0xff]
      %v588 = vld [vmem:[%s2 + $0x88] sm:$0xff]
      %v589 = vld [vmem:[%s2 + $0x90] sm:$0xff]
      %v590 = vld [vmem:[%s2 + $0x98] sm:$0xff]
      %v591 = vld [vmem:[%s2 + $0xa0] sm:$0xff]
      %v592 = vld [vmem:[%s2 + $0xa8] sm:$0xff]
      %v593 = vld [vmem:[%s2 + $0xb0] sm:$0xff]
      %v594 = vld [vmem:[%s2 + $0xb8] sm:$0xff]
      %v595 = vld [vmem:[%s2 + $0xc0] sm:$0xff]
      %v596 = vld [vmem:[%s2 + $0xc8] sm:$0xff]
      %v597 = vld [vmem:[%s2 + $0xd0] sm:$0xff]
      %v598 = vld [vmem:[%s2 + $0xd8] sm:$0xff]
      %v599 = vld [vmem:[%s2 + $0xe0] sm:$0xff]
      %v600 = vld [vmem:[%s2 + $0xe8] sm:$0xff]
      %v601 = vld [vmem:[%s2 + $0xf0] sm:$0xff]
      %v602 = vld [vmem:[%s2 + $0xf8] sm:$0xff]
      %v603 = vld [vmem:[%s2 + $0x100] sm:$0xff]
      %v604 = vld [vmem:[%s2 + $0x108] sm:$0xff]
      %v605 = vld [vmem:[%s2 + $0x110] sm:$0xff]
      %v606 = vld [vmem:[%s2 + $0x118] sm:$0xff]
      %v607 = vld [vmem:[%s2 + $0x120] sm:$0xff]
      %v608 = vld [vmem:[%s2 + $0x128] sm:$0xff]
      %v609 = vld [vmem:[%s2 + $0x130] sm:$0xff]
      %v610 = vld [vmem:[%s2 + $0x138] sm:$0xff]
      %v611 = vld [vmem:[%s2 + $0x140] sm:$0xff]
      %v612 = vld [vmem:[%s2 + $0x148] sm:$0xff]
      %v613 = vld [vmem:[%s2 + $0x150] sm:$0xff]
      %v614 = vld [vmem:[%s2 + $0x158] sm:$0xff]
      %v615 = vld [vmem:[%s2 + $0x160] sm:$0xff]
      %v616 = vld [vmem:[%s2 + $0x168] sm:$0xff]
      %v617 = vld [vmem:[%s2 + $0x170] sm:$0xff]
      %v618 = vld [vmem:[%s2 + $0x178] sm:$0xff]
      %v619 = vld [vmem:[%s2 + $0x180] sm:$0xff]
      %v620 = vld [vmem:[%s2 + $0x188] sm:$0xff]
      %v621 = vld [vmem:[%s2 + $0x190] sm:$0xff]
      %v622 = vld [vmem:[%s2 + $0x198] sm:$0xff]
      %v623 = vld [vmem:[%s2 + $0x1a0] sm:$0xff]
      %v624 = vld [vmem:[%s2 + $0x1a8] sm:$0xff]
      %v625 = vld [vmem:[%s2 + $0x1b0] sm:$0xff]
      %v626 = vld [vmem:[%s2 + $0x1b8] sm:$0xff]
      %v627 = vld [vmem:[%s2 + $0x1c0] sm:$0xff]
      %v628 = vld [vmem:[%s2 + $0x1c8] sm:$0xff]
      %v629 = vld [vmem:[%s2 + $0x1d0] sm:$0xff]
      %v630 = vld [vmem:[%s2 + $0x1d8] sm:$0xff]
      %v631 = vld [vmem:[%s2 + $0x1e0] sm:$0xff]
      %v632 = vld [vmem:[%s2 + $0x1e8] sm:$0xff]
      %v633 = vld [vmem:[%s2 + $0x1f0] sm:$0xff]
      %v634 = vld [vmem:[%s2 + $0x1f8] sm:$0xff]
      %v635 = vld [vmem:[%s2 + $0x200] sm:$0xff]
      %v636 = vld [vmem:[%s2 + $0x208] sm:$0xff]
      %v637 = vld [vmem:[%s2 + $0x210] sm:$0xff]
      %v638 = vld [vmem:[%s2 + $0x218] sm:$0xff]
      %v639 = vld [vmem:[%s2 + $0x220] sm:$0xff]
      %v640 = vld [vmem:[%s2 + $0x228] sm:$0xff]
      %v641 = vld [vmem:[%s2 + $0x230] sm:$0xff]
      %v642 = vld [vmem:[%s2 + $0x238] sm:$0xff]
      %v643 = vld [vmem:[%s2 + $0x240] sm:$0xff]
      %v644 = vld [vmem:[%s2 + $0x248] sm:$0xff]
      %v645 = vld [vmem:[%s2 + $0x250] sm:$0xff]
      %v646 = vld [vmem:[%s2 + $0x258] sm:$0xff]
      %v647 = vld [vmem:[%s2 + $0x260] sm:$0xff]
      %v648 = vld [vmem:[%s2 + $0x268] sm:$0xff]
      %v649 = vld [vmem:[%s2 + $0x270] sm:$0xff]
      %v650 = vld [vmem:[%s2 + $0x278] sm:$0xff]
      %v651 = vld [vmem:[%s2 + $0x280] sm:$0xff]
      %v652 = vld [vmem:[%s2 + $0x288] sm:$0xff]
      %v653 = vld [vmem:[%s2 + $0x290] sm:$0xff]
      %v654 = vld [vmem:[%s2 + $0x298] sm:$0xff]
      %v655 = vld [vmem:[%s2 + $0x2a0] sm:$0xff]
      %v656 = vld [vmem:[%s2 + $0x2a8] sm:$0xff]
      %v657 = vld [vmem:[%s2 + $0x2b0] sm:$0xff]
      %v658 = vld [vmem:[%s2 + $0x2b8] sm:$0xff]
      %v659 = vld [vmem:[%s2 + $0x2c0] sm:$0xff]
      %v660 = vld [vmem:[%s2 + $0x2c8] sm:$0xff]
      %v661 = vld [vmem:[%s2 + $0x2d0] sm:$0xff]
      %v662 = vld [vmem:[%s2 + $0x2d8] sm:$0xff]
      %v663 = vld [vmem:[%s2 + $0x2e0] sm:$0xff]
      %v664 = vld [vmem:[%s2 + $0x2e8] sm:$0xff]
      %v665 = vld [vmem:[%s2 + $0x2f0] sm:$0xff]
      %v666 = vld [vmem:[%s2 + $0x2f8] sm:$0xff]
      %v667 = vld [vmem:[%s2 + $0x300] sm:$0xff]
      %v668 = vld [vmem:[%s2 + $0x308] sm:$0xff]
      %v669 = vld [vmem:[%s2 + $0x310] sm:$0xff]
      %v670 = vld [vmem:[%s2 + $0x318] sm:$0xff]
      %v671 = vld [vmem:[%s2 + $0x320] sm:$0xff]
      %v672 = vld [vmem:[%s2 + $0x328] sm:$0xff]
      %v673 = vld [vmem:[%s2 + $0x330] sm:$0xff]
      %v674 = vld [vmem:[%s2 + $0x338] sm:$0xff]
      %v675 = vld [vmem:[%s2 + $0x340] sm:$0xff]
      %v676 = vld [vmem:[%s2 + $0x348] sm:$0xff]
      %v677 = vld [vmem:[%s2 + $0x350] sm:$0xff]
      %v678 = vld [vmem:[%s2 + $0x358] sm:$0xff]
      %v679 = vld [vmem:[%s2 + $0x360] sm:$0xff]
      %v680 = vld [vmem:[%s2 + $0x368] sm:$0xff]
      %v681 = vld [vmem:[%s2 + $0x370] sm:$0xff]
      %v682 = vld [vmem:[%s2 + $0x378] sm:$0xff]
      %v683 = vld [vmem:[%s2 + $0x380] sm:$0xff]
      %v684 = vld [vmem:[%s2 + $0x388] sm:$0xff]
      %v685 = vld [vmem:[%s2 + $0x390] sm:$0xff]
      %v686 = vld [vmem:[%s2 + $0x398] sm:$0xff]
      %v687 = vld [vmem:[%s2 + $0x3a0] sm:$0xff]
      %v688 = vld [vmem:[%s2 + $0x3a8] sm:$0xff]
      %v689 = vld [vmem:[%s2 + $0x3b0] sm:$0xff]
      %v690 = vld [vmem:[%s2 + $0x3b8] sm:$0xff]
      %v691 = vld [vmem:[%s2 + $0x3c0] sm:$0xff]
      %v692 = vld [vmem:[%s2 + $0x3c8] sm:$0xff]
      %v693 = vld [vmem:[%s2 + $0x3d0] sm:$0xff]
      %v694 = vld [vmem:[%s2 + $0x3d8] sm:$0xff]
      %v695 = vld [vmem:[%s2 + $0x3e0] sm:$0xff]
      %v696 = vld [vmem:[%s2 + $0x3e8] sm:$0xff]
      %v697 = vld [vmem:[%s2 + $0x3f0] sm:$0xff]
      %v698 = vld [vmem:[%s2 + $0x3f8] sm:$0xff]
      %v699 = vpack.c.bf16 %v496, %v496
      %v700 = vpack.c.bf16 %v497, %v497
      %v701 = vmul.f32 %v558, %v558
      %v702 = vmul.f32 %v561, %v561
      %v703 = vadd.f32 %v701, %v702
      %v704 = vmul.f32 %v566, %v566
      %v705 = vadd.f32 %v703, %v704
      %v706 = vmax.f32 %v705, 1e-08
      %v707 = vrsqrt.pop %v706
      %v708 = vmul.f32 %v706, %v707
      %vm709 = vcmp.eq.f32.partialorder %v706, inf
      %v710 = vsel %vm709, %v706, %v708
      %vm711 = vcmp.eq.f32.partialorder %v706, 0.0
      %v712 = vand.u32 %v706, 2147483648
      %v713 = vsel %vm711, %v712, %v710
      %v714 = vld [vmem:[%s3] sm:$0x77]
      %v715 = vld [vmem:[%s3 + $0x8] sm:$0x77]
      %v716 = vld [vmem:[%s3 + $0x10] sm:$0x77]
      %v717 = vld [vmem:[%s3 + $0x18] sm:$0x77]
      %v718 = vpack.c.bf16 %v713, %v713
      %v723 = vunpack.c.l.b16 %v714
      %v724 = vunpack.c.h.b16 %v714
      %v725 = vunpack.c.l.b16 %v715
      %v726 = vunpack.c.h.b16 %v715
      %v727 = vunpack.c.l.b16 %v716
      %v728 = vunpack.c.h.b16 %v716
      %v729 = vunpack.c.l.b16 %v717
      %v730 = vunpack.c.h.b16 %v717
      %v731 = vpack.c.b16 %v723, %v723
      %v732 = vpack.c.b16 %v724, %v724
      %v733 = vpack.c.b16 %v725, %v725
      %v734 = vpack.c.b16 %v726, %v726
      %v735 = vpack.c.b16 %v727, %v727
      %v736 = vpack.c.b16 %v728, %v728
      %v737 = vpack.c.b16 %v729, %v729
      %v738 = vpack.c.b16 %v730, %v730
      %vm739 = vcmask 48128
      %v741 = vsel %vm739, %v718, 0
      %vm743 = vcmask 1042432
      %v745 = vsel %vm743, %v731, 0
      %v748 = vsel %vm743, %v732, 0
      %v751 = vsel %vm743, %v733, 0
      %v754 = vsel %vm743, %v734, 0
      %v757 = vsel %vm743, %v735, 0
      %v760 = vsel %vm743, %v736, 0
      %v763 = vsel %vm743, %v737, 0
      %v766 = vsel %vm743, %v738, 0
      %768 = vmatprep.subr.bf16.mxu0 0
      %769 = vmatpush1.bf16.msra.mxu0 0
      %770 = vmatprep.subr.bf16.mxu0 0
      %771 = vmatpush1.bf16.msra.mxu0 0
      %772 = vmatprep.subr.bf16.mxu0 0
      %773 = vmatpush1.bf16.msra.mxu0 0
      %774 = vmatprep.subr.bf16.mxu0 0
      %775 = vmatpush1.bf16.msra.mxu0 0
      %776 = vmatprep.subr.bf16.mxu0 0
      %777 = vmatpush1.bf16.msra.mxu0 0
      %778 = vmatprep.subr.bf16.mxu0 0
      %779 = vmatpush1.bf16.msra.mxu0 0
      %780 = vmatprep.subr.bf16.mxu0 0
      %781 = vmatpush1.bf16.msra.mxu0 0
      %782 = vmatprep.subr.bf16.mxu0 %v748
      %783 = vmatpush1.bf16.msra.mxu0 %v745
      %784 = vmatprep.subr.bf16.mxu0 0
      %785 = vmatpush2.bf16.msra.mxu0 0
      %786 = vmatprep.subr.bf16.mxu0 0
      %787 = vmatpush2.bf16.msra.mxu0 0
      %788 = vmatprep.subr.bf16.mxu0 0
      %789 = vmatpush2.bf16.msra.mxu0 0
      %790 = vmatprep.subr.bf16.mxu0 0
      %791 = vmatpush2.bf16.msra.mxu0 0
      %792 = vmatprep.subr.bf16.mxu0 0
      %793 = vmatpush2.bf16.msra.mxu0 0
      %794 = vmatprep.subr.bf16.mxu0 0
      %795 = vmatpush2.bf16.msra.mxu0 0
      %796 = vmatprep.subr.bf16.mxu0 0
      %797 = vmatpush2.bf16.msra.mxu0 0
      %798 = vmatprep.subr.bf16.mxu0 0
      %799 = vmatpush2.bf16.msra.mxu0 0
      %800 = vmatprep.mubr.bf16.mxu0 0
      %801 = vmatmul.mubr.bf16.gmra.mxu0 %v741
      %v802 = vpop.f32.mrf.mxu0
      %v803 = vadd.f32 0.0, %v802
      %v804 = vpop.f32.mrf.mxu0
      %v805 = vadd.f32 0.0, %v804
      %v806 = vpop.f32.mrf.mxu0
      %v807 = vpop.f32.mrf.mxu0
      %808 = vdwg.mxu0
      %809 = vmatprep.subr.bf16.mxu0 0
      %810 = vmatpush1.bf16.msra.mxu0 0
      %811 = vmatprep.subr.bf16.mxu0 0
      %812 = vmatpush1.bf16.msra.mxu0 0
      %813 = vmatprep.subr.bf16.mxu0 0
      %814 = vmatpush1.bf16.msra.mxu0 0
      %815 = vmatprep.subr.bf16.mxu0 0
      %816 = vmatpush1.bf16.msra.mxu0 0
      %817 = vmatprep.subr.bf16.mxu0 0
      %818 = vmatpush1.bf16.msra.mxu0 0
      %819 = vmatprep.subr.bf16.mxu0 0
      %820 = vmatpush1.bf16.msra.mxu0 0
      %821 = vmatprep.subr.bf16.mxu0 0
      %822 = vmatpush1.bf16.msra.mxu0 0
      %823 = vmatprep.subr.bf16.mxu0 %v754
      %824 = vmatpush1.bf16.msra.mxu0 %v751
      %825 = vmatprep.subr.bf16.mxu0 0
      %826 = vmatpush2.bf16.msra.mxu0 0
      %827 = vmatprep.subr.bf16.mxu0 0
      %828 = vmatpush2.bf16.msra.mxu0 0
      %829 = vmatprep.subr.bf16.mxu0 0
      %830 = vmatpush2.bf16.msra.mxu0 0
      %831 = vmatprep.subr.bf16.mxu0 0
      %832 = vmatpush2.bf16.msra.mxu0 0
      %833 = vmatprep.subr.bf16.mxu0 0
      %834 = vmatpush2.bf16.msra.mxu0 0
      %835 = vmatprep.subr.bf16.mxu0 0
      %836 = vmatpush2.bf16.msra.mxu0 0
      %837 = vmatprep.subr.bf16.mxu0 0
      %838 = vmatpush2.bf16.msra.mxu0 0
      %839 = vmatprep.subr.bf16.mxu0 0
      %840 = vmatpush2.bf16.msra.mxu0 0
      %841 = vmatprep.mubr.bf16.mxu0 0
      %842 = vmatmul.mubr.bf16.gmra.mxu0 %v741
      %v843 = vpop.f32.mrf.mxu0
      %v844 = vadd.f32 0.0, %v843
      %v845 = vpop.f32.mrf.mxu0
      %v846 = vadd.f32 0.0, %v845
      %v847 = vpop.f32.mrf.mxu0
      %v848 = vpop.f32.mrf.mxu0
      %849 = vdwg.mxu0
      %850 = vmatprep.subr.bf16.mxu0 0
      %851 = vmatpush1.bf16.msra.mxu0 0
      %852 = vmatprep.subr.bf16.mxu0 0
      %853 = vmatpush1.bf16.msra.mxu0 0
      %854 = vmatprep.subr.bf16.mxu0 0
      %855 = vmatpush1.bf16.msra.mxu0 0
      %856 = vmatprep.subr.bf16.mxu0 0
      %857 = vmatpush1.bf16.msra.mxu0 0
      %858 = vmatprep.subr.bf16.mxu0 0
      %859 = vmatpush1.bf16.msra.mxu0 0
      %860 = vmatprep.subr.bf16.mxu0 0
      %861 = vmatpush1.bf16.msra.mxu0 0
      %862 = vmatprep.subr.bf16.mxu0 0
      %863 = vmatpush1.bf16.msra.mxu0 0
      %864 = vmatprep.subr.bf16.mxu0 %v760
      %865 = vmatpush1.bf16.msra.mxu0 %v757
      %866 = vmatprep.subr.bf16.mxu0 0
      %867 = vmatpush2.bf16.msra.mxu0 0
      %868 = vmatprep.subr.bf16.mxu0 0
      %869 = vmatpush2.bf16.msra.mxu0 0
      %870 = vmatprep.subr.bf16.mxu0 0
      %871 = vmatpush2.bf16.msra.mxu0 0
      %872 = vmatprep.subr.bf16.mxu0 0
      %873 = vmatpush2.bf16.msra.mxu0 0
      %874 = vmatprep.subr.bf16.mxu0 0
      %875 = vmatpush2.bf16.msra.mxu0 0
      %876 = vmatprep.subr.bf16.mxu0 0
      %877 = vmatpush2.bf16.msra.mxu0 0
      %878 = vmatprep.subr.bf16.mxu0 0
      %879 = vmatpush2.bf16.msra.mxu0 0
      %880 = vmatprep.subr.bf16.mxu0 0
      %881 = vmatpush2.bf16.msra.mxu0 0
      %882 = vmatprep.mubr.bf16.mxu0 0
      %883 = vmatmul.mubr.bf16.gmra.mxu0 %v741
      %v884 = vpop.f32.mrf.mxu0
      %v885 = vadd.f32 0.0, %v884
      %v886 = vpop.f32.mrf.mxu0
      %v887 = vadd.f32 0.0, %v886
      %v888 = vpop.f32.mrf.mxu0
      %v889 = vpop.f32.mrf.mxu0
      %890 = vdwg.mxu0
      %891 = vmatprep.subr.bf16.mxu0 0
      %892 = vmatpush1.bf16.msra.mxu0 0
      %893 = vmatprep.subr.bf16.mxu0 0
      %894 = vmatpush1.bf16.msra.mxu0 0
      %895 = vmatprep.subr.bf16.mxu0 0
      %896 = vmatpush1.bf16.msra.mxu0 0
      %897 = vmatprep.subr.bf16.mxu0 0
      %898 = vmatpush1.bf16.msra.mxu0 0
      %899 = vmatprep.subr.bf16.mxu0 0
      %900 = vmatpush1.bf16.msra.mxu0 0
      %901 = vmatprep.subr.bf16.mxu0 0
      %902 = vmatpush1.bf16.msra.mxu0 0
      %903 = vmatprep.subr.bf16.mxu0 0
      %904 = vmatpush1.bf16.msra.mxu0 0
      %905 = vmatprep.subr.bf16.mxu0 %v766
      %906 = vmatpush1.bf16.msra.mxu0 %v763
      %907 = vmatprep.subr.bf16.mxu0 0
      %908 = vmatpush2.bf16.msra.mxu0 0
      %909 = vmatprep.subr.bf16.mxu0 0
      %910 = vmatpush2.bf16.msra.mxu0 0
      %911 = vmatprep.subr.bf16.mxu0 0
      %912 = vmatpush2.bf16.msra.mxu0 0
      %913 = vmatprep.subr.bf16.mxu0 0
      %914 = vmatpush2.bf16.msra.mxu0 0
      %915 = vmatprep.subr.bf16.mxu0 0
      %916 = vmatpush2.bf16.msra.mxu0 0
      %917 = vmatprep.subr.bf16.mxu0 0
      %918 = vmatpush2.bf16.msra.mxu0 0
      %919 = vmatprep.subr.bf16.mxu0 0
      %920 = vmatpush2.bf16.msra.mxu0 0
      %921 = vmatprep.subr.bf16.mxu0 0
      %922 = vmatpush2.bf16.msra.mxu0 0
      %923 = vmatprep.mubr.bf16.mxu0 0
      %924 = vmatmul.mubr.bf16.gmra.mxu0 %v741
      %v925 = vpop.f32.mrf.mxu0
      %v926 = vadd.f32 0.0, %v925
      %v927 = vpop.f32.mrf.mxu0
      %v928 = vadd.f32 0.0, %v927
      %v929 = vpop.f32.mrf.mxu0
      %v930 = vpop.f32.mrf.mxu0
      %931 = vdwg.mxu0
      %v1060 = vunpack.c.l.b16 %v571
      %v1061 = vunpack.c.h.b16 %v571
      %v1062 = vunpack.c.l.b16 %v572
      %v1063 = vunpack.c.h.b16 %v572
      %v1064 = vunpack.c.l.b16 %v573
      %v1065 = vunpack.c.h.b16 %v573
      %v1066 = vunpack.c.l.b16 %v574
      %v1067 = vunpack.c.h.b16 %v574
      %v1068 = vunpack.c.l.b16 %v575
      %v1069 = vunpack.c.h.b16 %v575
      %v1070 = vunpack.c.l.b16 %v576
      %v1071 = vunpack.c.h.b16 %v576
      %v1072 = vunpack.c.l.b16 %v577
      %v1073 = vunpack.c.h.b16 %v577
      %v1074 = vunpack.c.l.b16 %v578
      %v1075 = vunpack.c.h.b16 %v578
      %v1076 = vunpack.c.l.b16 %v579
      %v1077 = vunpack.c.h.b16 %v579
      %v1078 = vunpack.c.l.b16 %v580
      %v1079 = vunpack.c.h.b16 %v580
      %v1080 = vunpack.c.l.b16 %v581
      %v1081 = vunpack.c.h.b16 %v581
      %v1082 = vunpack.c.l.b16 %v582
      %v1083 = vunpack.c.h.b16 %v582
      %v1084 = vunpack.c.l.b16 %v583
      %v1085 = vunpack.c.h.b16 %v583
      %v1086 = vunpack.c.l.b16 %v584
      %v1087 = vunpack.c.h.b16 %v584
      %v1088 = vunpack.c.l.b16 %v585
      %v1089 = vunpack.c.h.b16 %v585
      %v1090 = vunpack.c.l.b16 %v586
      %v1091 = vunpack.c.h.b16 %v586
      %v1092 = vunpack.c.l.b16 %v587
      %v1093 = vunpack.c.h.b16 %v587
      %v1094 = vunpack.c.l.b16 %v588
      %v1095 = vunpack.c.h.b16 %v588
      %v1096 = vunpack.c.l.b16 %v589
      %v1097 = vunpack.c.h.b16 %v589
      %v1098 = vunpack.c.l.b16 %v590
      %v1099 = vunpack.c.h.b16 %v590
      %v1100 = vunpack.c.l.b16 %v591
      %v1101 = vunpack.c.h.b16 %v591
      %v1102 = vunpack.c.l.b16 %v592
      %v1103 = vunpack.c.h.b16 %v592
      %v1104 = vunpack.c.l.b16 %v593
      %v1105 = vunpack.c.h.b16 %v593
      %v1106 = vunpack.c.l.b16 %v594
      %v1107 = vunpack.c.h.b16 %v594
      %v1108 = vunpack.c.l.b16 %v595
      %v1109 = vunpack.c.h.b16 %v595
      %v1110 = vunpack.c.l.b16 %v596
      %v1111 = vunpack.c.h.b16 %v596
      %v1112 = vunpack.c.l.b16 %v597
      %v1113 = vunpack.c.h.b16 %v597
      %v1114 = vunpack.c.l.b16 %v598
      %v1115 = vunpack.c.h.b16 %v598
      %v1116 = vunpack.c.l.b16 %v599
      %v1117 = vunpack.c.h.b16 %v599
      %v1118 = vunpack.c.l.b16 %v600
      %v1119 = vunpack.c.h.b16 %v600
      %v1120 = vunpack.c.l.b16 %v601
      %v1121 = vunpack.c.h.b16 %v601
      %v1122 = vunpack.c.l.b16 %v602
      %v1123 = vunpack.c.h.b16 %v602
      %v1124 = vunpack.c.l.b16 %v603
      %v1125 = vunpack.c.h.b16 %v603
      %v1126 = vunpack.c.l.b16 %v604
      %v1127 = vunpack.c.h.b16 %v604
      %v1128 = vunpack.c.l.b16 %v605
      %v1129 = vunpack.c.h.b16 %v605
      %v1130 = vunpack.c.l.b16 %v606
      %v1131 = vunpack.c.h.b16 %v606
      %v1132 = vunpack.c.l.b16 %v607
      %v1133 = vunpack.c.h.b16 %v607
      %v1134 = vunpack.c.l.b16 %v608
      %v1135 = vunpack.c.h.b16 %v608
      %v1136 = vunpack.c.l.b16 %v609
      %v1137 = vunpack.c.h.b16 %v609
      %v1138 = vunpack.c.l.b16 %v610
      %v1139 = vunpack.c.h.b16 %v610
      %v1140 = vunpack.c.l.b16 %v611
      %v1141 = vunpack.c.h.b16 %v611
      %v1142 = vunpack.c.l.b16 %v612
      %v1143 = vunpack.c.h.b16 %v612
      %v1144 = vunpack.c.l.b16 %v613
      %v1145 = vunpack.c.h.b16 %v613
      %v1146 = vunpack.c.l.b16 %v614
      %v1147 = vunpack.c.h.b16 %v614
      %v1148 = vunpack.c.l.b16 %v615
      %v1149 = vunpack.c.h.b16 %v615
      %v1150 = vunpack.c.l.b16 %v616
      %v1151 = vunpack.c.h.b16 %v616
      %v1152 = vunpack.c.l.b16 %v617
      %v1153 = vunpack.c.h.b16 %v617
      %v1154 = vunpack.c.l.b16 %v618
      %v1155 = vunpack.c.h.b16 %v618
      %v1156 = vunpack.c.l.b16 %v619
      %v1157 = vunpack.c.h.b16 %v619
      %v1158 = vunpack.c.l.b16 %v620
      %v1159 = vunpack.c.h.b16 %v620
      %v1160 = vunpack.c.l.b16 %v621
      %v1161 = vunpack.c.h.b16 %v621
      %v1162 = vunpack.c.l.b16 %v622
      %v1163 = vunpack.c.h.b16 %v622
      %v1164 = vunpack.c.l.b16 %v623
      %v1165 = vunpack.c.h.b16 %v623
      %v1166 = vunpack.c.l.b16 %v624
      %v1167 = vunpack.c.h.b16 %v624
      %v1168 = vunpack.c.l.b16 %v625
      %v1169 = vunpack.c.h.b16 %v625
      %v1170 = vunpack.c.l.b16 %v626
      %v1171 = vunpack.c.h.b16 %v626
      %v1172 = vunpack.c.l.b16 %v627
      %v1173 = vunpack.c.h.b16 %v627
      %v1174 = vunpack.c.l.b16 %v628
      %v1175 = vunpack.c.h.b16 %v628
      %v1176 = vunpack.c.l.b16 %v629
      %v1177 = vunpack.c.h.b16 %v629
      %v1178 = vunpack.c.l.b16 %v630
      %v1179 = vunpack.c.h.b16 %v630
      %v1180 = vunpack.c.l.b16 %v631
      %v1181 = vunpack.c.h.b16 %v631
      %v1182 = vunpack.c.l.b16 %v632
      %v1183 = vunpack.c.h.b16 %v632
      %v1184 = vunpack.c.l.b16 %v633
      %v1185 = vunpack.c.h.b16 %v633
      %v1186 = vunpack.c.l.b16 %v634
      %v1187 = vunpack.c.h.b16 %v634
      %v1188 = vunpack.c.l.b16 %v635
      %v1189 = vunpack.c.h.b16 %v635
      %v1190 = vunpack.c.l.b16 %v636
      %v1191 = vunpack.c.h.b16 %v636
      %v1192 = vunpack.c.l.b16 %v637
      %v1193 = vunpack.c.h.b16 %v637
      %v1194 = vunpack.c.l.b16 %v638
      %v1195 = vunpack.c.h.b16 %v638
      %v1196 = vunpack.c.l.b16 %v639
      %v1197 = vunpack.c.h.b16 %v639
      %v1198 = vunpack.c.l.b16 %v640
      %v1199 = vunpack.c.h.b16 %v640
      %v1200 = vunpack.c.l.b16 %v641
      %v1201 = vunpack.c.h.b16 %v641
      %v1202 = vunpack.c.l.b16 %v642
      %v1203 = vunpack.c.h.b16 %v642
      %v1204 = vunpack.c.l.b16 %v643
      %v1205 = vunpack.c.h.b16 %v643
      %v1206 = vunpack.c.l.b16 %v644
      %v1207 = vunpack.c.h.b16 %v644
      %v1208 = vunpack.c.l.b16 %v645
      %v1209 = vunpack.c.h.b16 %v645
      %v1210 = vunpack.c.l.b16 %v646
      %v1211 = vunpack.c.h.b16 %v646
      %v1212 = vunpack.c.l.b16 %v647
      %v1213 = vunpack.c.h.b16 %v647
      %v1214 = vunpack.c.l.b16 %v648
      %v1215 = vunpack.c.h.b16 %v648
      %v1216 = vunpack.c.l.b16 %v649
      %v1217 = vunpack.c.h.b16 %v649
      %v1218 = vunpack.c.l.b16 %v650
      %v1219 = vunpack.c.h.b16 %v650
      %v1220 = vunpack.c.l.b16 %v651
      %v1221 = vunpack.c.h.b16 %v651
      %v1222 = vunpack.c.l.b16 %v652
      %v1223 = vunpack.c.h.b16 %v652
      %v1224 = vunpack.c.l.b16 %v653
      %v1225 = vunpack.c.h.b16 %v653
      %v1226 = vunpack.c.l.b16 %v654
      %v1227 = vunpack.c.h.b16 %v654
      %v1228 = vunpack.c.l.b16 %v655
      %v1229 = vunpack.c.h.b16 %v655
      %v1230 = vunpack.c.l.b16 %v656
      %v1231 = vunpack.c.h.b16 %v656
      %v1232 = vunpack.c.l.b16 %v657
      %v1233 = vunpack.c.h.b16 %v657
      %v1234 = vunpack.c.l.b16 %v658
      %v1235 = vunpack.c.h.b16 %v658
      %v1236 = vunpack.c.l.b16 %v659
      %v1237 = vunpack.c.h.b16 %v659
      %v1238 = vunpack.c.l.b16 %v660
      %v1239 = vunpack.c.h.b16 %v660
      %v1240 = vunpack.c.l.b16 %v661
      %v1241 = vunpack.c.h.b16 %v661
      %v1242 = vunpack.c.l.b16 %v662
      %v1243 = vunpack.c.h.b16 %v662
      %v1244 = vunpack.c.l.b16 %v663
      %v1245 = vunpack.c.h.b16 %v663
      %v1246 = vunpack.c.l.b16 %v664
      %v1247 = vunpack.c.h.b16 %v664
      %v1248 = vunpack.c.l.b16 %v665
      %v1249 = vunpack.c.h.b16 %v665
      %v1250 = vunpack.c.l.b16 %v666
      %v1251 = vunpack.c.h.b16 %v666
      %v1252 = vunpack.c.l.b16 %v667
      %v1253 = vunpack.c.h.b16 %v667
      %v1254 = vunpack.c.l.b16 %v668
      %v1255 = vunpack.c.h.b16 %v668
      %v1256 = vunpack.c.l.b16 %v669
      %v1257 = vunpack.c.h.b16 %v669
      %v1258 = vunpack.c.l.b16 %v670
      %v1259 = vunpack.c.h.b16 %v670
      %v1260 = vunpack.c.l.b16 %v671
      %v1261 = vunpack.c.h.b16 %v671
      %v1262 = vunpack.c.l.b16 %v672
      %v1263 = vunpack.c.h.b16 %v672
      %v1264 = vunpack.c.l.b16 %v673
      %v1265 = vunpack.c.h.b16 %v673
      %v1266 = vunpack.c.l.b16 %v674
      %v1267 = vunpack.c.h.b16 %v674
      %v1268 = vunpack.c.l.b16 %v675
      %v1269 = vunpack.c.h.b16 %v675
      %v1270 = vunpack.c.l.b16 %v676
      %v1271 = vunpack.c.h.b16 %v676
      %v1272 = vunpack.c.l.b16 %v677
      %v1273 = vunpack.c.h.b16 %v677
      %v1274 = vunpack.c.l.b16 %v678
      %v1275 = vunpack.c.h.b16 %v678
      %v1276 = vunpack.c.l.b16 %v679
      %v1277 = vunpack.c.h.b16 %v679
      %v1278 = vunpack.c.l.b16 %v680
      %v1279 = vunpack.c.h.b16 %v680
      %v1280 = vunpack.c.l.b16 %v681
      %v1281 = vunpack.c.h.b16 %v681
      %v1282 = vunpack.c.l.b16 %v682
      %v1283 = vunpack.c.h.b16 %v682
      %v1284 = vunpack.c.l.b16 %v683
      %v1285 = vunpack.c.h.b16 %v683
      %v1286 = vunpack.c.l.b16 %v684
      %v1287 = vunpack.c.h.b16 %v684
      %v1288 = vunpack.c.l.b16 %v685
      %v1289 = vunpack.c.h.b16 %v685
      %v1290 = vunpack.c.l.b16 %v686
      %v1291 = vunpack.c.h.b16 %v686
      %v1292 = vunpack.c.l.b16 %v687
      %v1293 = vunpack.c.h.b16 %v687
      %v1294 = vunpack.c.l.b16 %v688
      %v1295 = vunpack.c.h.b16 %v688
      %v1296 = vunpack.c.l.b16 %v689
      %v1297 = vunpack.c.h.b16 %v689
      %v1298 = vunpack.c.l.b16 %v690
      %v1299 = vunpack.c.h.b16 %v690
      %v1300 = vunpack.c.l.b16 %v691
      %v1301 = vunpack.c.h.b16 %v691
      %v1302 = vunpack.c.l.b16 %v692
      %v1303 = vunpack.c.h.b16 %v692
      %v1304 = vunpack.c.l.b16 %v693
      %v1305 = vunpack.c.h.b16 %v693
      %v1306 = vunpack.c.l.b16 %v694
      %v1307 = vunpack.c.h.b16 %v694
      %v1308 = vunpack.c.l.b16 %v695
      %v1309 = vunpack.c.h.b16 %v695
      %v1310 = vunpack.c.l.b16 %v696
      %v1311 = vunpack.c.h.b16 %v696
      %v1312 = vunpack.c.l.b16 %v697
      %v1313 = vunpack.c.h.b16 %v697
      %v1314 = vunpack.c.l.b16 %v698
      %v1315 = vunpack.c.h.b16 %v698
      %v1316 = vpack.c.b16 %v1068, %v1060
      %v1317 = vpack.c.b16 %v1069, %v1061
      %v1318 = vpack.c.b16 %v1070, %v1062
      %v1319 = vpack.c.b16 %v1071, %v1063
      %v1320 = vpack.c.b16 %v1072, %v1064
      %v1321 = vpack.c.b16 %v1073, %v1065
      %v1322 = vpack.c.b16 %v1074, %v1066
      %v1323 = vpack.c.b16 %v1075, %v1067
      %v1324 = vpack.c.b16 %v1084, %v1076
      %v1325 = vpack.c.b16 %v1085, %v1077
      %v1326 = vpack.c.b16 %v1086, %v1078
      %v1327 = vpack.c.b16 %v1087, %v1079
      %v1328 = vpack.c.b16 %v1088, %v1080
      %v1329 = vpack.c.b16 %v1089, %v1081
      %v1330 = vpack.c.b16 %v1090, %v1082
      %v1331 = vpack.c.b16 %v1091, %v1083
      %v1332 = vpack.c.b16 %v1100, %v1092
      %v1333 = vpack.c.b16 %v1101, %v1093
      %v1334 = vpack.c.b16 %v1102, %v1094
      %v1335 = vpack.c.b16 %v1103, %v1095
      %v1336 = vpack.c.b16 %v1104, %v1096
      %v1337 = vpack.c.b16 %v1105, %v1097
      %v1338 = vpack.c.b16 %v1106, %v1098
      %v1339 = vpack.c.b16 %v1107, %v1099
      %v1340 = vpack.c.b16 %v1116, %v1108
      %v1341 = vpack.c.b16 %v1117, %v1109
      %v1342 = vpack.c.b16 %v1118, %v1110
      %v1343 = vpack.c.b16 %v1119, %v1111
      %v1344 = vpack.c.b16 %v1120, %v1112
      %v1345 = vpack.c.b16 %v1121, %v1113
      %v1346 = vpack.c.b16 %v1122, %v1114
      %v1347 = vpack.c.b16 %v1123, %v1115
      %v1348 = vpack.c.b16 %v1132, %v1124
      %v1349 = vpack.c.b16 %v1133, %v1125
      %v1350 = vpack.c.b16 %v1134, %v1126
      %v1351 = vpack.c.b16 %v1135, %v1127
      %v1352 = vpack.c.b16 %v1136, %v1128
      %v1353 = vpack.c.b16 %v1137, %v1129
      %v1354 = vpack.c.b16 %v1138, %v1130
      %v1355 = vpack.c.b16 %v1139, %v1131
      %v1356 = vpack.c.b16 %v1148, %v1140
      %v1357 = vpack.c.b16 %v1149, %v1141
      %v1358 = vpack.c.b16 %v1150, %v1142
      %v1359 = vpack.c.b16 %v1151, %v1143
      %v1360 = vpack.c.b16 %v1152, %v1144
      %v1361 = vpack.c.b16 %v1153, %v1145
      %v1362 = vpack.c.b16 %v1154, %v1146
      %v1363 = vpack.c.b16 %v1155, %v1147
      %v1364 = vpack.c.b16 %v1164, %v1156
      %v1365 = vpack.c.b16 %v1165, %v1157
      %v1366 = vpack.c.b16 %v1166, %v1158
      %v1367 = vpack.c.b16 %v1167, %v1159
      %v1368 = vpack.c.b16 %v1168, %v1160
      %v1369 = vpack.c.b16 %v1169, %v1161
      %v1370 = vpack.c.b16 %v1170, %v1162
      %v1371 = vpack.c.b16 %v1171, %v1163
      %v1372 = vpack.c.b16 %v1180, %v1172
      %v1373 = vpack.c.b16 %v1181, %v1173
      %v1374 = vpack.c.b16 %v1182, %v1174
      %v1375 = vpack.c.b16 %v1183, %v1175
      %v1376 = vpack.c.b16 %v1184, %v1176
      %v1377 = vpack.c.b16 %v1185, %v1177
      %v1378 = vpack.c.b16 %v1186, %v1178
      %v1379 = vpack.c.b16 %v1187, %v1179
      %v1380 = vpack.c.b16 %v1196, %v1188
      %v1381 = vpack.c.b16 %v1197, %v1189
      %v1382 = vpack.c.b16 %v1198, %v1190
      %v1383 = vpack.c.b16 %v1199, %v1191
      %v1384 = vpack.c.b16 %v1200, %v1192
      %v1385 = vpack.c.b16 %v1201, %v1193
      %v1386 = vpack.c.b16 %v1202, %v1194
      %v1387 = vpack.c.b16 %v1203, %v1195
      %v1388 = vpack.c.b16 %v1212, %v1204
      %v1389 = vpack.c.b16 %v1213, %v1205
      %v1390 = vpack.c.b16 %v1214, %v1206
      %v1391 = vpack.c.b16 %v1215, %v1207
      %v1392 = vpack.c.b16 %v1216, %v1208
      %v1393 = vpack.c.b16 %v1217, %v1209
      %v1394 = vpack.c.b16 %v1218, %v1210
      %v1395 = vpack.c.b16 %v1219, %v1211
      %v1396 = vpack.c.b16 %v1228, %v1220
      %v1397 = vpack.c.b16 %v1229, %v1221
      %v1398 = vpack.c.b16 %v1230, %v1222
      %v1399 = vpack.c.b16 %v1231, %v1223
      %v1400 = vpack.c.b16 %v1232, %v1224
      %v1401 = vpack.c.b16 %v1233, %v1225
      %v1402 = vpack.c.b16 %v1234, %v1226
      %v1403 = vpack.c.b16 %v1235, %v1227
      %v1404 = vpack.c.b16 %v1244, %v1236
      %v1405 = vpack.c.b16 %v1245, %v1237
      %v1406 = vpack.c.b16 %v1246, %v1238
      %v1407 = vpack.c.b16 %v1247, %v1239
      %v1408 = vpack.c.b16 %v1248, %v1240
      %v1409 = vpack.c.b16 %v1249, %v1241
      %v1410 = vpack.c.b16 %v1250, %v1242
      %v1411 = vpack.c.b16 %v1251, %v1243
      %v1412 = vpack.c.b16 %v1260, %v1252
      %v1413 = vpack.c.b16 %v1261, %v1253
      %v1414 = vpack.c.b16 %v1262, %v1254
      %v1415 = vpack.c.b16 %v1263, %v1255
      %v1416 = vpack.c.b16 %v1264, %v1256
      %v1417 = vpack.c.b16 %v1265, %v1257
      %v1418 = vpack.c.b16 %v1266, %v1258
      %v1419 = vpack.c.b16 %v1267, %v1259
      %v1420 = vpack.c.b16 %v1276, %v1268
      %v1421 = vpack.c.b16 %v1277, %v1269
      %v1422 = vpack.c.b16 %v1278, %v1270
      %v1423 = vpack.c.b16 %v1279, %v1271
      %v1424 = vpack.c.b16 %v1280, %v1272
      %v1425 = vpack.c.b16 %v1281, %v1273
      %v1426 = vpack.c.b16 %v1282, %v1274
      %v1427 = vpack.c.b16 %v1283, %v1275
      %v1428 = vpack.c.b16 %v1292, %v1284
      %v1429 = vpack.c.b16 %v1293, %v1285
      %v1430 = vpack.c.b16 %v1294, %v1286
      %v1431 = vpack.c.b16 %v1295, %v1287
      %v1432 = vpack.c.b16 %v1296, %v1288
      %v1433 = vpack.c.b16 %v1297, %v1289
      %v1434 = vpack.c.b16 %v1298, %v1290
      %v1435 = vpack.c.b16 %v1299, %v1291
      %v1436 = vpack.c.b16 %v1308, %v1300
      %v1437 = vpack.c.b16 %v1309, %v1301
      %v1438 = vpack.c.b16 %v1310, %v1302
      %v1439 = vpack.c.b16 %v1311, %v1303
      %v1440 = vpack.c.b16 %v1312, %v1304
      %v1441 = vpack.c.b16 %v1313, %v1305
      %v1442 = vpack.c.b16 %v1314, %v1306
      %v1443 = vpack.c.b16 %v1315, %v1307
      %1572 = vmatprep.subr.bf16.mxu0 %v1373
      %1573 = vmatpush1.bf16.msra.mxu0 %v1372
      %1574 = vmatprep.subr.bf16.mxu0 %v1365
      %1575 = vmatpush1.bf16.msra.mxu0 %v1364
      %1576 = vmatprep.subr.bf16.mxu0 %v1357
      %1577 = vmatpush1.bf16.msra.mxu0 %v1356
      %1578 = vmatprep.subr.bf16.mxu0 %v1349
      %1579 = vmatpush1.bf16.msra.mxu0 %v1348
      %1580 = vmatprep.subr.bf16.mxu0 %v1341
      %1581 = vmatpush1.bf16.msra.mxu0 %v1340
      %1582 = vmatprep.subr.bf16.mxu0 %v1333
      %1583 = vmatpush1.bf16.msra.mxu0 %v1332
      %1584 = vmatprep.subr.bf16.mxu0 %v1325
      %1585 = vmatpush1.bf16.msra.mxu0 %v1324
      %1586 = vmatprep.subr.bf16.mxu0 %v1317
      %1587 = vmatpush1.bf16.msra.mxu0 %v1316
      %1588 = vmatprep.subr.bf16.mxu0 %v1437
      %1589 = vmatpush2.bf16.msra.mxu0 %v1436
      %1590 = vmatprep.subr.bf16.mxu0 %v1429
      %1591 = vmatpush2.bf16.msra.mxu0 %v1428
      %1592 = vmatprep.subr.bf16.mxu0 %v1421
      %1593 = vmatpush2.bf16.msra.mxu0 %v1420
      %1594 = vmatprep.subr.bf16.mxu0 %v1413
      %1595 = vmatpush2.bf16.msra.mxu0 %v1412
      %1596 = vmatprep.subr.bf16.mxu0 %v1405
      %1597 = vmatpush2.bf16.msra.mxu0 %v1404
      %1598 = vmatprep.subr.bf16.mxu0 %v1397
      %1599 = vmatpush2.bf16.msra.mxu0 %v1396
      %1600 = vmatprep.subr.bf16.mxu0 %v1389
      %1601 = vmatpush2.bf16.msra.mxu0 %v1388
      %1602 = vmatprep.subr.bf16.mxu0 %v1381
      %1603 = vmatpush2.bf16.msra.mxu0 %v1380
      %1604 = vmatprep.mubr.bf16.mxu0 %v700
      %1605 = vmatmul.mubr.bf16.gmra.mxu0 %v699
      %v1606 = vpop.f32.mrf.mxu0
      %v1607 = vadd.f32 %v803, %v1606
      %v1608 = vpop.f32.mrf.mxu0
      %v1609 = vadd.f32 %v805, %v1608
      %v1610 = vpop.f32.mrf.mxu0
      %v1611 = vpop.f32.mrf.mxu0
      %1612 = vdwg.mxu0
      %1613 = vmatprep.subr.bf16.mxu0 %v1375
      %1614 = vmatpush1.bf16.msra.mxu0 %v1374
      %1615 = vmatprep.subr.bf16.mxu0 %v1367
      %1616 = vmatpush1.bf16.msra.mxu0 %v1366
      %1617 = vmatprep.subr.bf16.mxu0 %v1359
      %1618 = vmatpush1.bf16.msra.mxu0 %v1358
      %1619 = vmatprep.subr.bf16.mxu0 %v1351
      %1620 = vmatpush1.bf16.msra.mxu0 %v1350
      %1621 = vmatprep.subr.bf16.mxu0 %v1343
      %1622 = vmatpush1.bf16.msra.mxu0 %v1342
      %1623 = vmatprep.subr.bf16.mxu0 %v1335
      %1624 = vmatpush1.bf16.msra.mxu0 %v1334
      %1625 = vmatprep.subr.bf16.mxu0 %v1327
      %1626 = vmatpush1.bf16.msra.mxu0 %v1326
      %1627 = vmatprep.subr.bf16.mxu0 %v1319
      %1628 = vmatpush1.bf16.msra.mxu0 %v1318
      %1629 = vmatprep.subr.bf16.mxu0 %v1439
      %1630 = vmatpush2.bf16.msra.mxu0 %v1438
      %1631 = vmatprep.subr.bf16.mxu0 %v1431
      %1632 = vmatpush2.bf16.msra.mxu0 %v1430
      %1633 = vmatprep.subr.bf16.mxu0 %v1423
      %1634 = vmatpush2.bf16.msra.mxu0 %v1422
      %1635 = vmatprep.subr.bf16.mxu0 %v1415
      %1636 = vmatpush2.bf16.msra.mxu0 %v1414
      %1637 = vmatprep.subr.bf16.mxu0 %v1407
      %1638 = vmatpush2.bf16.msra.mxu0 %v1406
      %1639 = vmatprep.subr.bf16.mxu0 %v1399
      %1640 = vmatpush2.bf16.msra.mxu0 %v1398
      %1641 = vmatprep.subr.bf16.mxu0 %v1391
      %1642 = vmatpush2.bf16.msra.mxu0 %v1390
      %1643 = vmatprep.subr.bf16.mxu0 %v1383
      %1644 = vmatpush2.bf16.msra.mxu0 %v1382
      %1645 = vmatprep.mubr.bf16.mxu0 %v700
      %1646 = vmatmul.mubr.bf16.gmra.mxu0 %v699
      %v1647 = vpop.f32.mrf.mxu0
      %v1648 = vadd.f32 %v844, %v1647
      %v1649 = vpop.f32.mrf.mxu0
      %v1650 = vadd.f32 %v846, %v1649
      %v1651 = vpop.f32.mrf.mxu0
      %v1652 = vpop.f32.mrf.mxu0
      %1653 = vdwg.mxu0
      %1654 = vmatprep.subr.bf16.mxu0 %v1377
      %1655 = vmatpush1.bf16.msra.mxu0 %v1376
      %1656 = vmatprep.subr.bf16.mxu0 %v1369
      %1657 = vmatpush1.bf16.msra.mxu0 %v1368
      %1658 = vmatprep.subr.bf16.mxu0 %v1361
      %1659 = vmatpush1.bf16.msra.mxu0 %v1360
      %1660 = vmatprep.subr.bf16.mxu0 %v1353
      %1661 = vmatpush1.bf16.msra.mxu0 %v1352
      %1662 = vmatprep.subr.bf16.mxu0 %v1345
      %1663 = vmatpush1.bf16.msra.mxu0 %v1344
      %1664 = vmatprep.subr.bf16.mxu0 %v1337
      %1665 = vmatpush1.bf16.msra.mxu0 %v1336
      %1666 = vmatprep.subr.bf16.mxu0 %v1329
      %1667 = vmatpush1.bf16.msra.mxu0 %v1328
      %1668 = vmatprep.subr.bf16.mxu0 %v1321
      %1669 = vmatpush1.bf16.msra.mxu0 %v1320
      %1670 = vmatprep.subr.bf16.mxu0 %v1441
      %1671 = vmatpush2.bf16.msra.mxu0 %v1440
      %1672 = vmatprep.subr.bf16.mxu0 %v1433
      %1673 = vmatpush2.bf16.msra.mxu0 %v1432
      %1674 = vmatprep.subr.bf16.mxu0 %v1425
      %1675 = vmatpush2.bf16.msra.mxu0 %v1424
      %1676 = vmatprep.subr.bf16.mxu0 %v1417
      %1677 = vmatpush2.bf16.msra.mxu0 %v1416
      %1678 = vmatprep.subr.bf16.mxu0 %v1409
      %1679 = vmatpush2.bf16.msra.mxu0 %v1408
      %1680 = vmatprep.subr.bf16.mxu0 %v1401
      %1681 = vmatpush2.bf16.msra.mxu0 %v1400
      %1682 = vmatprep.subr.bf16.mxu0 %v1393
      %1683 = vmatpush2.bf16.msra.mxu0 %v1392
      %1684 = vmatprep.subr.bf16.mxu0 %v1385
      %1685 = vmatpush2.bf16.msra.mxu0 %v1384
      %1686 = vmatprep.mubr.bf16.mxu0 %v700
      %1687 = vmatmul.mubr.bf16.gmra.mxu0 %v699
      %v1688 = vpop.f32.mrf.mxu0
      %v1689 = vadd.f32 %v885, %v1688
      %v1690 = vpop.f32.mrf.mxu0
      %v1691 = vadd.f32 %v887, %v1690
      %v1692 = vpop.f32.mrf.mxu0
      %v1693 = vpop.f32.mrf.mxu0
      %1694 = vdwg.mxu0
      %1695 = vmatprep.subr.bf16.mxu0 %v1379
      %1696 = vmatpush1.bf16.msra.mxu0 %v1378
      %1697 = vmatprep.subr.bf16.mxu0 %v1371
      %1698 = vmatpush1.bf16.msra.mxu0 %v1370
      %1699 = vmatprep.subr.bf16.mxu0 %v1363
      %1700 = vmatpush1.bf16.msra.mxu0 %v1362
      %1701 = vmatprep.subr.bf16.mxu0 %v1355
      %1702 = vmatpush1.bf16.msra.mxu0 %v1354
      %1703 = vmatprep.subr.bf16.mxu0 %v1347
      %1704 = vmatpush1.bf16.msra.mxu0 %v1346
      %1705 = vmatprep.subr.bf16.mxu0 %v1339
      %1706 = vmatpush1.bf16.msra.mxu0 %v1338
      %1707 = vmatprep.subr.bf16.mxu0 %v1331
      %1708 = vmatpush1.bf16.msra.mxu0 %v1330
      %1709 = vmatprep.subr.bf16.mxu0 %v1323
      %1710 = vmatpush1.bf16.msra.mxu0 %v1322
      %1711 = vmatprep.subr.bf16.mxu0 %v1443
      %1712 = vmatpush2.bf16.msra.mxu0 %v1442
      %1713 = vmatprep.subr.bf16.mxu0 %v1435
      %1714 = vmatpush2.bf16.msra.mxu0 %v1434
      %1715 = vmatprep.subr.bf16.mxu0 %v1427
      %1716 = vmatpush2.bf16.msra.mxu0 %v1426
      %1717 = vmatprep.subr.bf16.mxu0 %v1419
      %1718 = vmatpush2.bf16.msra.mxu0 %v1418
      %1719 = vmatprep.subr.bf16.mxu0 %v1411
      %1720 = vmatpush2.bf16.msra.mxu0 %v1410
      %1721 = vmatprep.subr.bf16.mxu0 %v1403
      %1722 = vmatpush2.bf16.msra.mxu0 %v1402
      %1723 = vmatprep.subr.bf16.mxu0 %v1395
      %1724 = vmatpush2.bf16.msra.mxu0 %v1394
      %1725 = vmatprep.subr.bf16.mxu0 %v1387
      %1726 = vmatpush2.bf16.msra.mxu0 %v1386
      %1727 = vmatprep.mubr.bf16.mxu0 %v700
      %1728 = vmatmul.mubr.bf16.gmra.mxu0 %v699
      %v1729 = vpop.f32.mrf.mxu0
      %v1730 = vadd.f32 %v926, %v1729
      %v1731 = vpop.f32.mrf.mxu0
      %v1732 = vadd.f32 %v928, %v1731
      %v1733 = vpop.f32.mrf.mxu0
      %v1734 = vpop.f32.mrf.mxu0
      %1735 = vdwg.mxu0
      %v1736 = vld [vmem:[%s4] sm:$0xff]
      %v1738 = vlaneseq
      %v1739 = vshrl.u32 %v1738, 7
      %v1740 = vsub.s32 0, %v1739
      %v1741 = vrot.slane %v1736, %v1740
      %v1742 = vlaneseq
      %v1743 = vshrl.u32 %v1742, 7
      %v1744 = vsub.s32 1, %v1743
      %v1745 = vrot.slane %v1736, %v1744
      %v1746 = vlaneseq
      %v1747 = vshrl.u32 %v1746, 7
      %v1748 = vsub.s32 2, %v1747
      %v1749 = vrot.slane %v1736, %v1748
      %v1750 = vlaneseq
      %v1751 = vshrl.u32 %v1750, 7
      %v1752 = vsub.s32 3, %v1751
      %v1753 = vrot.slane %v1736, %v1752
      %v1754 = vlaneseq
      %v1755 = vshrl.u32 %v1754, 7
      %v1756 = vsub.s32 4, %v1755
      %v1757 = vrot.slane %v1736, %v1756
      %v1758 = vlaneseq
      %v1759 = vshrl.u32 %v1758, 7
      %v1760 = vsub.s32 5, %v1759
      %v1761 = vrot.slane %v1736, %v1760
      %v1762 = vlaneseq
      %v1763 = vshrl.u32 %v1762, 7
      %v1764 = vsub.s32 6, %v1763
      %v1765 = vrot.slane %v1736, %v1764
      %v1766 = vlaneseq
      %v1767 = vshrl.u32 %v1766, 7
      %v1768 = vsub.s32 7, %v1767
      %v1769 = vrot.slane %v1736, %v1768
      %v1778 = vadd.f32 %v1607, %v1741
      %v1779 = vadd.f32 %v1609, %v1745
      %v1780 = vadd.f32 %v1648, %v1749
      %v1781 = vadd.f32 %v1650, %v1753
      %v1782 = vadd.f32 %v1689, %v1757
      %v1783 = vadd.f32 %v1691, %v1761
      %v1784 = vadd.f32 %v1730, %v1765
      %v1785 = vadd.f32 %v1732, %v1769
      %v1786 = vld [vmem:[%s5] sm:$0x7]
      %v1787 = vpack.c.bf16 %v561, %v558
      %v1788 = vpack.c.bf16 %v566, %v566
      %v1790 = vsel %vm739, %v1787, 0
      %v1793 = vsel %vm739, %v1788, 0
      %v1796 = vsel %vm743, %v1786, 0
      %1798 = vmatprep.subr.bf16.mxu0 0
      %1799 = vmatpush1.bf16.msra.mxu0 0
      %1800 = vmatprep.subr.bf16.mxu0 0
      %1801 = vmatpush1.bf16.msra.mxu0 0
      %1802 = vmatprep.subr.bf16.mxu0 0
      %1803 = vmatpush1.bf16.msra.mxu0 0
      %1804 = vmatprep.subr.bf16.mxu0 0
      %1805 = vmatpush1.bf16.msra.mxu0 0
      %1806 = vmatprep.subr.bf16.mxu0 0
      %1807 = vmatpush1.bf16.msra.mxu0 0
      %1808 = vmatprep.subr.bf16.mxu0 0
      %1809 = vmatpush1.bf16.msra.mxu0 0
      %1810 = vmatprep.subr.bf16.mxu0 0
      %1811 = vmatpush1.bf16.msra.mxu0 0
      %1812 = vmatprep.subr.bf16.mxu0 0
      %1813 = vmatpush1.bf16.msra.mxu0 %v1796
      %1814 = vmatprep.subr.bf16.mxu0 0
      %1815 = vmatpush2.bf16.msra.mxu0 0
      %1816 = vmatprep.subr.bf16.mxu0 0
      %1817 = vmatpush2.bf16.msra.mxu0 0
      %1818 = vmatprep.subr.bf16.mxu0 0
      %1819 = vmatpush2.bf16.msra.mxu0 0
      %1820 = vmatprep.subr.bf16.mxu0 0
      %1821 = vmatpush2.bf16.msra.mxu0 0
      %1822 = vmatprep.subr.bf16.mxu0 0
      %1823 = vmatpush2.bf16.msra.mxu0 0
      %1824 = vmatprep.subr.bf16.mxu0 0
      %1825 = vmatpush2.bf16.msra.mxu0 0
      %1826 = vmatprep.subr.bf16.mxu0 0
      %1827 = vmatpush2.bf16.msra.mxu0 0
      %1828 = vmatprep.subr.bf16.mxu0 0
      %1829 = vmatpush2.bf16.msra.mxu0 0
      %1830 = vmatprep.mubr.bf16.mxu0 0
      %1831 = vmatmul.mubr.bf16.gmra.mxu0 %v1790
      %v1832 = vpop.f32.mrf.mxu0
      %v1833 = vadd.f32 0.0, %v1832
      %v1834 = vpop.f32.mrf.mxu0
      %v1835 = vpop.f32.mrf.mxu0
      %v1836 = vadd.f32 0.0, %v1835
      %v1837 = vpop.f32.mrf.mxu0
      %1838 = vmatprep.mubr.bf16.mxu0 0
      %1839 = vmatmul.mubr.bf16.gmra.mxu0 %v1793
      %v1840 = vpop.f32.mrf.mxu0
      %v1841 = vadd.f32 0.0, %v1840
      %v1842 = vpop.f32.mrf.mxu0
      %v1843 = vpop.f32.mrf.mxu0
      %v1844 = vpop.f32.mrf.mxu0
      %1845 = vdwg.mxu0
      %v1846 = vmul.f32 %v1833, %v1833
      %v1847 = vmul.f32 %v1836, %v1836
      %v1848 = vadd.f32 %v1846, %v1847
      %v1849 = vmul.f32 %v1841, %v1841
      %v1850 = vadd.f32 %v1848, %v1849
      %v1851 = vmax.f32 %v1850, 1e-08
      %v1852 = vrsqrt.pop %v1851
      %v1853 = vmul.f32 %v1851, %v1852
      %vm1854 = vcmp.eq.f32.partialorder %v1851, inf
      %v1855 = vsel %vm1854, %v1851, %v1853
      %vm1856 = vcmp.eq.f32.partialorder %v1851, 0.0
      %v1857 = vand.u32 %v1851, 2147483648
      %v1858 = vsel %vm1856, %v1857, %v1855
      %v1859 = vsub.f32 0.0, %v1858
      %v1860 = vmul.f32 %v1859, 1.442695
      %v1861 = vpow.pop %v1860
      %v1862 = vadd.f32 %v1861, 1.0
      %v1863 = vrcp.pop %v1862
      %v1864 = vmul.f32 %v1833, %v1863
      %v1865 = vmul.f32 %v1836, %v1863
      %v1866 = vmul.f32 %v1841, %v1863
      %v1867 = vmax.f32 %v1778, 0.0
      %v1868 = vmax.f32 %v1779, 0.0
      %v1869 = vmax.f32 %v1780, 0.0
      %v1870 = vmax.f32 %v1781, 0.0
      %v1871 = vmax.f32 %v1782, 0.0
      %v1872 = vmax.f32 %v1783, 0.0
      %v1873 = vmax.f32 %v1784, 0.0
      %v1874 = vmax.f32 %v1785, 0.0
      %v1875 = vld [vmem:[%s6] sm:$0x7]
      %v1876 = vpack.c.bf16 %v1865, %v1864
      %v1877 = vpack.c.bf16 %v1866, %v1866
      %v1879 = vsel %vm739, %v1876, 0
      %v1882 = vsel %vm739, %v1877, 0
      %v1885 = vsel %vm743, %v1875, 0
      %1887 = vmatprep.subr.bf16.mxu0 0
      %1888 = vmatpush1.bf16.msra.mxu0 0
      %1889 = vmatprep.subr.bf16.mxu0 0
      %1890 = vmatpush1.bf16.msra.mxu0 0
      %1891 = vmatprep.subr.bf16.mxu0 0
      %1892 = vmatpush1.bf16.msra.mxu0 0
      %1893 = vmatprep.subr.bf16.mxu0 0
      %1894 = vmatpush1.bf16.msra.mxu0 0
      %1895 = vmatprep.subr.bf16.mxu0 0
      %1896 = vmatpush1.bf16.msra.mxu0 0
      %1897 = vmatprep.subr.bf16.mxu0 0
      %1898 = vmatpush1.bf16.msra.mxu0 0
      %1899 = vmatprep.subr.bf16.mxu0 0
      %1900 = vmatpush1.bf16.msra.mxu0 0
      %1901 = vmatprep.subr.bf16.mxu0 0
      %1902 = vmatpush1.bf16.msra.mxu0 %v1885
      %1903 = vmatprep.subr.bf16.mxu0 0
      %1904 = vmatpush2.bf16.msra.mxu0 0
      %1905 = vmatprep.subr.bf16.mxu0 0
      %1906 = vmatpush2.bf16.msra.mxu0 0
      %1907 = vmatprep.subr.bf16.mxu0 0
      %1908 = vmatpush2.bf16.msra.mxu0 0
      %1909 = vmatprep.subr.bf16.mxu0 0
      %1910 = vmatpush2.bf16.msra.mxu0 0
      %1911 = vmatprep.subr.bf16.mxu0 0
      %1912 = vmatpush2.bf16.msra.mxu0 0
      %1913 = vmatprep.subr.bf16.mxu0 0
      %1914 = vmatpush2.bf16.msra.mxu0 0
      %1915 = vmatprep.subr.bf16.mxu0 0
      %1916 = vmatpush2.bf16.msra.mxu0 0
      %1917 = vmatprep.subr.bf16.mxu0 0
      %1918 = vmatpush2.bf16.msra.mxu0 0
      %1919 = vmatprep.mubr.bf16.mxu0 0
      %1920 = vmatmul.mubr.bf16.gmra.mxu0 %v1879
      %v1921 = vpop.f32.mrf.mxu0
      %v1922 = vadd.f32 0.0, %v1921
      %v1923 = vpop.f32.mrf.mxu0
      %v1924 = vpop.f32.mrf.mxu0
      %v1925 = vadd.f32 0.0, %v1924
      %v1926 = vpop.f32.mrf.mxu0
      %1927 = vmatprep.mubr.bf16.mxu0 0
      %1928 = vmatmul.mubr.bf16.gmra.mxu0 %v1882
      %v1929 = vpop.f32.mrf.mxu0
      %v1930 = vadd.f32 0.0, %v1929
      %v1931 = vpop.f32.mrf.mxu0
      %v1932 = vpop.f32.mrf.mxu0
      %v1933 = vpop.f32.mrf.mxu0
      %1934 = vdwg.mxu0
      %v1935 = vld [vmem:[%s7] sm:$0xff]
      %v1936 = vld [vmem:[%s7 + $0x8] sm:$0xff]
      %v1937 = vld [vmem:[%s7 + $0x10] sm:$0xff]
      %v1938 = vld [vmem:[%s7 + $0x18] sm:$0xff]
      %v1939 = vld [vmem:[%s7 + $0x20] sm:$0xff]
      %v1940 = vld [vmem:[%s7 + $0x28] sm:$0xff]
      %v1941 = vld [vmem:[%s7 + $0x30] sm:$0xff]
      %v1942 = vld [vmem:[%s7 + $0x38] sm:$0xff]
      %v1943 = vld [vmem:[%s7 + $0x40] sm:$0xff]
      %v1944 = vld [vmem:[%s7 + $0x48] sm:$0xff]
      %v1945 = vld [vmem:[%s7 + $0x50] sm:$0xff]
      %v1946 = vld [vmem:[%s7 + $0x58] sm:$0xff]
      %v1947 = vld [vmem:[%s7 + $0x60] sm:$0xff]
      %v1948 = vld [vmem:[%s7 + $0x68] sm:$0xff]
      %v1949 = vld [vmem:[%s7 + $0x70] sm:$0xff]
      %v1950 = vld [vmem:[%s7 + $0x78] sm:$0xff]
      %v1951 = vld [vmem:[%s7 + $0x80] sm:$0xff]
      %v1952 = vld [vmem:[%s7 + $0x88] sm:$0xff]
      %v1953 = vld [vmem:[%s7 + $0x90] sm:$0xff]
      %v1954 = vld [vmem:[%s7 + $0x98] sm:$0xff]
      %v1955 = vld [vmem:[%s7 + $0xa0] sm:$0xff]
      %v1956 = vld [vmem:[%s7 + $0xa8] sm:$0xff]
      %v1957 = vld [vmem:[%s7 + $0xb0] sm:$0xff]
      %v1958 = vld [vmem:[%s7 + $0xb8] sm:$0xff]
      %v1959 = vld [vmem:[%s7 + $0xc0] sm:$0xff]
      %v1960 = vld [vmem:[%s7 + $0xc8] sm:$0xff]
      %v1961 = vld [vmem:[%s7 + $0xd0] sm:$0xff]
      %v1962 = vld [vmem:[%s7 + $0xd8] sm:$0xff]
      %v1963 = vld [vmem:[%s7 + $0xe0] sm:$0xff]
      %v1964 = vld [vmem:[%s7 + $0xe8] sm:$0xff]
      %v1965 = vld [vmem:[%s7 + $0xf0] sm:$0xff]
      %v1966 = vld [vmem:[%s7 + $0xf8] sm:$0xff]
      %v1967 = vld [vmem:[%s7 + $0x100] sm:$0xff]
      %v1968 = vld [vmem:[%s7 + $0x108] sm:$0xff]
      %v1969 = vld [vmem:[%s7 + $0x110] sm:$0xff]
      %v1970 = vld [vmem:[%s7 + $0x118] sm:$0xff]
      %v1971 = vld [vmem:[%s7 + $0x120] sm:$0xff]
      %v1972 = vld [vmem:[%s7 + $0x128] sm:$0xff]
      %v1973 = vld [vmem:[%s7 + $0x130] sm:$0xff]
      %v1974 = vld [vmem:[%s7 + $0x138] sm:$0xff]
      %v1975 = vld [vmem:[%s7 + $0x140] sm:$0xff]
      %v1976 = vld [vmem:[%s7 + $0x148] sm:$0xff]
      %v1977 = vld [vmem:[%s7 + $0x150] sm:$0xff]
      %v1978 = vld [vmem:[%s7 + $0x158] sm:$0xff]
      %v1979 = vld [vmem:[%s7 + $0x160] sm:$0xff]
      %v1980 = vld [vmem:[%s7 + $0x168] sm:$0xff]
      %v1981 = vld [vmem:[%s7 + $0x170] sm:$0xff]
      %v1982 = vld [vmem:[%s7 + $0x178] sm:$0xff]
      %v1983 = vld [vmem:[%s7 + $0x180] sm:$0xff]
      %v1984 = vld [vmem:[%s7 + $0x188] sm:$0xff]
      %v1985 = vld [vmem:[%s7 + $0x190] sm:$0xff]
      %v1986 = vld [vmem:[%s7 + $0x198] sm:$0xff]
      %v1987 = vld [vmem:[%s7 + $0x1a0] sm:$0xff]
      %v1988 = vld [vmem:[%s7 + $0x1a8] sm:$0xff]
      %v1989 = vld [vmem:[%s7 + $0x1b0] sm:$0xff]
      %v1990 = vld [vmem:[%s7 + $0x1b8] sm:$0xff]
      %v1991 = vld [vmem:[%s7 + $0x1c0] sm:$0xff]
      %v1992 = vld [vmem:[%s7 + $0x1c8] sm:$0xff]
      %v1993 = vld [vmem:[%s7 + $0x1d0] sm:$0xff]
      %v1994 = vld [vmem:[%s7 + $0x1d8] sm:$0xff]
      %v1995 = vld [vmem:[%s7 + $0x1e0] sm:$0xff]
      %v1996 = vld [vmem:[%s7 + $0x1e8] sm:$0xff]
      %v1997 = vld [vmem:[%s7 + $0x1f0] sm:$0xff]
      %v1998 = vld [vmem:[%s7 + $0x1f8] sm:$0xff]
      %v1999 = vld [vmem:[%s7 + $0x200] sm:$0xff]
      %v2000 = vld [vmem:[%s7 + $0x208] sm:$0xff]
      %v2001 = vld [vmem:[%s7 + $0x210] sm:$0xff]
      %v2002 = vld [vmem:[%s7 + $0x218] sm:$0xff]
      %v2003 = vld [vmem:[%s7 + $0x220] sm:$0xff]
      %v2004 = vld [vmem:[%s7 + $0x228] sm:$0xff]
      %v2005 = vld [vmem:[%s7 + $0x230] sm:$0xff]
      %v2006 = vld [vmem:[%s7 + $0x238] sm:$0xff]
      %v2007 = vld [vmem:[%s7 + $0x240] sm:$0xff]
      %v2008 = vld [vmem:[%s7 + $0x248] sm:$0xff]
      %v2009 = vld [vmem:[%s7 + $0x250] sm:$0xff]
      %v2010 = vld [vmem:[%s7 + $0x258] sm:$0xff]
      %v2011 = vld [vmem:[%s7 + $0x260] sm:$0xff]
      %v2012 = vld [vmem:[%s7 + $0x268] sm:$0xff]
      %v2013 = vld [vmem:[%s7 + $0x270] sm:$0xff]
      %v2014 = vld [vmem:[%s7 + $0x278] sm:$0xff]
      %v2015 = vld [vmem:[%s7 + $0x280] sm:$0xff]
      %v2016 = vld [vmem:[%s7 + $0x288] sm:$0xff]
      %v2017 = vld [vmem:[%s7 + $0x290] sm:$0xff]
      %v2018 = vld [vmem:[%s7 + $0x298] sm:$0xff]
      %v2019 = vld [vmem:[%s7 + $0x2a0] sm:$0xff]
      %v2020 = vld [vmem:[%s7 + $0x2a8] sm:$0xff]
      %v2021 = vld [vmem:[%s7 + $0x2b0] sm:$0xff]
      %v2022 = vld [vmem:[%s7 + $0x2b8] sm:$0xff]
      %v2023 = vld [vmem:[%s7 + $0x2c0] sm:$0xff]
      %v2024 = vld [vmem:[%s7 + $0x2c8] sm:$0xff]
      %v2025 = vld [vmem:[%s7 + $0x2d0] sm:$0xff]
      %v2026 = vld [vmem:[%s7 + $0x2d8] sm:$0xff]
      %v2027 = vld [vmem:[%s7 + $0x2e0] sm:$0xff]
      %v2028 = vld [vmem:[%s7 + $0x2e8] sm:$0xff]
      %v2029 = vld [vmem:[%s7 + $0x2f0] sm:$0xff]
      %v2030 = vld [vmem:[%s7 + $0x2f8] sm:$0xff]
      %v2031 = vld [vmem:[%s7 + $0x300] sm:$0xff]
      %v2032 = vld [vmem:[%s7 + $0x308] sm:$0xff]
      %v2033 = vld [vmem:[%s7 + $0x310] sm:$0xff]
      %v2034 = vld [vmem:[%s7 + $0x318] sm:$0xff]
      %v2035 = vld [vmem:[%s7 + $0x320] sm:$0xff]
      %v2036 = vld [vmem:[%s7 + $0x328] sm:$0xff]
      %v2037 = vld [vmem:[%s7 + $0x330] sm:$0xff]
      %v2038 = vld [vmem:[%s7 + $0x338] sm:$0xff]
      %v2039 = vld [vmem:[%s7 + $0x340] sm:$0xff]
      %v2040 = vld [vmem:[%s7 + $0x348] sm:$0xff]
      %v2041 = vld [vmem:[%s7 + $0x350] sm:$0xff]
      %v2042 = vld [vmem:[%s7 + $0x358] sm:$0xff]
      %v2043 = vld [vmem:[%s7 + $0x360] sm:$0xff]
      %v2044 = vld [vmem:[%s7 + $0x368] sm:$0xff]
      %v2045 = vld [vmem:[%s7 + $0x370] sm:$0xff]
      %v2046 = vld [vmem:[%s7 + $0x378] sm:$0xff]
      %v2047 = vld [vmem:[%s7 + $0x380] sm:$0xff]
      %v2048 = vld [vmem:[%s7 + $0x388] sm:$0xff]
      %v2049 = vld [vmem:[%s7 + $0x390] sm:$0xff]
      %v2050 = vld [vmem:[%s7 + $0x398] sm:$0xff]
      %v2051 = vld [vmem:[%s7 + $0x3a0] sm:$0xff]
      %v2052 = vld [vmem:[%s7 + $0x3a8] sm:$0xff]
      %v2053 = vld [vmem:[%s7 + $0x3b0] sm:$0xff]
      %v2054 = vld [vmem:[%s7 + $0x3b8] sm:$0xff]
      %v2055 = vld [vmem:[%s7 + $0x3c0] sm:$0xff]
      %v2056 = vld [vmem:[%s7 + $0x3c8] sm:$0xff]
      %v2057 = vld [vmem:[%s7 + $0x3d0] sm:$0xff]
      %v2058 = vld [vmem:[%s7 + $0x3d8] sm:$0xff]
      %v2059 = vld [vmem:[%s7 + $0x3e0] sm:$0xff]
      %v2060 = vld [vmem:[%s7 + $0x3e8] sm:$0xff]
      %v2061 = vld [vmem:[%s7 + $0x3f0] sm:$0xff]
      %v2062 = vld [vmem:[%s7 + $0x3f8] sm:$0xff]
      %v2063 = vpack.c.bf16 %v1867, %v1867
      %v2064 = vpack.c.bf16 %v1868, %v1868
      %v2065 = vpack.c.bf16 %v1869, %v1869
      %v2066 = vpack.c.bf16 %v1870, %v1870
      %v2067 = vpack.c.bf16 %v1871, %v1871
      %v2068 = vpack.c.bf16 %v1872, %v1872
      %v2069 = vpack.c.bf16 %v1873, %v1873
      %v2070 = vpack.c.bf16 %v1874, %v1874
      %v2071 = vmul.f32 %v1922, %v1922
      %v2072 = vmul.f32 %v1925, %v1925
      %v2073 = vadd.f32 %v2071, %v2072
      %v2074 = vmul.f32 %v1930, %v1930
      %v2075 = vadd.f32 %v2073, %v2074
      %v2076 = vmax.f32 %v2075, 1e-08
      %v2077 = vrsqrt.pop %v2076
      %v2078 = vmul.f32 %v2076, %v2077
      %vm2079 = vcmp.eq.f32.partialorder %v2076, inf
      %v2080 = vsel %vm2079, %v2076, %v2078
      %vm2081 = vcmp.eq.f32.partialorder %v2076, 0.0
      %v2082 = vand.u32 %v2076, 2147483648
      %v2083 = vsel %vm2081, %v2082, %v2080
      %v2084 = vld [vmem:[%s8] sm:$0x77]
      %v2085 = vpack.c.bf16 %v2083, %v2083
      %v2087 = vunpack.c.l.b16 %v2084
      %v2088 = vunpack.c.h.b16 %v2084
      %v2089 = vpack.c.b16 %v2087, %v2087
      %v2090 = vpack.c.b16 %v2088, %v2088
      %v2092 = vsel %vm739, %v2085, 0
      %v2095 = vsel %vm743, %v2089, 0
      %v2098 = vsel %vm743, %v2090, 0
      %2100 = vmatprep.subr.bf16.mxu0 0
      %2101 = vmatpush1.bf16.msra.mxu0 0
      %2102 = vmatprep.subr.bf16.mxu0 0
      %2103 = vmatpush1.bf16.msra.mxu0 0
      %2104 = vmatprep.subr.bf16.mxu0 0
      %2105 = vmatpush1.bf16.msra.mxu0 0
      %2106 = vmatprep.subr.bf16.mxu0 0
      %2107 = vmatpush1.bf16.msra.mxu0 0
      %2108 = vmatprep.subr.bf16.mxu0 0
      %2109 = vmatpush1.bf16.msra.mxu0 0
      %2110 = vmatprep.subr.bf16.mxu0 0
      %2111 = vmatpush1.bf16.msra.mxu0 0
      %2112 = vmatprep.subr.bf16.mxu0 0
      %2113 = vmatpush1.bf16.msra.mxu0 0
      %2114 = vmatprep.subr.bf16.mxu0 %v2098
      %2115 = vmatpush1.bf16.msra.mxu0 %v2095
      %2116 = vmatprep.subr.bf16.mxu0 0
      %2117 = vmatpush2.bf16.msra.mxu0 0
      %2118 = vmatprep.subr.bf16.mxu0 0
      %2119 = vmatpush2.bf16.msra.mxu0 0
      %2120 = vmatprep.subr.bf16.mxu0 0
      %2121 = vmatpush2.bf16.msra.mxu0 0
      %2122 = vmatprep.subr.bf16.mxu0 0
      %2123 = vmatpush2.bf16.msra.mxu0 0
      %2124 = vmatprep.subr.bf16.mxu0 0
      %2125 = vmatpush2.bf16.msra.mxu0 0
      %2126 = vmatprep.subr.bf16.mxu0 0
      %2127 = vmatpush2.bf16.msra.mxu0 0
      %2128 = vmatprep.subr.bf16.mxu0 0
      %2129 = vmatpush2.bf16.msra.mxu0 0
      %2130 = vmatprep.subr.bf16.mxu0 0
      %2131 = vmatpush2.bf16.msra.mxu0 0
      %2132 = vmatprep.mubr.bf16.mxu0 0
      %2133 = vmatmul.mubr.bf16.gmra.mxu0 %v2092
      %v2134 = vpop.f32.mrf.mxu0
      %v2135 = vadd.f32 0.0, %v2134
      %v2136 = vpop.f32.mrf.mxu0
      %v2137 = vadd.f32 0.0, %v2136
      %v2138 = vpop.f32.mrf.mxu0
      %v2139 = vpop.f32.mrf.mxu0
      %2140 = vdwg.mxu0
      %v2269 = vunpack.c.l.b16 %v1935
      %v2270 = vunpack.c.h.b16 %v1935
      %v2271 = vunpack.c.l.b16 %v1936
      %v2272 = vunpack.c.h.b16 %v1936
      %v2273 = vunpack.c.l.b16 %v1937
      %v2274 = vunpack.c.h.b16 %v1937
      %v2275 = vunpack.c.l.b16 %v1938
      %v2276 = vunpack.c.h.b16 %v1938
      %v2277 = vunpack.c.l.b16 %v1939
      %v2278 = vunpack.c.h.b16 %v1939
      %v2279 = vunpack.c.l.b16 %v1940
      %v2280 = vunpack.c.h.b16 %v1940
      %v2281 = vunpack.c.l.b16 %v1941
      %v2282 = vunpack.c.h.b16 %v1941
      %v2283 = vunpack.c.l.b16 %v1942
      %v2284 = vunpack.c.h.b16 %v1942
      %v2285 = vunpack.c.l.b16 %v1943
      %v2286 = vunpack.c.h.b16 %v1943
      %v2287 = vunpack.c.l.b16 %v1944
      %v2288 = vunpack.c.h.b16 %v1944
      %v2289 = vunpack.c.l.b16 %v1945
      %v2290 = vunpack.c.h.b16 %v1945
      %v2291 = vunpack.c.l.b16 %v1946
      %v2292 = vunpack.c.h.b16 %v1946
      %v2293 = vunpack.c.l.b16 %v1947
      %v2294 = vunpack.c.h.b16 %v1947
      %v2295 = vunpack.c.l.b16 %v1948
      %v2296 = vunpack.c.h.b16 %v1948
      %v2297 = vunpack.c.l.b16 %v1949
      %v2298 = vunpack.c.h.b16 %v1949
      %v2299 = vunpack.c.l.b16 %v1950
      %v2300 = vunpack.c.h.b16 %v1950
      %v2301 = vunpack.c.l.b16 %v1951
      %v2302 = vunpack.c.h.b16 %v1951
      %v2303 = vunpack.c.l.b16 %v1952
      %v2304 = vunpack.c.h.b16 %v1952
      %v2305 = vunpack.c.l.b16 %v1953
      %v2306 = vunpack.c.h.b16 %v1953
      %v2307 = vunpack.c.l.b16 %v1954
      %v2308 = vunpack.c.h.b16 %v1954
      %v2309 = vunpack.c.l.b16 %v1955
      %v2310 = vunpack.c.h.b16 %v1955
      %v2311 = vunpack.c.l.b16 %v1956
      %v2312 = vunpack.c.h.b16 %v1956
      %v2313 = vunpack.c.l.b16 %v1957
      %v2314 = vunpack.c.h.b16 %v1957
      %v2315 = vunpack.c.l.b16 %v1958
      %v2316 = vunpack.c.h.b16 %v1958
      %v2317 = vunpack.c.l.b16 %v1959
      %v2318 = vunpack.c.h.b16 %v1959
      %v2319 = vunpack.c.l.b16 %v1960
      %v2320 = vunpack.c.h.b16 %v1960
      %v2321 = vunpack.c.l.b16 %v1961
      %v2322 = vunpack.c.h.b16 %v1961
      %v2323 = vunpack.c.l.b16 %v1962
      %v2324 = vunpack.c.h.b16 %v1962
      %v2325 = vunpack.c.l.b16 %v1963
      %v2326 = vunpack.c.h.b16 %v1963
      %v2327 = vunpack.c.l.b16 %v1964
      %v2328 = vunpack.c.h.b16 %v1964
      %v2329 = vunpack.c.l.b16 %v1965
      %v2330 = vunpack.c.h.b16 %v1965
      %v2331 = vunpack.c.l.b16 %v1966
      %v2332 = vunpack.c.h.b16 %v1966
      %v2333 = vunpack.c.l.b16 %v1967
      %v2334 = vunpack.c.h.b16 %v1967
      %v2335 = vunpack.c.l.b16 %v1968
      %v2336 = vunpack.c.h.b16 %v1968
      %v2337 = vunpack.c.l.b16 %v1969
      %v2338 = vunpack.c.h.b16 %v1969
      %v2339 = vunpack.c.l.b16 %v1970
      %v2340 = vunpack.c.h.b16 %v1970
      %v2341 = vunpack.c.l.b16 %v1971
      %v2342 = vunpack.c.h.b16 %v1971
      %v2343 = vunpack.c.l.b16 %v1972
      %v2344 = vunpack.c.h.b16 %v1972
      %v2345 = vunpack.c.l.b16 %v1973
      %v2346 = vunpack.c.h.b16 %v1973
      %v2347 = vunpack.c.l.b16 %v1974
      %v2348 = vunpack.c.h.b16 %v1974
      %v2349 = vunpack.c.l.b16 %v1975
      %v2350 = vunpack.c.h.b16 %v1975
      %v2351 = vunpack.c.l.b16 %v1976
      %v2352 = vunpack.c.h.b16 %v1976
      %v2353 = vunpack.c.l.b16 %v1977
      %v2354 = vunpack.c.h.b16 %v1977
      %v2355 = vunpack.c.l.b16 %v1978
      %v2356 = vunpack.c.h.b16 %v1978
      %v2357 = vunpack.c.l.b16 %v1979
      %v2358 = vunpack.c.h.b16 %v1979
      %v2359 = vunpack.c.l.b16 %v1980
      %v2360 = vunpack.c.h.b16 %v1980
      %v2361 = vunpack.c.l.b16 %v1981
      %v2362 = vunpack.c.h.b16 %v1981
      %v2363 = vunpack.c.l.b16 %v1982
      %v2364 = vunpack.c.h.b16 %v1982
      %v2365 = vunpack.c.l.b16 %v1983
      %v2366 = vunpack.c.h.b16 %v1983
      %v2367 = vunpack.c.l.b16 %v1984
      %v2368 = vunpack.c.h.b16 %v1984
      %v2369 = vunpack.c.l.b16 %v1985
      %v2370 = vunpack.c.h.b16 %v1985
      %v2371 = vunpack.c.l.b16 %v1986
      %v2372 = vunpack.c.h.b16 %v1986
      %v2373 = vunpack.c.l.b16 %v1987
      %v2374 = vunpack.c.h.b16 %v1987
      %v2375 = vunpack.c.l.b16 %v1988
      %v2376 = vunpack.c.h.b16 %v1988
      %v2377 = vunpack.c.l.b16 %v1989
      %v2378 = vunpack.c.h.b16 %v1989
      %v2379 = vunpack.c.l.b16 %v1990
      %v2380 = vunpack.c.h.b16 %v1990
      %v2381 = vunpack.c.l.b16 %v1991
      %v2382 = vunpack.c.h.b16 %v1991
      %v2383 = vunpack.c.l.b16 %v1992
      %v2384 = vunpack.c.h.b16 %v1992
      %v2385 = vunpack.c.l.b16 %v1993
      %v2386 = vunpack.c.h.b16 %v1993
      %v2387 = vunpack.c.l.b16 %v1994
      %v2388 = vunpack.c.h.b16 %v1994
      %v2389 = vunpack.c.l.b16 %v1995
      %v2390 = vunpack.c.h.b16 %v1995
      %v2391 = vunpack.c.l.b16 %v1996
      %v2392 = vunpack.c.h.b16 %v1996
      %v2393 = vunpack.c.l.b16 %v1997
      %v2394 = vunpack.c.h.b16 %v1997
      %v2395 = vunpack.c.l.b16 %v1998
      %v2396 = vunpack.c.h.b16 %v1998
      %v2397 = vunpack.c.l.b16 %v1999
      %v2398 = vunpack.c.h.b16 %v1999
      %v2399 = vunpack.c.l.b16 %v2000
      %v2400 = vunpack.c.h.b16 %v2000
      %v2401 = vunpack.c.l.b16 %v2001
      %v2402 = vunpack.c.h.b16 %v2001
      %v2403 = vunpack.c.l.b16 %v2002
      %v2404 = vunpack.c.h.b16 %v2002
      %v2405 = vunpack.c.l.b16 %v2003
      %v2406 = vunpack.c.h.b16 %v2003
      %v2407 = vunpack.c.l.b16 %v2004
      %v2408 = vunpack.c.h.b16 %v2004
      %v2409 = vunpack.c.l.b16 %v2005
      %v2410 = vunpack.c.h.b16 %v2005
      %v2411 = vunpack.c.l.b16 %v2006
      %v2412 = vunpack.c.h.b16 %v2006
      %v2413 = vunpack.c.l.b16 %v2007
      %v2414 = vunpack.c.h.b16 %v2007
      %v2415 = vunpack.c.l.b16 %v2008
      %v2416 = vunpack.c.h.b16 %v2008
      %v2417 = vunpack.c.l.b16 %v2009
      %v2418 = vunpack.c.h.b16 %v2009
      %v2419 = vunpack.c.l.b16 %v2010
      %v2420 = vunpack.c.h.b16 %v2010
      %v2421 = vunpack.c.l.b16 %v2011
      %v2422 = vunpack.c.h.b16 %v2011
      %v2423 = vunpack.c.l.b16 %v2012
      %v2424 = vunpack.c.h.b16 %v2012
      %v2425 = vunpack.c.l.b16 %v2013
      %v2426 = vunpack.c.h.b16 %v2013
      %v2427 = vunpack.c.l.b16 %v2014
      %v2428 = vunpack.c.h.b16 %v2014
      %v2429 = vunpack.c.l.b16 %v2015
      %v2430 = vunpack.c.h.b16 %v2015
      %v2431 = vunpack.c.l.b16 %v2016
      %v2432 = vunpack.c.h.b16 %v2016
      %v2433 = vunpack.c.l.b16 %v2017
      %v2434 = vunpack.c.h.b16 %v2017
      %v2435 = vunpack.c.l.b16 %v2018
      %v2436 = vunpack.c.h.b16 %v2018
      %v2437 = vunpack.c.l.b16 %v2019
      %v2438 = vunpack.c.h.b16 %v2019
      %v2439 = vunpack.c.l.b16 %v2020
      %v2440 = vunpack.c.h.b16 %v2020
      %v2441 = vunpack.c.l.b16 %v2021
      %v2442 = vunpack.c.h.b16 %v2021
      %v2443 = vunpack.c.l.b16 %v2022
      %v2444 = vunpack.c.h.b16 %v2022
      %v2445 = vunpack.c.l.b16 %v2023
      %v2446 = vunpack.c.h.b16 %v2023
      %v2447 = vunpack.c.l.b16 %v2024
      %v2448 = vunpack.c.h.b16 %v2024
      %v2449 = vunpack.c.l.b16 %v2025
      %v2450 = vunpack.c.h.b16 %v2025
      %v2451 = vunpack.c.l.b16 %v2026
      %v2452 = vunpack.c.h.b16 %v2026
      %v2453 = vunpack.c.l.b16 %v2027
      %v2454 = vunpack.c.h.b16 %v2027
      %v2455 = vunpack.c.l.b16 %v2028
      %v2456 = vunpack.c.h.b16 %v2028
      %v2457 = vunpack.c.l.b16 %v2029
      %v2458 = vunpack.c.h.b16 %v2029
      %v2459 = vunpack.c.l.b16 %v2030
      %v2460 = vunpack.c.h.b16 %v2030
      %v2461 = vunpack.c.l.b16 %v2031
      %v2462 = vunpack.c.h.b16 %v2031
      %v2463 = vunpack.c.l.b16 %v2032
      %v2464 = vunpack.c.h.b16 %v2032
      %v2465 = vunpack.c.l.b16 %v2033
      %v2466 = vunpack.c.h.b16 %v2033
      %v2467 = vunpack.c.l.b16 %v2034
      %v2468 = vunpack.c.h.b16 %v2034
      %v2469 = vunpack.c.l.b16 %v2035
      %v2470 = vunpack.c.h.b16 %v2035
      %v2471 = vunpack.c.l.b16 %v2036
      %v2472 = vunpack.c.h.b16 %v2036
      %v2473 = vunpack.c.l.b16 %v2037
      %v2474 = vunpack.c.h.b16 %v2037
      %v2475 = vunpack.c.l.b16 %v2038
      %v2476 = vunpack.c.h.b16 %v2038
      %v2477 = vunpack.c.l.b16 %v2039
      %v2478 = vunpack.c.h.b16 %v2039
      %v2479 = vunpack.c.l.b16 %v2040
      %v2480 = vunpack.c.h.b16 %v2040
      %v2481 = vunpack.c.l.b16 %v2041
      %v2482 = vunpack.c.h.b16 %v2041
      %v2483 = vunpack.c.l.b16 %v2042
      %v2484 = vunpack.c.h.b16 %v2042
      %v2485 = vunpack.c.l.b16 %v2043
      %v2486 = vunpack.c.h.b16 %v2043
      %v2487 = vunpack.c.l.b16 %v2044
      %v2488 = vunpack.c.h.b16 %v2044
      %v2489 = vunpack.c.l.b16 %v2045
      %v2490 = vunpack.c.h.b16 %v2045
      %v2491 = vunpack.c.l.b16 %v2046
      %v2492 = vunpack.c.h.b16 %v2046
      %v2493 = vunpack.c.l.b16 %v2047
      %v2494 = vunpack.c.h.b16 %v2047
      %v2495 = vunpack.c.l.b16 %v2048
      %v2496 = vunpack.c.h.b16 %v2048
      %v2497 = vunpack.c.l.b16 %v2049
      %v2498 = vunpack.c.h.b16 %v2049
      %v2499 = vunpack.c.l.b16 %v2050
      %v2500 = vunpack.c.h.b16 %v2050
      %v2501 = vunpack.c.l.b16 %v2051
      %v2502 = vunpack.c.h.b16 %v2051
      %v2503 = vunpack.c.l.b16 %v2052
      %v2504 = vunpack.c.h.b16 %v2052
      %v2505 = vunpack.c.l.b16 %v2053
      %v2506 = vunpack.c.h.b16 %v2053
      %v2507 = vunpack.c.l.b16 %v2054
      %v2508 = vunpack.c.h.b16 %v2054
      %v2509 = vunpack.c.l.b16 %v2055
      %v2510 = vunpack.c.h.b16 %v2055
      %v2511 = vunpack.c.l.b16 %v2056
      %v2512 = vunpack.c.h.b16 %v2056
      %v2513 = vunpack.c.l.b16 %v2057
      %v2514 = vunpack.c.h.b16 %v2057
      %v2515 = vunpack.c.l.b16 %v2058
      %v2516 = vunpack.c.h.b16 %v2058
      %v2517 = vunpack.c.l.b16 %v2059
      %v2518 = vunpack.c.h.b16 %v2059
      %v2519 = vunpack.c.l.b16 %v2060
      %v2520 = vunpack.c.h.b16 %v2060
      %v2521 = vunpack.c.l.b16 %v2061
      %v2522 = vunpack.c.h.b16 %v2061
      %v2523 = vunpack.c.l.b16 %v2062
      %v2524 = vunpack.c.h.b16 %v2062
      %v2525 = vpack.c.b16 %v2271, %v2269
      %v2526 = vpack.c.b16 %v2272, %v2270
      %v2527 = vpack.c.b16 %v2275, %v2273
      %v2528 = vpack.c.b16 %v2276, %v2274
      %v2529 = vpack.c.b16 %v2279, %v2277
      %v2530 = vpack.c.b16 %v2280, %v2278
      %v2531 = vpack.c.b16 %v2283, %v2281
      %v2532 = vpack.c.b16 %v2284, %v2282
      %v2533 = vpack.c.b16 %v2287, %v2285
      %v2534 = vpack.c.b16 %v2288, %v2286
      %v2535 = vpack.c.b16 %v2291, %v2289
      %v2536 = vpack.c.b16 %v2292, %v2290
      %v2537 = vpack.c.b16 %v2295, %v2293
      %v2538 = vpack.c.b16 %v2296, %v2294
      %v2539 = vpack.c.b16 %v2299, %v2297
      %v2540 = vpack.c.b16 %v2300, %v2298
      %v2541 = vpack.c.b16 %v2303, %v2301
      %v2542 = vpack.c.b16 %v2304, %v2302
      %v2543 = vpack.c.b16 %v2307, %v2305
      %v2544 = vpack.c.b16 %v2308, %v2306
      %v2545 = vpack.c.b16 %v2311, %v2309
      %v2546 = vpack.c.b16 %v2312, %v2310
      %v2547 = vpack.c.b16 %v2315, %v2313
      %v2548 = vpack.c.b16 %v2316, %v2314
      %v2549 = vpack.c.b16 %v2319, %v2317
      %v2550 = vpack.c.b16 %v2320, %v2318
      %v2551 = vpack.c.b16 %v2323, %v2321
      %v2552 = vpack.c.b16 %v2324, %v2322
      %v2553 = vpack.c.b16 %v2327, %v2325
      %v2554 = vpack.c.b16 %v2328, %v2326
      %v2555 = vpack.c.b16 %v2331, %v2329
      %v2556 = vpack.c.b16 %v2332, %v2330
      %v2557 = vpack.c.b16 %v2335, %v2333
      %v2558 = vpack.c.b16 %v2336, %v2334
      %v2559 = vpack.c.b16 %v2339, %v2337
      %v2560 = vpack.c.b16 %v2340, %v2338
      %v2561 = vpack.c.b16 %v2343, %v2341
      %v2562 = vpack.c.b16 %v2344, %v2342
      %v2563 = vpack.c.b16 %v2347, %v2345
      %v2564 = vpack.c.b16 %v2348, %v2346
      %v2565 = vpack.c.b16 %v2351, %v2349
      %v2566 = vpack.c.b16 %v2352, %v2350
      %v2567 = vpack.c.b16 %v2355, %v2353
      %v2568 = vpack.c.b16 %v2356, %v2354
      %v2569 = vpack.c.b16 %v2359, %v2357
      %v2570 = vpack.c.b16 %v2360, %v2358
      %v2571 = vpack.c.b16 %v2363, %v2361
      %v2572 = vpack.c.b16 %v2364, %v2362
      %v2573 = vpack.c.b16 %v2367, %v2365
      %v2574 = vpack.c.b16 %v2368, %v2366
      %v2575 = vpack.c.b16 %v2371, %v2369
      %v2576 = vpack.c.b16 %v2372, %v2370
      %v2577 = vpack.c.b16 %v2375, %v2373
      %v2578 = vpack.c.b16 %v2376, %v2374
      %v2579 = vpack.c.b16 %v2379, %v2377
      %v2580 = vpack.c.b16 %v2380, %v2378
      %v2581 = vpack.c.b16 %v2383, %v2381
      %v2582 = vpack.c.b16 %v2384, %v2382
      %v2583 = vpack.c.b16 %v2387, %v2385
      %v2584 = vpack.c.b16 %v2388, %v2386
      %v2585 = vpack.c.b16 %v2391, %v2389
      %v2586 = vpack.c.b16 %v2392, %v2390
      %v2587 = vpack.c.b16 %v2395, %v2393
      %v2588 = vpack.c.b16 %v2396, %v2394
      %v2589 = vpack.c.b16 %v2399, %v2397
      %v2590 = vpack.c.b16 %v2400, %v2398
      %v2591 = vpack.c.b16 %v2403, %v2401
      %v2592 = vpack.c.b16 %v2404, %v2402
      %v2593 = vpack.c.b16 %v2407, %v2405
      %v2594 = vpack.c.b16 %v2408, %v2406
      %v2595 = vpack.c.b16 %v2411, %v2409
      %v2596 = vpack.c.b16 %v2412, %v2410
      %v2597 = vpack.c.b16 %v2415, %v2413
      %v2598 = vpack.c.b16 %v2416, %v2414
      %v2599 = vpack.c.b16 %v2419, %v2417
      %v2600 = vpack.c.b16 %v2420, %v2418
      %v2601 = vpack.c.b16 %v2423, %v2421
      %v2602 = vpack.c.b16 %v2424, %v2422
      %v2603 = vpack.c.b16 %v2427, %v2425
      %v2604 = vpack.c.b16 %v2428, %v2426
      %v2605 = vpack.c.b16 %v2431, %v2429
      %v2606 = vpack.c.b16 %v2432, %v2430
      %v2607 = vpack.c.b16 %v2435, %v2433
      %v2608 = vpack.c.b16 %v2436, %v2434
      %v2609 = vpack.c.b16 %v2439, %v2437
      %v2610 = vpack.c.b16 %v2440, %v2438
      %v2611 = vpack.c.b16 %v2443, %v2441
      %v2612 = vpack.c.b16 %v2444, %v2442
      %v2613 = vpack.c.b16 %v2447, %v2445
      %v2614 = vpack.c.b16 %v2448, %v2446
      %v2615 = vpack.c.b16 %v2451, %v2449
      %v2616 = vpack.c.b16 %v2452, %v2450
      %v2617 = vpack.c.b16 %v2455, %v2453
      %v2618 = vpack.c.b16 %v2456, %v2454
      %v2619 = vpack.c.b16 %v2459, %v2457
      %v2620 = vpack.c.b16 %v2460, %v2458
      %v2621 = vpack.c.b16 %v2463, %v2461
      %v2622 = vpack.c.b16 %v2464, %v2462
      %v2623 = vpack.c.b16 %v2467, %v2465
      %v2624 = vpack.c.b16 %v2468, %v2466
      %v2625 = vpack.c.b16 %v2471, %v2469
      %v2626 = vpack.c.b16 %v2472, %v2470
      %v2627 = vpack.c.b16 %v2475, %v2473
      %v2628 = vpack.c.b16 %v2476, %v2474
      %v2629 = vpack.c.b16 %v2479, %v2477
      %v2630 = vpack.c.b16 %v2480, %v2478
      %v2631 = vpack.c.b16 %v2483, %v2481
      %v2632 = vpack.c.b16 %v2484, %v2482
      %v2633 = vpack.c.b16 %v2487, %v2485
      %v2634 = vpack.c.b16 %v2488, %v2486
      %v2635 = vpack.c.b16 %v2491, %v2489
      %v2636 = vpack.c.b16 %v2492, %v2490
      %v2637 = vpack.c.b16 %v2495, %v2493
      %v2638 = vpack.c.b16 %v2496, %v2494
      %v2639 = vpack.c.b16 %v2499, %v2497
      %v2640 = vpack.c.b16 %v2500, %v2498
      %v2641 = vpack.c.b16 %v2503, %v2501
      %v2642 = vpack.c.b16 %v2504, %v2502
      %v2643 = vpack.c.b16 %v2507, %v2505
      %v2644 = vpack.c.b16 %v2508, %v2506
      %v2645 = vpack.c.b16 %v2511, %v2509
      %v2646 = vpack.c.b16 %v2512, %v2510
      %v2647 = vpack.c.b16 %v2515, %v2513
      %v2648 = vpack.c.b16 %v2516, %v2514
      %v2649 = vpack.c.b16 %v2519, %v2517
      %v2650 = vpack.c.b16 %v2520, %v2518
      %v2651 = vpack.c.b16 %v2523, %v2521
      %v2652 = vpack.c.b16 %v2524, %v2522
      %2781 = vmatprep.subr.bf16.mxu0 %v2540
      %2782 = vmatpush1.bf16.msra.mxu0 %v2539
      %2783 = vmatprep.subr.bf16.mxu0 %v2538
      %2784 = vmatpush1.bf16.msra.mxu0 %v2537
      %2785 = vmatprep.subr.bf16.mxu0 %v2536
      %2786 = vmatpush1.bf16.msra.mxu0 %v2535
      %2787 = vmatprep.subr.bf16.mxu0 %v2534
      %2788 = vmatpush1.bf16.msra.mxu0 %v2533
      %2789 = vmatprep.subr.bf16.mxu0 %v2532
      %2790 = vmatpush1.bf16.msra.mxu0 %v2531
      %2791 = vmatprep.subr.bf16.mxu0 %v2530
      %2792 = vmatpush1.bf16.msra.mxu0 %v2529
      %2793 = vmatprep.subr.bf16.mxu0 %v2528
      %2794 = vmatpush1.bf16.msra.mxu0 %v2527
      %2795 = vmatprep.subr.bf16.mxu0 %v2526
      %2796 = vmatpush1.bf16.msra.mxu0 %v2525
      %2797 = vmatprep.subr.bf16.mxu0 %v2556
      %2798 = vmatpush2.bf16.msra.mxu0 %v2555
      %2799 = vmatprep.subr.bf16.mxu0 %v2554
      %2800 = vmatpush2.bf16.msra.mxu0 %v2553
      %2801 = vmatprep.subr.bf16.mxu0 %v2552
      %2802 = vmatpush2.bf16.msra.mxu0 %v2551
      %2803 = vmatprep.subr.bf16.mxu0 %v2550
      %2804 = vmatpush2.bf16.msra.mxu0 %v2549
      %2805 = vmatprep.subr.bf16.mxu0 %v2548
      %2806 = vmatpush2.bf16.msra.mxu0 %v2547
      %2807 = vmatprep.subr.bf16.mxu0 %v2546
      %2808 = vmatpush2.bf16.msra.mxu0 %v2545
      %2809 = vmatprep.subr.bf16.mxu0 %v2544
      %2810 = vmatpush2.bf16.msra.mxu0 %v2543
      %2811 = vmatprep.subr.bf16.mxu0 %v2542
      %2812 = vmatpush2.bf16.msra.mxu0 %v2541
      %2813 = vmatprep.mubr.bf16.mxu0 %v2064
      %2814 = vmatmul.mubr.bf16.gmra.mxu0 %v2063
      %v2815 = vpop.f32.mrf.mxu0
      %v2816 = vadd.f32 %v2135, %v2815
      %v2817 = vpop.f32.mrf.mxu0
      %v2818 = vadd.f32 %v2137, %v2817
      %v2819 = vpop.f32.mrf.mxu0
      %v2820 = vpop.f32.mrf.mxu0
      %2821 = vdwg.mxu0
      %2822 = vmatprep.subr.bf16.mxu0 %v2572
      %2823 = vmatpush1.bf16.msra.mxu0 %v2571
      %2824 = vmatprep.subr.bf16.mxu0 %v2570
      %2825 = vmatpush1.bf16.msra.mxu0 %v2569
      %2826 = vmatprep.subr.bf16.mxu0 %v2568
      %2827 = vmatpush1.bf16.msra.mxu0 %v2567
      %2828 = vmatprep.subr.bf16.mxu0 %v2566
      %2829 = vmatpush1.bf16.msra.mxu0 %v2565
      %2830 = vmatprep.subr.bf16.mxu0 %v2564
      %2831 = vmatpush1.bf16.msra.mxu0 %v2563
      %2832 = vmatprep.subr.bf16.mxu0 %v2562
      %2833 = vmatpush1.bf16.msra.mxu0 %v2561
      %2834 = vmatprep.subr.bf16.mxu0 %v2560
      %2835 = vmatpush1.bf16.msra.mxu0 %v2559
      %2836 = vmatprep.subr.bf16.mxu0 %v2558
      %2837 = vmatpush1.bf16.msra.mxu0 %v2557
      %2838 = vmatprep.subr.bf16.mxu0 %v2588
      %2839 = vmatpush2.bf16.msra.mxu0 %v2587
      %2840 = vmatprep.subr.bf16.mxu0 %v2586
      %2841 = vmatpush2.bf16.msra.mxu0 %v2585
      %2842 = vmatprep.subr.bf16.mxu0 %v2584
      %2843 = vmatpush2.bf16.msra.mxu0 %v2583
      %2844 = vmatprep.subr.bf16.mxu0 %v2582
      %2845 = vmatpush2.bf16.msra.mxu0 %v2581
      %2846 = vmatprep.subr.bf16.mxu0 %v2580
      %2847 = vmatpush2.bf16.msra.mxu0 %v2579
      %2848 = vmatprep.subr.bf16.mxu0 %v2578
      %2849 = vmatpush2.bf16.msra.mxu0 %v2577
      %2850 = vmatprep.subr.bf16.mxu0 %v2576
      %2851 = vmatpush2.bf16.msra.mxu0 %v2575
      %2852 = vmatprep.subr.bf16.mxu0 %v2574
      %2853 = vmatpush2.bf16.msra.mxu0 %v2573
      %2854 = vmatprep.mubr.bf16.mxu0 %v2066
      %2855 = vmatmul.mubr.bf16.gmra.mxu0 %v2065
      %v2856 = vpop.f32.mrf.mxu0
      %v2857 = vadd.f32 %v2816, %v2856
      %v2858 = vpop.f32.mrf.mxu0
      %v2859 = vadd.f32 %v2818, %v2858
      %v2860 = vpop.f32.mrf.mxu0
      %v2861 = vpop.f32.mrf.mxu0
      %2862 = vdwg.mxu0
      %2863 = vmatprep.subr.bf16.mxu0 %v2604
      %2864 = vmatpush1.bf16.msra.mxu0 %v2603
      %2865 = vmatprep.subr.bf16.mxu0 %v2602
      %2866 = vmatpush1.bf16.msra.mxu0 %v2601
      %2867 = vmatprep.subr.bf16.mxu0 %v2600
      %2868 = vmatpush1.bf16.msra.mxu0 %v2599
      %2869 = vmatprep.subr.bf16.mxu0 %v2598
      %2870 = vmatpush1.bf16.msra.mxu0 %v2597
      %2871 = vmatprep.subr.bf16.mxu0 %v2596
      %2872 = vmatpush1.bf16.msra.mxu0 %v2595
      %2873 = vmatprep.subr.bf16.mxu0 %v2594
      %2874 = vmatpush1.bf16.msra.mxu0 %v2593
      %2875 = vmatprep.subr.bf16.mxu0 %v2592
      %2876 = vmatpush1.bf16.msra.mxu0 %v2591
      %2877 = vmatprep.subr.bf16.mxu0 %v2590
      %2878 = vmatpush1.bf16.msra.mxu0 %v2589
      %2879 = vmatprep.subr.bf16.mxu0 %v2620
      %2880 = vmatpush2.bf16.msra.mxu0 %v2619
      %2881 = vmatprep.subr.bf16.mxu0 %v2618
      %2882 = vmatpush2.bf16.msra.mxu0 %v2617
      %2883 = vmatprep.subr.bf16.mxu0 %v2616
      %2884 = vmatpush2.bf16.msra.mxu0 %v2615
      %2885 = vmatprep.subr.bf16.mxu0 %v2614
      %2886 = vmatpush2.bf16.msra.mxu0 %v2613
      %2887 = vmatprep.subr.bf16.mxu0 %v2612
      %2888 = vmatpush2.bf16.msra.mxu0 %v2611
      %2889 = vmatprep.subr.bf16.mxu0 %v2610
      %2890 = vmatpush2.bf16.msra.mxu0 %v2609
      %2891 = vmatprep.subr.bf16.mxu0 %v2608
      %2892 = vmatpush2.bf16.msra.mxu0 %v2607
      %2893 = vmatprep.subr.bf16.mxu0 %v2606
      %2894 = vmatpush2.bf16.msra.mxu0 %v2605
      %2895 = vmatprep.mubr.bf16.mxu0 %v2068
      %2896 = vmatmul.mubr.bf16.gmra.mxu0 %v2067
      %v2897 = vpop.f32.mrf.mxu0
      %v2898 = vadd.f32 %v2857, %v2897
      %v2899 = vpop.f32.mrf.mxu0
      %v2900 = vadd.f32 %v2859, %v2899
      %v2901 = vpop.f32.mrf.mxu0
      %v2902 = vpop.f32.mrf.mxu0
      %2903 = vdwg.mxu0
      %2904 = vmatprep.subr.bf16.mxu0 %v2636
      %2905 = vmatpush1.bf16.msra.mxu0 %v2635
      %2906 = vmatprep.subr.bf16.mxu0 %v2634
      %2907 = vmatpush1.bf16.msra.mxu0 %v2633
      %2908 = vmatprep.subr.bf16.mxu0 %v2632
      %2909 = vmatpush1.bf16.msra.mxu0 %v2631
      %2910 = vmatprep.subr.bf16.mxu0 %v2630
      %2911 = vmatpush1.bf16.msra.mxu0 %v2629
      %2912 = vmatprep.subr.bf16.mxu0 %v2628
      %2913 = vmatpush1.bf16.msra.mxu0 %v2627
      %2914 = vmatprep.subr.bf16.mxu0 %v2626
      %2915 = vmatpush1.bf16.msra.mxu0 %v2625
      %2916 = vmatprep.subr.bf16.mxu0 %v2624
      %2917 = vmatpush1.bf16.msra.mxu0 %v2623
      %2918 = vmatprep.subr.bf16.mxu0 %v2622
      %2919 = vmatpush1.bf16.msra.mxu0 %v2621
      %2920 = vmatprep.subr.bf16.mxu0 %v2652
      %2921 = vmatpush2.bf16.msra.mxu0 %v2651
      %2922 = vmatprep.subr.bf16.mxu0 %v2650
      %2923 = vmatpush2.bf16.msra.mxu0 %v2649
      %2924 = vmatprep.subr.bf16.mxu0 %v2648
      %2925 = vmatpush2.bf16.msra.mxu0 %v2647
      %2926 = vmatprep.subr.bf16.mxu0 %v2646
      %2927 = vmatpush2.bf16.msra.mxu0 %v2645
      %2928 = vmatprep.subr.bf16.mxu0 %v2644
      %2929 = vmatpush2.bf16.msra.mxu0 %v2643
      %2930 = vmatprep.subr.bf16.mxu0 %v2642
      %2931 = vmatpush2.bf16.msra.mxu0 %v2641
      %2932 = vmatprep.subr.bf16.mxu0 %v2640
      %2933 = vmatpush2.bf16.msra.mxu0 %v2639
      %2934 = vmatprep.subr.bf16.mxu0 %v2638
      %2935 = vmatpush2.bf16.msra.mxu0 %v2637
      %2936 = vmatprep.mubr.bf16.mxu0 %v2070
      %2937 = vmatmul.mubr.bf16.gmra.mxu0 %v2069
      %v2938 = vpop.f32.mrf.mxu0
      %v2939 = vadd.f32 %v2898, %v2938
      %v2940 = vpop.f32.mrf.mxu0
      %v2941 = vadd.f32 %v2900, %v2940
      %v2942 = vpop.f32.mrf.mxu0
      %v2943 = vpop.f32.mrf.mxu0
      %2944 = vdwg.mxu0
      %v2945 = vld [vmem:[%s9] sm:$0x3]
      %v2947 = vlaneseq
      %v2948 = vshrl.u32 %v2947, 7
      %v2949 = vsub.s32 0, %v2948
      %v2950 = vrot.slane %v2945, %v2949
      %v2951 = vlaneseq
      %v2952 = vshrl.u32 %v2951, 7
      %v2953 = vsub.s32 1, %v2952
      %v2954 = vrot.slane %v2945, %v2953
      %v2957 = vadd.f32 %v2939, %v2950
      %v2958 = vadd.f32 %v2941, %v2954
      %v2959 = vld [vmem:[%s10] sm:$0x7]
      %v2960 = vpack.c.bf16 %v1925, %v1922
      %v2961 = vpack.c.bf16 %v1930, %v1930
      %v2963 = vsel %vm739, %v2960, 0
      %v2966 = vsel %vm739, %v2961, 0
      %v2969 = vsel %vm743, %v2959, 0
      %2971 = vmatprep.subr.bf16.mxu0 0
      %2972 = vmatpush1.bf16.msra.mxu0 0
      %2973 = vmatprep.subr.bf16.mxu0 0
      %2974 = vmatpush1.bf16.msra.mxu0 0
      %2975 = vmatprep.subr.bf16.mxu0 0
      %2976 = vmatpush1.bf16.msra.mxu0 0
      %2977 = vmatprep.subr.bf16.mxu0 0
      %2978 = vmatpush1.bf16.msra.mxu0 0
      %2979 = vmatprep.subr.bf16.mxu0 0
      %2980 = vmatpush1.bf16.msra.mxu0 0
      %2981 = vmatprep.subr.bf16.mxu0 0
      %2982 = vmatpush1.bf16.msra.mxu0 0
      %2983 = vmatprep.subr.bf16.mxu0 0
      %2984 = vmatpush1.bf16.msra.mxu0 0
      %2985 = vmatprep.subr.bf16.mxu0 0
      %2986 = vmatpush1.bf16.msra.mxu0 %v2969
      %2987 = vmatprep.subr.bf16.mxu0 0
      %2988 = vmatpush2.bf16.msra.mxu0 0
      %2989 = vmatprep.subr.bf16.mxu0 0
      %2990 = vmatpush2.bf16.msra.mxu0 0
      %2991 = vmatprep.subr.bf16.mxu0 0
      %2992 = vmatpush2.bf16.msra.mxu0 0
      %2993 = vmatprep.subr.bf16.mxu0 0
      %2994 = vmatpush2.bf16.msra.mxu0 0
      %2995 = vmatprep.subr.bf16.mxu0 0
      %2996 = vmatpush2.bf16.msra.mxu0 0
      %2997 = vmatprep.subr.bf16.mxu0 0
      %2998 = vmatpush2.bf16.msra.mxu0 0
      %2999 = vmatprep.subr.bf16.mxu0 0
      %3000 = vmatpush2.bf16.msra.mxu0 0
      %3001 = vmatprep.subr.bf16.mxu0 0
      %3002 = vmatpush2.bf16.msra.mxu0 0
      %3003 = vmatprep.mubr.bf16.mxu0 0
      %3004 = vmatmul.mubr.bf16.gmra.mxu0 %v2963
      %v3005 = vpop.f32.mrf.mxu0
      %v3006 = vadd.f32 0.0, %v3005
      %v3007 = vpop.f32.mrf.mxu0
      %v3008 = vpop.f32.mrf.mxu0
      %v3009 = vadd.f32 0.0, %v3008
      %v3010 = vpop.f32.mrf.mxu0
      %3011 = vmatprep.mubr.bf16.mxu0 0
      %3012 = vmatmul.mubr.bf16.gmra.mxu0 %v2966
      %v3013 = vpop.f32.mrf.mxu0
      %v3014 = vadd.f32 0.0, %v3013
      %v3015 = vpop.f32.mrf.mxu0
      %v3016 = vpop.f32.mrf.mxu0
      %v3017 = vpop.f32.mrf.mxu0
      %3018 = vdwg.mxu0
      %v3019 = vadd.f32 %v496, %v2957
      %v3020 = vadd.f32 %v497, %v2958
      %v3021 = vadd.f32 %v498, %v3006
      %3023 = vrot.lane.b32.xlu0 %v3009, 3
      %v3024 = vpop.permute.xlu0 %3023
      %v3026 = vadd.f32 %v498, %v3024
      %3028 = vrot.lane.b32.xlu0 %v3014, 6
      %v3029 = vpop.permute.xlu0 %3028
      %v3031 = vadd.f32 %v498, %v3029
      %v3032 = vld [vmem:[%s11] sm:$0x3]
      %v3033 = vld [vmem:[%s12] sm:$0x3]
      %v3034 = vadd.f32 %v3019, %v3020
      %3035 = vadd.xlane.f32.xlu0 %v3034
      %v3036 = vpop.xlane.xlu0 %3035
      %v3037 = vrcp.pop 256.0
      %v3038 = vmul.f32 %v3036, %v3037
      %v3039 = vsub.f32 %v3019, %v3038
      %v3040 = vsub.f32 %v3020, %v3038
      %v3041 = vmul.f32 %v3039, %v3039
      %v3042 = vmul.f32 %v3040, %v3040
      %v3043 = vadd.f32 %v3041, %v3042
      %3044 = vadd.xlane.f32.xlu0 %v3043
      %v3045 = vpop.xlane.xlu0 %3044
      %v3046 = vmul.f32 %v3045, %v3037
      %v3047 = vadd.f32 %v3046, 1e-05
      %v3048 = vrsqrt.pop %v3047
      %v3049 = vmul.f32 %v3039, %v3048
      %v3050 = vmul.f32 %v3040, %v3048
      %v3052 = vlaneseq
      %v3053 = vshrl.u32 %v3052, 7
      %v3054 = vsub.s32 0, %v3053
      %v3055 = vrot.slane %v3032, %v3054
      %v3056 = vlaneseq
      %v3057 = vshrl.u32 %v3056, 7
      %v3058 = vsub.s32 1, %v3057
      %v3059 = vrot.slane %v3032, %v3058
      %v3062 = vmul.f32 %v3049, %v3055
      %v3063 = vmul.f32 %v3050, %v3059
      %v3065 = vlaneseq
      %v3066 = vshrl.u32 %v3065, 7
      %v3067 = vsub.s32 0, %v3066
      %v3068 = vrot.slane %v3033, %v3067
      %v3069 = vlaneseq
      %v3070 = vshrl.u32 %v3069, 7
      %v3071 = vsub.s32 1, %v3070
      %v3072 = vrot.slane %v3033, %v3071
      %v3075 = vadd.f32 %v3062, %v3068
      %v3076 = vadd.f32 %v3063, %v3072
      %v3077 = vmul.f32 %v3021, %v3021
      %v3078 = vmul.f32 %v3026, %v3026
      %3080 = vrot.lane.b32.xlu0 %v3078, 125
      %v3081 = vpop.permute.xlu0 %3080
      %v3083 = vadd.f32 %v3077, %v3081
      %v3084 = vmul.f32 %v3031, %v3031
      %3086 = vrot.lane.b32.xlu0 %v3084, 122
      %v3087 = vpop.permute.xlu0 %3086
      %v3089 = vadd.f32 %v3083, %v3087
      %v3090 = vmax.f32 %v3089, 1e-08
      %v3091 = vsel %vm509, %v3090, 0.0
      %3092 = vadd.xlane.f32.xlu0 %v3091
      %v3093 = vpop.xlane.xlu0 %3092
      %v3094 = vrcp.pop 3.0
      %v3095 = vmul.f32 %v3093, %v3094
      %v3096 = vrsqrt.pop %v3095
      %v3097 = vmul.f32 %v3021, %v3096
      %v3098 = vmul.f32 %v3026, %v3096
      %v3099 = vmul.f32 %v3031, %v3096
      %v3100 = vld [vmem:[%s13] sm:$0x3]
      %v3101 = vld [vmem:[%s14] sm:$0x3]
      %v3102 = vadd.f32 %v3075, %v3076
      %3103 = vadd.xlane.f32.xlu0 %v3102
      %v3104 = vpop.xlane.xlu0 %3103
      %v3105 = vmul.f32 %v3104, %v3037
      %v3106 = vsub.f32 %v3075, %v3105
      %v3107 = vsub.f32 %v3076, %v3105
      %v3108 = vmul.f32 %v3106, %v3106
      %v3109 = vmul.f32 %v3107, %v3107
      %v3110 = vadd.f32 %v3108, %v3109
      %3111 = vadd.xlane.f32.xlu0 %v3110
      %v3112 = vpop.xlane.xlu0 %3111
      %v3113 = vmul.f32 %v3112, %v3037
      %v3114 = vadd.f32 %v3113, 1e-05
      %v3115 = vrsqrt.pop %v3114
      %v3116 = vmul.f32 %v3106, %v3115
      %v3117 = vmul.f32 %v3107, %v3115
      %v3119 = vlaneseq
      %v3120 = vshrl.u32 %v3119, 7
      %v3121 = vsub.s32 0, %v3120
      %v3122 = vrot.slane %v3100, %v3121
      %v3123 = vlaneseq
      %v3124 = vshrl.u32 %v3123, 7
      %v3125 = vsub.s32 1, %v3124
      %v3126 = vrot.slane %v3100, %v3125
      %v3129 = vmul.f32 %v3116, %v3122
      %v3130 = vmul.f32 %v3117, %v3126
      %v3132 = vlaneseq
      %v3133 = vshrl.u32 %v3132, 7
      %v3134 = vsub.s32 0, %v3133
      %v3135 = vrot.slane %v3101, %v3134
      %v3136 = vlaneseq
      %v3137 = vshrl.u32 %v3136, 7
      %v3138 = vsub.s32 1, %v3137
      %v3139 = vrot.slane %v3101, %v3138
      %v3142 = vadd.f32 %v3129, %v3135
      %v3143 = vadd.f32 %v3130, %v3139
      %v3144 = vmul.f32 %v3097, %v3097
      %v3145 = vmul.f32 %v3098, %v3098
      %3147 = vrot.lane.b32.xlu0 %v3145, 125
      %v3148 = vpop.permute.xlu0 %3147
      %v3150 = vadd.f32 %v3144, %v3148
      %v3151 = vmul.f32 %v3099, %v3099
      %3153 = vrot.lane.b32.xlu0 %v3151, 122
      %v3154 = vpop.permute.xlu0 %3153
      %v3156 = vadd.f32 %v3150, %v3154
      %v3157 = vmax.f32 %v3156, 1e-08
      %v3158 = vsel %vm509, %v3157, 0.0
      %3159 = vadd.xlane.f32.xlu0 %v3158
      %v3160 = vpop.xlane.xlu0 %3159
      %v3161 = vmul.f32 %v3160, %v3094
      %v3162 = vrsqrt.pop %v3161
      %v3163 = vmul.f32 %v3097, %v3162
      %v3164 = vmul.f32 %v3098, %v3162
      %v3165 = vmul.f32 %v3099, %v3162
      %v3166 = vsel %vm509, %v3163, %v3164
      %v3167 = vsel %vm739, %v3166, %v3165
      %3168 = vst [vmem:[%s494] sm:$0xff] %v3142
      %3169 = vst [vmem:[%s494 + $0x8] sm:$0xff] %v3143
      %vm3170 = vcmask 72704
      %3171 = vst.msk [vmem:[%s494 + $0x10] sm:$0xff] %vm3170, %v3167
      %p3172 = scmp.lt.s32.totalorder %s26, 1
      %s3173 = scalar_select %p3172, %s26, 1
      %s3174 = smul.addr %s3173, 3
      %s3175 = smul.addr %s3174, 8
      %s3176 = scalar_lea.vmem %s15, %s3175
      // Predicated region
      $region81: #{pocket_encoder_forward.12} parent=79 // pred_check
        %p3177 = pneg %p364
      $region82: #{pocket_encoder_forward.12} parent=79 // pred_check_branch
        %3179 = sbr.rel (%p3177) target = $region84
      $region83: #{pocket_encoder_forward.12} parent=79 // pred_region
        _
      $region84: #{pocket_encoder_forward.12} parent=79 // pred_fallthru
        _
    $region80: #{pocket_encoder_forward.12} parent=5 // pred_fallthru
      _
    %p3180 = scmp.le.s32.totalorder 2, %s21
    // Predicated region
    $region85: #{pocket_encoder_forward.12} parent=5 // pred_check
      %p3181 = pneg %p3180
    $region86: #{pocket_encoder_forward.12} parent=5 // pred_check_branch
      %3183 = sbr.rel (%p3181) target = $region88
    $region87: #{pocket_encoder_forward.12} parent=5 // pred_region
      %s3184 = ssub.s32 %s21, 2
      // Predicated region
      $region89: #{pocket_encoder_forward.12} parent=87 // pred_check
        %p3185 = pneg %p370
      $region90: #{pocket_encoder_forward.12} parent=87 // pred_check_branch
        %3187 = sbr.rel (%p3185) target = $region92
      $region91: #{pocket_encoder_forward.12} parent=87 // pred_region
        %p3188 = scmp.lt.s32.totalorder %s27, 1
        %s3189 = scalar_select %p3188, %s27, 1
        %s3190 = smul.addr %s3189, 3
        %s3191 = smul.addr %s3190, 8
        %s3192 = scalar_lea.vmem %s15, %s3191
      $region92: #{pocket_encoder_forward.12} parent=87 // pred_fallthru
        _
    $region88: #{pocket_encoder_forward.12} parent=5 // pred_fallthru
      _
  $region6: #{pocket_encoder_forward.12} parent=0 // loop_footer
    %s25 = sadd.s32 1, %s21
  $region7: #{pocket_encoder_forward.12} parent=0 // loop_footer_branch
    %20 = sbr.rel target = $region3
  $region8: #{pocket_encoder_forward.12} parent=0 // loop_exit
    _

</llo_original>
